<compile_context>
chip_gen: v6e
topology: v6e:2x2x1
jax: 0.10.0
libtpu: 0.0.40
codegen_flags: <defaults>
</compile_context>

<pallas_src>
import functools

import jax
import jax.numpy as jnp
from jax.experimental import pallas as pl
from jax.experimental.pallas import tpu as pltpu

_BN_EPS = 1e-5
_VMEM = pl.BlockSpec(memory_space=pltpu.MemorySpace.VMEM)
_TILE_P = 512                        # rows per grid step (multiple of 8)
_VMEM_LIMIT = 32 * 1024 * 1024       # tiles use <2 MiB; well under v7x's 64 MiB


# ---------------------------------------------------------------------------
# Pallas kernels
# ---------------------------------------------------------------------------
def _matmul_affine_kernel(p_ref, w_ref, b_ref, o_ref, *, relu):
    """Fused conv-as-matmul (+ folded shortcut) + bias (+ ReLU).

    p_ref: (tile_p, K) bf16   im2col patches, K = 9*Cin [+ Cin_shortcut]
    w_ref: (K, Cout)  bf16    BN-scale-folded weights [+ shortcut selection rows]
    b_ref: (1, Cout)  f32     folded BN bias
    o_ref: (tile_p, Cout) f32
    """
    y = jnp.dot(p_ref[...], w_ref[...], preferred_element_type=jnp.float32)
    y = y + b_ref[...]
    if relu:
        y = jnp.maximum(y, 0.0)
    o_ref[...] = y.astype(o_ref.dtype)


def _head_kernel(x_ref, pool_ref, w_ref, b_ref, o_ref):
    """Global average pool (as a matmul) + final linear layer.

    x_ref: (N*H*W, C), pool_ref: (N, N*H*W), w_ref: (C, classes),
    b_ref: (1, classes), o_ref: (N, classes)
    """
    pooled = jnp.dot(pool_ref[...], x_ref[...],
                     preferred_element_type=jnp.float32)        # (N, C)
    o_ref[...] = (jnp.dot(pooled, w_ref[...],
                          preferred_element_type=jnp.float32) + b_ref[...])


# ---------------------------------------------------------------------------
# Wrappers (data-movement glue stays in plain JAX/XLA)
# ---------------------------------------------------------------------------
def _im2col(x, stride, shortcut=None):
    """Fold the 9 shifted taps of a 3x3/pad-1 conv into one (P, 9*Cin) matrix.

    Optionally appends the (already strided) shortcut as extra columns so the
    residual add becomes part of the single MXU contraction.
    """
    n, h, w, c = x.shape
    ho, wo = h // stride, w // stride
    xp = jnp.pad(x, ((0, 0), (1, 1), (1, 1), (0, 0)))
    cols = []
    for kh in range(3):
        for kw in range(3):
            cols.append(
                xp[:, kh:kh + stride * ho:stride, kw:kw + stride * wo:stride, :]
                .reshape(n * ho * wo, c))
    if shortcut is not None:
        cols.append(shortcut.reshape(n * ho * wo, shortcut.shape[-1]))
    return jnp.concatenate(cols, axis=-1), (n, ho, wo)


def conv3x3_bn(x, w_folded, bias, *, stride=1, relu=True, shortcut=None):
    patches, (n, ho, wo) = _im2col(x, stride, shortcut)
    patches = patches.astype(jnp.bfloat16)            # bf16 MXU inputs, half DMA
    p_rows, k = patches.shape
    cout = w_folded.shape[-1]
    tile_p = min(p_rows, _TILE_P)
    out = pl.pallas_call(
        functools.partial(_matmul_affine_kernel, relu=relu),
        out_shape=jax.ShapeDtypeStruct((p_rows, cout), jnp.float32),
        grid=(pl.cdiv(p_rows, tile_p),),
        in_specs=[pl.BlockSpec((tile_p, k), lambda i: (i, 0)),
                  pl.BlockSpec((k, cout), lambda i: (0, 0)),
                  pl.BlockSpec((1, cout), lambda i: (0, 0))],
        out_specs=pl.BlockSpec((tile_p, cout), lambda i: (i, 0)),
        compiler_params=pltpu.CompilerParams(
            dimension_semantics=("parallel",),
            vmem_limit_bytes=_VMEM_LIMIT),
    )(patches, w_folded, bias)
    return out.reshape(n, ho, wo, cout)


def basic_block(x, p, stride):
    out = conv3x3_bn(x, p["w1"], p["b1"], stride=stride, relu=True)
    # option-A shortcut: strided identity; channel placement is handled by the
    # identity-selection rows already appended to p["w2"] (no jnp.pad copy).
    sc = x[:, ::stride, ::stride, :] if stride != 1 else x
    return conv3x3_bn(out, p["w2"], p["b2"], stride=1, relu=True, shortcut=sc)


# ---------------------------------------------------------------------------
# Deterministic parameter initialization (folded at init time)
# ---------------------------------------------------------------------------
def _kaiming_conv(key, cin, cout):
    fan_in = 9 * cin
    std = (2.0 / fan_in) ** 0.5
    return std * jax.random.normal(key, (9, cin, cout), jnp.float32)


def _bn_fold(c):
    # inference-mode BN (gamma=1, beta=0, mean=0, var=1) -> per-channel affine
    scale = jnp.full((c,), 1.0 / float(jnp.sqrt(1.0 + _BN_EPS)), jnp.float32)
    bias = jnp.zeros((1, c), jnp.float32)
    return scale, bias


def _fold_conv(w9, scale, cin_pad=None):
    """(9, Cin, Cout) * BN scale -> (9*Cin[_pad], Cout), stored bf16."""
    if cin_pad is not None and cin_pad != w9.shape[1]:
        w9 = jnp.pad(w9, ((0, 0), (0, cin_pad - w9.shape[1]), (0, 0)))
    w = (w9 * scale[None, None, :]).reshape(-1, w9.shape[-1])
    return w.astype(jnp.bfloat16)


def _shortcut_selection(cin, cout):
    """Identity-selection rows implementing the option-A zero-pad shortcut."""
    lo = (cout - cin) // 2
    sel = jnp.zeros((cin, cout), jnp.float32)
    sel = sel.at[jnp.arange(cin), lo + jnp.arange(cin)].set(1.0)
    return sel.astype(jnp.bfloat16)


def init_params(key, num_blocks=(2, 2, 2), num_classes=10):
    keys = iter(jax.random.split(key, 64))
    params = {}
    s0, b0 = _bn_fold(16)
    params["conv1_w"] = _fold_conv(_kaiming_conv(next(keys), 3, 16), s0,
                                   cin_pad=8)          # stem Cin padded 3 -> 8
    params["bn1_b"] = b0
    in_planes = 16
    for li, (planes, nblk) in enumerate(zip((16, 32, 64), num_blocks), start=1):
        blocks = []
        for _ in range(nblk):
            s1, b1 = _bn_fold(planes)
            s2, b2 = _bn_fold(planes)
            w1 = _fold_conv(_kaiming_conv(next(keys), in_planes, planes), s1)
            w2 = _fold_conv(_kaiming_conv(next(keys), planes, planes), s2)
            # append shortcut selection rows -> residual add fused into the dot
            w2 = jnp.concatenate([w2, _shortcut_selection(in_planes, planes)],
                                 axis=0)
            blocks.append({"w1": w1, "b1": b1, "w2": w2, "b2": b2})
            in_planes = planes
        params[f"layer{li}"] = blocks
    params["fc_w"] = ((2.0 / 64) ** 0.5) * jax.random.normal(
        next(keys), (64, num_classes), jnp.float32)
    params["fc_b"] = jax.random.uniform(
        next(keys), (1, num_classes), jnp.float32,
        minval=-1.0 / 8.0, maxval=1.0 / 8.0)
    return params


# ---------------------------------------------------------------------------
# Full forward pass
# ---------------------------------------------------------------------------
def resnet14_forward(params, x_nchw):
    x = jnp.transpose(x_nchw, (0, 2, 3, 1)).astype(jnp.float32)   # NCHW -> NHWC
    # pad stem channels 3 -> 8 (sublane multiple); matching weight rows are 0
    x = jnp.pad(x, ((0, 0), (0, 0), (0, 0), (0, 8 - x.shape[-1])))
    x = conv3x3_bn(x, params["conv1_w"], params["bn1_b"], stride=1, relu=True)
    layer_stride = {"layer1": 1, "layer2": 2, "layer3": 2}
    for name in ("layer1", "layer2", "layer3"):
        for bi, bp in enumerate(params[name]):
            x = basic_block(x, bp, layer_stride[name] if bi == 0 else 1)

    n, h, w, c = x.shape
    x2 = x.reshape(n * h * w, c)
    # pooling matrix: pooled[n] = mean over that sample's H*W rows (MXU dot,
    # avoids the cross-sublane XLU reduction)
    pool_mat = jnp.kron(jnp.eye(n, dtype=jnp.float32),
                        jnp.full((1, h * w), 1.0 / (h * w), jnp.float32))
    logits = pl.pallas_call(
        _head_kernel,
        out_shape=jax.ShapeDtypeStruct((n, params["fc_w"].shape[-1]),
                                       jnp.float32),
        in_specs=[_VMEM] * 4,
        out_specs=_VMEM,
    )(x2, pool_mat, params["fc_w"], params["fc_b"])
    return logits


if __name__ == "__main__":
    key = jax.random.PRNGKey(0)
    pkey, xkey = jax.random.split(key)
    params = init_params(pkey, num_blocks=(2, 2, 2), num_classes=10)
    # PyTorch-style NCHW input: batch=2, channels=3, spatial=16x16
    x = jax.random.normal(xkey, (2, 3, 16, 16), jnp.float32)
    fwd = jax.jit(resnet14_forward)
    out = fwd(params, x)
    jax.block_until_ready(out)
    assert out.shape == (2, 10) and out.dtype == jnp.float32
    print("KERNEL_OK")
</pallas_src>

<mosaic_0001>
module attributes {stable_mosaic.version = 11 : i64} {
  func.func @_matmul_affine_kernel(%arg0: i32, %arg1: memref<512x72xbf16, #tpu.memory_space<vmem>>, %arg2: memref<72x16xbf16, #tpu.memory_space<vmem>>, %arg3: memref<1x16xf32, #tpu.memory_space<vmem>>, %arg4: memref<512x16xf32, #tpu.memory_space<vmem>>) attributes {dimension_semantics = [#tpu.dimension_semantics<parallel>], iteration_bounds = array<i64: 1>, scalar_prefetch = 0 : i64, scratch_operands = 0 : i64, tpu.core_type = #tpu.core_type<tc>, window_params = [{transform_indices = @transform_0, window_bounds = array<i64: 512, 72>}, {pipeline_mode = #tpu.pipeline_mode<synchronous>, transform_indices = @transform_1, window_bounds = array<i64: 72, 16>}, {pipeline_mode = #tpu.pipeline_mode<synchronous>, transform_indices = @transform_2, window_bounds = array<i64: 1, 16>}, {transform_indices = @transform_3, window_bounds = array<i64: 512, 16>}]} {
    %c0 = arith.constant 0 : index
    %c0_0 = arith.constant 0 : index
    %0 = vector.load %arg1[%c0, %c0_0] : memref<512x72xbf16, #tpu.memory_space<vmem>>, vector<512x72xbf16>
    %c0_1 = arith.constant 0 : index
    %c0_2 = arith.constant 0 : index
    %1 = vector.load %arg2[%c0_1, %c0_2] : memref<72x16xbf16, #tpu.memory_space<vmem>>, vector<72x16xbf16>
    %cst = arith.constant dense<0.000000e+00> : vector<512x16xf32>
    %2 = tpu.matmul %0, %1, %cst {dimension_numbers = #tpu.dot_dimension_numbers<[1], [0], [0], [1], [0, 0, 1, 1], [], []>} : vector<512x72xbf16>, vector<72x16xbf16>, vector<512x16xf32> -> vector<512x16xf32>
    %c0_3 = arith.constant 0 : index
    %c0_4 = arith.constant 0 : index
    %3 = vector.load %arg3[%c0_3, %c0_4] : memref<1x16xf32, #tpu.memory_space<vmem>>, vector<1x16xf32>
    %4 = vector.broadcast %3 : vector<1x16xf32> to vector<512x16xf32>
    %5 = arith.addf %2, %4 : vector<512x16xf32>
    %cst_5 = arith.constant 0.000000e+00 : f32
    %6 = vector.broadcast %cst_5 : f32 to vector<512x16xf32>
    %7 = arith.maximumf %5, %6 : vector<512x16xf32>
    %c0_6 = arith.constant 0 : index
    %c0_7 = arith.constant 0 : index
    %8 = vector.load %arg4[%c0_6, %c0_7] : memref<512x16xf32, #tpu.memory_space<vmem>>, vector<512x16xf32>
    tpu.vector_store %arg4[%c0_6, %c0_7], %7 {strides = array<i32>} : memref<512x16xf32, #tpu.memory_space<vmem>>, vector<512x16xf32>,
    return
  }
  func.func @transform_0(%arg0: i32) -> (i32, i32) {
    %c0_i32 = arith.constant 0 : i32
    %c0_i32_0 = arith.constant 0 : i32
    return %arg0, %c0_i32 : i32, i32
  }
  func.func @transform_1(%arg0: i32) -> (i32, i32) {
    %c0_i32 = arith.constant 0 : i32
    %c0_i32_0 = arith.constant 0 : i32
    %c0_i32_1 = arith.constant 0 : i32
    return %c0_i32, %c0_i32_0 : i32, i32
  }
  func.func @transform_2(%arg0: i32) -> (i32, i32) {
    %c0_i32 = arith.constant 0 : i32
    %c0_i32_0 = arith.constant 0 : i32
    %c0_i32_1 = arith.constant 0 : i32
    return %c0_i32, %c0_i32_0 : i32, i32
  }
  func.func @transform_3(%arg0: i32) -> (i32, i32) {
    %c0_i32 = arith.constant 0 : i32
    %c0_i32_0 = arith.constant 0 : i32
    return %arg0, %c0_i32 : i32, i32
  }
}

module attributes {stable_mosaic.version = 11 : i64} {
  func.func @_matmul_affine_kernel(%arg0: i32, %arg1: memref<512x144xbf16, #tpu.memory_space<vmem>>, %arg2: memref<144x16xbf16, #tpu.memory_space<vmem>>, %arg3: memref<1x16xf32, #tpu.memory_space<vmem>>, %arg4: memref<512x16xf32, #tpu.memory_space<vmem>>) attributes {dimension_semantics = [#tpu.dimension_semantics<parallel>], iteration_bounds = array<i64: 1>, scalar_prefetch = 0 : i64, scratch_operands = 0 : i64, tpu.core_type = #tpu.core_type<tc>, window_params = [{transform_indices = @transform_0, window_bounds = array<i64: 512, 144>}, {pipeline_mode = #tpu.pipeline_mode<synchronous>, transform_indices = @transform_1, window_bounds = array<i64: 144, 16>}, {pipeline_mode = #tpu.pipeline_mode<synchronous>, transform_indices = @transform_2, window_bounds = array<i64: 1, 16>}, {transform_indices = @transform_3, window_bounds = array<i64: 512, 16>}]} {
    %c0 = arith.constant 0 : index
    %c0_0 = arith.constant 0 : index
    %0 = vector.load %arg1[%c0, %c0_0] : memref<512x144xbf16, #tpu.memory_space<vmem>>, vector<512x144xbf16>
    %c0_1 = arith.constant 0 : index
    %c0_2 = arith.constant 0 : index
    %1 = vector.load %arg2[%c0_1, %c0_2] : memref<144x16xbf16, #tpu.memory_space<vmem>>, vector<144x16xbf16>
    %cst = arith.constant dense<0.000000e+00> : vector<512x16xf32>
    %2 = tpu.matmul %0, %1, %cst {dimension_numbers = #tpu.dot_dimension_numbers<[1], [0], [0], [1], [0, 0, 1, 1], [], []>} : vector<512x144xbf16>, vector<144x16xbf16>, vector<512x16xf32> -> vector<512x16xf32>
    %c0_3 = arith.constant 0 : index
    %c0_4 = arith.constant 0 : index
    %3 = vector.load %arg3[%c0_3, %c0_4] : memref<1x16xf32, #tpu.memory_space<vmem>>, vector<1x16xf32>
    %4 = vector.broadcast %3 : vector<1x16xf32> to vector<512x16xf32>
    %5 = arith.addf %2, %4 : vector<512x16xf32>
    %cst_5 = arith.constant 0.000000e+00 : f32
    %6 = vector.broadcast %cst_5 : f32 to vector<512x16xf32>
    %7 = arith.maximumf %5, %6 : vector<512x16xf32>
    %c0_6 = arith.constant 0 : index
    %c0_7 = arith.constant 0 : index
    %8 = vector.load %arg4[%c0_6, %c0_7] : memref<512x16xf32, #tpu.memory_space<vmem>>, vector<512x16xf32>
    tpu.vector_store %arg4[%c0_6, %c0_7], %7 {strides = array<i32>} : memref<512x16xf32, #tpu.memory_space<vmem>>, vector<512x16xf32>,
    return
  }
  func.func @transform_0(%arg0: i32) -> (i32, i32) {
    %c0_i32 = arith.constant 0 : i32
    %c0_i32_0 = arith.constant 0 : i32
    return %arg0, %c0_i32 : i32, i32
  }
  func.func @transform_1(%arg0: i32) -> (i32, i32) {
    %c0_i32 = arith.constant 0 : i32
    %c0_i32_0 = arith.constant 0 : i32
    %c0_i32_1 = arith.constant 0 : i32
    return %c0_i32, %c0_i32_0 : i32, i32
  }
  func.func @transform_2(%arg0: i32) -> (i32, i32) {
    %c0_i32 = arith.constant 0 : i32
    %c0_i32_0 = arith.constant 0 : i32
    %c0_i32_1 = arith.constant 0 : i32
    return %c0_i32, %c0_i32_0 : i32, i32
  }
  func.func @transform_3(%arg0: i32) -> (i32, i32) {
    %c0_i32 = arith.constant 0 : i32
    %c0_i32_0 = arith.constant 0 : i32
    return %arg0, %c0_i32 : i32, i32
  }
}

module attributes {stable_mosaic.version = 11 : i64} {
  func.func @_matmul_affine_kernel(%arg0: i32, %arg1: memref<512x160xbf16, #tpu.memory_space<vmem>>, %arg2: memref<160x16xbf16, #tpu.memory_space<vmem>>, %arg3: memref<1x16xf32, #tpu.memory_space<vmem>>, %arg4: memref<512x16xf32, #tpu.memory_space<vmem>>) attributes {dimension_semantics = [#tpu.dimension_semantics<parallel>], iteration_bounds = array<i64: 1>, scalar_prefetch = 0 : i64, scratch_operands = 0 : i64, tpu.core_type = #tpu.core_type<tc>, window_params = [{transform_indices = @transform_0, window_bounds = array<i64: 512, 160>}, {pipeline_mode = #tpu.pipeline_mode<synchronous>, transform_indices = @transform_1, window_bounds = array<i64: 160, 16>}, {pipeline_mode = #tpu.pipeline_mode<synchronous>, transform_indices = @transform_2, window_bounds = array<i64: 1, 16>}, {transform_indices = @transform_3, window_bounds = array<i64: 512, 16>}]} {
    %c0 = arith.constant 0 : index
    %c0_0 = arith.constant 0 : index
    %0 = vector.load %arg1[%c0, %c0_0] : memref<512x160xbf16, #tpu.memory_space<vmem>>, vector<512x160xbf16>
    %c0_1 = arith.constant 0 : index
    %c0_2 = arith.constant 0 : index
    %1 = vector.load %arg2[%c0_1, %c0_2] : memref<160x16xbf16, #tpu.memory_space<vmem>>, vector<160x16xbf16>
    %cst = arith.constant dense<0.000000e+00> : vector<512x16xf32>
    %2 = tpu.matmul %0, %1, %cst {dimension_numbers = #tpu.dot_dimension_numbers<[1], [0], [0], [1], [0, 0, 1, 1], [], []>} : vector<512x160xbf16>, vector<160x16xbf16>, vector<512x16xf32> -> vector<512x16xf32>
    %c0_3 = arith.constant 0 : index
    %c0_4 = arith.constant 0 : index
    %3 = vector.load %arg3[%c0_3, %c0_4] : memref<1x16xf32, #tpu.memory_space<vmem>>, vector<1x16xf32>
    %4 = vector.broadcast %3 : vector<1x16xf32> to vector<512x16xf32>
    %5 = arith.addf %2, %4 : vector<512x16xf32>
    %cst_5 = arith.constant 0.000000e+00 : f32
    %6 = vector.broadcast %cst_5 : f32 to vector<512x16xf32>
    %7 = arith.maximumf %5, %6 : vector<512x16xf32>
    %c0_6 = arith.constant 0 : index
    %c0_7 = arith.constant 0 : index
    %8 = vector.load %arg4[%c0_6, %c0_7] : memref<512x16xf32, #tpu.memory_space<vmem>>, vector<512x16xf32>
    tpu.vector_store %arg4[%c0_6, %c0_7], %7 {strides = array<i32>} : memref<512x16xf32, #tpu.memory_space<vmem>>, vector<512x16xf32>,
    return
  }
  func.func @transform_0(%arg0: i32) -> (i32, i32) {
    %c0_i32 = arith.constant 0 : i32
    %c0_i32_0 = arith.constant 0 : i32
    return %arg0, %c0_i32 : i32, i32
  }
  func.func @transform_1(%arg0: i32) -> (i32, i32) {
    %c0_i32 = arith.constant 0 : i32
    %c0_i32_0 = arith.constant 0 : i32
    %c0_i32_1 = arith.constant 0 : i32
    return %c0_i32, %c0_i32_0 : i32, i32
  }
  func.func @transform_2(%arg0: i32) -> (i32, i32) {
    %c0_i32 = arith.constant 0 : i32
    %c0_i32_0 = arith.constant 0 : i32
    %c0_i32_1 = arith.constant 0 : i32
    return %c0_i32, %c0_i32_0 : i32, i32
  }
  func.func @transform_3(%arg0: i32) -> (i32, i32) {
    %c0_i32 = arith.constant 0 : i32
    %c0_i32_0 = arith.constant 0 : i32
    return %arg0, %c0_i32 : i32, i32
  }
}

module attributes {stable_mosaic.version = 11 : i64} {
  func.func @_matmul_affine_kernel(%arg0: i32, %arg1: memref<128x144xbf16, #tpu.memory_space<vmem>>, %arg2: memref<144x32xbf16, #tpu.memory_space<vmem>>, %arg3: memref<1x32xf32, #tpu.memory_space<vmem>>, %arg4: memref<128x32xf32, #tpu.memory_space<vmem>>) attributes {dimension_semantics = [#tpu.dimension_semantics<parallel>], iteration_bounds = array<i64: 1>, scalar_prefetch = 0 : i64, scratch_operands = 0 : i64, tpu.core_type = #tpu.core_type<tc>, window_params = [{transform_indices = @transform_0, window_bounds = array<i64: 128, 144>}, {pipeline_mode = #tpu.pipeline_mode<synchronous>, transform_indices = @transform_1, window_bounds = array<i64: 144, 32>}, {pipeline_mode = #tpu.pipeline_mode<synchronous>, transform_indices = @transform_2, window_bounds = array<i64: 1, 32>}, {transform_indices = @transform_3, window_bounds = array<i64: 128, 32>}]} {
    %c0 = arith.constant 0 : index
    %c0_0 = arith.constant 0 : index
    %0 = vector.load %arg1[%c0, %c0_0] : memref<128x144xbf16, #tpu.memory_space<vmem>>, vector<128x144xbf16>
    %c0_1 = arith.constant 0 : index
    %c0_2 = arith.constant 0 : index
    %1 = vector.load %arg2[%c0_1, %c0_2] : memref<144x32xbf16, #tpu.memory_space<vmem>>, vector<144x32xbf16>
    %cst = arith.constant dense<0.000000e+00> : vector<128x32xf32>
    %2 = tpu.matmul %0, %1, %cst {dimension_numbers = #tpu.dot_dimension_numbers<[1], [0], [0], [1], [0, 0, 1, 1], [], []>} : vector<128x144xbf16>, vector<144x32xbf16>, vector<128x32xf32> -> vector<128x32xf32>
    %c0_3 = arith.constant 0 : index
    %c0_4 = arith.constant 0 : index
    %3 = vector.load %arg3[%c0_3, %c0_4] : memref<1x32xf32, #tpu.memory_space<vmem>>, vector<1x32xf32>
    %4 = vector.broadcast %3 : vector<1x32xf32> to vector<128x32xf32>
    %5 = arith.addf %2, %4 : vector<128x32xf32>
    %cst_5 = arith.constant 0.000000e+00 : f32
    %6 = vector.broadcast %cst_5 : f32 to vector<128x32xf32>
    %7 = arith.maximumf %5, %6 : vector<128x32xf32>
    %c0_6 = arith.constant 0 : index
    %c0_7 = arith.constant 0 : index
    %8 = vector.load %arg4[%c0_6, %c0_7] : memref<128x32xf32, #tpu.memory_space<vmem>>, vector<128x32xf32>
    tpu.vector_store %arg4[%c0_6, %c0_7], %7 {strides = array<i32>} : memref<128x32xf32, #tpu.memory_space<vmem>>, vector<128x32xf32>,
    return
  }
  func.func @transform_0(%arg0: i32) -> (i32, i32) {
    %c0_i32 = arith.constant 0 : i32
    %c0_i32_0 = arith.constant 0 : i32
    return %arg0, %c0_i32 : i32, i32
  }
  func.func @transform_1(%arg0: i32) -> (i32, i32) {
    %c0_i32 = arith.constant 0 : i32
    %c0_i32_0 = arith.constant 0 : i32
    %c0_i32_1 = arith.constant 0 : i32
    return %c0_i32, %c0_i32_0 : i32, i32
  }
  func.func @transform_2(%arg0: i32) -> (i32, i32) {
    %c0_i32 = arith.constant 0 : i32
    %c0_i32_0 = arith.constant 0 : i32
    %c0_i32_1 = arith.constant 0 : i32
    return %c0_i32, %c0_i32_0 : i32, i32
  }
  func.func @transform_3(%arg0: i32) -> (i32, i32) {
    %c0_i32 = arith.constant 0 : i32
    %c0_i32_0 = arith.constant 0 : i32
    return %arg0, %c0_i32 : i32, i32
  }
}

module attributes {stable_mosaic.version = 11 : i64} {
  func.func @_matmul_affine_kernel(%arg0: i32, %arg1: memref<128x304xbf16, #tpu.memory_space<vmem>>, %arg2: memref<304x32xbf16, #tpu.memory_space<vmem>>, %arg3: memref<1x32xf32, #tpu.memory_space<vmem>>, %arg4: memref<128x32xf32, #tpu.memory_space<vmem>>) attributes {dimension_semantics = [#tpu.dimension_semantics<parallel>], iteration_bounds = array<i64: 1>, scalar_prefetch = 0 : i64, scratch_operands = 0 : i64, tpu.core_type = #tpu.core_type<tc>, window_params = [{transform_indices = @transform_0, window_bounds = array<i64: 128, 304>}, {pipeline_mode = #tpu.pipeline_mode<synchronous>, transform_indices = @transform_1, window_bounds = array<i64: 304, 32>}, {pipeline_mode = #tpu.pipeline_mode<synchronous>, transform_indices = @transform_2, window_bounds = array<i64: 1, 32>}, {transform_indices = @transform_3, window_bounds = array<i64: 128, 32>}]} {
    %c0 = arith.constant 0 : index
    %c0_0 = arith.constant 0 : index
    %0 = vector.load %arg1[%c0, %c0_0] : memref<128x304xbf16, #tpu.memory_space<vmem>>, vector<128x304xbf16>
    %c0_1 = arith.constant 0 : index
    %c0_2 = arith.constant 0 : index
    %1 = vector.load %arg2[%c0_1, %c0_2] : memref<304x32xbf16, #tpu.memory_space<vmem>>, vector<304x32xbf16>
    %cst = arith.constant dense<0.000000e+00> : vector<128x32xf32>
    %2 = tpu.matmul %0, %1, %cst {dimension_numbers = #tpu.dot_dimension_numbers<[1], [0], [0], [1], [0, 0, 1, 1], [], []>} : vector<128x304xbf16>, vector<304x32xbf16>, vector<128x32xf32> -> vector<128x32xf32>
    %c0_3 = arith.constant 0 : index
    %c0_4 = arith.constant 0 : index
    %3 = vector.load %arg3[%c0_3, %c0_4] : memref<1x32xf32, #tpu.memory_space<vmem>>, vector<1x32xf32>
    %4 = vector.broadcast %3 : vector<1x32xf32> to vector<128x32xf32>
    %5 = arith.addf %2, %4 : vector<128x32xf32>
    %cst_5 = arith.constant 0.000000e+00 : f32
    %6 = vector.broadcast %cst_5 : f32 to vector<128x32xf32>
    %7 = arith.maximumf %5, %6 : vector<128x32xf32>
    %c0_6 = arith.constant 0 : index
    %c0_7 = arith.constant 0 : index
    %8 = vector.load %arg4[%c0_6, %c0_7] : memref<128x32xf32, #tpu.memory_space<vmem>>, vector<128x32xf32>
    tpu.vector_store %arg4[%c0_6, %c0_7], %7 {strides = array<i32>} : memref<128x32xf32, #tpu.memory_space<vmem>>, vector<128x32xf32>,
    return
  }
  func.func @transform_0(%arg0: i32) -> (i32, i32) {
    %c0_i32 = arith.constant 0 : i32
    %c0_i32_0 = arith.constant 0 : i32
    return %arg0, %c0_i32 : i32, i32
  }
  func.func @transform_1(%arg0: i32) -> (i32, i32) {
    %c0_i32 = arith.constant 0 : i32
    %c0_i32_0 = arith.constant 0 : i32
    %c0_i32_1 = arith.constant 0 : i32
    return %c0_i32, %c0_i32_0 : i32, i32
  }
  func.func @transform_2(%arg0: i32) -> (i32, i32) {
    %c0_i32 = arith.constant 0 : i32
    %c0_i32_0 = arith.constant 0 : i32
    %c0_i32_1 = arith.constant 0 : i32
    return %c0_i32, %c0_i32_0 : i32, i32
  }
  func.func @transform_3(%arg0: i32) -> (i32, i32) {
    %c0_i32 = arith.constant 0 : i32
    %c0_i32_0 = arith.constant 0 : i32
    return %arg0, %c0_i32 : i32, i32
  }
}

module attributes {stable_mosaic.version = 11 : i64} {
  func.func @_matmul_affine_kernel(%arg0: i32, %arg1: memref<128x288xbf16, #tpu.memory_space<vmem>>, %arg2: memref<288x32xbf16, #tpu.memory_space<vmem>>, %arg3: memref<1x32xf32, #tpu.memory_space<vmem>>, %arg4: memref<128x32xf32, #tpu.memory_space<vmem>>) attributes {dimension_semantics = [#tpu.dimension_semantics<parallel>], iteration_bounds = array<i64: 1>, scalar_prefetch = 0 : i64, scratch_operands = 0 : i64, tpu.core_type = #tpu.core_type<tc>, window_params = [{transform_indices = @transform_0, window_bounds = array<i64: 128, 288>}, {pipeline_mode = #tpu.pipeline_mode<synchronous>, transform_indices = @transform_1, window_bounds = array<i64: 288, 32>}, {pipeline_mode = #tpu.pipeline_mode<synchronous>, transform_indices = @transform_2, window_bounds = array<i64: 1, 32>}, {transform_indices = @transform_3, window_bounds = array<i64: 128, 32>}]} {
    %c0 = arith.constant 0 : index
    %c0_0 = arith.constant 0 : index
    %0 = vector.load %arg1[%c0, %c0_0] : memref<128x288xbf16, #tpu.memory_space<vmem>>, vector<128x288xbf16>
    %c0_1 = arith.constant 0 : index
    %c0_2 = arith.constant 0 : index
    %1 = vector.load %arg2[%c0_1, %c0_2] : memref<288x32xbf16, #tpu.memory_space<vmem>>, vector<288x32xbf16>
    %cst = arith.constant dense<0.000000e+00> : vector<128x32xf32>
    %2 = tpu.matmul %0, %1, %cst {dimension_numbers = #tpu.dot_dimension_numbers<[1], [0], [0], [1], [0, 0, 1, 1], [], []>} : vector<128x288xbf16>, vector<288x32xbf16>, vector<128x32xf32> -> vector<128x32xf32>
    %c0_3 = arith.constant 0 : index
    %c0_4 = arith.constant 0 : index
    %3 = vector.load %arg3[%c0_3, %c0_4] : memref<1x32xf32, #tpu.memory_space<vmem>>, vector<1x32xf32>
    %4 = vector.broadcast %3 : vector<1x32xf32> to vector<128x32xf32>
    %5 = arith.addf %2, %4 : vector<128x32xf32>
    %cst_5 = arith.constant 0.000000e+00 : f32
    %6 = vector.broadcast %cst_5 : f32 to vector<128x32xf32>
    %7 = arith.maximumf %5, %6 : vector<128x32xf32>
    %c0_6 = arith.constant 0 : index
    %c0_7 = arith.constant 0 : index
    %8 = vector.load %arg4[%c0_6, %c0_7] : memref<128x32xf32, #tpu.memory_space<vmem>>, vector<128x32xf32>
    tpu.vector_store %arg4[%c0_6, %c0_7], %7 {strides = array<i32>} : memref<128x32xf32, #tpu.memory_space<vmem>>, vector<128x32xf32>,
    return
  }
  func.func @transform_0(%arg0: i32) -> (i32, i32) {
    %c0_i32 = arith.constant 0 : i32
    %c0_i32_0 = arith.constant 0 : i32
    return %arg0, %c0_i32 : i32, i32
  }
  func.func @transform_1(%arg0: i32) -> (i32, i32) {
    %c0_i32 = arith.constant 0 : i32
    %c0_i32_0 = arith.constant 0 : i32
    %c0_i32_1 = arith.constant 0 : i32
    return %c0_i32, %c0_i32_0 : i32, i32
  }
  func.func @transform_2(%arg0: i32) -> (i32, i32) {
    %c0_i32 = arith.constant 0 : i32
    %c0_i32_0 = arith.constant 0 : i32
    %c0_i32_1 = arith.constant 0 : i32
    return %c0_i32, %c0_i32_0 : i32, i32
  }
  func.func @transform_3(%arg0: i32) -> (i32, i32) {
    %c0_i32 = arith.constant 0 : i32
    %c0_i32_0 = arith.constant 0 : i32
    return %arg0, %c0_i32 : i32, i32
  }
}

module attributes {stable_mosaic.version = 11 : i64} {
  func.func @_matmul_affine_kernel(%arg0: i32, %arg1: memref<128x320xbf16, #tpu.memory_space<vmem>>, %arg2: memref<320x32xbf16, #tpu.memory_space<vmem>>, %arg3: memref<1x32xf32, #tpu.memory_space<vmem>>, %arg4: memref<128x32xf32, #tpu.memory_space<vmem>>) attributes {dimension_semantics = [#tpu.dimension_semantics<parallel>], iteration_bounds = array<i64: 1>, scalar_prefetch = 0 : i64, scratch_operands = 0 : i64, tpu.core_type = #tpu.core_type<tc>, window_params = [{transform_indices = @transform_0, window_bounds = array<i64: 128, 320>}, {pipeline_mode = #tpu.pipeline_mode<synchronous>, transform_indices = @transform_1, window_bounds = array<i64: 320, 32>}, {pipeline_mode = #tpu.pipeline_mode<synchronous>, transform_indices = @transform_2, window_bounds = array<i64: 1, 32>}, {transform_indices = @transform_3, window_bounds = array<i64: 128, 32>}]} {
    %c0 = arith.constant 0 : index
    %c0_0 = arith.constant 0 : index
    %0 = vector.load %arg1[%c0, %c0_0] : memref<128x320xbf16, #tpu.memory_space<vmem>>, vector<128x320xbf16>
    %c0_1 = arith.constant 0 : index
    %c0_2 = arith.constant 0 : index
    %1 = vector.load %arg2[%c0_1, %c0_2] : memref<320x32xbf16, #tpu.memory_space<vmem>>, vector<320x32xbf16>
    %cst = arith.constant dense<0.000000e+00> : vector<128x32xf32>
    %2 = tpu.matmul %0, %1, %cst {dimension_numbers = #tpu.dot_dimension_numbers<[1], [0], [0], [1], [0, 0, 1, 1], [], []>} : vector<128x320xbf16>, vector<320x32xbf16>, vector<128x32xf32> -> vector<128x32xf32>
    %c0_3 = arith.constant 0 : index
    %c0_4 = arith.constant 0 : index
    %3 = vector.load %arg3[%c0_3, %c0_4] : memref<1x32xf32, #tpu.memory_space<vmem>>, vector<1x32xf32>
    %4 = vector.broadcast %3 : vector<1x32xf32> to vector<128x32xf32>
    %5 = arith.addf %2, %4 : vector<128x32xf32>
    %cst_5 = arith.constant 0.000000e+00 : f32
    %6 = vector.broadcast %cst_5 : f32 to vector<128x32xf32>
    %7 = arith.maximumf %5, %6 : vector<128x32xf32>
    %c0_6 = arith.constant 0 : index
    %c0_7 = arith.constant 0 : index
    %8 = vector.load %arg4[%c0_6, %c0_7] : memref<128x32xf32, #tpu.memory_space<vmem>>, vector<128x32xf32>
    tpu.vector_store %arg4[%c0_6, %c0_7], %7 {strides = array<i32>} : memref<128x32xf32, #tpu.memory_space<vmem>>, vector<128x32xf32>,
    return
  }
  func.func @transform_0(%arg0: i32) -> (i32, i32) {
    %c0_i32 = arith.constant 0 : i32
    %c0_i32_0 = arith.constant 0 : i32
    return %arg0, %c0_i32 : i32, i32
  }
  func.func @transform_1(%arg0: i32) -> (i32, i32) {
    %c0_i32 = arith.constant 0 : i32
    %c0_i32_0 = arith.constant 0 : i32
    %c0_i32_1 = arith.constant 0 : i32
    return %c0_i32, %c0_i32_0 : i32, i32
  }
  func.func @transform_2(%arg0: i32) -> (i32, i32) {
    %c0_i32 = arith.constant 0 : i32
    %c0_i32_0 = arith.constant 0 : i32
    %c0_i32_1 = arith.constant 0 : i32
    return %c0_i32, %c0_i32_0 : i32, i32
  }
  func.func @transform_3(%arg0: i32) -> (i32, i32) {
    %c0_i32 = arith.constant 0 : i32
    %c0_i32_0 = arith.constant 0 : i32
    return %arg0, %c0_i32 : i32, i32
  }
}

module attributes {stable_mosaic.version = 11 : i64} {
  func.func @_matmul_affine_kernel(%arg0: i32, %arg1: memref<32x288xbf16, #tpu.memory_space<vmem>>, %arg2: memref<288x64xbf16, #tpu.memory_space<vmem>>, %arg3: memref<1x64xf32, #tpu.memory_space<vmem>>, %arg4: memref<32x64xf32, #tpu.memory_space<vmem>>) attributes {dimension_semantics = [#tpu.dimension_semantics<parallel>], iteration_bounds = array<i64: 1>, scalar_prefetch = 0 : i64, scratch_operands = 0 : i64, tpu.core_type = #tpu.core_type<tc>, window_params = [{transform_indices = @transform_0, window_bounds = array<i64: 32, 288>}, {pipeline_mode = #tpu.pipeline_mode<synchronous>, transform_indices = @transform_1, window_bounds = array<i64: 288, 64>}, {pipeline_mode = #tpu.pipeline_mode<synchronous>, transform_indices = @transform_2, window_bounds = array<i64: 1, 64>}, {transform_indices = @transform_3, window_bounds = array<i64: 32, 64>}]} {
    %c0 = arith.constant 0 : index
    %c0_0 = arith.constant 0 : index
    %0 = vector.load %arg1[%c0, %c0_0] : memref<32x288xbf16, #tpu.memory_space<vmem>>, vector<32x288xbf16>
    %c0_1 = arith.constant 0 : index
    %c0_2 = arith.constant 0 : index
    %1 = vector.load %arg2[%c0_1, %c0_2] : memref<288x64xbf16, #tpu.memory_space<vmem>>, vector<288x64xbf16>
    %cst = arith.constant dense<0.000000e+00> : vector<32x64xf32>
    %2 = tpu.matmul %0, %1, %cst {dimension_numbers = #tpu.dot_dimension_numbers<[1], [0], [0], [1], [0, 0, 1, 1], [], []>} : vector<32x288xbf16>, vector<288x64xbf16>, vector<32x64xf32> -> vector<32x64xf32>
    %c0_3 = arith.constant 0 : index
    %c0_4 = arith.constant 0 : index
    %3 = vector.load %arg3[%c0_3, %c0_4] : memref<1x64xf32, #tpu.memory_space<vmem>>, vector<1x64xf32>
    %4 = vector.broadcast %3 : vector<1x64xf32> to vector<32x64xf32>
    %5 = arith.addf %2, %4 : vector<32x64xf32>
    %cst_5 = arith.constant 0.000000e+00 : f32
    %6 = vector.broadcast %cst_5 : f32 to vector<32x64xf32>
    %7 = arith.maximumf %5, %6 : vector<32x64xf32>
    %c0_6 = arith.constant 0 : index
    %c0_7 = arith.constant 0 : index
    %8 = vector.load %arg4[%c0_6, %c0_7] : memref<32x64xf32, #tpu.memory_space<vmem>>, vector<32x64xf32>
    tpu.vector_store %arg4[%c0_6, %c0_7], %7 {strides = array<i32>} : memref<32x64xf32, #tpu.memory_space<vmem>>, vector<32x64xf32>,
    return
  }
  func.func @transform_0(%arg0: i32) -> (i32, i32) {
    %c0_i32 = arith.constant 0 : i32
    %c0_i32_0 = arith.constant 0 : i32
    return %arg0, %c0_i32 : i32, i32
  }
  func.func @transform_1(%arg0: i32) -> (i32, i32) {
    %c0_i32 = arith.constant 0 : i32
    %c0_i32_0 = arith.constant 0 : i32
    %c0_i32_1 = arith.constant 0 : i32
    return %c0_i32, %c0_i32_0 : i32, i32
  }
  func.func @transform_2(%arg0: i32) -> (i32, i32) {
    %c0_i32 = arith.constant 0 : i32
    %c0_i32_0 = arith.constant 0 : i32
    %c0_i32_1 = arith.constant 0 : i32
    return %c0_i32, %c0_i32_0 : i32, i32
  }
  func.func @transform_3(%arg0: i32) -> (i32, i32) {
    %c0_i32 = arith.constant 0 : i32
    %c0_i32_0 = arith.constant 0 : i32
    return %arg0, %c0_i32 : i32, i32
  }
}

module attributes {stable_mosaic.version = 11 : i64} {
  func.func @_matmul_affine_kernel(%arg0: i32, %arg1: memref<32x608xbf16, #tpu.memory_space<vmem>>, %arg2: memref<608x64xbf16, #tpu.memory_space<vmem>>, %arg3: memref<1x64xf32, #tpu.memory_space<vmem>>, %arg4: memref<32x64xf32, #tpu.memory_space<vmem>>) attributes {dimension_semantics = [#tpu.dimension_semantics<parallel>], iteration_bounds = array<i64: 1>, scalar_prefetch = 0 : i64, scratch_operands = 0 : i64, tpu.core_type = #tpu.core_type<tc>, window_params = [{transform_indices = @transform_0, window_bounds = array<i64: 32, 608>}, {pipeline_mode = #tpu.pipeline_mode<synchronous>, transform_indices = @transform_1, window_bounds = array<i64: 608, 64>}, {pipeline_mode = #tpu.pipeline_mode<synchronous>, transform_indices = @transform_2, window_bounds = array<i64: 1, 64>}, {transform_indices = @transform_3, window_bounds = array<i64: 32, 64>}]} {
    %c0 = arith.constant 0 : index
    %c0_0 = arith.constant 0 : index
    %0 = vector.load %arg1[%c0, %c0_0] : memref<32x608xbf16, #tpu.memory_space<vmem>>, vector<32x608xbf16>
    %c0_1 = arith.constant 0 : index
    %c0_2 = arith.constant 0 : index
    %1 = vector.load %arg2[%c0_1, %c0_2] : memref<608x64xbf16, #tpu.memory_space<vmem>>, vector<608x64xbf16>
    %cst = arith.constant dense<0.000000e+00> : vector<32x64xf32>
    %2 = tpu.matmul %0, %1, %cst {dimension_numbers = #tpu.dot_dimension_numbers<[1], [0], [0], [1], [0, 0, 1, 1], [], []>} : vector<32x608xbf16>, vector<608x64xbf16>, vector<32x64xf32> -> vector<32x64xf32>
    %c0_3 = arith.constant 0 : index
    %c0_4 = arith.constant 0 : index
    %3 = vector.load %arg3[%c0_3, %c0_4] : memref<1x64xf32, #tpu.memory_space<vmem>>, vector<1x64xf32>
    %4 = vector.broadcast %3 : vector<1x64xf32> to vector<32x64xf32>
    %5 = arith.addf %2, %4 : vector<32x64xf32>
    %cst_5 = arith.constant 0.000000e+00 : f32
    %6 = vector.broadcast %cst_5 : f32 to vector<32x64xf32>
    %7 = arith.maximumf %5, %6 : vector<32x64xf32>
    %c0_6 = arith.constant 0 : index
    %c0_7 = arith.constant 0 : index
    %8 = vector.load %arg4[%c0_6, %c0_7] : memref<32x64xf32, #tpu.memory_space<vmem>>, vector<32x64xf32>
    tpu.vector_store %arg4[%c0_6, %c0_7], %7 {strides = array<i32>} : memref<32x64xf32, #tpu.memory_space<vmem>>, vector<32x64xf32>,
    return
  }
  func.func @transform_0(%arg0: i32) -> (i32, i32) {
    %c0_i32 = arith.constant 0 : i32
    %c0_i32_0 = arith.constant 0 : i32
    return %arg0, %c0_i32 : i32, i32
  }
  func.func @transform_1(%arg0: i32) -> (i32, i32) {
    %c0_i32 = arith.constant 0 : i32
    %c0_i32_0 = arith.constant 0 : i32
    %c0_i32_1 = arith.constant 0 : i32
    return %c0_i32, %c0_i32_0 : i32, i32
  }
  func.func @transform_2(%arg0: i32) -> (i32, i32) {
    %c0_i32 = arith.constant 0 : i32
    %c0_i32_0 = arith.constant 0 : i32
    %c0_i32_1 = arith.constant 0 : i32
    return %c0_i32, %c0_i32_0 : i32, i32
  }
  func.func @transform_3(%arg0: i32) -> (i32, i32) {
    %c0_i32 = arith.constant 0 : i32
    %c0_i32_0 = arith.constant 0 : i32
    return %arg0, %c0_i32 : i32, i32
  }
}

module attributes {stable_mosaic.version = 11 : i64} {
  func.func @_matmul_affine_kernel(%arg0: i32, %arg1: memref<32x576xbf16, #tpu.memory_space<vmem>>, %arg2: memref<576x64xbf16, #tpu.memory_space<vmem>>, %arg3: memref<1x64xf32, #tpu.memory_space<vmem>>, %arg4: memref<32x64xf32, #tpu.memory_space<vmem>>) attributes {dimension_semantics = [#tpu.dimension_semantics<parallel>], iteration_bounds = array<i64: 1>, scalar_prefetch = 0 : i64, scratch_operands = 0 : i64, tpu.core_type = #tpu.core_type<tc>, window_params = [{transform_indices = @transform_0, window_bounds = array<i64: 32, 576>}, {pipeline_mode = #tpu.pipeline_mode<synchronous>, transform_indices = @transform_1, window_bounds = array<i64: 576, 64>}, {pipeline_mode = #tpu.pipeline_mode<synchronous>, transform_indices = @transform_2, window_bounds = array<i64: 1, 64>}, {transform_indices = @transform_3, window_bounds = array<i64: 32, 64>}]} {
    %c0 = arith.constant 0 : index
    %c0_0 = arith.constant 0 : index
    %0 = vector.load %arg1[%c0, %c0_0] : memref<32x576xbf16, #tpu.memory_space<vmem>>, vector<32x576xbf16>
    %c0_1 = arith.constant 0 : index
    %c0_2 = arith.constant 0 : index
    %1 = vector.load %arg2[%c0_1, %c0_2] : memref<576x64xbf16, #tpu.memory_space<vmem>>, vector<576x64xbf16>
    %cst = arith.constant dense<0.000000e+00> : vector<32x64xf32>
    %2 = tpu.matmul %0, %1, %cst {dimension_numbers = #tpu.dot_dimension_numbers<[1], [0], [0], [1], [0, 0, 1, 1], [], []>} : vector<32x576xbf16>, vector<576x64xbf16>, vector<32x64xf32> -> vector<32x64xf32>
    %c0_3 = arith.constant 0 : index
    %c0_4 = arith.constant 0 : index
    %3 = vector.load %arg3[%c0_3, %c0_4] : memref<1x64xf32, #tpu.memory_space<vmem>>, vector<1x64xf32>
    %4 = vector.broadcast %3 : vector<1x64xf32> to vector<32x64xf32>
    %5 = arith.addf %2, %4 : vector<32x64xf32>
    %cst_5 = arith.constant 0.000000e+00 : f32
    %6 = vector.broadcast %cst_5 : f32 to vector<32x64xf32>
    %7 = arith.maximumf %5, %6 : vector<32x64xf32>
    %c0_6 = arith.constant 0 : index
    %c0_7 = arith.constant 0 : index
    %8 = vector.load %arg4[%c0_6, %c0_7] : memref<32x64xf32, #tpu.memory_space<vmem>>, vector<32x64xf32>
    tpu.vector_store %arg4[%c0_6, %c0_7], %7 {strides = array<i32>} : memref<32x64xf32, #tpu.memory_space<vmem>>, vector<32x64xf32>,
    return
  }
  func.func @transform_0(%arg0: i32) -> (i32, i32) {
    %c0_i32 = arith.constant 0 : i32
    %c0_i32_0 = arith.constant 0 : i32
    return %arg0, %c0_i32 : i32, i32
  }
  func.func @transform_1(%arg0: i32) -> (i32, i32) {
    %c0_i32 = arith.constant 0 : i32
    %c0_i32_0 = arith.constant 0 : i32
    %c0_i32_1 = arith.constant 0 : i32
    return %c0_i32, %c0_i32_0 : i32, i32
  }
  func.func @transform_2(%arg0: i32) -> (i32, i32) {
    %c0_i32 = arith.constant 0 : i32
    %c0_i32_0 = arith.constant 0 : i32
    %c0_i32_1 = arith.constant 0 : i32
    return %c0_i32, %c0_i32_0 : i32, i32
  }
  func.func @transform_3(%arg0: i32) -> (i32, i32) {
    %c0_i32 = arith.constant 0 : i32
    %c0_i32_0 = arith.constant 0 : i32
    return %arg0, %c0_i32 : i32, i32
  }
}

module attributes {stable_mosaic.version = 11 : i64} {
  func.func @_matmul_affine_kernel(%arg0: i32, %arg1: memref<32x640xbf16, #tpu.memory_space<vmem>>, %arg2: memref<640x64xbf16, #tpu.memory_space<vmem>>, %arg3: memref<1x64xf32, #tpu.memory_space<vmem>>, %arg4: memref<32x64xf32, #tpu.memory_space<vmem>>) attributes {dimension_semantics = [#tpu.dimension_semantics<parallel>], iteration_bounds = array<i64: 1>, scalar_prefetch = 0 : i64, scratch_operands = 0 : i64, tpu.core_type = #tpu.core_type<tc>, window_params = [{transform_indices = @transform_0, window_bounds = array<i64: 32, 640>}, {pipeline_mode = #tpu.pipeline_mode<synchronous>, transform_indices = @transform_1, window_bounds = array<i64: 640, 64>}, {pipeline_mode = #tpu.pipeline_mode<synchronous>, transform_indices = @transform_2, window_bounds = array<i64: 1, 64>}, {transform_indices = @transform_3, window_bounds = array<i64: 32, 64>}]} {
    %c0 = arith.constant 0 : index
    %c0_0 = arith.constant 0 : index
    %0 = vector.load %arg1[%c0, %c0_0] : memref<32x640xbf16, #tpu.memory_space<vmem>>, vector<32x640xbf16>
    %c0_1 = arith.constant 0 : index
    %c0_2 = arith.constant 0 : index
    %1 = vector.load %arg2[%c0_1, %c0_2] : memref<640x64xbf16, #tpu.memory_space<vmem>>, vector<640x64xbf16>
    %cst = arith.constant dense<0.000000e+00> : vector<32x64xf32>
    %2 = tpu.matmul %0, %1, %cst {dimension_numbers = #tpu.dot_dimension_numbers<[1], [0], [0], [1], [0, 0, 1, 1], [], []>} : vector<32x640xbf16>, vector<640x64xbf16>, vector<32x64xf32> -> vector<32x64xf32>
    %c0_3 = arith.constant 0 : index
    %c0_4 = arith.constant 0 : index
    %3 = vector.load %arg3[%c0_3, %c0_4] : memref<1x64xf32, #tpu.memory_space<vmem>>, vector<1x64xf32>
    %4 = vector.broadcast %3 : vector<1x64xf32> to vector<32x64xf32>
    %5 = arith.addf %2, %4 : vector<32x64xf32>
    %cst_5 = arith.constant 0.000000e+00 : f32
    %6 = vector.broadcast %cst_5 : f32 to vector<32x64xf32>
    %7 = arith.maximumf %5, %6 : vector<32x64xf32>
    %c0_6 = arith.constant 0 : index
    %c0_7 = arith.constant 0 : index
    %8 = vector.load %arg4[%c0_6, %c0_7] : memref<32x64xf32, #tpu.memory_space<vmem>>, vector<32x64xf32>
    tpu.vector_store %arg4[%c0_6, %c0_7], %7 {strides = array<i32>} : memref<32x64xf32, #tpu.memory_space<vmem>>, vector<32x64xf32>,
    return
  }
  func.func @transform_0(%arg0: i32) -> (i32, i32) {
    %c0_i32 = arith.constant 0 : i32
    %c0_i32_0 = arith.constant 0 : i32
    return %arg0, %c0_i32 : i32, i32
  }
  func.func @transform_1(%arg0: i32) -> (i32, i32) {
    %c0_i32 = arith.constant 0 : i32
    %c0_i32_0 = arith.constant 0 : i32
    %c0_i32_1 = arith.constant 0 : i32
    return %c0_i32, %c0_i32_0 : i32, i32
  }
  func.func @transform_2(%arg0: i32) -> (i32, i32) {
    %c0_i32 = arith.constant 0 : i32
    %c0_i32_0 = arith.constant 0 : i32
    %c0_i32_1 = arith.constant 0 : i32
    return %c0_i32, %c0_i32_0 : i32, i32
  }
  func.func @transform_3(%arg0: i32) -> (i32, i32) {
    %c0_i32 = arith.constant 0 : i32
    %c0_i32_0 = arith.constant 0 : i32
    return %arg0, %c0_i32 : i32, i32
  }
}

module attributes {stable_mosaic.version = 11 : i64} {
  func.func @_head_kernel(%arg0: memref<32x64xf32, #tpu.memory_space<vmem>>, %arg1: memref<2x32xf32, #tpu.memory_space<vmem>>, %arg2: memref<64x10xf32, #tpu.memory_space<vmem>>, %arg3: memref<1x10xf32, #tpu.memory_space<vmem>>, %arg4: memref<2x10xf32, #tpu.memory_space<vmem>>) attributes {dimension_semantics = [], scalar_prefetch = 0 : i64, scratch_operands = 0 : i64, tpu.core_type = #tpu.core_type<tc>} {
    %c0 = arith.constant 0 : index
    %c0_0 = arith.constant 0 : index
    %0 = vector.load %arg1[%c0, %c0_0] : memref<2x32xf32, #tpu.memory_space<vmem>>, vector<2x32xf32>
    %c0_1 = arith.constant 0 : index
    %c0_2 = arith.constant 0 : index
    %1 = vector.load %arg0[%c0_1, %c0_2] : memref<32x64xf32, #tpu.memory_space<vmem>>, vector<32x64xf32>
    %cst = arith.constant dense<0.000000e+00> : vector<2x64xf32>
    %2 = tpu.matmul %0, %1, %cst {dimension_numbers = #tpu.dot_dimension_numbers<[1], [0], [0], [1], [0, 0, 1, 1], [], []>} : vector<2x32xf32>, vector<32x64xf32>, vector<2x64xf32> -> vector<2x64xf32>
    %c0_3 = arith.constant 0 : index
    %c0_4 = arith.constant 0 : index
    %3 = vector.load %arg2[%c0_3, %c0_4] : memref<64x10xf32, #tpu.memory_space<vmem>>, vector<64x10xf32>
    %cst_5 = arith.constant dense<0.000000e+00> : vector<2x10xf32>
    %4 = tpu.matmul %2, %3, %cst_5 {dimension_numbers = #tpu.dot_dimension_numbers<[1], [0], [0], [1], [0, 0, 1, 1], [], []>} : vector<2x64xf32>, vector<64x10xf32>, vector<2x10xf32> -> vector<2x10xf32>
    %c0_6 = arith.constant 0 : index
    %c0_7 = arith.constant 0 : index
    %5 = vector.load %arg3[%c0_6, %c0_7] : memref<1x10xf32, #tpu.memory_space<vmem>>, vector<1x10xf32>
    %6 = vector.broadcast %5 : vector<1x10xf32> to vector<2x10xf32>
    %7 = arith.addf %4, %6 : vector<2x10xf32>
    %c0_8 = arith.constant 0 : index
    %c0_9 = arith.constant 0 : index
    %8 = vector.load %arg4[%c0_8, %c0_9] : memref<2x10xf32, #tpu.memory_space<vmem>>, vector<2x10xf32>
    tpu.vector_store %arg4[%c0_8, %c0_9], %7 {strides = array<i32>} : memref<2x10xf32, #tpu.memory_space<vmem>>, vector<2x10xf32>,
    return
  }
}

</mosaic_0001>

<llo_original>
// kernel: resnet14_forward.14
$region0: #{resnet14_forward.14}
  #allocation0 [shape = 'u32[]', space=smem, size = 0x4, offset = 0x4, fixed_abs, tag = 'smem constant byte address 0x4 - core index']
  #allocation1 [shape = 'u32[144,128]{1,0:T(1,128)}', space=vmem, size = 0x12000, scoped, tag = 'internal scratch']
  %s0 = inlined_call_operand.vmem [shape: bf16[512,72], index: 0, kind: input, shape index: {}]
  %s1 = inlined_call_operand.vmem [shape: bf16[72,16], index: 1, kind: input, shape index: {}]
  %s2 = inlined_call_operand.vmem [shape: f32[1,16], index: 2, kind: input, shape index: {}]
  %s3 = inlined_call_operand.vmem [shape: f32[512,16], index: 3, kind: output, shape index: {}]
  %s4 = sld [smem:[#allocation0]]
  $region22: #{resnet14_forward.14} parent=0
    _
  %s6 = ssub.s32 1, %s4
  %s7 = scalar_select 0, %s6, %s4
  // Predicated region
  $region2: #{resnet14_forward.14} parent=0 // pred_check
    _
  $region3: #{resnet14_forward.14} parent=0 // pred_check_branch
    %9 = sbr.rel (0) target = $region5
  $region4: #{resnet14_forward.14} parent=0 // pred_region
    _
  $region5: #{resnet14_forward.14} parent=0 // pred_fallthru
    _
  // Predicated region
  $region6: #{resnet14_forward.14} parent=0 // pred_check
    _
  $region7: #{resnet14_forward.14} parent=0 // pred_check_branch
    %11 = sbr.rel (0) target = $region9
  $region8: #{resnet14_forward.14} parent=0 // pred_region
    _
  $region9: #{resnet14_forward.14} parent=0 // pred_fallthru
    _
  // Predicated region
  $region10: #{resnet14_forward.14} parent=0 // pred_check
    _
  $region11: #{resnet14_forward.14} parent=0 // pred_check_branch
    %13 = sbr.rel (0) target = $region13
  $region12: #{resnet14_forward.14} parent=0 // pred_region
    _
  $region13: #{resnet14_forward.14} parent=0 // pred_fallthru
    _
  %v15 = vld [vmem:[%s0] sm:$0xf]
  %v16 = vld [vmem:[%s0 + $0x4] sm:$0xf]
  %v17 = vld [vmem:[%s0 + $0x8] sm:$0xf]
  %v18 = vld [vmem:[%s0 + $0xc] sm:$0xf]
  %v19 = vld [vmem:[%s0 + $0x10] sm:$0xf]
  %v20 = vld [vmem:[%s0 + $0x14] sm:$0xf]
  %v21 = vld [vmem:[%s0 + $0x18] sm:$0xf]
  %v22 = vld [vmem:[%s0 + $0x1c] sm:$0xf]
  %v23 = vld [vmem:[%s0 + $0x20] sm:$0xf]
  %v24 = vld [vmem:[%s0 + $0x24] sm:$0xf]
  %v25 = vld [vmem:[%s0 + $0x28] sm:$0xf]
  %v26 = vld [vmem:[%s0 + $0x2c] sm:$0xf]
  %v27 = vld [vmem:[%s0 + $0x30] sm:$0xf]
  %v28 = vld [vmem:[%s0 + $0x34] sm:$0xf]
  %v29 = vld [vmem:[%s0 + $0x38] sm:$0xf]
  %v30 = vld [vmem:[%s0 + $0x3c] sm:$0xf]
  %v31 = vld [vmem:[%s0 + $0x40] sm:$0xf]
  %v32 = vld [vmem:[%s0 + $0x44] sm:$0xf]
  %v33 = vld [vmem:[%s0 + $0x48] sm:$0xf]
  %v34 = vld [vmem:[%s0 + $0x4c] sm:$0xf]
  %v35 = vld [vmem:[%s0 + $0x50] sm:$0xf]
  %v36 = vld [vmem:[%s0 + $0x54] sm:$0xf]
  %v37 = vld [vmem:[%s0 + $0x58] sm:$0xf]
  %v38 = vld [vmem:[%s0 + $0x5c] sm:$0xf]
  %v39 = vld [vmem:[%s0 + $0x60] sm:$0xf]
  %v40 = vld [vmem:[%s0 + $0x64] sm:$0xf]
  %v41 = vld [vmem:[%s0 + $0x68] sm:$0xf]
  %v42 = vld [vmem:[%s0 + $0x6c] sm:$0xf]
  %v43 = vld [vmem:[%s0 + $0x70] sm:$0xf]
  %v44 = vld [vmem:[%s0 + $0x74] sm:$0xf]
  %v45 = vld [vmem:[%s0 + $0x78] sm:$0xf]
  %v46 = vld [vmem:[%s0 + $0x7c] sm:$0xf]
  %v47 = vld [vmem:[%s0 + $0x80] sm:$0xf]
  %v48 = vld [vmem:[%s0 + $0x84] sm:$0xf]
  %v49 = vld [vmem:[%s0 + $0x88] sm:$0xf]
  %v50 = vld [vmem:[%s0 + $0x8c] sm:$0xf]
  %v51 = vld [vmem:[%s0 + $0x90] sm:$0xf]
  %v52 = vld [vmem:[%s0 + $0x94] sm:$0xf]
  %v53 = vld [vmem:[%s0 + $0x98] sm:$0xf]
  %v54 = vld [vmem:[%s0 + $0x9c] sm:$0xf]
  %v55 = vld [vmem:[%s0 + $0xa0] sm:$0xf]
  %v56 = vld [vmem:[%s0 + $0xa4] sm:$0xf]
  %v57 = vld [vmem:[%s0 + $0xa8] sm:$0xf]
  %v58 = vld [vmem:[%s0 + $0xac] sm:$0xf]
  %v59 = vld [vmem:[%s0 + $0xb0] sm:$0xf]
  %v60 = vld [vmem:[%s0 + $0xb4] sm:$0xf]
  %v61 = vld [vmem:[%s0 + $0xb8] sm:$0xf]
  %v62 = vld [vmem:[%s0 + $0xbc] sm:$0xf]
  %v63 = vld [vmem:[%s0 + $0xc0] sm:$0xf]
  %v64 = vld [vmem:[%s0 + $0xc4] sm:$0xf]
  %v65 = vld [vmem:[%s0 + $0xc8] sm:$0xf]
  %v66 = vld [vmem:[%s0 + $0xcc] sm:$0xf]
  %v67 = vld [vmem:[%s0 + $0xd0] sm:$0xf]
  %v68 = vld [vmem:[%s0 + $0xd4] sm:$0xf]
  %v69 = vld [vmem:[%s0 + $0xd8] sm:$0xf]
  %v70 = vld [vmem:[%s0 + $0xdc] sm:$0xf]
  %v71 = vld [vmem:[%s0 + $0xe0] sm:$0xf]
  %v72 = vld [vmem:[%s0 + $0xe4] sm:$0xf]
  %v73 = vld [vmem:[%s0 + $0xe8] sm:$0xf]
  %v74 = vld [vmem:[%s0 + $0xec] sm:$0xf]
  %v75 = vld [vmem:[%s0 + $0xf0] sm:$0xf]
  %v76 = vld [vmem:[%s0 + $0xf4] sm:$0xf]
  %v77 = vld [vmem:[%s0 + $0xf8] sm:$0xf]
  %v78 = vld [vmem:[%s0 + $0xfc] sm:$0xf]
  %v79 = vld [vmem:[%s1] sm:$0xf]
  %v80 = vld [vmem:[%s1 + $0x4] sm:$0xf]
  %v81 = vld [vmem:[%s1 + $0x8] sm:$0xf]
  %v82 = vld [vmem:[%s1 + $0xc] sm:$0xf]
  %v83 = vld [vmem:[%s1 + $0x10] sm:$0xf]
  %v84 = vld [vmem:[%s1 + $0x14] sm:$0xf]
  %v85 = vld [vmem:[%s1 + $0x18] sm:$0xf]
  %v86 = vld [vmem:[%s1 + $0x1c] sm:$0xf]
  %v87 = vld [vmem:[%s1 + $0x20] sm:$0xf]
  %v88 = vld [vmem:[%s2] sm:$0x1]
  %v90 = vlaneseq
  %v91 = vshrl.u32 %v90, 7
  %v92 = vsub.s32 0, %v91
  %v93 = vrot.slane %v88, %v92
  %v159 = vunpack.c.l.b16 %v15
  %v160 = vunpack.c.l.b16 %v16
  %v161 = vunpack.c.l.b16 %v17
  %v162 = vunpack.c.l.b16 %v18
  %v163 = vunpack.c.l.b16 %v19
  %v164 = vunpack.c.l.b16 %v20
  %v165 = vunpack.c.l.b16 %v21
  %v166 = vunpack.c.l.b16 %v22
  %v167 = vunpack.c.l.b16 %v23
  %v168 = vunpack.c.l.b16 %v24
  %v169 = vunpack.c.l.b16 %v25
  %v170 = vunpack.c.l.b16 %v26
  %v171 = vunpack.c.l.b16 %v27
  %v172 = vunpack.c.l.b16 %v28
  %v173 = vunpack.c.l.b16 %v29
  %v174 = vunpack.c.l.b16 %v30
  %v175 = vunpack.c.l.b16 %v31
  %v176 = vunpack.c.l.b16 %v32
  %v177 = vunpack.c.l.b16 %v33
  %v178 = vunpack.c.l.b16 %v34
  %v179 = vunpack.c.l.b16 %v35
  %v180 = vunpack.c.l.b16 %v36
  %v181 = vunpack.c.l.b16 %v37
  %v182 = vunpack.c.l.b16 %v38
  %v183 = vunpack.c.l.b16 %v39
  %v184 = vunpack.c.l.b16 %v40
  %v185 = vunpack.c.l.b16 %v41
  %v186 = vunpack.c.l.b16 %v42
  %v187 = vunpack.c.l.b16 %v43
  %v188 = vunpack.c.l.b16 %v44
  %v189 = vunpack.c.l.b16 %v45
  %v190 = vunpack.c.l.b16 %v46
  %v191 = vunpack.c.l.b16 %v47
  %v192 = vunpack.c.l.b16 %v48
  %v193 = vunpack.c.l.b16 %v49
  %v194 = vunpack.c.l.b16 %v50
  %v195 = vunpack.c.l.b16 %v51
  %v196 = vunpack.c.l.b16 %v52
  %v197 = vunpack.c.l.b16 %v53
  %v198 = vunpack.c.l.b16 %v54
  %v199 = vunpack.c.l.b16 %v55
  %v200 = vunpack.c.l.b16 %v56
  %v201 = vunpack.c.l.b16 %v57
  %v202 = vunpack.c.l.b16 %v58
  %v203 = vunpack.c.l.b16 %v59
  %v204 = vunpack.c.l.b16 %v60
  %v205 = vunpack.c.l.b16 %v61
  %v206 = vunpack.c.l.b16 %v62
  %v207 = vunpack.c.l.b16 %v63
  %v208 = vunpack.c.l.b16 %v64
  %v209 = vunpack.c.l.b16 %v65
  %v210 = vunpack.c.l.b16 %v66
  %v211 = vunpack.c.l.b16 %v67
  %v212 = vunpack.c.l.b16 %v68
  %v213 = vunpack.c.l.b16 %v69
  %v214 = vunpack.c.l.b16 %v70
  %v215 = vunpack.c.l.b16 %v71
  %v216 = vunpack.c.l.b16 %v72
  %v217 = vunpack.c.l.b16 %v73
  %v218 = vunpack.c.l.b16 %v74
  %v219 = vunpack.c.l.b16 %v75
  %v220 = vunpack.c.l.b16 %v76
  %v221 = vunpack.c.l.b16 %v77
  %v222 = vunpack.c.l.b16 %v78
  %v223 = vpack.c.b16 %v160, %v159
  %v224 = vpack.c.b16 %v162, %v161
  %v225 = vpack.c.b16 %v164, %v163
  %v226 = vpack.c.b16 %v166, %v165
  %v227 = vpack.c.b16 %v168, %v167
  %v228 = vpack.c.b16 %v170, %v169
  %v229 = vpack.c.b16 %v172, %v171
  %v230 = vpack.c.b16 %v174, %v173
  %v231 = vpack.c.b16 %v176, %v175
  %v232 = vpack.c.b16 %v178, %v177
  %v233 = vpack.c.b16 %v180, %v179
  %v234 = vpack.c.b16 %v182, %v181
  %v235 = vpack.c.b16 %v184, %v183
  %v236 = vpack.c.b16 %v186, %v185
  %v237 = vpack.c.b16 %v188, %v187
  %v238 = vpack.c.b16 %v190, %v189
  %v239 = vpack.c.b16 %v192, %v191
  %v240 = vpack.c.b16 %v194, %v193
  %v241 = vpack.c.b16 %v196, %v195
  %v242 = vpack.c.b16 %v198, %v197
  %v243 = vpack.c.b16 %v200, %v199
  %v244 = vpack.c.b16 %v202, %v201
  %v245 = vpack.c.b16 %v204, %v203
  %v246 = vpack.c.b16 %v206, %v205
  %v247 = vpack.c.b16 %v208, %v207
  %v248 = vpack.c.b16 %v210, %v209
  %v249 = vpack.c.b16 %v212, %v211
  %v250 = vpack.c.b16 %v214, %v213
  %v251 = vpack.c.b16 %v216, %v215
  %v252 = vpack.c.b16 %v218, %v217
  %v253 = vpack.c.b16 %v220, %v219
  %v254 = vpack.c.b16 %v222, %v221
  %v264 = vunpack.c.l.b16 %v79
  %v265 = vunpack.c.l.b16 %v80
  %v266 = vunpack.c.l.b16 %v81
  %v267 = vunpack.c.l.b16 %v82
  %v268 = vunpack.c.l.b16 %v83
  %v269 = vunpack.c.l.b16 %v84
  %v270 = vunpack.c.l.b16 %v85
  %v271 = vunpack.c.l.b16 %v86
  %v272 = vunpack.c.l.b16 %v87
  %v273 = vpack.c.b16 %v265, %v264
  %v274 = vpack.c.b16 %v267, %v266
  %v275 = vpack.c.b16 %v269, %v268
  %v276 = vpack.c.b16 %v271, %v270
  %v277 = vpack.c.b16 %v272, %v272
  %vm282 = vcmask 588800
  %v284 = vsel %vm282, %v223, 0
  %v287 = vsel %vm282, %v224, 0
  %v290 = vsel %vm282, %v225, 0
  %v293 = vsel %vm282, %v226, 0
  %v296 = vsel %vm282, %v227, 0
  %v299 = vsel %vm282, %v228, 0
  %v302 = vsel %vm282, %v229, 0
  %v305 = vsel %vm282, %v230, 0
  %v308 = vsel %vm282, %v231, 0
  %v311 = vsel %vm282, %v232, 0
  %v314 = vsel %vm282, %v233, 0
  %v317 = vsel %vm282, %v234, 0
  %v320 = vsel %vm282, %v235, 0
  %v323 = vsel %vm282, %v236, 0
  %v326 = vsel %vm282, %v237, 0
  %v329 = vsel %vm282, %v238, 0
  %v332 = vsel %vm282, %v239, 0
  %v335 = vsel %vm282, %v240, 0
  %v338 = vsel %vm282, %v241, 0
  %v341 = vsel %vm282, %v242, 0
  %v344 = vsel %vm282, %v243, 0
  %v347 = vsel %vm282, %v244, 0
  %v350 = vsel %vm282, %v245, 0
  %v353 = vsel %vm282, %v246, 0
  %v356 = vsel %vm282, %v247, 0
  %v359 = vsel %vm282, %v248, 0
  %v362 = vsel %vm282, %v249, 0
  %v365 = vsel %vm282, %v250, 0
  %v368 = vsel %vm282, %v251, 0
  %v371 = vsel %vm282, %v252, 0
  %v374 = vsel %vm282, %v253, 0
  %v377 = vsel %vm282, %v254, 0
  %vm379 = vcmask 1043456
  %v381 = vsel %vm379, %v277, 0
  %383 = vmatprep.subr.bf16.mxu0 0
  %384 = vmatpush1.bf16.msra.mxu0 0
  %385 = vmatprep.subr.bf16.mxu0 0
  %386 = vmatpush1.bf16.msra.mxu0 0
  %387 = vmatprep.subr.bf16.mxu0 0
  %388 = vmatpush1.bf16.msra.mxu0 0
  %389 = vmatprep.subr.bf16.mxu0 0
  %390 = vmatpush1.bf16.msra.mxu0 %v381
  %391 = vmatprep.subr.bf16.mxu0 0
  %392 = vmatpush1.bf16.msra.mxu0 %v276
  %393 = vmatprep.subr.bf16.mxu0 0
  %394 = vmatpush1.bf16.msra.mxu0 %v275
  %395 = vmatprep.subr.bf16.mxu0 0
  %396 = vmatpush1.bf16.msra.mxu0 %v274
  %397 = vmatprep.subr.bf16.mxu0 0
  %398 = vmatpush1.bf16.msra.mxu0 %v273
  %399 = vmatprep.subr.bf16.mxu0 0
  %400 = vmatpush2.bf16.msra.mxu0 0
  %401 = vmatprep.subr.bf16.mxu0 0
  %402 = vmatpush2.bf16.msra.mxu0 0
  %403 = vmatprep.subr.bf16.mxu0 0
  %404 = vmatpush2.bf16.msra.mxu0 0
  %405 = vmatprep.subr.bf16.mxu0 0
  %406 = vmatpush2.bf16.msra.mxu0 0
  %407 = vmatprep.subr.bf16.mxu0 0
  %408 = vmatpush2.bf16.msra.mxu0 0
  %409 = vmatprep.subr.bf16.mxu0 0
  %410 = vmatpush2.bf16.msra.mxu0 0
  %411 = vmatprep.subr.bf16.mxu0 0
  %412 = vmatpush2.bf16.msra.mxu0 0
  %413 = vmatprep.subr.bf16.mxu0 0
  %414 = vmatpush2.bf16.msra.mxu0 0
  %415 = vmatprep.mubr.bf16.mxu0 0
  %416 = vmatmul.mubr.bf16.gmra.mxu0 %v284
  %v417 = vpop.f32.mrf.mxu0
  %v418 = vadd.f32 %v93, %v417
  %v419 = vpop.f32.mrf.mxu0
  %v420 = vpop.f32.mrf.mxu0
  %v421 = vadd.f32 %v93, %v420
  %v422 = vpop.f32.mrf.mxu0
  %423 = vmatprep.mubr.bf16.mxu0 0
  %424 = vmatmul.mubr.bf16.gmra.mxu0 %v287
  %v425 = vpop.f32.mrf.mxu0
  %v426 = vadd.f32 %v93, %v425
  %v427 = vpop.f32.mrf.mxu0
  %v428 = vpop.f32.mrf.mxu0
  %v429 = vadd.f32 %v93, %v428
  %v430 = vpop.f32.mrf.mxu0
  %431 = vmatprep.mubr.bf16.mxu0 0
  %432 = vmatmul.mubr.bf16.gmra.mxu0 %v290
  %v433 = vpop.f32.mrf.mxu0
  %v434 = vadd.f32 %v93, %v433
  %v435 = vpop.f32.mrf.mxu0
  %v436 = vpop.f32.mrf.mxu0
  %v437 = vadd.f32 %v93, %v436
  %v438 = vpop.f32.mrf.mxu0
  %439 = vmatprep.mubr.bf16.mxu0 0
  %440 = vmatmul.mubr.bf16.gmra.mxu0 %v293
  %v441 = vpop.f32.mrf.mxu0
  %v442 = vadd.f32 %v93, %v441
  %v443 = vpop.f32.mrf.mxu0
  %v444 = vpop.f32.mrf.mxu0
  %v445 = vadd.f32 %v93, %v444
  %v446 = vpop.f32.mrf.mxu0
  %447 = vmatprep.mubr.bf16.mxu0 0
  %448 = vmatmul.mubr.bf16.gmra.mxu0 %v296
  %v449 = vpop.f32.mrf.mxu0
  %v450 = vadd.f32 %v93, %v449
  %v451 = vpop.f32.mrf.mxu0
  %v452 = vpop.f32.mrf.mxu0
  %v453 = vadd.f32 %v93, %v452
  %v454 = vpop.f32.mrf.mxu0
  %455 = vmatprep.mubr.bf16.mxu0 0
  %456 = vmatmul.mubr.bf16.gmra.mxu0 %v299
  %v457 = vpop.f32.mrf.mxu0
  %v458 = vadd.f32 %v93, %v457
  %v459 = vpop.f32.mrf.mxu0
  %v460 = vpop.f32.mrf.mxu0
  %v461 = vadd.f32 %v93, %v460
  %v462 = vpop.f32.mrf.mxu0
  %463 = vmatprep.mubr.bf16.mxu0 0
  %464 = vmatmul.mubr.bf16.gmra.mxu0 %v302
  %v465 = vpop.f32.mrf.mxu0
  %v466 = vadd.f32 %v93, %v465
  %v467 = vpop.f32.mrf.mxu0
  %v468 = vpop.f32.mrf.mxu0
  %v469 = vadd.f32 %v93, %v468
  %v470 = vpop.f32.mrf.mxu0
  %471 = vmatprep.mubr.bf16.mxu0 0
  %472 = vmatmul.mubr.bf16.gmra.mxu0 %v305
  %v473 = vpop.f32.mrf.mxu0
  %v474 = vadd.f32 %v93, %v473
  %v475 = vpop.f32.mrf.mxu0
  %v476 = vpop.f32.mrf.mxu0
  %v477 = vadd.f32 %v93, %v476
  %v478 = vpop.f32.mrf.mxu0
  %479 = vmatprep.mubr.bf16.mxu0 0
  %480 = vmatmul.mubr.bf16.gmra.mxu0 %v308
  %v481 = vpop.f32.mrf.mxu0
  %v482 = vadd.f32 %v93, %v481
  %v483 = vpop.f32.mrf.mxu0
  %v484 = vpop.f32.mrf.mxu0
  %v485 = vadd.f32 %v93, %v484
  %v486 = vpop.f32.mrf.mxu0
  %487 = vmatprep.mubr.bf16.mxu0 0
  %488 = vmatmul.mubr.bf16.gmra.mxu0 %v311
  %v489 = vpop.f32.mrf.mxu0
  %v490 = vadd.f32 %v93, %v489
  %v491 = vpop.f32.mrf.mxu0
  %v492 = vpop.f32.mrf.mxu0
  %v493 = vadd.f32 %v93, %v492
  %v494 = vpop.f32.mrf.mxu0
  %495 = vmatprep.mubr.bf16.mxu0 0
  %496 = vmatmul.mubr.bf16.gmra.mxu0 %v314
  %v497 = vpop.f32.mrf.mxu0
  %v498 = vadd.f32 %v93, %v497
  %v499 = vpop.f32.mrf.mxu0
  %v500 = vpop.f32.mrf.mxu0
  %v501 = vadd.f32 %v93, %v500
  %v502 = vpop.f32.mrf.mxu0
  %503 = vmatprep.mubr.bf16.mxu0 0
  %504 = vmatmul.mubr.bf16.gmra.mxu0 %v317
  %v505 = vpop.f32.mrf.mxu0
  %v506 = vadd.f32 %v93, %v505
  %v507 = vpop.f32.mrf.mxu0
  %v508 = vpop.f32.mrf.mxu0
  %v509 = vadd.f32 %v93, %v508
  %v510 = vpop.f32.mrf.mxu0
  %511 = vmatprep.mubr.bf16.mxu0 0
  %512 = vmatmul.mubr.bf16.gmra.mxu0 %v320
  %v513 = vpop.f32.mrf.mxu0
  %v514 = vadd.f32 %v93, %v513
  %v515 = vpop.f32.mrf.mxu0
  %v516 = vpop.f32.mrf.mxu0
  %v517 = vadd.f32 %v93, %v516
  %v518 = vpop.f32.mrf.mxu0
  %519 = vmatprep.mubr.bf16.mxu0 0
  %520 = vmatmul.mubr.bf16.gmra.mxu0 %v323
  %v521 = vpop.f32.mrf.mxu0
  %v522 = vadd.f32 %v93, %v521
  %v523 = vpop.f32.mrf.mxu0
  %v524 = vpop.f32.mrf.mxu0
  %v525 = vadd.f32 %v93, %v524
  %v526 = vpop.f32.mrf.mxu0
  %527 = vmatprep.mubr.bf16.mxu0 0
  %528 = vmatmul.mubr.bf16.gmra.mxu0 %v326
  %v529 = vpop.f32.mrf.mxu0
  %v530 = vadd.f32 %v93, %v529
  %v531 = vpop.f32.mrf.mxu0
  %v532 = vpop.f32.mrf.mxu0
  %v533 = vadd.f32 %v93, %v532
  %v534 = vpop.f32.mrf.mxu0
  %535 = vmatprep.mubr.bf16.mxu0 0
  %536 = vmatmul.mubr.bf16.gmra.mxu0 %v329
  %v537 = vpop.f32.mrf.mxu0
  %v538 = vadd.f32 %v93, %v537
  %v539 = vpop.f32.mrf.mxu0
  %v540 = vpop.f32.mrf.mxu0
  %v541 = vadd.f32 %v93, %v540
  %v542 = vpop.f32.mrf.mxu0
  %543 = vmatprep.mubr.bf16.mxu0 0
  %544 = vmatmul.mubr.bf16.gmra.mxu0 %v332
  %v545 = vpop.f32.mrf.mxu0
  %v546 = vadd.f32 %v93, %v545
  %v547 = vpop.f32.mrf.mxu0
  %v548 = vpop.f32.mrf.mxu0
  %v549 = vadd.f32 %v93, %v548
  %v550 = vpop.f32.mrf.mxu0
  %551 = vmatprep.mubr.bf16.mxu0 0
  %552 = vmatmul.mubr.bf16.gmra.mxu0 %v335
  %v553 = vpop.f32.mrf.mxu0
  %v554 = vadd.f32 %v93, %v553
  %v555 = vpop.f32.mrf.mxu0
  %v556 = vpop.f32.mrf.mxu0
  %v557 = vadd.f32 %v93, %v556
  %v558 = vpop.f32.mrf.mxu0
  %559 = vmatprep.mubr.bf16.mxu0 0
  %560 = vmatmul.mubr.bf16.gmra.mxu0 %v338
  %v561 = vpop.f32.mrf.mxu0
  %v562 = vadd.f32 %v93, %v561
  %v563 = vpop.f32.mrf.mxu0
  %v564 = vpop.f32.mrf.mxu0
  %v565 = vadd.f32 %v93, %v564
  %v566 = vpop.f32.mrf.mxu0
  %567 = vmatprep.mubr.bf16.mxu0 0
  %568 = vmatmul.mubr.bf16.gmra.mxu0 %v341
  %v569 = vpop.f32.mrf.mxu0
  %v570 = vadd.f32 %v93, %v569
  %v571 = vpop.f32.mrf.mxu0
  %v572 = vpop.f32.mrf.mxu0
  %v573 = vadd.f32 %v93, %v572
  %v574 = vpop.f32.mrf.mxu0
  %575 = vmatprep.mubr.bf16.mxu0 0
  %576 = vmatmul.mubr.bf16.gmra.mxu0 %v344
  %v577 = vpop.f32.mrf.mxu0
  %v578 = vadd.f32 %v93, %v577
  %v579 = vpop.f32.mrf.mxu0
  %v580 = vpop.f32.mrf.mxu0
  %v581 = vadd.f32 %v93, %v580
  %v582 = vpop.f32.mrf.mxu0
  %583 = vmatprep.mubr.bf16.mxu0 0
  %584 = vmatmul.mubr.bf16.gmra.mxu0 %v347
  %v585 = vpop.f32.mrf.mxu0
  %v586 = vadd.f32 %v93, %v585
  %v587 = vpop.f32.mrf.mxu0
  %v588 = vpop.f32.mrf.mxu0
  %v589 = vadd.f32 %v93, %v588
  %v590 = vpop.f32.mrf.mxu0
  %591 = vmatprep.mubr.bf16.mxu0 0
  %592 = vmatmul.mubr.bf16.gmra.mxu0 %v350
  %v593 = vpop.f32.mrf.mxu0
  %v594 = vadd.f32 %v93, %v593
  %v595 = vpop.f32.mrf.mxu0
  %v596 = vpop.f32.mrf.mxu0
  %v597 = vadd.f32 %v93, %v596
  %v598 = vpop.f32.mrf.mxu0
  %599 = vmatprep.mubr.bf16.mxu0 0
  %600 = vmatmul.mubr.bf16.gmra.mxu0 %v353
  %v601 = vpop.f32.mrf.mxu0
  %v602 = vadd.f32 %v93, %v601
  %v603 = vpop.f32.mrf.mxu0
  %v604 = vpop.f32.mrf.mxu0
  %v605 = vadd.f32 %v93, %v604
  %v606 = vpop.f32.mrf.mxu0
  %607 = vmatprep.mubr.bf16.mxu0 0
  %608 = vmatmul.mubr.bf16.gmra.mxu0 %v356
  %v609 = vpop.f32.mrf.mxu0
  %v610 = vadd.f32 %v93, %v609
  %v611 = vpop.f32.mrf.mxu0
  %v612 = vpop.f32.mrf.mxu0
  %v613 = vadd.f32 %v93, %v612
  %v614 = vpop.f32.mrf.mxu0
  %615 = vmatprep.mubr.bf16.mxu0 0
  %616 = vmatmul.mubr.bf16.gmra.mxu0 %v359
  %v617 = vpop.f32.mrf.mxu0
  %v618 = vadd.f32 %v93, %v617
  %v619 = vpop.f32.mrf.mxu0
  %v620 = vpop.f32.mrf.mxu0
  %v621 = vadd.f32 %v93, %v620
  %v622 = vpop.f32.mrf.mxu0
  %623 = vmatprep.mubr.bf16.mxu0 0
  %624 = vmatmul.mubr.bf16.gmra.mxu0 %v362
  %v625 = vpop.f32.mrf.mxu0
  %v626 = vadd.f32 %v93, %v625
  %v627 = vpop.f32.mrf.mxu0
  %v628 = vpop.f32.mrf.mxu0
  %v629 = vadd.f32 %v93, %v628
  %v630 = vpop.f32.mrf.mxu0
  %631 = vmatprep.mubr.bf16.mxu0 0
  %632 = vmatmul.mubr.bf16.gmra.mxu0 %v365
  %v633 = vpop.f32.mrf.mxu0
  %v634 = vadd.f32 %v93, %v633
  %v635 = vpop.f32.mrf.mxu0
  %v636 = vpop.f32.mrf.mxu0
  %v637 = vadd.f32 %v93, %v636
  %v638 = vpop.f32.mrf.mxu0
  %639 = vmatprep.mubr.bf16.mxu0 0
  %640 = vmatmul.mubr.bf16.gmra.mxu0 %v368
  %v641 = vpop.f32.mrf.mxu0
  %v642 = vadd.f32 %v93, %v641
  %v643 = vpop.f32.mrf.mxu0
  %v644 = vpop.f32.mrf.mxu0
  %v645 = vadd.f32 %v93, %v644
  %v646 = vpop.f32.mrf.mxu0
  %647 = vmatprep.mubr.bf16.mxu0 0
  %648 = vmatmul.mubr.bf16.gmra.mxu0 %v371
  %v649 = vpop.f32.mrf.mxu0
  %v650 = vadd.f32 %v93, %v649
  %v651 = vpop.f32.mrf.mxu0
  %v652 = vpop.f32.mrf.mxu0
  %v653 = vadd.f32 %v93, %v652
  %v654 = vpop.f32.mrf.mxu0
  %655 = vmatprep.mubr.bf16.mxu0 0
  %656 = vmatmul.mubr.bf16.gmra.mxu0 %v374
  %v657 = vpop.f32.mrf.mxu0
  %v658 = vadd.f32 %v93, %v657
  %v659 = vpop.f32.mrf.mxu0
  %v660 = vpop.f32.mrf.mxu0
  %v661 = vadd.f32 %v93, %v660
  %v662 = vpop.f32.mrf.mxu0
  %663 = vmatprep.mubr.bf16.mxu0 0
  %664 = vmatmul.mubr.bf16.gmra.mxu0 %v377
  %v665 = vpop.f32.mrf.mxu0
  %v666 = vadd.f32 %v93, %v665
  %v667 = vpop.f32.mrf.mxu0
  %v668 = vpop.f32.mrf.mxu0
  %v669 = vadd.f32 %v93, %v668
  %v670 = vpop.f32.mrf.mxu0
  %671 = vdwg.mxu0
  %v672 = vmax.f32 %v418, 0.0
  %v673 = vmax.f32 %v421, 0.0
  %v674 = vmax.f32 %v426, 0.0
  %v675 = vmax.f32 %v429, 0.0
  %v676 = vmax.f32 %v434, 0.0
  %v677 = vmax.f32 %v437, 0.0
  %v678 = vmax.f32 %v442, 0.0
  %v679 = vmax.f32 %v445, 0.0
  %v680 = vmax.f32 %v450, 0.0
  %v681 = vmax.f32 %v453, 0.0
  %v682 = vmax.f32 %v458, 0.0
  %v683 = vmax.f32 %v461, 0.0
  %v684 = vmax.f32 %v466, 0.0
  %v685 = vmax.f32 %v469, 0.0
  %v686 = vmax.f32 %v474, 0.0
  %v687 = vmax.f32 %v477, 0.0
  %v688 = vmax.f32 %v482, 0.0
  %v689 = vmax.f32 %v485, 0.0
  %v690 = vmax.f32 %v490, 0.0
  %v691 = vmax.f32 %v493, 0.0
  %v692 = vmax.f32 %v498, 0.0
  %v693 = vmax.f32 %v501, 0.0
  %v694 = vmax.f32 %v506, 0.0
  %v695 = vmax.f32 %v509, 0.0
  %v696 = vmax.f32 %v514, 0.0
  %v697 = vmax.f32 %v517, 0.0
  %v698 = vmax.f32 %v522, 0.0
  %v699 = vmax.f32 %v525, 0.0
  %v700 = vmax.f32 %v530, 0.0
  %v701 = vmax.f32 %v533, 0.0
  %v702 = vmax.f32 %v538, 0.0
  %v703 = vmax.f32 %v541, 0.0
  %v704 = vmax.f32 %v546, 0.0
  %v705 = vmax.f32 %v549, 0.0
  %v706 = vmax.f32 %v554, 0.0
  %v707 = vmax.f32 %v557, 0.0
  %v708 = vmax.f32 %v562, 0.0
  %v709 = vmax.f32 %v565, 0.0
  %v710 = vmax.f32 %v570, 0.0
  %v711 = vmax.f32 %v573, 0.0
  %v712 = vmax.f32 %v578, 0.0
  %v713 = vmax.f32 %v581, 0.0
  %v714 = vmax.f32 %v586, 0.0
  %v715 = vmax.f32 %v589, 0.0
  %v716 = vmax.f32 %v594, 0.0
  %v717 = vmax.f32 %v597, 0.0
  %v718 = vmax.f32 %v602, 0.0
  %v719 = vmax.f32 %v605, 0.0
  %v720 = vmax.f32 %v610, 0.0
  %v721 = vmax.f32 %v613, 0.0
  %v722 = vmax.f32 %v618, 0.0
  %v723 = vmax.f32 %v621, 0.0
  %v724 = vmax.f32 %v626, 0.0
  %v725 = vmax.f32 %v629, 0.0
  %v726 = vmax.f32 %v634, 0.0
  %v727 = vmax.f32 %v637, 0.0
  %v728 = vmax.f32 %v642, 0.0
  %v729 = vmax.f32 %v645, 0.0
  %v730 = vmax.f32 %v650, 0.0
  %v731 = vmax.f32 %v653, 0.0
  %v732 = vmax.f32 %v658, 0.0
  %v733 = vmax.f32 %v661, 0.0
  %v734 = vmax.f32 %v666, 0.0
  %v735 = vmax.f32 %v669, 0.0
  %vm736 = vcmask 130048
  %737 = vst.msk [vmem:[%s3] sm:$0xff] %vm736, %v672
  %738 = vst.msk [vmem:[%s3 + $0x8] sm:$0xff] %vm736, %v673
  %739 = vst.msk [vmem:[%s3 + $0x10] sm:$0xff] %vm736, %v674
  %740 = vst.msk [vmem:[%s3 + $0x18] sm:$0xff] %vm736, %v675
  %741 = vst.msk [vmem:[%s3 + $0x20] sm:$0xff] %vm736, %v676
  %742 = vst.msk [vmem:[%s3 + $0x28] sm:$0xff] %vm736, %v677
  %743 = vst.msk [vmem:[%s3 + $0x30] sm:$0xff] %vm736, %v678
  %744 = vst.msk [vmem:[%s3 + $0x38] sm:$0xff] %vm736, %v679
  %745 = vst.msk [vmem:[%s3 + $0x40] sm:$0xff] %vm736, %v680
  %746 = vst.msk [vmem:[%s3 + $0x48] sm:$0xff] %vm736, %v681
  %747 = vst.msk [vmem:[%s3 + $0x50] sm:$0xff] %vm736, %v682
  %748 = vst.msk [vmem:[%s3 + $0x58] sm:$0xff] %vm736, %v683
  %749 = vst.msk [vmem:[%s3 + $0x60] sm:$0xff] %vm736, %v684
  %750 = vst.msk [vmem:[%s3 + $0x68] sm:$0xff] %vm736, %v685
  %751 = vst.msk [vmem:[%s3 + $0x70] sm:$0xff] %vm736, %v686
  %752 = vst.msk [vmem:[%s3 + $0x78] sm:$0xff] %vm736, %v687
  %753 = vst.msk [vmem:[%s3 + $0x80] sm:$0xff] %vm736, %v688
  %754 = vst.msk [vmem:[%s3 + $0x88] sm:$0xff] %vm736, %v689
  %755 = vst.msk [vmem:[%s3 + $0x90] sm:$0xff] %vm736, %v690
  %756 = vst.msk [vmem:[%s3 + $0x98] sm:$0xff] %vm736, %v691
  %757 = vst.msk [vmem:[%s3 + $0xa0] sm:$0xff] %vm736, %v692
  %758 = vst.msk [vmem:[%s3 + $0xa8] sm:$0xff] %vm736, %v693
  %759 = vst.msk [vmem:[%s3 + $0xb0] sm:$0xff] %vm736, %v694
  %760 = vst.msk [vmem:[%s3 + $0xb8] sm:$0xff] %vm736, %v695
  %761 = vst.msk [vmem:[%s3 + $0xc0] sm:$0xff] %vm736, %v696
  %762 = vst.msk [vmem:[%s3 + $0xc8] sm:$0xff] %vm736, %v697
  %763 = vst.msk [vmem:[%s3 + $0xd0] sm:$0xff] %vm736, %v698
  %764 = vst.msk [vmem:[%s3 + $0xd8] sm:$0xff] %vm736, %v699
  %765 = vst.msk [vmem:[%s3 + $0xe0] sm:$0xff] %vm736, %v700
  %766 = vst.msk [vmem:[%s3 + $0xe8] sm:$0xff] %vm736, %v701
  %767 = vst.msk [vmem:[%s3 + $0xf0] sm:$0xff] %vm736, %v702
  %768 = vst.msk [vmem:[%s3 + $0xf8] sm:$0xff] %vm736, %v703
  %769 = vst.msk [vmem:[%s3 + $0x100] sm:$0xff] %vm736, %v704
  %770 = vst.msk [vmem:[%s3 + $0x108] sm:$0xff] %vm736, %v705
  %771 = vst.msk [vmem:[%s3 + $0x110] sm:$0xff] %vm736, %v706
  %772 = vst.msk [vmem:[%s3 + $0x118] sm:$0xff] %vm736, %v707
  %773 = vst.msk [vmem:[%s3 + $0x120] sm:$0xff] %vm736, %v708
  %774 = vst.msk [vmem:[%s3 + $0x128] sm:$0xff] %vm736, %v709
  %775 = vst.msk [vmem:[%s3 + $0x130] sm:$0xff] %vm736, %v710
  %776 = vst.msk [vmem:[%s3 + $0x138] sm:$0xff] %vm736, %v711
  %777 = vst.msk [vmem:[%s3 + $0x140] sm:$0xff] %vm736, %v712
  %778 = vst.msk [vmem:[%s3 + $0x148] sm:$0xff] %vm736, %v713
  %779 = vst.msk [vmem:[%s3 + $0x150] sm:$0xff] %vm736, %v714
  %780 = vst.msk [vmem:[%s3 + $0x158] sm:$0xff] %vm736, %v715
  %781 = vst.msk [vmem:[%s3 + $0x160] sm:$0xff] %vm736, %v716
  %782 = vst.msk [vmem:[%s3 + $0x168] sm:$0xff] %vm736, %v717
  %783 = vst.msk [vmem:[%s3 + $0x170] sm:$0xff] %vm736, %v718
  %784 = vst.msk [vmem:[%s3 + $0x178] sm:$0xff] %vm736, %v719
  %785 = vst.msk [vmem:[%s3 + $0x180] sm:$0xff] %vm736, %v720
  %786 = vst.msk [vmem:[%s3 + $0x188] sm:$0xff] %vm736, %v721
  %787 = vst.msk [vmem:[%s3 + $0x190] sm:$0xff] %vm736, %v722
  %788 = vst.msk [vmem:[%s3 + $0x198] sm:$0xff] %vm736, %v723
  %789 = vst.msk [vmem:[%s3 + $0x1a0] sm:$0xff] %vm736, %v724
  %790 = vst.msk [vmem:[%s3 + $0x1a8] sm:$0xff] %vm736, %v725
  %791 = vst.msk [vmem:[%s3 + $0x1b0] sm:$0xff] %vm736, %v726
  %792 = vst.msk [vmem:[%s3 + $0x1b8] sm:$0xff] %vm736, %v727
  %793 = vst.msk [vmem:[%s3 + $0x1c0] sm:$0xff] %vm736, %v728
  %794 = vst.msk [vmem:[%s3 + $0x1c8] sm:$0xff] %vm736, %v729
  %795 = vst.msk [vmem:[%s3 + $0x1d0] sm:$0xff] %vm736, %v730
  %796 = vst.msk [vmem:[%s3 + $0x1d8] sm:$0xff] %vm736, %v731
  %797 = vst.msk [vmem:[%s3 + $0x1e0] sm:$0xff] %vm736, %v732
  %798 = vst.msk [vmem:[%s3 + $0x1e8] sm:$0xff] %vm736, %v733
  %799 = vst.msk [vmem:[%s3 + $0x1f0] sm:$0xff] %vm736, %v734
  %800 = vst.msk [vmem:[%s3 + $0x1f8] sm:$0xff] %vm736, %v735
  // Predicated region
  $region14: #{resnet14_forward.14} parent=0 // pred_check
    _
  $region15: #{resnet14_forward.14} parent=0 // pred_check_branch
    %802 = sbr.rel (0) target = $region17
  $region16: #{resnet14_forward.14} parent=0 // pred_region
    _
  $region17: #{resnet14_forward.14} parent=0 // pred_fallthru
    _
  // Predicated region
  $region18: #{resnet14_forward.14} parent=0 // pred_check
    _
  $region19: #{resnet14_forward.14} parent=0 // pred_check_branch
    %804 = sbr.rel (0) target = $region21
  $region20: #{resnet14_forward.14} parent=0 // pred_region
    _
  $region21: #{resnet14_forward.14} parent=0 // pred_fallthru
    _

// kernel: resnet14_forward.15
$region0: #{resnet14_forward.15}
  #allocation0 [shape = 'u32[]', space=smem, size = 0x4, offset = 0x4, fixed_abs, tag = 'smem constant byte address 0x4 - core index']
  #allocation1 [shape = 'u32[144,128]{1,0:T(1,128)}', space=vmem, size = 0x12000, scoped, tag = 'internal scratch']
  %s0 = inlined_call_operand.vmem [shape: bf16[512,144], index: 0, kind: input, shape index: {}]
  %s1 = inlined_call_operand.vmem [shape: bf16[144,16], index: 1, kind: input, shape index: {}]
  %s2 = inlined_call_operand.vmem [shape: f32[1,16], index: 2, kind: input, shape index: {}]
  %s3 = inlined_call_operand.vmem [shape: f32[512,16], index: 3, kind: output, shape index: {}]
  %s4 = sld [smem:[#allocation0]]
  $region22: #{resnet14_forward.15} parent=0
    _
  %s6 = ssub.s32 1, %s4
  %s7 = scalar_select 0, %s6, %s4
  // Predicated region
  $region2: #{resnet14_forward.15} parent=0 // pred_check
    _
  $region3: #{resnet14_forward.15} parent=0 // pred_check_branch
    %9 = sbr.rel (0) target = $region5
  $region4: #{resnet14_forward.15} parent=0 // pred_region
    _
  $region5: #{resnet14_forward.15} parent=0 // pred_fallthru
    _
  // Predicated region
  $region6: #{resnet14_forward.15} parent=0 // pred_check
    _
  $region7: #{resnet14_forward.15} parent=0 // pred_check_branch
    %11 = sbr.rel (0) target = $region9
  $region8: #{resnet14_forward.15} parent=0 // pred_region
    _
  $region9: #{resnet14_forward.15} parent=0 // pred_fallthru
    _
  // Predicated region
  $region10: #{resnet14_forward.15} parent=0 // pred_check
    _
  $region11: #{resnet14_forward.15} parent=0 // pred_check_branch
    %13 = sbr.rel (0) target = $region13
  $region12: #{resnet14_forward.15} parent=0 // pred_region
    _
  $region13: #{resnet14_forward.15} parent=0 // pred_fallthru
    _
  %v15 = vld [vmem:[%s0] sm:$0xff]
  %v16 = vld [vmem:[%s0 + $0x8] sm:$0xff]
  %v17 = vld [vmem:[%s0 + $0x10] sm:$0xff]
  %v18 = vld [vmem:[%s0 + $0x18] sm:$0xff]
  %v19 = vld [vmem:[%s0 + $0x20] sm:$0xff]
  %v20 = vld [vmem:[%s0 + $0x28] sm:$0xff]
  %v21 = vld [vmem:[%s0 + $0x30] sm:$0xff]
  %v22 = vld [vmem:[%s0 + $0x38] sm:$0xff]
  %v23 = vld [vmem:[%s0 + $0x40] sm:$0xff]
  %v24 = vld [vmem:[%s0 + $0x48] sm:$0xff]
  %v25 = vld [vmem:[%s0 + $0x50] sm:$0xff]
  %v26 = vld [vmem:[%s0 + $0x58] sm:$0xff]
  %v27 = vld [vmem:[%s0 + $0x60] sm:$0xff]
  %v28 = vld [vmem:[%s0 + $0x68] sm:$0xff]
  %v29 = vld [vmem:[%s0 + $0x70] sm:$0xff]
  %v30 = vld [vmem:[%s0 + $0x78] sm:$0xff]
  %v31 = vld [vmem:[%s0 + $0x80] sm:$0xff]
  %v32 = vld [vmem:[%s0 + $0x88] sm:$0xff]
  %v33 = vld [vmem:[%s0 + $0x90] sm:$0xff]
  %v34 = vld [vmem:[%s0 + $0x98] sm:$0xff]
  %v35 = vld [vmem:[%s0 + $0xa0] sm:$0xff]
  %v36 = vld [vmem:[%s0 + $0xa8] sm:$0xff]
  %v37 = vld [vmem:[%s0 + $0xb0] sm:$0xff]
  %v38 = vld [vmem:[%s0 + $0xb8] sm:$0xff]
  %v39 = vld [vmem:[%s0 + $0xc0] sm:$0xff]
  %v40 = vld [vmem:[%s0 + $0xc8] sm:$0xff]
  %v41 = vld [vmem:[%s0 + $0xd0] sm:$0xff]
  %v42 = vld [vmem:[%s0 + $0xd8] sm:$0xff]
  %v43 = vld [vmem:[%s0 + $0xe0] sm:$0xff]
  %v44 = vld [vmem:[%s0 + $0xe8] sm:$0xff]
  %v45 = vld [vmem:[%s0 + $0xf0] sm:$0xff]
  %v46 = vld [vmem:[%s0 + $0xf8] sm:$0xff]
  %v47 = vld [vmem:[%s0 + $0x100] sm:$0xff]
  %v48 = vld [vmem:[%s0 + $0x108] sm:$0xff]
  %v49 = vld [vmem:[%s0 + $0x110] sm:$0xff]
  %v50 = vld [vmem:[%s0 + $0x118] sm:$0xff]
  %v51 = vld [vmem:[%s0 + $0x120] sm:$0xff]
  %v52 = vld [vmem:[%s0 + $0x128] sm:$0xff]
  %v53 = vld [vmem:[%s0 + $0x130] sm:$0xff]
  %v54 = vld [vmem:[%s0 + $0x138] sm:$0xff]
  %v55 = vld [vmem:[%s0 + $0x140] sm:$0xff]
  %v56 = vld [vmem:[%s0 + $0x148] sm:$0xff]
  %v57 = vld [vmem:[%s0 + $0x150] sm:$0xff]
  %v58 = vld [vmem:[%s0 + $0x158] sm:$0xff]
  %v59 = vld [vmem:[%s0 + $0x160] sm:$0xff]
  %v60 = vld [vmem:[%s0 + $0x168] sm:$0xff]
  %v61 = vld [vmem:[%s0 + $0x170] sm:$0xff]
  %v62 = vld [vmem:[%s0 + $0x178] sm:$0xff]
  %v63 = vld [vmem:[%s0 + $0x180] sm:$0xff]
  %v64 = vld [vmem:[%s0 + $0x188] sm:$0xff]
  %v65 = vld [vmem:[%s0 + $0x190] sm:$0xff]
  %v66 = vld [vmem:[%s0 + $0x198] sm:$0xff]
  %v67 = vld [vmem:[%s0 + $0x1a0] sm:$0xff]
  %v68 = vld [vmem:[%s0 + $0x1a8] sm:$0xff]
  %v69 = vld [vmem:[%s0 + $0x1b0] sm:$0xff]
  %v70 = vld [vmem:[%s0 + $0x1b8] sm:$0xff]
  %v71 = vld [vmem:[%s0 + $0x1c0] sm:$0xff]
  %v72 = vld [vmem:[%s0 + $0x1c8] sm:$0xff]
  %v73 = vld [vmem:[%s0 + $0x1d0] sm:$0xff]
  %v74 = vld [vmem:[%s0 + $0x1d8] sm:$0xff]
  %v75 = vld [vmem:[%s0 + $0x1e0] sm:$0xff]
  %v76 = vld [vmem:[%s0 + $0x1e8] sm:$0xff]
  %v77 = vld [vmem:[%s0 + $0x1f0] sm:$0xff]
  %v78 = vld [vmem:[%s0 + $0x1f8] sm:$0xff]
  %v79 = vld [vmem:[%s1] sm:$0xf]
  %v80 = vld [vmem:[%s1 + $0x4] sm:$0xf]
  %v81 = vld [vmem:[%s1 + $0x8] sm:$0xf]
  %v82 = vld [vmem:[%s1 + $0xc] sm:$0xf]
  %v83 = vld [vmem:[%s1 + $0x10] sm:$0xf]
  %v84 = vld [vmem:[%s1 + $0x14] sm:$0xf]
  %v85 = vld [vmem:[%s1 + $0x18] sm:$0xf]
  %v86 = vld [vmem:[%s1 + $0x1c] sm:$0xf]
  %v87 = vld [vmem:[%s1 + $0x20] sm:$0xf]
  %v88 = vld [vmem:[%s1 + $0x24] sm:$0xf]
  %v89 = vld [vmem:[%s1 + $0x28] sm:$0xf]
  %v90 = vld [vmem:[%s1 + $0x2c] sm:$0xf]
  %v91 = vld [vmem:[%s1 + $0x30] sm:$0xf]
  %v92 = vld [vmem:[%s1 + $0x34] sm:$0xf]
  %v93 = vld [vmem:[%s1 + $0x38] sm:$0xf]
  %v94 = vld [vmem:[%s1 + $0x3c] sm:$0xf]
  %v95 = vld [vmem:[%s1 + $0x40] sm:$0xf]
  %v96 = vld [vmem:[%s1 + $0x44] sm:$0xf]
  %v97 = vld [vmem:[%s2] sm:$0x1]
  %v99 = vlaneseq
  %v100 = vshrl.u32 %v99, 7
  %v101 = vsub.s32 0, %v100
  %v102 = vrot.slane %v97, %v101
  %v168 = vunpack.c.l.b16 %v15
  %v169 = vunpack.c.h.b16 %v15
  %v170 = vunpack.c.l.b16 %v16
  %v171 = vunpack.c.h.b16 %v16
  %v172 = vunpack.c.l.b16 %v17
  %v173 = vunpack.c.h.b16 %v17
  %v174 = vunpack.c.l.b16 %v18
  %v175 = vunpack.c.h.b16 %v18
  %v176 = vunpack.c.l.b16 %v19
  %v177 = vunpack.c.h.b16 %v19
  %v178 = vunpack.c.l.b16 %v20
  %v179 = vunpack.c.h.b16 %v20
  %v180 = vunpack.c.l.b16 %v21
  %v181 = vunpack.c.h.b16 %v21
  %v182 = vunpack.c.l.b16 %v22
  %v183 = vunpack.c.h.b16 %v22
  %v184 = vunpack.c.l.b16 %v23
  %v185 = vunpack.c.h.b16 %v23
  %v186 = vunpack.c.l.b16 %v24
  %v187 = vunpack.c.h.b16 %v24
  %v188 = vunpack.c.l.b16 %v25
  %v189 = vunpack.c.h.b16 %v25
  %v190 = vunpack.c.l.b16 %v26
  %v191 = vunpack.c.h.b16 %v26
  %v192 = vunpack.c.l.b16 %v27
  %v193 = vunpack.c.h.b16 %v27
  %v194 = vunpack.c.l.b16 %v28
  %v195 = vunpack.c.h.b16 %v28
  %v196 = vunpack.c.l.b16 %v29
  %v197 = vunpack.c.h.b16 %v29
  %v198 = vunpack.c.l.b16 %v30
  %v199 = vunpack.c.h.b16 %v30
  %v200 = vunpack.c.l.b16 %v31
  %v201 = vunpack.c.h.b16 %v31
  %v202 = vunpack.c.l.b16 %v32
  %v203 = vunpack.c.h.b16 %v32
  %v204 = vunpack.c.l.b16 %v33
  %v205 = vunpack.c.h.b16 %v33
  %v206 = vunpack.c.l.b16 %v34
  %v207 = vunpack.c.h.b16 %v34
  %v208 = vunpack.c.l.b16 %v35
  %v209 = vunpack.c.h.b16 %v35
  %v210 = vunpack.c.l.b16 %v36
  %v211 = vunpack.c.h.b16 %v36
  %v212 = vunpack.c.l.b16 %v37
  %v213 = vunpack.c.h.b16 %v37
  %v214 = vunpack.c.l.b16 %v38
  %v215 = vunpack.c.h.b16 %v38
  %v216 = vunpack.c.l.b16 %v39
  %v217 = vunpack.c.h.b16 %v39
  %v218 = vunpack.c.l.b16 %v40
  %v219 = vunpack.c.h.b16 %v40
  %v220 = vunpack.c.l.b16 %v41
  %v221 = vunpack.c.h.b16 %v41
  %v222 = vunpack.c.l.b16 %v42
  %v223 = vunpack.c.h.b16 %v42
  %v224 = vunpack.c.l.b16 %v43
  %v225 = vunpack.c.h.b16 %v43
  %v226 = vunpack.c.l.b16 %v44
  %v227 = vunpack.c.h.b16 %v44
  %v228 = vunpack.c.l.b16 %v45
  %v229 = vunpack.c.h.b16 %v45
  %v230 = vunpack.c.l.b16 %v46
  %v231 = vunpack.c.h.b16 %v46
  %v232 = vunpack.c.l.b16 %v47
  %v233 = vunpack.c.h.b16 %v47
  %v234 = vunpack.c.l.b16 %v48
  %v235 = vunpack.c.h.b16 %v48
  %v236 = vunpack.c.l.b16 %v49
  %v237 = vunpack.c.h.b16 %v49
  %v238 = vunpack.c.l.b16 %v50
  %v239 = vunpack.c.h.b16 %v50
  %v240 = vunpack.c.l.b16 %v51
  %v241 = vunpack.c.h.b16 %v51
  %v242 = vunpack.c.l.b16 %v52
  %v243 = vunpack.c.h.b16 %v52
  %v244 = vunpack.c.l.b16 %v53
  %v245 = vunpack.c.h.b16 %v53
  %v246 = vunpack.c.l.b16 %v54
  %v247 = vunpack.c.h.b16 %v54
  %v248 = vunpack.c.l.b16 %v55
  %v249 = vunpack.c.h.b16 %v55
  %v250 = vunpack.c.l.b16 %v56
  %v251 = vunpack.c.h.b16 %v56
  %v252 = vunpack.c.l.b16 %v57
  %v253 = vunpack.c.h.b16 %v57
  %v254 = vunpack.c.l.b16 %v58
  %v255 = vunpack.c.h.b16 %v58
  %v256 = vunpack.c.l.b16 %v59
  %v257 = vunpack.c.h.b16 %v59
  %v258 = vunpack.c.l.b16 %v60
  %v259 = vunpack.c.h.b16 %v60
  %v260 = vunpack.c.l.b16 %v61
  %v261 = vunpack.c.h.b16 %v61
  %v262 = vunpack.c.l.b16 %v62
  %v263 = vunpack.c.h.b16 %v62
  %v264 = vunpack.c.l.b16 %v63
  %v265 = vunpack.c.h.b16 %v63
  %v266 = vunpack.c.l.b16 %v64
  %v267 = vunpack.c.h.b16 %v64
  %v268 = vunpack.c.l.b16 %v65
  %v269 = vunpack.c.h.b16 %v65
  %v270 = vunpack.c.l.b16 %v66
  %v271 = vunpack.c.h.b16 %v66
  %v272 = vunpack.c.l.b16 %v67
  %v273 = vunpack.c.h.b16 %v67
  %v274 = vunpack.c.l.b16 %v68
  %v275 = vunpack.c.h.b16 %v68
  %v276 = vunpack.c.l.b16 %v69
  %v277 = vunpack.c.h.b16 %v69
  %v278 = vunpack.c.l.b16 %v70
  %v279 = vunpack.c.h.b16 %v70
  %v280 = vunpack.c.l.b16 %v71
  %v281 = vunpack.c.h.b16 %v71
  %v282 = vunpack.c.l.b16 %v72
  %v283 = vunpack.c.h.b16 %v72
  %v284 = vunpack.c.l.b16 %v73
  %v285 = vunpack.c.h.b16 %v73
  %v286 = vunpack.c.l.b16 %v74
  %v287 = vunpack.c.h.b16 %v74
  %v288 = vunpack.c.l.b16 %v75
  %v289 = vunpack.c.h.b16 %v75
  %v290 = vunpack.c.l.b16 %v76
  %v291 = vunpack.c.h.b16 %v76
  %v292 = vunpack.c.l.b16 %v77
  %v293 = vunpack.c.h.b16 %v77
  %v294 = vunpack.c.l.b16 %v78
  %v295 = vunpack.c.h.b16 %v78
  %v296 = vpack.c.b16 %v170, %v168
  %v297 = vpack.c.b16 %v171, %v169
  %v298 = vpack.c.b16 %v174, %v172
  %v299 = vpack.c.b16 %v175, %v173
  %v300 = vpack.c.b16 %v178, %v176
  %v301 = vpack.c.b16 %v179, %v177
  %v302 = vpack.c.b16 %v182, %v180
  %v303 = vpack.c.b16 %v183, %v181
  %v304 = vpack.c.b16 %v186, %v184
  %v305 = vpack.c.b16 %v187, %v185
  %v306 = vpack.c.b16 %v190, %v188
  %v307 = vpack.c.b16 %v191, %v189
  %v308 = vpack.c.b16 %v194, %v192
  %v309 = vpack.c.b16 %v195, %v193
  %v310 = vpack.c.b16 %v198, %v196
  %v311 = vpack.c.b16 %v199, %v197
  %v312 = vpack.c.b16 %v202, %v200
  %v313 = vpack.c.b16 %v203, %v201
  %v314 = vpack.c.b16 %v206, %v204
  %v315 = vpack.c.b16 %v207, %v205
  %v316 = vpack.c.b16 %v210, %v208
  %v317 = vpack.c.b16 %v211, %v209
  %v318 = vpack.c.b16 %v214, %v212
  %v319 = vpack.c.b16 %v215, %v213
  %v320 = vpack.c.b16 %v218, %v216
  %v321 = vpack.c.b16 %v219, %v217
  %v322 = vpack.c.b16 %v222, %v220
  %v323 = vpack.c.b16 %v223, %v221
  %v324 = vpack.c.b16 %v226, %v224
  %v325 = vpack.c.b16 %v227, %v225
  %v326 = vpack.c.b16 %v230, %v228
  %v327 = vpack.c.b16 %v231, %v229
  %v328 = vpack.c.b16 %v234, %v232
  %v329 = vpack.c.b16 %v235, %v233
  %v330 = vpack.c.b16 %v238, %v236
  %v331 = vpack.c.b16 %v239, %v237
  %v332 = vpack.c.b16 %v242, %v240
  %v333 = vpack.c.b16 %v243, %v241
  %v334 = vpack.c.b16 %v246, %v244
  %v335 = vpack.c.b16 %v247, %v245
  %v336 = vpack.c.b16 %v250, %v248
  %v337 = vpack.c.b16 %v251, %v249
  %v338 = vpack.c.b16 %v254, %v252
  %v339 = vpack.c.b16 %v255, %v253
  %v340 = vpack.c.b16 %v258, %v256
  %v341 = vpack.c.b16 %v259, %v257
  %v342 = vpack.c.b16 %v262, %v260
  %v343 = vpack.c.b16 %v263, %v261
  %v344 = vpack.c.b16 %v266, %v264
  %v345 = vpack.c.b16 %v267, %v265
  %v346 = vpack.c.b16 %v270, %v268
  %v347 = vpack.c.b16 %v271, %v269
  %v348 = vpack.c.b16 %v274, %v272
  %v349 = vpack.c.b16 %v275, %v273
  %v350 = vpack.c.b16 %v278, %v276
  %v351 = vpack.c.b16 %v279, %v277
  %v352 = vpack.c.b16 %v282, %v280
  %v353 = vpack.c.b16 %v283, %v281
  %v354 = vpack.c.b16 %v286, %v284
  %v355 = vpack.c.b16 %v287, %v285
  %v356 = vpack.c.b16 %v290, %v288
  %v357 = vpack.c.b16 %v291, %v289
  %v358 = vpack.c.b16 %v294, %v292
  %v359 = vpack.c.b16 %v295, %v293
  %v410 = vunpack.c.l.b16 %v79
  %v411 = vunpack.c.l.b16 %v80
  %v412 = vunpack.c.l.b16 %v81
  %v413 = vunpack.c.l.b16 %v82
  %v414 = vunpack.c.l.b16 %v83
  %v415 = vunpack.c.l.b16 %v84
  %v416 = vunpack.c.l.b16 %v85
  %v417 = vunpack.c.l.b16 %v86
  %v418 = vunpack.c.l.b16 %v87
  %v419 = vunpack.c.l.b16 %v88
  %v420 = vunpack.c.l.b16 %v89
  %v421 = vunpack.c.l.b16 %v90
  %v422 = vunpack.c.l.b16 %v91
  %v423 = vunpack.c.l.b16 %v92
  %v424 = vunpack.c.l.b16 %v93
  %v425 = vunpack.c.l.b16 %v94
  %v426 = vunpack.c.l.b16 %v95
  %v427 = vunpack.c.l.b16 %v96
  %v428 = vpack.c.b16 %v411, %v410
  %v429 = vpack.c.b16 %v413, %v412
  %v430 = vpack.c.b16 %v415, %v414
  %v431 = vpack.c.b16 %v417, %v416
  %v432 = vpack.c.b16 %v419, %v418
  %v433 = vpack.c.b16 %v421, %v420
  %v434 = vpack.c.b16 %v423, %v422
  %v435 = vpack.c.b16 %v425, %v424
  %v436 = vpack.c.b16 %v427, %v426
  %vm446 = vcmask 130048
  %v448 = vsel %vm446, %v297, 0
  %v451 = vsel %vm446, %v299, 0
  %v454 = vsel %vm446, %v301, 0
  %v457 = vsel %vm446, %v303, 0
  %v460 = vsel %vm446, %v305, 0
  %v463 = vsel %vm446, %v307, 0
  %v466 = vsel %vm446, %v309, 0
  %v469 = vsel %vm446, %v311, 0
  %v472 = vsel %vm446, %v313, 0
  %v475 = vsel %vm446, %v315, 0
  %v478 = vsel %vm446, %v317, 0
  %v481 = vsel %vm446, %v319, 0
  %v484 = vsel %vm446, %v321, 0
  %v487 = vsel %vm446, %v323, 0
  %v490 = vsel %vm446, %v325, 0
  %v493 = vsel %vm446, %v327, 0
  %v496 = vsel %vm446, %v329, 0
  %v499 = vsel %vm446, %v331, 0
  %v502 = vsel %vm446, %v333, 0
  %v505 = vsel %vm446, %v335, 0
  %v508 = vsel %vm446, %v337, 0
  %v511 = vsel %vm446, %v339, 0
  %v514 = vsel %vm446, %v341, 0
  %v517 = vsel %vm446, %v343, 0
  %v520 = vsel %vm446, %v345, 0
  %v523 = vsel %vm446, %v347, 0
  %v526 = vsel %vm446, %v349, 0
  %v529 = vsel %vm446, %v351, 0
  %v532 = vsel %vm446, %v353, 0
  %v535 = vsel %vm446, %v355, 0
  %v538 = vsel %vm446, %v357, 0
  %v541 = vsel %vm446, %v359, 0
  %543 = vmatprep.subr.bf16.mxu0 0
  %544 = vmatpush1.bf16.msra.mxu0 %v435
  %545 = vmatprep.subr.bf16.mxu0 0
  %546 = vmatpush1.bf16.msra.mxu0 %v434
  %547 = vmatprep.subr.bf16.mxu0 0
  %548 = vmatpush1.bf16.msra.mxu0 %v433
  %549 = vmatprep.subr.bf16.mxu0 0
  %550 = vmatpush1.bf16.msra.mxu0 %v432
  %551 = vmatprep.subr.bf16.mxu0 0
  %552 = vmatpush1.bf16.msra.mxu0 %v431
  %553 = vmatprep.subr.bf16.mxu0 0
  %554 = vmatpush1.bf16.msra.mxu0 %v430
  %555 = vmatprep.subr.bf16.mxu0 0
  %556 = vmatpush1.bf16.msra.mxu0 %v429
  %557 = vmatprep.subr.bf16.mxu0 0
  %558 = vmatpush1.bf16.msra.mxu0 %v428
  %559 = vmatprep.subr.bf16.mxu0 0
  %560 = vmatpush2.bf16.msra.mxu0 0
  %561 = vmatprep.subr.bf16.mxu0 0
  %562 = vmatpush2.bf16.msra.mxu0 0
  %563 = vmatprep.subr.bf16.mxu0 0
  %564 = vmatpush2.bf16.msra.mxu0 0
  %565 = vmatprep.subr.bf16.mxu0 0
  %566 = vmatpush2.bf16.msra.mxu0 0
  %567 = vmatprep.subr.bf16.mxu0 0
  %568 = vmatpush2.bf16.msra.mxu0 0
  %569 = vmatprep.subr.bf16.mxu0 0
  %570 = vmatpush2.bf16.msra.mxu0 0
  %571 = vmatprep.subr.bf16.mxu0 0
  %572 = vmatpush2.bf16.msra.mxu0 0
  %573 = vmatprep.subr.bf16.mxu0 0
  %574 = vmatpush2.bf16.msra.mxu0 %v436
  %575 = vmatprep.mubr.bf16.mxu0 %v448
  %576 = vmatmul.mubr.bf16.gmra.mxu0 %v296
  %v577 = vpop.f32.mrf.mxu0
  %v578 = vadd.f32 %v102, %v577
  %v579 = vpop.f32.mrf.mxu0
  %v580 = vpop.f32.mrf.mxu0
  %v581 = vadd.f32 %v102, %v580
  %v582 = vpop.f32.mrf.mxu0
  %583 = vmatprep.mubr.bf16.mxu0 %v451
  %584 = vmatmul.mubr.bf16.gmra.mxu0 %v298
  %v585 = vpop.f32.mrf.mxu0
  %v586 = vadd.f32 %v102, %v585
  %v587 = vpop.f32.mrf.mxu0
  %v588 = vpop.f32.mrf.mxu0
  %v589 = vadd.f32 %v102, %v588
  %v590 = vpop.f32.mrf.mxu0
  %591 = vmatprep.mubr.bf16.mxu0 %v454
  %592 = vmatmul.mubr.bf16.gmra.mxu0 %v300
  %v593 = vpop.f32.mrf.mxu0
  %v594 = vadd.f32 %v102, %v593
  %v595 = vpop.f32.mrf.mxu0
  %v596 = vpop.f32.mrf.mxu0
  %v597 = vadd.f32 %v102, %v596
  %v598 = vpop.f32.mrf.mxu0
  %599 = vmatprep.mubr.bf16.mxu0 %v457
  %600 = vmatmul.mubr.bf16.gmra.mxu0 %v302
  %v601 = vpop.f32.mrf.mxu0
  %v602 = vadd.f32 %v102, %v601
  %v603 = vpop.f32.mrf.mxu0
  %v604 = vpop.f32.mrf.mxu0
  %v605 = vadd.f32 %v102, %v604
  %v606 = vpop.f32.mrf.mxu0
  %607 = vmatprep.mubr.bf16.mxu0 %v460
  %608 = vmatmul.mubr.bf16.gmra.mxu0 %v304
  %v609 = vpop.f32.mrf.mxu0
  %v610 = vadd.f32 %v102, %v609
  %v611 = vpop.f32.mrf.mxu0
  %v612 = vpop.f32.mrf.mxu0
  %v613 = vadd.f32 %v102, %v612
  %v614 = vpop.f32.mrf.mxu0
  %615 = vmatprep.mubr.bf16.mxu0 %v463
  %616 = vmatmul.mubr.bf16.gmra.mxu0 %v306
  %v617 = vpop.f32.mrf.mxu0
  %v618 = vadd.f32 %v102, %v617
  %v619 = vpop.f32.mrf.mxu0
  %v620 = vpop.f32.mrf.mxu0
  %v621 = vadd.f32 %v102, %v620
  %v622 = vpop.f32.mrf.mxu0
  %623 = vmatprep.mubr.bf16.mxu0 %v466
  %624 = vmatmul.mubr.bf16.gmra.mxu0 %v308
  %v625 = vpop.f32.mrf.mxu0
  %v626 = vadd.f32 %v102, %v625
  %v627 = vpop.f32.mrf.mxu0
  %v628 = vpop.f32.mrf.mxu0
  %v629 = vadd.f32 %v102, %v628
  %v630 = vpop.f32.mrf.mxu0
  %631 = vmatprep.mubr.bf16.mxu0 %v469
  %632 = vmatmul.mubr.bf16.gmra.mxu0 %v310
  %v633 = vpop.f32.mrf.mxu0
  %v634 = vadd.f32 %v102, %v633
  %v635 = vpop.f32.mrf.mxu0
  %v636 = vpop.f32.mrf.mxu0
  %v637 = vadd.f32 %v102, %v636
  %v638 = vpop.f32.mrf.mxu0
  %639 = vmatprep.mubr.bf16.mxu0 %v472
  %640 = vmatmul.mubr.bf16.gmra.mxu0 %v312
  %v641 = vpop.f32.mrf.mxu0
  %v642 = vadd.f32 %v102, %v641
  %v643 = vpop.f32.mrf.mxu0
  %v644 = vpop.f32.mrf.mxu0
  %v645 = vadd.f32 %v102, %v644
  %v646 = vpop.f32.mrf.mxu0
  %647 = vmatprep.mubr.bf16.mxu0 %v475
  %648 = vmatmul.mubr.bf16.gmra.mxu0 %v314
  %v649 = vpop.f32.mrf.mxu0
  %v650 = vadd.f32 %v102, %v649
  %v651 = vpop.f32.mrf.mxu0
  %v652 = vpop.f32.mrf.mxu0
  %v653 = vadd.f32 %v102, %v652
  %v654 = vpop.f32.mrf.mxu0
  %655 = vmatprep.mubr.bf16.mxu0 %v478
  %656 = vmatmul.mubr.bf16.gmra.mxu0 %v316
  %v657 = vpop.f32.mrf.mxu0
  %v658 = vadd.f32 %v102, %v657
  %v659 = vpop.f32.mrf.mxu0
  %v660 = vpop.f32.mrf.mxu0
  %v661 = vadd.f32 %v102, %v660
  %v662 = vpop.f32.mrf.mxu0
  %663 = vmatprep.mubr.bf16.mxu0 %v481
  %664 = vmatmul.mubr.bf16.gmra.mxu0 %v318
  %v665 = vpop.f32.mrf.mxu0
  %v666 = vadd.f32 %v102, %v665
  %v667 = vpop.f32.mrf.mxu0
  %v668 = vpop.f32.mrf.mxu0
  %v669 = vadd.f32 %v102, %v668
  %v670 = vpop.f32.mrf.mxu0
  %671 = vmatprep.mubr.bf16.mxu0 %v484
  %672 = vmatmul.mubr.bf16.gmra.mxu0 %v320
  %v673 = vpop.f32.mrf.mxu0
  %v674 = vadd.f32 %v102, %v673
  %v675 = vpop.f32.mrf.mxu0
  %v676 = vpop.f32.mrf.mxu0
  %v677 = vadd.f32 %v102, %v676
  %v678 = vpop.f32.mrf.mxu0
  %679 = vmatprep.mubr.bf16.mxu0 %v487
  %680 = vmatmul.mubr.bf16.gmra.mxu0 %v322
  %v681 = vpop.f32.mrf.mxu0
  %v682 = vadd.f32 %v102, %v681
  %v683 = vpop.f32.mrf.mxu0
  %v684 = vpop.f32.mrf.mxu0
  %v685 = vadd.f32 %v102, %v684
  %v686 = vpop.f32.mrf.mxu0
  %687 = vmatprep.mubr.bf16.mxu0 %v490
  %688 = vmatmul.mubr.bf16.gmra.mxu0 %v324
  %v689 = vpop.f32.mrf.mxu0
  %v690 = vadd.f32 %v102, %v689
  %v691 = vpop.f32.mrf.mxu0
  %v692 = vpop.f32.mrf.mxu0
  %v693 = vadd.f32 %v102, %v692
  %v694 = vpop.f32.mrf.mxu0
  %695 = vmatprep.mubr.bf16.mxu0 %v493
  %696 = vmatmul.mubr.bf16.gmra.mxu0 %v326
  %v697 = vpop.f32.mrf.mxu0
  %v698 = vadd.f32 %v102, %v697
  %v699 = vpop.f32.mrf.mxu0
  %v700 = vpop.f32.mrf.mxu0
  %v701 = vadd.f32 %v102, %v700
  %v702 = vpop.f32.mrf.mxu0
  %703 = vmatprep.mubr.bf16.mxu0 %v496
  %704 = vmatmul.mubr.bf16.gmra.mxu0 %v328
  %v705 = vpop.f32.mrf.mxu0
  %v706 = vadd.f32 %v102, %v705
  %v707 = vpop.f32.mrf.mxu0
  %v708 = vpop.f32.mrf.mxu0
  %v709 = vadd.f32 %v102, %v708
  %v710 = vpop.f32.mrf.mxu0
  %711 = vmatprep.mubr.bf16.mxu0 %v499
  %712 = vmatmul.mubr.bf16.gmra.mxu0 %v330
  %v713 = vpop.f32.mrf.mxu0
  %v714 = vadd.f32 %v102, %v713
  %v715 = vpop.f32.mrf.mxu0
  %v716 = vpop.f32.mrf.mxu0
  %v717 = vadd.f32 %v102, %v716
  %v718 = vpop.f32.mrf.mxu0
  %719 = vmatprep.mubr.bf16.mxu0 %v502
  %720 = vmatmul.mubr.bf16.gmra.mxu0 %v332
  %v721 = vpop.f32.mrf.mxu0
  %v722 = vadd.f32 %v102, %v721
  %v723 = vpop.f32.mrf.mxu0
  %v724 = vpop.f32.mrf.mxu0
  %v725 = vadd.f32 %v102, %v724
  %v726 = vpop.f32.mrf.mxu0
  %727 = vmatprep.mubr.bf16.mxu0 %v505
  %728 = vmatmul.mubr.bf16.gmra.mxu0 %v334
  %v729 = vpop.f32.mrf.mxu0
  %v730 = vadd.f32 %v102, %v729
  %v731 = vpop.f32.mrf.mxu0
  %v732 = vpop.f32.mrf.mxu0
  %v733 = vadd.f32 %v102, %v732
  %v734 = vpop.f32.mrf.mxu0
  %735 = vmatprep.mubr.bf16.mxu0 %v508
  %736 = vmatmul.mubr.bf16.gmra.mxu0 %v336
  %v737 = vpop.f32.mrf.mxu0
  %v738 = vadd.f32 %v102, %v737
  %v739 = vpop.f32.mrf.mxu0
  %v740 = vpop.f32.mrf.mxu0
  %v741 = vadd.f32 %v102, %v740
  %v742 = vpop.f32.mrf.mxu0
  %743 = vmatprep.mubr.bf16.mxu0 %v511
  %744 = vmatmul.mubr.bf16.gmra.mxu0 %v338
  %v745 = vpop.f32.mrf.mxu0
  %v746 = vadd.f32 %v102, %v745
  %v747 = vpop.f32.mrf.mxu0
  %v748 = vpop.f32.mrf.mxu0
  %v749 = vadd.f32 %v102, %v748
  %v750 = vpop.f32.mrf.mxu0
  %751 = vmatprep.mubr.bf16.mxu0 %v514
  %752 = vmatmul.mubr.bf16.gmra.mxu0 %v340
  %v753 = vpop.f32.mrf.mxu0
  %v754 = vadd.f32 %v102, %v753
  %v755 = vpop.f32.mrf.mxu0
  %v756 = vpop.f32.mrf.mxu0
  %v757 = vadd.f32 %v102, %v756
  %v758 = vpop.f32.mrf.mxu0
  %759 = vmatprep.mubr.bf16.mxu0 %v517
  %760 = vmatmul.mubr.bf16.gmra.mxu0 %v342
  %v761 = vpop.f32.mrf.mxu0
  %v762 = vadd.f32 %v102, %v761
  %v763 = vpop.f32.mrf.mxu0
  %v764 = vpop.f32.mrf.mxu0
  %v765 = vadd.f32 %v102, %v764
  %v766 = vpop.f32.mrf.mxu0
  %767 = vmatprep.mubr.bf16.mxu0 %v520
  %768 = vmatmul.mubr.bf16.gmra.mxu0 %v344
  %v769 = vpop.f32.mrf.mxu0
  %v770 = vadd.f32 %v102, %v769
  %v771 = vpop.f32.mrf.mxu0
  %v772 = vpop.f32.mrf.mxu0
  %v773 = vadd.f32 %v102, %v772
  %v774 = vpop.f32.mrf.mxu0
  %775 = vmatprep.mubr.bf16.mxu0 %v523
  %776 = vmatmul.mubr.bf16.gmra.mxu0 %v346
  %v777 = vpop.f32.mrf.mxu0
  %v778 = vadd.f32 %v102, %v777
  %v779 = vpop.f32.mrf.mxu0
  %v780 = vpop.f32.mrf.mxu0
  %v781 = vadd.f32 %v102, %v780
  %v782 = vpop.f32.mrf.mxu0
  %783 = vmatprep.mubr.bf16.mxu0 %v526
  %784 = vmatmul.mubr.bf16.gmra.mxu0 %v348
  %v785 = vpop.f32.mrf.mxu0
  %v786 = vadd.f32 %v102, %v785
  %v787 = vpop.f32.mrf.mxu0
  %v788 = vpop.f32.mrf.mxu0
  %v789 = vadd.f32 %v102, %v788
  %v790 = vpop.f32.mrf.mxu0
  %791 = vmatprep.mubr.bf16.mxu0 %v529
  %792 = vmatmul.mubr.bf16.gmra.mxu0 %v350
  %v793 = vpop.f32.mrf.mxu0
  %v794 = vadd.f32 %v102, %v793
  %v795 = vpop.f32.mrf.mxu0
  %v796 = vpop.f32.mrf.mxu0
  %v797 = vadd.f32 %v102, %v796
  %v798 = vpop.f32.mrf.mxu0
  %799 = vmatprep.mubr.bf16.mxu0 %v532
  %800 = vmatmul.mubr.bf16.gmra.mxu0 %v352
  %v801 = vpop.f32.mrf.mxu0
  %v802 = vadd.f32 %v102, %v801
  %v803 = vpop.f32.mrf.mxu0
  %v804 = vpop.f32.mrf.mxu0
  %v805 = vadd.f32 %v102, %v804
  %v806 = vpop.f32.mrf.mxu0
  %807 = vmatprep.mubr.bf16.mxu0 %v535
  %808 = vmatmul.mubr.bf16.gmra.mxu0 %v354
  %v809 = vpop.f32.mrf.mxu0
  %v810 = vadd.f32 %v102, %v809
  %v811 = vpop.f32.mrf.mxu0
  %v812 = vpop.f32.mrf.mxu0
  %v813 = vadd.f32 %v102, %v812
  %v814 = vpop.f32.mrf.mxu0
  %815 = vmatprep.mubr.bf16.mxu0 %v538
  %816 = vmatmul.mubr.bf16.gmra.mxu0 %v356
  %v817 = vpop.f32.mrf.mxu0
  %v818 = vadd.f32 %v102, %v817
  %v819 = vpop.f32.mrf.mxu0
  %v820 = vpop.f32.mrf.mxu0
  %v821 = vadd.f32 %v102, %v820
  %v822 = vpop.f32.mrf.mxu0
  %823 = vmatprep.mubr.bf16.mxu0 %v541
  %824 = vmatmul.mubr.bf16.gmra.mxu0 %v358
  %v825 = vpop.f32.mrf.mxu0
  %v826 = vadd.f32 %v102, %v825
  %v827 = vpop.f32.mrf.mxu0
  %v828 = vpop.f32.mrf.mxu0
  %v829 = vadd.f32 %v102, %v828
  %v830 = vpop.f32.mrf.mxu0
  %831 = vdwg.mxu0
  %v832 = vmax.f32 %v578, 0.0
  %v833 = vmax.f32 %v581, 0.0
  %v834 = vmax.f32 %v586, 0.0
  %v835 = vmax.f32 %v589, 0.0
  %v836 = vmax.f32 %v594, 0.0
  %v837 = vmax.f32 %v597, 0.0
  %v838 = vmax.f32 %v602, 0.0
  %v839 = vmax.f32 %v605, 0.0
  %v840 = vmax.f32 %v610, 0.0
  %v841 = vmax.f32 %v613, 0.0
  %v842 = vmax.f32 %v618, 0.0
  %v843 = vmax.f32 %v621, 0.0
  %v844 = vmax.f32 %v626, 0.0
  %v845 = vmax.f32 %v629, 0.0
  %v846 = vmax.f32 %v634, 0.0
  %v847 = vmax.f32 %v637, 0.0
  %v848 = vmax.f32 %v642, 0.0
  %v849 = vmax.f32 %v645, 0.0
  %v850 = vmax.f32 %v650, 0.0
  %v851 = vmax.f32 %v653, 0.0
  %v852 = vmax.f32 %v658, 0.0
  %v853 = vmax.f32 %v661, 0.0
  %v854 = vmax.f32 %v666, 0.0
  %v855 = vmax.f32 %v669, 0.0
  %v856 = vmax.f32 %v674, 0.0
  %v857 = vmax.f32 %v677, 0.0
  %v858 = vmax.f32 %v682, 0.0
  %v859 = vmax.f32 %v685, 0.0
  %v860 = vmax.f32 %v690, 0.0
  %v861 = vmax.f32 %v693, 0.0
  %v862 = vmax.f32 %v698, 0.0
  %v863 = vmax.f32 %v701, 0.0
  %v864 = vmax.f32 %v706, 0.0
  %v865 = vmax.f32 %v709, 0.0
  %v866 = vmax.f32 %v714, 0.0
  %v867 = vmax.f32 %v717, 0.0
  %v868 = vmax.f32 %v722, 0.0
  %v869 = vmax.f32 %v725, 0.0
  %v870 = vmax.f32 %v730, 0.0
  %v871 = vmax.f32 %v733, 0.0
  %v872 = vmax.f32 %v738, 0.0
  %v873 = vmax.f32 %v741, 0.0
  %v874 = vmax.f32 %v746, 0.0
  %v875 = vmax.f32 %v749, 0.0
  %v876 = vmax.f32 %v754, 0.0
  %v877 = vmax.f32 %v757, 0.0
  %v878 = vmax.f32 %v762, 0.0
  %v879 = vmax.f32 %v765, 0.0
  %v880 = vmax.f32 %v770, 0.0
  %v881 = vmax.f32 %v773, 0.0
  %v882 = vmax.f32 %v778, 0.0
  %v883 = vmax.f32 %v781, 0.0
  %v884 = vmax.f32 %v786, 0.0
  %v885 = vmax.f32 %v789, 0.0
  %v886 = vmax.f32 %v794, 0.0
  %v887 = vmax.f32 %v797, 0.0
  %v888 = vmax.f32 %v802, 0.0
  %v889 = vmax.f32 %v805, 0.0
  %v890 = vmax.f32 %v810, 0.0
  %v891 = vmax.f32 %v813, 0.0
  %v892 = vmax.f32 %v818, 0.0
  %v893 = vmax.f32 %v821, 0.0
  %v894 = vmax.f32 %v826, 0.0
  %v895 = vmax.f32 %v829, 0.0
  %896 = vst.msk [vmem:[%s3] sm:$0xff] %vm446, %v832
  %897 = vst.msk [vmem:[%s3 + $0x8] sm:$0xff] %vm446, %v833
  %898 = vst.msk [vmem:[%s3 + $0x10] sm:$0xff] %vm446, %v834
  %899 = vst.msk [vmem:[%s3 + $0x18] sm:$0xff] %vm446, %v835
  %900 = vst.msk [vmem:[%s3 + $0x20] sm:$0xff] %vm446, %v836
  %901 = vst.msk [vmem:[%s3 + $0x28] sm:$0xff] %vm446, %v837
  %902 = vst.msk [vmem:[%s3 + $0x30] sm:$0xff] %vm446, %v838
  %903 = vst.msk [vmem:[%s3 + $0x38] sm:$0xff] %vm446, %v839
  %904 = vst.msk [vmem:[%s3 + $0x40] sm:$0xff] %vm446, %v840
  %905 = vst.msk [vmem:[%s3 + $0x48] sm:$0xff] %vm446, %v841
  %906 = vst.msk [vmem:[%s3 + $0x50] sm:$0xff] %vm446, %v842
  %907 = vst.msk [vmem:[%s3 + $0x58] sm:$0xff] %vm446, %v843
  %908 = vst.msk [vmem:[%s3 + $0x60] sm:$0xff] %vm446, %v844
  %909 = vst.msk [vmem:[%s3 + $0x68] sm:$0xff] %vm446, %v845
  %910 = vst.msk [vmem:[%s3 + $0x70] sm:$0xff] %vm446, %v846
  %911 = vst.msk [vmem:[%s3 + $0x78] sm:$0xff] %vm446, %v847
  %912 = vst.msk [vmem:[%s3 + $0x80] sm:$0xff] %vm446, %v848
  %913 = vst.msk [vmem:[%s3 + $0x88] sm:$0xff] %vm446, %v849
  %914 = vst.msk [vmem:[%s3 + $0x90] sm:$0xff] %vm446, %v850
  %915 = vst.msk [vmem:[%s3 + $0x98] sm:$0xff] %vm446, %v851
  %916 = vst.msk [vmem:[%s3 + $0xa0] sm:$0xff] %vm446, %v852
  %917 = vst.msk [vmem:[%s3 + $0xa8] sm:$0xff] %vm446, %v853
  %918 = vst.msk [vmem:[%s3 + $0xb0] sm:$0xff] %vm446, %v854
  %919 = vst.msk [vmem:[%s3 + $0xb8] sm:$0xff] %vm446, %v855
  %920 = vst.msk [vmem:[%s3 + $0xc0] sm:$0xff] %vm446, %v856
  %921 = vst.msk [vmem:[%s3 + $0xc8] sm:$0xff] %vm446, %v857
  %922 = vst.msk [vmem:[%s3 + $0xd0] sm:$0xff] %vm446, %v858
  %923 = vst.msk [vmem:[%s3 + $0xd8] sm:$0xff] %vm446, %v859
  %924 = vst.msk [vmem:[%s3 + $0xe0] sm:$0xff] %vm446, %v860
  %925 = vst.msk [vmem:[%s3 + $0xe8] sm:$0xff] %vm446, %v861
  %926 = vst.msk [vmem:[%s3 + $0xf0] sm:$0xff] %vm446, %v862
  %927 = vst.msk [vmem:[%s3 + $0xf8] sm:$0xff] %vm446, %v863
  %928 = vst.msk [vmem:[%s3 + $0x100] sm:$0xff] %vm446, %v864
  %929 = vst.msk [vmem:[%s3 + $0x108] sm:$0xff] %vm446, %v865
  %930 = vst.msk [vmem:[%s3 + $0x110] sm:$0xff] %vm446, %v866
  %931 = vst.msk [vmem:[%s3 + $0x118] sm:$0xff] %vm446, %v867
  %932 = vst.msk [vmem:[%s3 + $0x120] sm:$0xff] %vm446, %v868
  %933 = vst.msk [vmem:[%s3 + $0x128] sm:$0xff] %vm446, %v869
  %934 = vst.msk [vmem:[%s3 + $0x130] sm:$0xff] %vm446, %v870
  %935 = vst.msk [vmem:[%s3 + $0x138] sm:$0xff] %vm446, %v871
  %936 = vst.msk [vmem:[%s3 + $0x140] sm:$0xff] %vm446, %v872
  %937 = vst.msk [vmem:[%s3 + $0x148] sm:$0xff] %vm446, %v873
  %938 = vst.msk [vmem:[%s3 + $0x150] sm:$0xff] %vm446, %v874
  %939 = vst.msk [vmem:[%s3 + $0x158] sm:$0xff] %vm446, %v875
  %940 = vst.msk [vmem:[%s3 + $0x160] sm:$0xff] %vm446, %v876
  %941 = vst.msk [vmem:[%s3 + $0x168] sm:$0xff] %vm446, %v877
  %942 = vst.msk [vmem:[%s3 + $0x170] sm:$0xff] %vm446, %v878
  %943 = vst.msk [vmem:[%s3 + $0x178] sm:$0xff] %vm446, %v879
  %944 = vst.msk [vmem:[%s3 + $0x180] sm:$0xff] %vm446, %v880
  %945 = vst.msk [vmem:[%s3 + $0x188] sm:$0xff] %vm446, %v881
  %946 = vst.msk [vmem:[%s3 + $0x190] sm:$0xff] %vm446, %v882
  %947 = vst.msk [vmem:[%s3 + $0x198] sm:$0xff] %vm446, %v883
  %948 = vst.msk [vmem:[%s3 + $0x1a0] sm:$0xff] %vm446, %v884
  %949 = vst.msk [vmem:[%s3 + $0x1a8] sm:$0xff] %vm446, %v885
  %950 = vst.msk [vmem:[%s3 + $0x1b0] sm:$0xff] %vm446, %v886
  %951 = vst.msk [vmem:[%s3 + $0x1b8] sm:$0xff] %vm446, %v887
  %952 = vst.msk [vmem:[%s3 + $0x1c0] sm:$0xff] %vm446, %v888
  %953 = vst.msk [vmem:[%s3 + $0x1c8] sm:$0xff] %vm446, %v889
  %954 = vst.msk [vmem:[%s3 + $0x1d0] sm:$0xff] %vm446, %v890
  %955 = vst.msk [vmem:[%s3 + $0x1d8] sm:$0xff] %vm446, %v891
  %956 = vst.msk [vmem:[%s3 + $0x1e0] sm:$0xff] %vm446, %v892
  %957 = vst.msk [vmem:[%s3 + $0x1e8] sm:$0xff] %vm446, %v893
  %958 = vst.msk [vmem:[%s3 + $0x1f0] sm:$0xff] %vm446, %v894
  %959 = vst.msk [vmem:[%s3 + $0x1f8] sm:$0xff] %vm446, %v895
  // Predicated region
  $region14: #{resnet14_forward.15} parent=0 // pred_check
    _
  $region15: #{resnet14_forward.15} parent=0 // pred_check_branch
    %961 = sbr.rel (0) target = $region17
  $region16: #{resnet14_forward.15} parent=0 // pred_region
    _
  $region17: #{resnet14_forward.15} parent=0 // pred_fallthru
    _
  // Predicated region
  $region18: #{resnet14_forward.15} parent=0 // pred_check
    _
  $region19: #{resnet14_forward.15} parent=0 // pred_check_branch
    %963 = sbr.rel (0) target = $region21
  $region20: #{resnet14_forward.15} parent=0 // pred_region
    _
  $region21: #{resnet14_forward.15} parent=0 // pred_fallthru
    _

// kernel: resnet14_forward.16
$region0: #{resnet14_forward.16}
  #allocation0 [shape = 'u32[]', space=smem, size = 0x4, offset = 0x4, fixed_abs, tag = 'smem constant byte address 0x4 - core index']
  #allocation1 [shape = 'u32[144,128]{1,0:T(1,128)}', space=vmem, size = 0x12000, scoped, tag = 'internal scratch']
  %s0 = inlined_call_operand.vmem [shape: bf16[512,160], index: 0, kind: input, shape index: {}]
  %s1 = inlined_call_operand.vmem [shape: bf16[160,16], index: 1, kind: input, shape index: {}]
  %s2 = inlined_call_operand.vmem [shape: f32[1,16], index: 2, kind: input, shape index: {}]
  %s3 = inlined_call_operand.vmem [shape: f32[512,16], index: 3, kind: output, shape index: {}]
  %s4 = sld [smem:[#allocation0]]
  $region22: #{resnet14_forward.16} parent=0
    _
  %s6 = ssub.s32 1, %s4
  %s7 = scalar_select 0, %s6, %s4
  // Predicated region
  $region2: #{resnet14_forward.16} parent=0 // pred_check
    _
  $region3: #{resnet14_forward.16} parent=0 // pred_check_branch
    %9 = sbr.rel (0) target = $region5
  $region4: #{resnet14_forward.16} parent=0 // pred_region
    _
  $region5: #{resnet14_forward.16} parent=0 // pred_fallthru
    _
  // Predicated region
  $region6: #{resnet14_forward.16} parent=0 // pred_check
    _
  $region7: #{resnet14_forward.16} parent=0 // pred_check_branch
    %11 = sbr.rel (0) target = $region9
  $region8: #{resnet14_forward.16} parent=0 // pred_region
    _
  $region9: #{resnet14_forward.16} parent=0 // pred_fallthru
    _
  // Predicated region
  $region10: #{resnet14_forward.16} parent=0 // pred_check
    _
  $region11: #{resnet14_forward.16} parent=0 // pred_check_branch
    %13 = sbr.rel (0) target = $region13
  $region12: #{resnet14_forward.16} parent=0 // pred_region
    _
  $region13: #{resnet14_forward.16} parent=0 // pred_fallthru
    _
  %v15 = vld [vmem:[%s0] sm:$0xff]
  %v16 = vld [vmem:[%s0 + $0x8] sm:$0xff]
  %v17 = vld [vmem:[%s0 + $0x10] sm:$0xff]
  %v18 = vld [vmem:[%s0 + $0x18] sm:$0xff]
  %v19 = vld [vmem:[%s0 + $0x20] sm:$0xff]
  %v20 = vld [vmem:[%s0 + $0x28] sm:$0xff]
  %v21 = vld [vmem:[%s0 + $0x30] sm:$0xff]
  %v22 = vld [vmem:[%s0 + $0x38] sm:$0xff]
  %v23 = vld [vmem:[%s0 + $0x40] sm:$0xff]
  %v24 = vld [vmem:[%s0 + $0x48] sm:$0xff]
  %v25 = vld [vmem:[%s0 + $0x50] sm:$0xff]
  %v26 = vld [vmem:[%s0 + $0x58] sm:$0xff]
  %v27 = vld [vmem:[%s0 + $0x60] sm:$0xff]
  %v28 = vld [vmem:[%s0 + $0x68] sm:$0xff]
  %v29 = vld [vmem:[%s0 + $0x70] sm:$0xff]
  %v30 = vld [vmem:[%s0 + $0x78] sm:$0xff]
  %v31 = vld [vmem:[%s0 + $0x80] sm:$0xff]
  %v32 = vld [vmem:[%s0 + $0x88] sm:$0xff]
  %v33 = vld [vmem:[%s0 + $0x90] sm:$0xff]
  %v34 = vld [vmem:[%s0 + $0x98] sm:$0xff]
  %v35 = vld [vmem:[%s0 + $0xa0] sm:$0xff]
  %v36 = vld [vmem:[%s0 + $0xa8] sm:$0xff]
  %v37 = vld [vmem:[%s0 + $0xb0] sm:$0xff]
  %v38 = vld [vmem:[%s0 + $0xb8] sm:$0xff]
  %v39 = vld [vmem:[%s0 + $0xc0] sm:$0xff]
  %v40 = vld [vmem:[%s0 + $0xc8] sm:$0xff]
  %v41 = vld [vmem:[%s0 + $0xd0] sm:$0xff]
  %v42 = vld [vmem:[%s0 + $0xd8] sm:$0xff]
  %v43 = vld [vmem:[%s0 + $0xe0] sm:$0xff]
  %v44 = vld [vmem:[%s0 + $0xe8] sm:$0xff]
  %v45 = vld [vmem:[%s0 + $0xf0] sm:$0xff]
  %v46 = vld [vmem:[%s0 + $0xf8] sm:$0xff]
  %v47 = vld [vmem:[%s0 + $0x100] sm:$0xff]
  %v48 = vld [vmem:[%s0 + $0x108] sm:$0xff]
  %v49 = vld [vmem:[%s0 + $0x110] sm:$0xff]
  %v50 = vld [vmem:[%s0 + $0x118] sm:$0xff]
  %v51 = vld [vmem:[%s0 + $0x120] sm:$0xff]
  %v52 = vld [vmem:[%s0 + $0x128] sm:$0xff]
  %v53 = vld [vmem:[%s0 + $0x130] sm:$0xff]
  %v54 = vld [vmem:[%s0 + $0x138] sm:$0xff]
  %v55 = vld [vmem:[%s0 + $0x140] sm:$0xff]
  %v56 = vld [vmem:[%s0 + $0x148] sm:$0xff]
  %v57 = vld [vmem:[%s0 + $0x150] sm:$0xff]
  %v58 = vld [vmem:[%s0 + $0x158] sm:$0xff]
  %v59 = vld [vmem:[%s0 + $0x160] sm:$0xff]
  %v60 = vld [vmem:[%s0 + $0x168] sm:$0xff]
  %v61 = vld [vmem:[%s0 + $0x170] sm:$0xff]
  %v62 = vld [vmem:[%s0 + $0x178] sm:$0xff]
  %v63 = vld [vmem:[%s0 + $0x180] sm:$0xff]
  %v64 = vld [vmem:[%s0 + $0x188] sm:$0xff]
  %v65 = vld [vmem:[%s0 + $0x190] sm:$0xff]
  %v66 = vld [vmem:[%s0 + $0x198] sm:$0xff]
  %v67 = vld [vmem:[%s0 + $0x1a0] sm:$0xff]
  %v68 = vld [vmem:[%s0 + $0x1a8] sm:$0xff]
  %v69 = vld [vmem:[%s0 + $0x1b0] sm:$0xff]
  %v70 = vld [vmem:[%s0 + $0x1b8] sm:$0xff]
  %v71 = vld [vmem:[%s0 + $0x1c0] sm:$0xff]
  %v72 = vld [vmem:[%s0 + $0x1c8] sm:$0xff]
  %v73 = vld [vmem:[%s0 + $0x1d0] sm:$0xff]
  %v74 = vld [vmem:[%s0 + $0x1d8] sm:$0xff]
  %v75 = vld [vmem:[%s0 + $0x1e0] sm:$0xff]
  %v76 = vld [vmem:[%s0 + $0x1e8] sm:$0xff]
  %v77 = vld [vmem:[%s0 + $0x1f0] sm:$0xff]
  %v78 = vld [vmem:[%s0 + $0x1f8] sm:$0xff]
  %v79 = vld [vmem:[%s1] sm:$0xf]
  %v80 = vld [vmem:[%s1 + $0x4] sm:$0xf]
  %v81 = vld [vmem:[%s1 + $0x8] sm:$0xf]
  %v82 = vld [vmem:[%s1 + $0xc] sm:$0xf]
  %v83 = vld [vmem:[%s1 + $0x10] sm:$0xf]
  %v84 = vld [vmem:[%s1 + $0x14] sm:$0xf]
  %v85 = vld [vmem:[%s1 + $0x18] sm:$0xf]
  %v86 = vld [vmem:[%s1 + $0x1c] sm:$0xf]
  %v87 = vld [vmem:[%s1 + $0x20] sm:$0xf]
  %v88 = vld [vmem:[%s1 + $0x24] sm:$0xf]
  %v89 = vld [vmem:[%s1 + $0x28] sm:$0xf]
  %v90 = vld [vmem:[%s1 + $0x2c] sm:$0xf]
  %v91 = vld [vmem:[%s1 + $0x30] sm:$0xf]
  %v92 = vld [vmem:[%s1 + $0x34] sm:$0xf]
  %v93 = vld [vmem:[%s1 + $0x38] sm:$0xf]
  %v94 = vld [vmem:[%s1 + $0x3c] sm:$0xf]
  %v95 = vld [vmem:[%s1 + $0x40] sm:$0xf]
  %v96 = vld [vmem:[%s1 + $0x44] sm:$0xf]
  %v97 = vld [vmem:[%s1 + $0x48] sm:$0xf]
  %v98 = vld [vmem:[%s1 + $0x4c] sm:$0xf]
  %v99 = vld [vmem:[%s2] sm:$0x1]
  %v101 = vlaneseq
  %v102 = vshrl.u32 %v101, 7
  %v103 = vsub.s32 0, %v102
  %v104 = vrot.slane %v99, %v103
  %v170 = vunpack.c.l.b16 %v15
  %v171 = vunpack.c.h.b16 %v15
  %v172 = vunpack.c.l.b16 %v16
  %v173 = vunpack.c.h.b16 %v16
  %v174 = vunpack.c.l.b16 %v17
  %v175 = vunpack.c.h.b16 %v17
  %v176 = vunpack.c.l.b16 %v18
  %v177 = vunpack.c.h.b16 %v18
  %v178 = vunpack.c.l.b16 %v19
  %v179 = vunpack.c.h.b16 %v19
  %v180 = vunpack.c.l.b16 %v20
  %v181 = vunpack.c.h.b16 %v20
  %v182 = vunpack.c.l.b16 %v21
  %v183 = vunpack.c.h.b16 %v21
  %v184 = vunpack.c.l.b16 %v22
  %v185 = vunpack.c.h.b16 %v22
  %v186 = vunpack.c.l.b16 %v23
  %v187 = vunpack.c.h.b16 %v23
  %v188 = vunpack.c.l.b16 %v24
  %v189 = vunpack.c.h.b16 %v24
  %v190 = vunpack.c.l.b16 %v25
  %v191 = vunpack.c.h.b16 %v25
  %v192 = vunpack.c.l.b16 %v26
  %v193 = vunpack.c.h.b16 %v26
  %v194 = vunpack.c.l.b16 %v27
  %v195 = vunpack.c.h.b16 %v27
  %v196 = vunpack.c.l.b16 %v28
  %v197 = vunpack.c.h.b16 %v28
  %v198 = vunpack.c.l.b16 %v29
  %v199 = vunpack.c.h.b16 %v29
  %v200 = vunpack.c.l.b16 %v30
  %v201 = vunpack.c.h.b16 %v30
  %v202 = vunpack.c.l.b16 %v31
  %v203 = vunpack.c.h.b16 %v31
  %v204 = vunpack.c.l.b16 %v32
  %v205 = vunpack.c.h.b16 %v32
  %v206 = vunpack.c.l.b16 %v33
  %v207 = vunpack.c.h.b16 %v33
  %v208 = vunpack.c.l.b16 %v34
  %v209 = vunpack.c.h.b16 %v34
  %v210 = vunpack.c.l.b16 %v35
  %v211 = vunpack.c.h.b16 %v35
  %v212 = vunpack.c.l.b16 %v36
  %v213 = vunpack.c.h.b16 %v36
  %v214 = vunpack.c.l.b16 %v37
  %v215 = vunpack.c.h.b16 %v37
  %v216 = vunpack.c.l.b16 %v38
  %v217 = vunpack.c.h.b16 %v38
  %v218 = vunpack.c.l.b16 %v39
  %v219 = vunpack.c.h.b16 %v39
  %v220 = vunpack.c.l.b16 %v40
  %v221 = vunpack.c.h.b16 %v40
  %v222 = vunpack.c.l.b16 %v41
  %v223 = vunpack.c.h.b16 %v41
  %v224 = vunpack.c.l.b16 %v42
  %v225 = vunpack.c.h.b16 %v42
  %v226 = vunpack.c.l.b16 %v43
  %v227 = vunpack.c.h.b16 %v43
  %v228 = vunpack.c.l.b16 %v44
  %v229 = vunpack.c.h.b16 %v44
  %v230 = vunpack.c.l.b16 %v45
  %v231 = vunpack.c.h.b16 %v45
  %v232 = vunpack.c.l.b16 %v46
  %v233 = vunpack.c.h.b16 %v46
  %v234 = vunpack.c.l.b16 %v47
  %v235 = vunpack.c.h.b16 %v47
  %v236 = vunpack.c.l.b16 %v48
  %v237 = vunpack.c.h.b16 %v48
  %v238 = vunpack.c.l.b16 %v49
  %v239 = vunpack.c.h.b16 %v49
  %v240 = vunpack.c.l.b16 %v50
  %v241 = vunpack.c.h.b16 %v50
  %v242 = vunpack.c.l.b16 %v51
  %v243 = vunpack.c.h.b16 %v51
  %v244 = vunpack.c.l.b16 %v52
  %v245 = vunpack.c.h.b16 %v52
  %v246 = vunpack.c.l.b16 %v53
  %v247 = vunpack.c.h.b16 %v53
  %v248 = vunpack.c.l.b16 %v54
  %v249 = vunpack.c.h.b16 %v54
  %v250 = vunpack.c.l.b16 %v55
  %v251 = vunpack.c.h.b16 %v55
  %v252 = vunpack.c.l.b16 %v56
  %v253 = vunpack.c.h.b16 %v56
  %v254 = vunpack.c.l.b16 %v57
  %v255 = vunpack.c.h.b16 %v57
  %v256 = vunpack.c.l.b16 %v58
  %v257 = vunpack.c.h.b16 %v58
  %v258 = vunpack.c.l.b16 %v59
  %v259 = vunpack.c.h.b16 %v59
  %v260 = vunpack.c.l.b16 %v60
  %v261 = vunpack.c.h.b16 %v60
  %v262 = vunpack.c.l.b16 %v61
  %v263 = vunpack.c.h.b16 %v61
  %v264 = vunpack.c.l.b16 %v62
  %v265 = vunpack.c.h.b16 %v62
  %v266 = vunpack.c.l.b16 %v63
  %v267 = vunpack.c.h.b16 %v63
  %v268 = vunpack.c.l.b16 %v64
  %v269 = vunpack.c.h.b16 %v64
  %v270 = vunpack.c.l.b16 %v65
  %v271 = vunpack.c.h.b16 %v65
  %v272 = vunpack.c.l.b16 %v66
  %v273 = vunpack.c.h.b16 %v66
  %v274 = vunpack.c.l.b16 %v67
  %v275 = vunpack.c.h.b16 %v67
  %v276 = vunpack.c.l.b16 %v68
  %v277 = vunpack.c.h.b16 %v68
  %v278 = vunpack.c.l.b16 %v69
  %v279 = vunpack.c.h.b16 %v69
  %v280 = vunpack.c.l.b16 %v70
  %v281 = vunpack.c.h.b16 %v70
  %v282 = vunpack.c.l.b16 %v71
  %v283 = vunpack.c.h.b16 %v71
  %v284 = vunpack.c.l.b16 %v72
  %v285 = vunpack.c.h.b16 %v72
  %v286 = vunpack.c.l.b16 %v73
  %v287 = vunpack.c.h.b16 %v73
  %v288 = vunpack.c.l.b16 %v74
  %v289 = vunpack.c.h.b16 %v74
  %v290 = vunpack.c.l.b16 %v75
  %v291 = vunpack.c.h.b16 %v75
  %v292 = vunpack.c.l.b16 %v76
  %v293 = vunpack.c.h.b16 %v76
  %v294 = vunpack.c.l.b16 %v77
  %v295 = vunpack.c.h.b16 %v77
  %v296 = vunpack.c.l.b16 %v78
  %v297 = vunpack.c.h.b16 %v78
  %v298 = vpack.c.b16 %v172, %v170
  %v299 = vpack.c.b16 %v173, %v171
  %v300 = vpack.c.b16 %v176, %v174
  %v301 = vpack.c.b16 %v177, %v175
  %v302 = vpack.c.b16 %v180, %v178
  %v303 = vpack.c.b16 %v181, %v179
  %v304 = vpack.c.b16 %v184, %v182
  %v305 = vpack.c.b16 %v185, %v183
  %v306 = vpack.c.b16 %v188, %v186
  %v307 = vpack.c.b16 %v189, %v187
  %v308 = vpack.c.b16 %v192, %v190
  %v309 = vpack.c.b16 %v193, %v191
  %v310 = vpack.c.b16 %v196, %v194
  %v311 = vpack.c.b16 %v197, %v195
  %v312 = vpack.c.b16 %v200, %v198
  %v313 = vpack.c.b16 %v201, %v199
  %v314 = vpack.c.b16 %v204, %v202
  %v315 = vpack.c.b16 %v205, %v203
  %v316 = vpack.c.b16 %v208, %v206
  %v317 = vpack.c.b16 %v209, %v207
  %v318 = vpack.c.b16 %v212, %v210
  %v319 = vpack.c.b16 %v213, %v211
  %v320 = vpack.c.b16 %v216, %v214
  %v321 = vpack.c.b16 %v217, %v215
  %v322 = vpack.c.b16 %v220, %v218
  %v323 = vpack.c.b16 %v221, %v219
  %v324 = vpack.c.b16 %v224, %v222
  %v325 = vpack.c.b16 %v225, %v223
  %v326 = vpack.c.b16 %v228, %v226
  %v327 = vpack.c.b16 %v229, %v227
  %v328 = vpack.c.b16 %v232, %v230
  %v329 = vpack.c.b16 %v233, %v231
  %v330 = vpack.c.b16 %v236, %v234
  %v331 = vpack.c.b16 %v237, %v235
  %v332 = vpack.c.b16 %v240, %v238
  %v333 = vpack.c.b16 %v241, %v239
  %v334 = vpack.c.b16 %v244, %v242
  %v335 = vpack.c.b16 %v245, %v243
  %v336 = vpack.c.b16 %v248, %v246
  %v337 = vpack.c.b16 %v249, %v247
  %v338 = vpack.c.b16 %v252, %v250
  %v339 = vpack.c.b16 %v253, %v251
  %v340 = vpack.c.b16 %v256, %v254
  %v341 = vpack.c.b16 %v257, %v255
  %v342 = vpack.c.b16 %v260, %v258
  %v343 = vpack.c.b16 %v261, %v259
  %v344 = vpack.c.b16 %v264, %v262
  %v345 = vpack.c.b16 %v265, %v263
  %v346 = vpack.c.b16 %v268, %v266
  %v347 = vpack.c.b16 %v269, %v267
  %v348 = vpack.c.b16 %v272, %v270
  %v349 = vpack.c.b16 %v273, %v271
  %v350 = vpack.c.b16 %v276, %v274
  %v351 = vpack.c.b16 %v277, %v275
  %v352 = vpack.c.b16 %v280, %v278
  %v353 = vpack.c.b16 %v281, %v279
  %v354 = vpack.c.b16 %v284, %v282
  %v355 = vpack.c.b16 %v285, %v283
  %v356 = vpack.c.b16 %v288, %v286
  %v357 = vpack.c.b16 %v289, %v287
  %v358 = vpack.c.b16 %v292, %v290
  %v359 = vpack.c.b16 %v293, %v291
  %v360 = vpack.c.b16 %v296, %v294
  %v361 = vpack.c.b16 %v297, %v295
  %v414 = vunpack.c.l.b16 %v79
  %v415 = vunpack.c.l.b16 %v80
  %v416 = vunpack.c.l.b16 %v81
  %v417 = vunpack.c.l.b16 %v82
  %v418 = vunpack.c.l.b16 %v83
  %v419 = vunpack.c.l.b16 %v84
  %v420 = vunpack.c.l.b16 %v85
  %v421 = vunpack.c.l.b16 %v86
  %v422 = vunpack.c.l.b16 %v87
  %v423 = vunpack.c.l.b16 %v88
  %v424 = vunpack.c.l.b16 %v89
  %v425 = vunpack.c.l.b16 %v90
  %v426 = vunpack.c.l.b16 %v91
  %v427 = vunpack.c.l.b16 %v92
  %v428 = vunpack.c.l.b16 %v93
  %v429 = vunpack.c.l.b16 %v94
  %v430 = vunpack.c.l.b16 %v95
  %v431 = vunpack.c.l.b16 %v96
  %v432 = vunpack.c.l.b16 %v97
  %v433 = vunpack.c.l.b16 %v98
  %v434 = vpack.c.b16 %v415, %v414
  %v435 = vpack.c.b16 %v417, %v416
  %v436 = vpack.c.b16 %v419, %v418
  %v437 = vpack.c.b16 %v421, %v420
  %v438 = vpack.c.b16 %v423, %v422
  %v439 = vpack.c.b16 %v425, %v424
  %v440 = vpack.c.b16 %v427, %v426
  %v441 = vpack.c.b16 %v429, %v428
  %v442 = vpack.c.b16 %v431, %v430
  %v443 = vpack.c.b16 %v433, %v432
  %vm454 = vcmask 261120
  %v456 = vsel %vm454, %v299, 0
  %v459 = vsel %vm454, %v301, 0
  %v462 = vsel %vm454, %v303, 0
  %v465 = vsel %vm454, %v305, 0
  %v468 = vsel %vm454, %v307, 0
  %v471 = vsel %vm454, %v309, 0
  %v474 = vsel %vm454, %v311, 0
  %v477 = vsel %vm454, %v313, 0
  %v480 = vsel %vm454, %v315, 0
  %v483 = vsel %vm454, %v317, 0
  %v486 = vsel %vm454, %v319, 0
  %v489 = vsel %vm454, %v321, 0
  %v492 = vsel %vm454, %v323, 0
  %v495 = vsel %vm454, %v325, 0
  %v498 = vsel %vm454, %v327, 0
  %v501 = vsel %vm454, %v329, 0
  %v504 = vsel %vm454, %v331, 0
  %v507 = vsel %vm454, %v333, 0
  %v510 = vsel %vm454, %v335, 0
  %v513 = vsel %vm454, %v337, 0
  %v516 = vsel %vm454, %v339, 0
  %v519 = vsel %vm454, %v341, 0
  %v522 = vsel %vm454, %v343, 0
  %v525 = vsel %vm454, %v345, 0
  %v528 = vsel %vm454, %v347, 0
  %v531 = vsel %vm454, %v349, 0
  %v534 = vsel %vm454, %v351, 0
  %v537 = vsel %vm454, %v353, 0
  %v540 = vsel %vm454, %v355, 0
  %v543 = vsel %vm454, %v357, 0
  %v546 = vsel %vm454, %v359, 0
  %v549 = vsel %vm454, %v361, 0
  %551 = vmatprep.subr.bf16.mxu0 0
  %552 = vmatpush1.bf16.msra.mxu0 %v441
  %553 = vmatprep.subr.bf16.mxu0 0
  %554 = vmatpush1.bf16.msra.mxu0 %v440
  %555 = vmatprep.subr.bf16.mxu0 0
  %556 = vmatpush1.bf16.msra.mxu0 %v439
  %557 = vmatprep.subr.bf16.mxu0 0
  %558 = vmatpush1.bf16.msra.mxu0 %v438
  %559 = vmatprep.subr.bf16.mxu0 0
  %560 = vmatpush1.bf16.msra.mxu0 %v437
  %561 = vmatprep.subr.bf16.mxu0 0
  %562 = vmatpush1.bf16.msra.mxu0 %v436
  %563 = vmatprep.subr.bf16.mxu0 0
  %564 = vmatpush1.bf16.msra.mxu0 %v435
  %565 = vmatprep.subr.bf16.mxu0 0
  %566 = vmatpush1.bf16.msra.mxu0 %v434
  %567 = vmatprep.subr.bf16.mxu0 0
  %568 = vmatpush2.bf16.msra.mxu0 0
  %569 = vmatprep.subr.bf16.mxu0 0
  %570 = vmatpush2.bf16.msra.mxu0 0
  %571 = vmatprep.subr.bf16.mxu0 0
  %572 = vmatpush2.bf16.msra.mxu0 0
  %573 = vmatprep.subr.bf16.mxu0 0
  %574 = vmatpush2.bf16.msra.mxu0 0
  %575 = vmatprep.subr.bf16.mxu0 0
  %576 = vmatpush2.bf16.msra.mxu0 0
  %577 = vmatprep.subr.bf16.mxu0 0
  %578 = vmatpush2.bf16.msra.mxu0 0
  %579 = vmatprep.subr.bf16.mxu0 0
  %580 = vmatpush2.bf16.msra.mxu0 %v443
  %581 = vmatprep.subr.bf16.mxu0 0
  %582 = vmatpush2.bf16.msra.mxu0 %v442
  %583 = vmatprep.mubr.bf16.mxu0 %v456
  %584 = vmatmul.mubr.bf16.gmra.mxu0 %v298
  %v585 = vpop.f32.mrf.mxu0
  %v586 = vadd.f32 %v104, %v585
  %v587 = vpop.f32.mrf.mxu0
  %v588 = vpop.f32.mrf.mxu0
  %v589 = vadd.f32 %v104, %v588
  %v590 = vpop.f32.mrf.mxu0
  %591 = vmatprep.mubr.bf16.mxu0 %v459
  %592 = vmatmul.mubr.bf16.gmra.mxu0 %v300
  %v593 = vpop.f32.mrf.mxu0
  %v594 = vadd.f32 %v104, %v593
  %v595 = vpop.f32.mrf.mxu0
  %v596 = vpop.f32.mrf.mxu0
  %v597 = vadd.f32 %v104, %v596
  %v598 = vpop.f32.mrf.mxu0
  %599 = vmatprep.mubr.bf16.mxu0 %v462
  %600 = vmatmul.mubr.bf16.gmra.mxu0 %v302
  %v601 = vpop.f32.mrf.mxu0
  %v602 = vadd.f32 %v104, %v601
  %v603 = vpop.f32.mrf.mxu0
  %v604 = vpop.f32.mrf.mxu0
  %v605 = vadd.f32 %v104, %v604
  %v606 = vpop.f32.mrf.mxu0
  %607 = vmatprep.mubr.bf16.mxu0 %v465
  %608 = vmatmul.mubr.bf16.gmra.mxu0 %v304
  %v609 = vpop.f32.mrf.mxu0
  %v610 = vadd.f32 %v104, %v609
  %v611 = vpop.f32.mrf.mxu0
  %v612 = vpop.f32.mrf.mxu0
  %v613 = vadd.f32 %v104, %v612
  %v614 = vpop.f32.mrf.mxu0
  %615 = vmatprep.mubr.bf16.mxu0 %v468
  %616 = vmatmul.mubr.bf16.gmra.mxu0 %v306
  %v617 = vpop.f32.mrf.mxu0
  %v618 = vadd.f32 %v104, %v617
  %v619 = vpop.f32.mrf.mxu0
  %v620 = vpop.f32.mrf.mxu0
  %v621 = vadd.f32 %v104, %v620
  %v622 = vpop.f32.mrf.mxu0
  %623 = vmatprep.mubr.bf16.mxu0 %v471
  %624 = vmatmul.mubr.bf16.gmra.mxu0 %v308
  %v625 = vpop.f32.mrf.mxu0
  %v626 = vadd.f32 %v104, %v625
  %v627 = vpop.f32.mrf.mxu0
  %v628 = vpop.f32.mrf.mxu0
  %v629 = vadd.f32 %v104, %v628
  %v630 = vpop.f32.mrf.mxu0
  %631 = vmatprep.mubr.bf16.mxu0 %v474
  %632 = vmatmul.mubr.bf16.gmra.mxu0 %v310
  %v633 = vpop.f32.mrf.mxu0
  %v634 = vadd.f32 %v104, %v633
  %v635 = vpop.f32.mrf.mxu0
  %v636 = vpop.f32.mrf.mxu0
  %v637 = vadd.f32 %v104, %v636
  %v638 = vpop.f32.mrf.mxu0
  %639 = vmatprep.mubr.bf16.mxu0 %v477
  %640 = vmatmul.mubr.bf16.gmra.mxu0 %v312
  %v641 = vpop.f32.mrf.mxu0
  %v642 = vadd.f32 %v104, %v641
  %v643 = vpop.f32.mrf.mxu0
  %v644 = vpop.f32.mrf.mxu0
  %v645 = vadd.f32 %v104, %v644
  %v646 = vpop.f32.mrf.mxu0
  %647 = vmatprep.mubr.bf16.mxu0 %v480
  %648 = vmatmul.mubr.bf16.gmra.mxu0 %v314
  %v649 = vpop.f32.mrf.mxu0
  %v650 = vadd.f32 %v104, %v649
  %v651 = vpop.f32.mrf.mxu0
  %v652 = vpop.f32.mrf.mxu0
  %v653 = vadd.f32 %v104, %v652
  %v654 = vpop.f32.mrf.mxu0
  %655 = vmatprep.mubr.bf16.mxu0 %v483
  %656 = vmatmul.mubr.bf16.gmra.mxu0 %v316
  %v657 = vpop.f32.mrf.mxu0
  %v658 = vadd.f32 %v104, %v657
  %v659 = vpop.f32.mrf.mxu0
  %v660 = vpop.f32.mrf.mxu0
  %v661 = vadd.f32 %v104, %v660
  %v662 = vpop.f32.mrf.mxu0
  %663 = vmatprep.mubr.bf16.mxu0 %v486
  %664 = vmatmul.mubr.bf16.gmra.mxu0 %v318
  %v665 = vpop.f32.mrf.mxu0
  %v666 = vadd.f32 %v104, %v665
  %v667 = vpop.f32.mrf.mxu0
  %v668 = vpop.f32.mrf.mxu0
  %v669 = vadd.f32 %v104, %v668
  %v670 = vpop.f32.mrf.mxu0
  %671 = vmatprep.mubr.bf16.mxu0 %v489
  %672 = vmatmul.mubr.bf16.gmra.mxu0 %v320
  %v673 = vpop.f32.mrf.mxu0
  %v674 = vadd.f32 %v104, %v673
  %v675 = vpop.f32.mrf.mxu0
  %v676 = vpop.f32.mrf.mxu0
  %v677 = vadd.f32 %v104, %v676
  %v678 = vpop.f32.mrf.mxu0
  %679 = vmatprep.mubr.bf16.mxu0 %v492
  %680 = vmatmul.mubr.bf16.gmra.mxu0 %v322
  %v681 = vpop.f32.mrf.mxu0
  %v682 = vadd.f32 %v104, %v681
  %v683 = vpop.f32.mrf.mxu0
  %v684 = vpop.f32.mrf.mxu0
  %v685 = vadd.f32 %v104, %v684
  %v686 = vpop.f32.mrf.mxu0
  %687 = vmatprep.mubr.bf16.mxu0 %v495
  %688 = vmatmul.mubr.bf16.gmra.mxu0 %v324
  %v689 = vpop.f32.mrf.mxu0
  %v690 = vadd.f32 %v104, %v689
  %v691 = vpop.f32.mrf.mxu0
  %v692 = vpop.f32.mrf.mxu0
  %v693 = vadd.f32 %v104, %v692
  %v694 = vpop.f32.mrf.mxu0
  %695 = vmatprep.mubr.bf16.mxu0 %v498
  %696 = vmatmul.mubr.bf16.gmra.mxu0 %v326
  %v697 = vpop.f32.mrf.mxu0
  %v698 = vadd.f32 %v104, %v697
  %v699 = vpop.f32.mrf.mxu0
  %v700 = vpop.f32.mrf.mxu0
  %v701 = vadd.f32 %v104, %v700
  %v702 = vpop.f32.mrf.mxu0
  %703 = vmatprep.mubr.bf16.mxu0 %v501
  %704 = vmatmul.mubr.bf16.gmra.mxu0 %v328
  %v705 = vpop.f32.mrf.mxu0
  %v706 = vadd.f32 %v104, %v705
  %v707 = vpop.f32.mrf.mxu0
  %v708 = vpop.f32.mrf.mxu0
  %v709 = vadd.f32 %v104, %v708
  %v710 = vpop.f32.mrf.mxu0
  %711 = vmatprep.mubr.bf16.mxu0 %v504
  %712 = vmatmul.mubr.bf16.gmra.mxu0 %v330
  %v713 = vpop.f32.mrf.mxu0
  %v714 = vadd.f32 %v104, %v713
  %v715 = vpop.f32.mrf.mxu0
  %v716 = vpop.f32.mrf.mxu0
  %v717 = vadd.f32 %v104, %v716
  %v718 = vpop.f32.mrf.mxu0
  %719 = vmatprep.mubr.bf16.mxu0 %v507
  %720 = vmatmul.mubr.bf16.gmra.mxu0 %v332
  %v721 = vpop.f32.mrf.mxu0
  %v722 = vadd.f32 %v104, %v721
  %v723 = vpop.f32.mrf.mxu0
  %v724 = vpop.f32.mrf.mxu0
  %v725 = vadd.f32 %v104, %v724
  %v726 = vpop.f32.mrf.mxu0
  %727 = vmatprep.mubr.bf16.mxu0 %v510
  %728 = vmatmul.mubr.bf16.gmra.mxu0 %v334
  %v729 = vpop.f32.mrf.mxu0
  %v730 = vadd.f32 %v104, %v729
  %v731 = vpop.f32.mrf.mxu0
  %v732 = vpop.f32.mrf.mxu0
  %v733 = vadd.f32 %v104, %v732
  %v734 = vpop.f32.mrf.mxu0
  %735 = vmatprep.mubr.bf16.mxu0 %v513
  %736 = vmatmul.mubr.bf16.gmra.mxu0 %v336
  %v737 = vpop.f32.mrf.mxu0
  %v738 = vadd.f32 %v104, %v737
  %v739 = vpop.f32.mrf.mxu0
  %v740 = vpop.f32.mrf.mxu0
  %v741 = vadd.f32 %v104, %v740
  %v742 = vpop.f32.mrf.mxu0
  %743 = vmatprep.mubr.bf16.mxu0 %v516
  %744 = vmatmul.mubr.bf16.gmra.mxu0 %v338
  %v745 = vpop.f32.mrf.mxu0
  %v746 = vadd.f32 %v104, %v745
  %v747 = vpop.f32.mrf.mxu0
  %v748 = vpop.f32.mrf.mxu0
  %v749 = vadd.f32 %v104, %v748
  %v750 = vpop.f32.mrf.mxu0
  %751 = vmatprep.mubr.bf16.mxu0 %v519
  %752 = vmatmul.mubr.bf16.gmra.mxu0 %v340
  %v753 = vpop.f32.mrf.mxu0
  %v754 = vadd.f32 %v104, %v753
  %v755 = vpop.f32.mrf.mxu0
  %v756 = vpop.f32.mrf.mxu0
  %v757 = vadd.f32 %v104, %v756
  %v758 = vpop.f32.mrf.mxu0
  %759 = vmatprep.mubr.bf16.mxu0 %v522
  %760 = vmatmul.mubr.bf16.gmra.mxu0 %v342
  %v761 = vpop.f32.mrf.mxu0
  %v762 = vadd.f32 %v104, %v761
  %v763 = vpop.f32.mrf.mxu0
  %v764 = vpop.f32.mrf.mxu0
  %v765 = vadd.f32 %v104, %v764
  %v766 = vpop.f32.mrf.mxu0
  %767 = vmatprep.mubr.bf16.mxu0 %v525
  %768 = vmatmul.mubr.bf16.gmra.mxu0 %v344
  %v769 = vpop.f32.mrf.mxu0
  %v770 = vadd.f32 %v104, %v769
  %v771 = vpop.f32.mrf.mxu0
  %v772 = vpop.f32.mrf.mxu0
  %v773 = vadd.f32 %v104, %v772
  %v774 = vpop.f32.mrf.mxu0
  %775 = vmatprep.mubr.bf16.mxu0 %v528
  %776 = vmatmul.mubr.bf16.gmra.mxu0 %v346
  %v777 = vpop.f32.mrf.mxu0
  %v778 = vadd.f32 %v104, %v777
  %v779 = vpop.f32.mrf.mxu0
  %v780 = vpop.f32.mrf.mxu0
  %v781 = vadd.f32 %v104, %v780
  %v782 = vpop.f32.mrf.mxu0
  %783 = vmatprep.mubr.bf16.mxu0 %v531
  %784 = vmatmul.mubr.bf16.gmra.mxu0 %v348
  %v785 = vpop.f32.mrf.mxu0
  %v786 = vadd.f32 %v104, %v785
  %v787 = vpop.f32.mrf.mxu0
  %v788 = vpop.f32.mrf.mxu0
  %v789 = vadd.f32 %v104, %v788
  %v790 = vpop.f32.mrf.mxu0
  %791 = vmatprep.mubr.bf16.mxu0 %v534
  %792 = vmatmul.mubr.bf16.gmra.mxu0 %v350
  %v793 = vpop.f32.mrf.mxu0
  %v794 = vadd.f32 %v104, %v793
  %v795 = vpop.f32.mrf.mxu0
  %v796 = vpop.f32.mrf.mxu0
  %v797 = vadd.f32 %v104, %v796
  %v798 = vpop.f32.mrf.mxu0
  %799 = vmatprep.mubr.bf16.mxu0 %v537
  %800 = vmatmul.mubr.bf16.gmra.mxu0 %v352
  %v801 = vpop.f32.mrf.mxu0
  %v802 = vadd.f32 %v104, %v801
  %v803 = vpop.f32.mrf.mxu0
  %v804 = vpop.f32.mrf.mxu0
  %v805 = vadd.f32 %v104, %v804
  %v806 = vpop.f32.mrf.mxu0
  %807 = vmatprep.mubr.bf16.mxu0 %v540
  %808 = vmatmul.mubr.bf16.gmra.mxu0 %v354
  %v809 = vpop.f32.mrf.mxu0
  %v810 = vadd.f32 %v104, %v809
  %v811 = vpop.f32.mrf.mxu0
  %v812 = vpop.f32.mrf.mxu0
  %v813 = vadd.f32 %v104, %v812
  %v814 = vpop.f32.mrf.mxu0
  %815 = vmatprep.mubr.bf16.mxu0 %v543
  %816 = vmatmul.mubr.bf16.gmra.mxu0 %v356
  %v817 = vpop.f32.mrf.mxu0
  %v818 = vadd.f32 %v104, %v817
  %v819 = vpop.f32.mrf.mxu0
  %v820 = vpop.f32.mrf.mxu0
  %v821 = vadd.f32 %v104, %v820
  %v822 = vpop.f32.mrf.mxu0
  %823 = vmatprep.mubr.bf16.mxu0 %v546
  %824 = vmatmul.mubr.bf16.gmra.mxu0 %v358
  %v825 = vpop.f32.mrf.mxu0
  %v826 = vadd.f32 %v104, %v825
  %v827 = vpop.f32.mrf.mxu0
  %v828 = vpop.f32.mrf.mxu0
  %v829 = vadd.f32 %v104, %v828
  %v830 = vpop.f32.mrf.mxu0
  %831 = vmatprep.mubr.bf16.mxu0 %v549
  %832 = vmatmul.mubr.bf16.gmra.mxu0 %v360
  %v833 = vpop.f32.mrf.mxu0
  %v834 = vadd.f32 %v104, %v833
  %v835 = vpop.f32.mrf.mxu0
  %v836 = vpop.f32.mrf.mxu0
  %v837 = vadd.f32 %v104, %v836
  %v838 = vpop.f32.mrf.mxu0
  %839 = vdwg.mxu0
  %v840 = vmax.f32 %v586, 0.0
  %v841 = vmax.f32 %v589, 0.0
  %v842 = vmax.f32 %v594, 0.0
  %v843 = vmax.f32 %v597, 0.0
  %v844 = vmax.f32 %v602, 0.0
  %v845 = vmax.f32 %v605, 0.0
  %v846 = vmax.f32 %v610, 0.0
  %v847 = vmax.f32 %v613, 0.0
  %v848 = vmax.f32 %v618, 0.0
  %v849 = vmax.f32 %v621, 0.0
  %v850 = vmax.f32 %v626, 0.0
  %v851 = vmax.f32 %v629, 0.0
  %v852 = vmax.f32 %v634, 0.0
  %v853 = vmax.f32 %v637, 0.0
  %v854 = vmax.f32 %v642, 0.0
  %v855 = vmax.f32 %v645, 0.0
  %v856 = vmax.f32 %v650, 0.0
  %v857 = vmax.f32 %v653, 0.0
  %v858 = vmax.f32 %v658, 0.0
  %v859 = vmax.f32 %v661, 0.0
  %v860 = vmax.f32 %v666, 0.0
  %v861 = vmax.f32 %v669, 0.0
  %v862 = vmax.f32 %v674, 0.0
  %v863 = vmax.f32 %v677, 0.0
  %v864 = vmax.f32 %v682, 0.0
  %v865 = vmax.f32 %v685, 0.0
  %v866 = vmax.f32 %v690, 0.0
  %v867 = vmax.f32 %v693, 0.0
  %v868 = vmax.f32 %v698, 0.0
  %v869 = vmax.f32 %v701, 0.0
  %v870 = vmax.f32 %v706, 0.0
  %v871 = vmax.f32 %v709, 0.0
  %v872 = vmax.f32 %v714, 0.0
  %v873 = vmax.f32 %v717, 0.0
  %v874 = vmax.f32 %v722, 0.0
  %v875 = vmax.f32 %v725, 0.0
  %v876 = vmax.f32 %v730, 0.0
  %v877 = vmax.f32 %v733, 0.0
  %v878 = vmax.f32 %v738, 0.0
  %v879 = vmax.f32 %v741, 0.0
  %v880 = vmax.f32 %v746, 0.0
  %v881 = vmax.f32 %v749, 0.0
  %v882 = vmax.f32 %v754, 0.0
  %v883 = vmax.f32 %v757, 0.0
  %v884 = vmax.f32 %v762, 0.0
  %v885 = vmax.f32 %v765, 0.0
  %v886 = vmax.f32 %v770, 0.0
  %v887 = vmax.f32 %v773, 0.0
  %v888 = vmax.f32 %v778, 0.0
  %v889 = vmax.f32 %v781, 0.0
  %v890 = vmax.f32 %v786, 0.0
  %v891 = vmax.f32 %v789, 0.0
  %v892 = vmax.f32 %v794, 0.0
  %v893 = vmax.f32 %v797, 0.0
  %v894 = vmax.f32 %v802, 0.0
  %v895 = vmax.f32 %v805, 0.0
  %v896 = vmax.f32 %v810, 0.0
  %v897 = vmax.f32 %v813, 0.0
  %v898 = vmax.f32 %v818, 0.0
  %v899 = vmax.f32 %v821, 0.0
  %v900 = vmax.f32 %v826, 0.0
  %v901 = vmax.f32 %v829, 0.0
  %v902 = vmax.f32 %v834, 0.0
  %v903 = vmax.f32 %v837, 0.0
  %vm904 = vcmask 130048
  %905 = vst.msk [vmem:[%s3] sm:$0xff] %vm904, %v840
  %906 = vst.msk [vmem:[%s3 + $0x8] sm:$0xff] %vm904, %v841
  %907 = vst.msk [vmem:[%s3 + $0x10] sm:$0xff] %vm904, %v842
  %908 = vst.msk [vmem:[%s3 + $0x18] sm:$0xff] %vm904, %v843
  %909 = vst.msk [vmem:[%s3 + $0x20] sm:$0xff] %vm904, %v844
  %910 = vst.msk [vmem:[%s3 + $0x28] sm:$0xff] %vm904, %v845
  %911 = vst.msk [vmem:[%s3 + $0x30] sm:$0xff] %vm904, %v846
  %912 = vst.msk [vmem:[%s3 + $0x38] sm:$0xff] %vm904, %v847
  %913 = vst.msk [vmem:[%s3 + $0x40] sm:$0xff] %vm904, %v848
  %914 = vst.msk [vmem:[%s3 + $0x48] sm:$0xff] %vm904, %v849
  %915 = vst.msk [vmem:[%s3 + $0x50] sm:$0xff] %vm904, %v850
  %916 = vst.msk [vmem:[%s3 + $0x58] sm:$0xff] %vm904, %v851
  %917 = vst.msk [vmem:[%s3 + $0x60] sm:$0xff] %vm904, %v852
  %918 = vst.msk [vmem:[%s3 + $0x68] sm:$0xff] %vm904, %v853
  %919 = vst.msk [vmem:[%s3 + $0x70] sm:$0xff] %vm904, %v854
  %920 = vst.msk [vmem:[%s3 + $0x78] sm:$0xff] %vm904, %v855
  %921 = vst.msk [vmem:[%s3 + $0x80] sm:$0xff] %vm904, %v856
  %922 = vst.msk [vmem:[%s3 + $0x88] sm:$0xff] %vm904, %v857
  %923 = vst.msk [vmem:[%s3 + $0x90] sm:$0xff] %vm904, %v858
  %924 = vst.msk [vmem:[%s3 + $0x98] sm:$0xff] %vm904, %v859
  %925 = vst.msk [vmem:[%s3 + $0xa0] sm:$0xff] %vm904, %v860
  %926 = vst.msk [vmem:[%s3 + $0xa8] sm:$0xff] %vm904, %v861
  %927 = vst.msk [vmem:[%s3 + $0xb0] sm:$0xff] %vm904, %v862
  %928 = vst.msk [vmem:[%s3 + $0xb8] sm:$0xff] %vm904, %v863
  %929 = vst.msk [vmem:[%s3 + $0xc0] sm:$0xff] %vm904, %v864
  %930 = vst.msk [vmem:[%s3 + $0xc8] sm:$0xff] %vm904, %v865
  %931 = vst.msk [vmem:[%s3 + $0xd0] sm:$0xff] %vm904, %v866
  %932 = vst.msk [vmem:[%s3 + $0xd8] sm:$0xff] %vm904, %v867
  %933 = vst.msk [vmem:[%s3 + $0xe0] sm:$0xff] %vm904, %v868
  %934 = vst.msk [vmem:[%s3 + $0xe8] sm:$0xff] %vm904, %v869
  %935 = vst.msk [vmem:[%s3 + $0xf0] sm:$0xff] %vm904, %v870
  %936 = vst.msk [vmem:[%s3 + $0xf8] sm:$0xff] %vm904, %v871
  %937 = vst.msk [vmem:[%s3 + $0x100] sm:$0xff] %vm904, %v872
  %938 = vst.msk [vmem:[%s3 + $0x108] sm:$0xff] %vm904, %v873
  %939 = vst.msk [vmem:[%s3 + $0x110] sm:$0xff] %vm904, %v874
  %940 = vst.msk [vmem:[%s3 + $0x118] sm:$0xff] %vm904, %v875
  %941 = vst.msk [vmem:[%s3 + $0x120] sm:$0xff] %vm904, %v876
  %942 = vst.msk [vmem:[%s3 + $0x128] sm:$0xff] %vm904, %v877
  %943 = vst.msk [vmem:[%s3 + $0x130] sm:$0xff] %vm904, %v878
  %944 = vst.msk [vmem:[%s3 + $0x138] sm:$0xff] %vm904, %v879
  %945 = vst.msk [vmem:[%s3 + $0x140] sm:$0xff] %vm904, %v880
  %946 = vst.msk [vmem:[%s3 + $0x148] sm:$0xff] %vm904, %v881
  %947 = vst.msk [vmem:[%s3 + $0x150] sm:$0xff] %vm904, %v882
  %948 = vst.msk [vmem:[%s3 + $0x158] sm:$0xff] %vm904, %v883
  %949 = vst.msk [vmem:[%s3 + $0x160] sm:$0xff] %vm904, %v884
  %950 = vst.msk [vmem:[%s3 + $0x168] sm:$0xff] %vm904, %v885
  %951 = vst.msk [vmem:[%s3 + $0x170] sm:$0xff] %vm904, %v886
  %952 = vst.msk [vmem:[%s3 + $0x178] sm:$0xff] %vm904, %v887
  %953 = vst.msk [vmem:[%s3 + $0x180] sm:$0xff] %vm904, %v888
  %954 = vst.msk [vmem:[%s3 + $0x188] sm:$0xff] %vm904, %v889
  %955 = vst.msk [vmem:[%s3 + $0x190] sm:$0xff] %vm904, %v890
  %956 = vst.msk [vmem:[%s3 + $0x198] sm:$0xff] %vm904, %v891
  %957 = vst.msk [vmem:[%s3 + $0x1a0] sm:$0xff] %vm904, %v892
  %958 = vst.msk [vmem:[%s3 + $0x1a8] sm:$0xff] %vm904, %v893
  %959 = vst.msk [vmem:[%s3 + $0x1b0] sm:$0xff] %vm904, %v894
  %960 = vst.msk [vmem:[%s3 + $0x1b8] sm:$0xff] %vm904, %v895
  %961 = vst.msk [vmem:[%s3 + $0x1c0] sm:$0xff] %vm904, %v896
  %962 = vst.msk [vmem:[%s3 + $0x1c8] sm:$0xff] %vm904, %v897
  %963 = vst.msk [vmem:[%s3 + $0x1d0] sm:$0xff] %vm904, %v898
  %964 = vst.msk [vmem:[%s3 + $0x1d8] sm:$0xff] %vm904, %v899
  %965 = vst.msk [vmem:[%s3 + $0x1e0] sm:$0xff] %vm904, %v900
  %966 = vst.msk [vmem:[%s3 + $0x1e8] sm:$0xff] %vm904, %v901
  %967 = vst.msk [vmem:[%s3 + $0x1f0] sm:$0xff] %vm904, %v902
  %968 = vst.msk [vmem:[%s3 + $0x1f8] sm:$0xff] %vm904, %v903
  // Predicated region
  $region14: #{resnet14_forward.16} parent=0 // pred_check
    _
  $region15: #{resnet14_forward.16} parent=0 // pred_check_branch
    %970 = sbr.rel (0) target = $region17
  $region16: #{resnet14_forward.16} parent=0 // pred_region
    _
  $region17: #{resnet14_forward.16} parent=0 // pred_fallthru
    _
  // Predicated region
  $region18: #{resnet14_forward.16} parent=0 // pred_check
    _
  $region19: #{resnet14_forward.16} parent=0 // pred_check_branch
    %972 = sbr.rel (0) target = $region21
  $region20: #{resnet14_forward.16} parent=0 // pred_region
    _
  $region21: #{resnet14_forward.16} parent=0 // pred_fallthru
    _

// kernel: resnet14_forward.19
$region0: #{resnet14_forward.19}
  #allocation0 [shape = 'u32[]', space=smem, size = 0x4, offset = 0x4, fixed_abs, tag = 'smem constant byte address 0x4 - core index']
  #allocation1 [shape = 'u32[144,128]{1,0:T(1,128)}', space=vmem, size = 0x12000, scoped, tag = 'internal scratch']
  %s0 = inlined_call_operand.vmem [shape: bf16[128,144], index: 0, kind: input, shape index: {}]
  %s1 = inlined_call_operand.vmem [shape: bf16[144,32], index: 1, kind: input, shape index: {}]
  %s2 = inlined_call_operand.vmem [shape: f32[1,32], index: 2, kind: input, shape index: {}]
  %s3 = inlined_call_operand.vmem [shape: f32[128,32], index: 3, kind: output, shape index: {}]
  %s4 = sld [smem:[#allocation0]]
  $region22: #{resnet14_forward.19} parent=0
    _
  %s6 = ssub.s32 1, %s4
  %s7 = scalar_select 0, %s6, %s4
  // Predicated region
  $region2: #{resnet14_forward.19} parent=0 // pred_check
    _
  $region3: #{resnet14_forward.19} parent=0 // pred_check_branch
    %9 = sbr.rel (0) target = $region5
  $region4: #{resnet14_forward.19} parent=0 // pred_region
    _
  $region5: #{resnet14_forward.19} parent=0 // pred_fallthru
    _
  // Predicated region
  $region6: #{resnet14_forward.19} parent=0 // pred_check
    _
  $region7: #{resnet14_forward.19} parent=0 // pred_check_branch
    %11 = sbr.rel (0) target = $region9
  $region8: #{resnet14_forward.19} parent=0 // pred_region
    _
  $region9: #{resnet14_forward.19} parent=0 // pred_fallthru
    _
  // Predicated region
  $region10: #{resnet14_forward.19} parent=0 // pred_check
    _
  $region11: #{resnet14_forward.19} parent=0 // pred_check_branch
    %13 = sbr.rel (0) target = $region13
  $region12: #{resnet14_forward.19} parent=0 // pred_region
    _
  $region13: #{resnet14_forward.19} parent=0 // pred_fallthru
    _
  %v15 = vld [vmem:[%s0] sm:$0xff]
  %v16 = vld [vmem:[%s0 + $0x8] sm:$0xff]
  %v17 = vld [vmem:[%s0 + $0x10] sm:$0xff]
  %v18 = vld [vmem:[%s0 + $0x18] sm:$0xff]
  %v19 = vld [vmem:[%s0 + $0x20] sm:$0xff]
  %v20 = vld [vmem:[%s0 + $0x28] sm:$0xff]
  %v21 = vld [vmem:[%s0 + $0x30] sm:$0xff]
  %v22 = vld [vmem:[%s0 + $0x38] sm:$0xff]
  %v23 = vld [vmem:[%s0 + $0x40] sm:$0xff]
  %v24 = vld [vmem:[%s0 + $0x48] sm:$0xff]
  %v25 = vld [vmem:[%s0 + $0x50] sm:$0xff]
  %v26 = vld [vmem:[%s0 + $0x58] sm:$0xff]
  %v27 = vld [vmem:[%s0 + $0x60] sm:$0xff]
  %v28 = vld [vmem:[%s0 + $0x68] sm:$0xff]
  %v29 = vld [vmem:[%s0 + $0x70] sm:$0xff]
  %v30 = vld [vmem:[%s0 + $0x78] sm:$0xff]
  %v31 = vld [vmem:[%s1] sm:$0xf]
  %v32 = vld [vmem:[%s1 + $0x4] sm:$0xf]
  %v33 = vld [vmem:[%s1 + $0x8] sm:$0xf]
  %v34 = vld [vmem:[%s1 + $0xc] sm:$0xf]
  %v35 = vld [vmem:[%s1 + $0x10] sm:$0xf]
  %v36 = vld [vmem:[%s1 + $0x14] sm:$0xf]
  %v37 = vld [vmem:[%s1 + $0x18] sm:$0xf]
  %v38 = vld [vmem:[%s1 + $0x1c] sm:$0xf]
  %v39 = vld [vmem:[%s1 + $0x20] sm:$0xf]
  %v40 = vld [vmem:[%s1 + $0x24] sm:$0xf]
  %v41 = vld [vmem:[%s1 + $0x28] sm:$0xf]
  %v42 = vld [vmem:[%s1 + $0x2c] sm:$0xf]
  %v43 = vld [vmem:[%s1 + $0x30] sm:$0xf]
  %v44 = vld [vmem:[%s1 + $0x34] sm:$0xf]
  %v45 = vld [vmem:[%s1 + $0x38] sm:$0xf]
  %v46 = vld [vmem:[%s1 + $0x3c] sm:$0xf]
  %v47 = vld [vmem:[%s1 + $0x40] sm:$0xf]
  %v48 = vld [vmem:[%s1 + $0x44] sm:$0xf]
  %v49 = vld [vmem:[%s2] sm:$0x1]
  %v51 = vlaneseq
  %v52 = vshrl.u32 %v51, 7
  %v53 = vsub.s32 0, %v52
  %v54 = vrot.slane %v49, %v53
  %v72 = vunpack.c.l.b16 %v15
  %v73 = vunpack.c.h.b16 %v15
  %v74 = vunpack.c.l.b16 %v16
  %v75 = vunpack.c.h.b16 %v16
  %v76 = vunpack.c.l.b16 %v17
  %v77 = vunpack.c.h.b16 %v17
  %v78 = vunpack.c.l.b16 %v18
  %v79 = vunpack.c.h.b16 %v18
  %v80 = vunpack.c.l.b16 %v19
  %v81 = vunpack.c.h.b16 %v19
  %v82 = vunpack.c.l.b16 %v20
  %v83 = vunpack.c.h.b16 %v20
  %v84 = vunpack.c.l.b16 %v21
  %v85 = vunpack.c.h.b16 %v21
  %v86 = vunpack.c.l.b16 %v22
  %v87 = vunpack.c.h.b16 %v22
  %v88 = vunpack.c.l.b16 %v23
  %v89 = vunpack.c.h.b16 %v23
  %v90 = vunpack.c.l.b16 %v24
  %v91 = vunpack.c.h.b16 %v24
  %v92 = vunpack.c.l.b16 %v25
  %v93 = vunpack.c.h.b16 %v25
  %v94 = vunpack.c.l.b16 %v26
  %v95 = vunpack.c.h.b16 %v26
  %v96 = vunpack.c.l.b16 %v27
  %v97 = vunpack.c.h.b16 %v27
  %v98 = vunpack.c.l.b16 %v28
  %v99 = vunpack.c.h.b16 %v28
  %v100 = vunpack.c.l.b16 %v29
  %v101 = vunpack.c.h.b16 %v29
  %v102 = vunpack.c.l.b16 %v30
  %v103 = vunpack.c.h.b16 %v30
  %v104 = vpack.c.b16 %v74, %v72
  %v105 = vpack.c.b16 %v75, %v73
  %v106 = vpack.c.b16 %v78, %v76
  %v107 = vpack.c.b16 %v79, %v77
  %v108 = vpack.c.b16 %v82, %v80
  %v109 = vpack.c.b16 %v83, %v81
  %v110 = vpack.c.b16 %v86, %v84
  %v111 = vpack.c.b16 %v87, %v85
  %v112 = vpack.c.b16 %v90, %v88
  %v113 = vpack.c.b16 %v91, %v89
  %v114 = vpack.c.b16 %v94, %v92
  %v115 = vpack.c.b16 %v95, %v93
  %v116 = vpack.c.b16 %v98, %v96
  %v117 = vpack.c.b16 %v99, %v97
  %v118 = vpack.c.b16 %v102, %v100
  %v119 = vpack.c.b16 %v103, %v101
  %v146 = vunpack.c.l.b16 %v31
  %v147 = vunpack.c.l.b16 %v32
  %v148 = vunpack.c.l.b16 %v33
  %v149 = vunpack.c.l.b16 %v34
  %v150 = vunpack.c.l.b16 %v35
  %v151 = vunpack.c.l.b16 %v36
  %v152 = vunpack.c.l.b16 %v37
  %v153 = vunpack.c.l.b16 %v38
  %v154 = vunpack.c.l.b16 %v39
  %v155 = vunpack.c.l.b16 %v40
  %v156 = vunpack.c.l.b16 %v41
  %v157 = vunpack.c.l.b16 %v42
  %v158 = vunpack.c.l.b16 %v43
  %v159 = vunpack.c.l.b16 %v44
  %v160 = vunpack.c.l.b16 %v45
  %v161 = vunpack.c.l.b16 %v46
  %v162 = vunpack.c.l.b16 %v47
  %v163 = vunpack.c.l.b16 %v48
  %v164 = vpack.c.b16 %v147, %v146
  %v165 = vpack.c.b16 %v149, %v148
  %v166 = vpack.c.b16 %v151, %v150
  %v167 = vpack.c.b16 %v153, %v152
  %v168 = vpack.c.b16 %v155, %v154
  %v169 = vpack.c.b16 %v157, %v156
  %v170 = vpack.c.b16 %v159, %v158
  %v171 = vpack.c.b16 %v161, %v160
  %v172 = vpack.c.b16 %v163, %v162
  %vm182 = vcmask 130048
  %v184 = vsel %vm182, %v105, 0
  %v187 = vsel %vm182, %v107, 0
  %v190 = vsel %vm182, %v109, 0
  %v193 = vsel %vm182, %v111, 0
  %v196 = vsel %vm182, %v113, 0
  %v199 = vsel %vm182, %v115, 0
  %v202 = vsel %vm182, %v117, 0
  %v205 = vsel %vm182, %v119, 0
  %207 = vmatprep.subr.bf16.mxu0 0
  %208 = vmatpush1.bf16.msra.mxu0 %v171
  %209 = vmatprep.subr.bf16.mxu0 0
  %210 = vmatpush1.bf16.msra.mxu0 %v170
  %211 = vmatprep.subr.bf16.mxu0 0
  %212 = vmatpush1.bf16.msra.mxu0 %v169
  %213 = vmatprep.subr.bf16.mxu0 0
  %214 = vmatpush1.bf16.msra.mxu0 %v168
  %215 = vmatprep.subr.bf16.mxu0 0
  %216 = vmatpush1.bf16.msra.mxu0 %v167
  %217 = vmatprep.subr.bf16.mxu0 0
  %218 = vmatpush1.bf16.msra.mxu0 %v166
  %219 = vmatprep.subr.bf16.mxu0 0
  %220 = vmatpush1.bf16.msra.mxu0 %v165
  %221 = vmatprep.subr.bf16.mxu0 0
  %222 = vmatpush1.bf16.msra.mxu0 %v164
  %223 = vmatprep.subr.bf16.mxu0 0
  %224 = vmatpush2.bf16.msra.mxu0 0
  %225 = vmatprep.subr.bf16.mxu0 0
  %226 = vmatpush2.bf16.msra.mxu0 0
  %227 = vmatprep.subr.bf16.mxu0 0
  %228 = vmatpush2.bf16.msra.mxu0 0
  %229 = vmatprep.subr.bf16.mxu0 0
  %230 = vmatpush2.bf16.msra.mxu0 0
  %231 = vmatprep.subr.bf16.mxu0 0
  %232 = vmatpush2.bf16.msra.mxu0 0
  %233 = vmatprep.subr.bf16.mxu0 0
  %234 = vmatpush2.bf16.msra.mxu0 0
  %235 = vmatprep.subr.bf16.mxu0 0
  %236 = vmatpush2.bf16.msra.mxu0 0
  %237 = vmatprep.subr.bf16.mxu0 0
  %238 = vmatpush2.bf16.msra.mxu0 %v172
  %239 = vmatprep.mubr.bf16.mxu0 %v184
  %240 = vmatmul.mubr.bf16.gmra.mxu0 %v104
  %v241 = vpop.f32.mrf.mxu0
  %v242 = vadd.f32 %v54, %v241
  %v243 = vpop.f32.mrf.mxu0
  %v244 = vpop.f32.mrf.mxu0
  %v245 = vadd.f32 %v54, %v244
  %v246 = vpop.f32.mrf.mxu0
  %247 = vmatprep.mubr.bf16.mxu0 %v187
  %248 = vmatmul.mubr.bf16.gmra.mxu0 %v106
  %v249 = vpop.f32.mrf.mxu0
  %v250 = vadd.f32 %v54, %v249
  %v251 = vpop.f32.mrf.mxu0
  %v252 = vpop.f32.mrf.mxu0
  %v253 = vadd.f32 %v54, %v252
  %v254 = vpop.f32.mrf.mxu0
  %255 = vmatprep.mubr.bf16.mxu0 %v190
  %256 = vmatmul.mubr.bf16.gmra.mxu0 %v108
  %v257 = vpop.f32.mrf.mxu0
  %v258 = vadd.f32 %v54, %v257
  %v259 = vpop.f32.mrf.mxu0
  %v260 = vpop.f32.mrf.mxu0
  %v261 = vadd.f32 %v54, %v260
  %v262 = vpop.f32.mrf.mxu0
  %263 = vmatprep.mubr.bf16.mxu0 %v193
  %264 = vmatmul.mubr.bf16.gmra.mxu0 %v110
  %v265 = vpop.f32.mrf.mxu0
  %v266 = vadd.f32 %v54, %v265
  %v267 = vpop.f32.mrf.mxu0
  %v268 = vpop.f32.mrf.mxu0
  %v269 = vadd.f32 %v54, %v268
  %v270 = vpop.f32.mrf.mxu0
  %271 = vmatprep.mubr.bf16.mxu0 %v196
  %272 = vmatmul.mubr.bf16.gmra.mxu0 %v112
  %v273 = vpop.f32.mrf.mxu0
  %v274 = vadd.f32 %v54, %v273
  %v275 = vpop.f32.mrf.mxu0
  %v276 = vpop.f32.mrf.mxu0
  %v277 = vadd.f32 %v54, %v276
  %v278 = vpop.f32.mrf.mxu0
  %279 = vmatprep.mubr.bf16.mxu0 %v199
  %280 = vmatmul.mubr.bf16.gmra.mxu0 %v114
  %v281 = vpop.f32.mrf.mxu0
  %v282 = vadd.f32 %v54, %v281
  %v283 = vpop.f32.mrf.mxu0
  %v284 = vpop.f32.mrf.mxu0
  %v285 = vadd.f32 %v54, %v284
  %v286 = vpop.f32.mrf.mxu0
  %287 = vmatprep.mubr.bf16.mxu0 %v202
  %288 = vmatmul.mubr.bf16.gmra.mxu0 %v116
  %v289 = vpop.f32.mrf.mxu0
  %v290 = vadd.f32 %v54, %v289
  %v291 = vpop.f32.mrf.mxu0
  %v292 = vpop.f32.mrf.mxu0
  %v293 = vadd.f32 %v54, %v292
  %v294 = vpop.f32.mrf.mxu0
  %295 = vmatprep.mubr.bf16.mxu0 %v205
  %296 = vmatmul.mubr.bf16.gmra.mxu0 %v118
  %v297 = vpop.f32.mrf.mxu0
  %v298 = vadd.f32 %v54, %v297
  %v299 = vpop.f32.mrf.mxu0
  %v300 = vpop.f32.mrf.mxu0
  %v301 = vadd.f32 %v54, %v300
  %v302 = vpop.f32.mrf.mxu0
  %303 = vdwg.mxu0
  %v304 = vmax.f32 %v242, 0.0
  %v305 = vmax.f32 %v245, 0.0
  %v306 = vmax.f32 %v250, 0.0
  %v307 = vmax.f32 %v253, 0.0
  %v308 = vmax.f32 %v258, 0.0
  %v309 = vmax.f32 %v261, 0.0
  %v310 = vmax.f32 %v266, 0.0
  %v311 = vmax.f32 %v269, 0.0
  %v312 = vmax.f32 %v274, 0.0
  %v313 = vmax.f32 %v277, 0.0
  %v314 = vmax.f32 %v282, 0.0
  %v315 = vmax.f32 %v285, 0.0
  %v316 = vmax.f32 %v290, 0.0
  %v317 = vmax.f32 %v293, 0.0
  %v318 = vmax.f32 %v298, 0.0
  %v319 = vmax.f32 %v301, 0.0
  %vm320 = vcmask 261120
  %321 = vst.msk [vmem:[%s3] sm:$0xff] %vm320, %v304
  %322 = vst.msk [vmem:[%s3 + $0x8] sm:$0xff] %vm320, %v305
  %323 = vst.msk [vmem:[%s3 + $0x10] sm:$0xff] %vm320, %v306
  %324 = vst.msk [vmem:[%s3 + $0x18] sm:$0xff] %vm320, %v307
  %325 = vst.msk [vmem:[%s3 + $0x20] sm:$0xff] %vm320, %v308
  %326 = vst.msk [vmem:[%s3 + $0x28] sm:$0xff] %vm320, %v309
  %327 = vst.msk [vmem:[%s3 + $0x30] sm:$0xff] %vm320, %v310
  %328 = vst.msk [vmem:[%s3 + $0x38] sm:$0xff] %vm320, %v311
  %329 = vst.msk [vmem:[%s3 + $0x40] sm:$0xff] %vm320, %v312
  %330 = vst.msk [vmem:[%s3 + $0x48] sm:$0xff] %vm320, %v313
  %331 = vst.msk [vmem:[%s3 + $0x50] sm:$0xff] %vm320, %v314
  %332 = vst.msk [vmem:[%s3 + $0x58] sm:$0xff] %vm320, %v315
  %333 = vst.msk [vmem:[%s3 + $0x60] sm:$0xff] %vm320, %v316
  %334 = vst.msk [vmem:[%s3 + $0x68] sm:$0xff] %vm320, %v317
  %335 = vst.msk [vmem:[%s3 + $0x70] sm:$0xff] %vm320, %v318
  %336 = vst.msk [vmem:[%s3 + $0x78] sm:$0xff] %vm320, %v319
  // Predicated region
  $region14: #{resnet14_forward.19} parent=0 // pred_check
    _
  $region15: #{resnet14_forward.19} parent=0 // pred_check_branch
    %338 = sbr.rel (0) target = $region17
  $region16: #{resnet14_forward.19} parent=0 // pred_region
    _
  $region17: #{resnet14_forward.19} parent=0 // pred_fallthru
    _
  // Predicated region
  $region18: #{resnet14_forward.19} parent=0 // pred_check
    _
  $region19: #{resnet14_forward.19} parent=0 // pred_check_branch
    %340 = sbr.rel (0) target = $region21
  $region20: #{resnet14_forward.19} parent=0 // pred_region
    _
  $region21: #{resnet14_forward.19} parent=0 // pred_fallthru
    _

// kernel: resnet14_forward.20
$region0: #{resnet14_forward.20}
  #allocation0 [shape = 'u32[]', space=smem, size = 0x4, offset = 0x4, fixed_abs, tag = 'smem constant byte address 0x4 - core index']
  #allocation1 [shape = 'u32[144,128]{1,0:T(1,128)}', space=vmem, size = 0x12000, scoped, tag = 'internal scratch']
  %s0 = inlined_call_operand.vmem [shape: bf16[128,304], index: 0, kind: input, shape index: {}]
  %s1 = inlined_call_operand.vmem [shape: bf16[304,32], index: 1, kind: input, shape index: {}]
  %s2 = inlined_call_operand.vmem [shape: f32[1,32], index: 2, kind: input, shape index: {}]
  %s3 = inlined_call_operand.vmem [shape: f32[128,32], index: 3, kind: output, shape index: {}]
  %s4 = sld [smem:[#allocation0]]
  $region22: #{resnet14_forward.20} parent=0
    _
  %s6 = ssub.s32 1, %s4
  %s7 = scalar_select 0, %s6, %s4
  // Predicated region
  $region2: #{resnet14_forward.20} parent=0 // pred_check
    _
  $region3: #{resnet14_forward.20} parent=0 // pred_check_branch
    %9 = sbr.rel (0) target = $region5
  $region4: #{resnet14_forward.20} parent=0 // pred_region
    _
  $region5: #{resnet14_forward.20} parent=0 // pred_fallthru
    _
  // Predicated region
  $region6: #{resnet14_forward.20} parent=0 // pred_check
    _
  $region7: #{resnet14_forward.20} parent=0 // pred_check_branch
    %11 = sbr.rel (0) target = $region9
  $region8: #{resnet14_forward.20} parent=0 // pred_region
    _
  $region9: #{resnet14_forward.20} parent=0 // pred_fallthru
    _
  // Predicated region
  $region10: #{resnet14_forward.20} parent=0 // pred_check
    _
  $region11: #{resnet14_forward.20} parent=0 // pred_check_branch
    %13 = sbr.rel (0) target = $region13
  $region12: #{resnet14_forward.20} parent=0 // pred_region
    _
  $region13: #{resnet14_forward.20} parent=0 // pred_fallthru
    _
  %v15 = vld [vmem:[%s0] sm:$0xff]
  %v16 = vld [vmem:[%s0 + $0x8] sm:$0xf]
  %v17 = vld [vmem:[%s0 + $0xc] sm:$0xff]
  %v18 = vld [vmem:[%s0 + $0x14] sm:$0xf]
  %v19 = vld [vmem:[%s0 + $0x18] sm:$0xff]
  %v20 = vld [vmem:[%s0 + $0x20] sm:$0xf]
  %v21 = vld [vmem:[%s0 + $0x24] sm:$0xff]
  %v22 = vld [vmem:[%s0 + $0x2c] sm:$0xf]
  %v23 = vld [vmem:[%s0 + $0x30] sm:$0xff]
  %v24 = vld [vmem:[%s0 + $0x38] sm:$0xf]
  %v25 = vld [vmem:[%s0 + $0x3c] sm:$0xff]
  %v26 = vld [vmem:[%s0 + $0x44] sm:$0xf]
  %v27 = vld [vmem:[%s0 + $0x48] sm:$0xff]
  %v28 = vld [vmem:[%s0 + $0x50] sm:$0xf]
  %v29 = vld [vmem:[%s0 + $0x54] sm:$0xff]
  %v30 = vld [vmem:[%s0 + $0x5c] sm:$0xf]
  %v31 = vld [vmem:[%s0 + $0x60] sm:$0xff]
  %v32 = vld [vmem:[%s0 + $0x68] sm:$0xf]
  %v33 = vld [vmem:[%s0 + $0x6c] sm:$0xff]
  %v34 = vld [vmem:[%s0 + $0x74] sm:$0xf]
  %v35 = vld [vmem:[%s0 + $0x78] sm:$0xff]
  %v36 = vld [vmem:[%s0 + $0x80] sm:$0xf]
  %v37 = vld [vmem:[%s0 + $0x84] sm:$0xff]
  %v38 = vld [vmem:[%s0 + $0x8c] sm:$0xf]
  %v39 = vld [vmem:[%s0 + $0x90] sm:$0xff]
  %v40 = vld [vmem:[%s0 + $0x98] sm:$0xf]
  %v41 = vld [vmem:[%s0 + $0x9c] sm:$0xff]
  %v42 = vld [vmem:[%s0 + $0xa4] sm:$0xf]
  %v43 = vld [vmem:[%s0 + $0xa8] sm:$0xff]
  %v44 = vld [vmem:[%s0 + $0xb0] sm:$0xf]
  %v45 = vld [vmem:[%s0 + $0xb4] sm:$0xff]
  %v46 = vld [vmem:[%s0 + $0xbc] sm:$0xf]
  %v47 = vld [vmem:[%s1] sm:$0xf]
  %v48 = vld [vmem:[%s1 + $0x4] sm:$0xf]
  %v49 = vld [vmem:[%s1 + $0x8] sm:$0xf]
  %v50 = vld [vmem:[%s1 + $0xc] sm:$0xf]
  %v51 = vld [vmem:[%s1 + $0x10] sm:$0xf]
  %v52 = vld [vmem:[%s1 + $0x14] sm:$0xf]
  %v53 = vld [vmem:[%s1 + $0x18] sm:$0xf]
  %v54 = vld [vmem:[%s1 + $0x1c] sm:$0xf]
  %v55 = vld [vmem:[%s1 + $0x20] sm:$0xf]
  %v56 = vld [vmem:[%s1 + $0x24] sm:$0xf]
  %v57 = vld [vmem:[%s1 + $0x28] sm:$0xf]
  %v58 = vld [vmem:[%s1 + $0x2c] sm:$0xf]
  %v59 = vld [vmem:[%s1 + $0x30] sm:$0xf]
  %v60 = vld [vmem:[%s1 + $0x34] sm:$0xf]
  %v61 = vld [vmem:[%s1 + $0x38] sm:$0xf]
  %v62 = vld [vmem:[%s1 + $0x3c] sm:$0xf]
  %v63 = vld [vmem:[%s1 + $0x40] sm:$0xf]
  %v64 = vld [vmem:[%s1 + $0x44] sm:$0xf]
  %v65 = vld [vmem:[%s1 + $0x48] sm:$0xf]
  %v66 = vld [vmem:[%s1 + $0x4c] sm:$0xf]
  %v67 = vld [vmem:[%s1 + $0x50] sm:$0xf]
  %v68 = vld [vmem:[%s1 + $0x54] sm:$0xf]
  %v69 = vld [vmem:[%s1 + $0x58] sm:$0xf]
  %v70 = vld [vmem:[%s1 + $0x5c] sm:$0xf]
  %v71 = vld [vmem:[%s1 + $0x60] sm:$0xf]
  %v72 = vld [vmem:[%s1 + $0x64] sm:$0xf]
  %v73 = vld [vmem:[%s1 + $0x68] sm:$0xf]
  %v74 = vld [vmem:[%s1 + $0x6c] sm:$0xf]
  %v75 = vld [vmem:[%s1 + $0x70] sm:$0xf]
  %v76 = vld [vmem:[%s1 + $0x74] sm:$0xf]
  %v77 = vld [vmem:[%s1 + $0x78] sm:$0xf]
  %v78 = vld [vmem:[%s1 + $0x7c] sm:$0xf]
  %v79 = vld [vmem:[%s1 + $0x80] sm:$0xf]
  %v80 = vld [vmem:[%s1 + $0x84] sm:$0xf]
  %v81 = vld [vmem:[%s1 + $0x88] sm:$0xf]
  %v82 = vld [vmem:[%s1 + $0x8c] sm:$0xf]
  %v83 = vld [vmem:[%s1 + $0x90] sm:$0xf]
  %v84 = vld [vmem:[%s1 + $0x94] sm:$0xf]
  %v85 = vld [vmem:[%s2] sm:$0x1]
  %v87 = vlaneseq
  %v88 = vshrl.u32 %v87, 7
  %v89 = vsub.s32 0, %v88
  %v90 = vrot.slane %v85, %v89
  %v124 = vunpack.c.l.b16 %v15
  %v125 = vunpack.c.h.b16 %v15
  %v126 = vunpack.c.l.b16 %v16
  %v127 = vunpack.c.l.b16 %v17
  %v128 = vunpack.c.h.b16 %v17
  %v129 = vunpack.c.l.b16 %v18
  %v130 = vunpack.c.l.b16 %v19
  %v131 = vunpack.c.h.b16 %v19
  %v132 = vunpack.c.l.b16 %v20
  %v133 = vunpack.c.l.b16 %v21
  %v134 = vunpack.c.h.b16 %v21
  %v135 = vunpack.c.l.b16 %v22
  %v136 = vunpack.c.l.b16 %v23
  %v137 = vunpack.c.h.b16 %v23
  %v138 = vunpack.c.l.b16 %v24
  %v139 = vunpack.c.l.b16 %v25
  %v140 = vunpack.c.h.b16 %v25
  %v141 = vunpack.c.l.b16 %v26
  %v142 = vunpack.c.l.b16 %v27
  %v143 = vunpack.c.h.b16 %v27
  %v144 = vunpack.c.l.b16 %v28
  %v145 = vunpack.c.l.b16 %v29
  %v146 = vunpack.c.h.b16 %v29
  %v147 = vunpack.c.l.b16 %v30
  %v148 = vunpack.c.l.b16 %v31
  %v149 = vunpack.c.h.b16 %v31
  %v150 = vunpack.c.l.b16 %v32
  %v151 = vunpack.c.l.b16 %v33
  %v152 = vunpack.c.h.b16 %v33
  %v153 = vunpack.c.l.b16 %v34
  %v154 = vunpack.c.l.b16 %v35
  %v155 = vunpack.c.h.b16 %v35
  %v156 = vunpack.c.l.b16 %v36
  %v157 = vunpack.c.l.b16 %v37
  %v158 = vunpack.c.h.b16 %v37
  %v159 = vunpack.c.l.b16 %v38
  %v160 = vunpack.c.l.b16 %v39
  %v161 = vunpack.c.h.b16 %v39
  %v162 = vunpack.c.l.b16 %v40
  %v163 = vunpack.c.l.b16 %v41
  %v164 = vunpack.c.h.b16 %v41
  %v165 = vunpack.c.l.b16 %v42
  %v166 = vunpack.c.l.b16 %v43
  %v167 = vunpack.c.h.b16 %v43
  %v168 = vunpack.c.l.b16 %v44
  %v169 = vunpack.c.l.b16 %v45
  %v170 = vunpack.c.h.b16 %v45
  %v171 = vunpack.c.l.b16 %v46
  %v172 = vpack.c.b16 %v127, %v124
  %v173 = vpack.c.b16 %v128, %v125
  %v174 = vpack.c.b16 %v129, %v126
  %v175 = vpack.c.b16 %v133, %v130
  %v176 = vpack.c.b16 %v134, %v131
  %v177 = vpack.c.b16 %v135, %v132
  %v178 = vpack.c.b16 %v139, %v136
  %v179 = vpack.c.b16 %v140, %v137
  %v180 = vpack.c.b16 %v141, %v138
  %v181 = vpack.c.b16 %v145, %v142
  %v182 = vpack.c.b16 %v146, %v143
  %v183 = vpack.c.b16 %v147, %v144
  %v184 = vpack.c.b16 %v151, %v148
  %v185 = vpack.c.b16 %v152, %v149
  %v186 = vpack.c.b16 %v153, %v150
  %v187 = vpack.c.b16 %v157, %v154
  %v188 = vpack.c.b16 %v158, %v155
  %v189 = vpack.c.b16 %v159, %v156
  %v190 = vpack.c.b16 %v163, %v160
  %v191 = vpack.c.b16 %v164, %v161
  %v192 = vpack.c.b16 %v165, %v162
  %v193 = vpack.c.b16 %v169, %v166
  %v194 = vpack.c.b16 %v170, %v167
  %v195 = vpack.c.b16 %v171, %v168
  %v250 = vunpack.c.l.b16 %v47
  %v251 = vunpack.c.l.b16 %v48
  %v252 = vunpack.c.l.b16 %v49
  %v253 = vunpack.c.l.b16 %v50
  %v254 = vunpack.c.l.b16 %v51
  %v255 = vunpack.c.l.b16 %v52
  %v256 = vunpack.c.l.b16 %v53
  %v257 = vunpack.c.l.b16 %v54
  %v258 = vunpack.c.l.b16 %v55
  %v259 = vunpack.c.l.b16 %v56
  %v260 = vunpack.c.l.b16 %v57
  %v261 = vunpack.c.l.b16 %v58
  %v262 = vunpack.c.l.b16 %v59
  %v263 = vunpack.c.l.b16 %v60
  %v264 = vunpack.c.l.b16 %v61
  %v265 = vunpack.c.l.b16 %v62
  %v266 = vunpack.c.l.b16 %v63
  %v267 = vunpack.c.l.b16 %v64
  %v268 = vunpack.c.l.b16 %v65
  %v269 = vunpack.c.l.b16 %v66
  %v270 = vunpack.c.l.b16 %v67
  %v271 = vunpack.c.l.b16 %v68
  %v272 = vunpack.c.l.b16 %v69
  %v273 = vunpack.c.l.b16 %v70
  %v274 = vunpack.c.l.b16 %v71
  %v275 = vunpack.c.l.b16 %v72
  %v276 = vunpack.c.l.b16 %v73
  %v277 = vunpack.c.l.b16 %v74
  %v278 = vunpack.c.l.b16 %v75
  %v279 = vunpack.c.l.b16 %v76
  %v280 = vunpack.c.l.b16 %v77
  %v281 = vunpack.c.l.b16 %v78
  %v282 = vunpack.c.l.b16 %v79
  %v283 = vunpack.c.l.b16 %v80
  %v284 = vunpack.c.l.b16 %v81
  %v285 = vunpack.c.l.b16 %v82
  %v286 = vunpack.c.l.b16 %v83
  %v287 = vunpack.c.l.b16 %v84
  %v288 = vpack.c.b16 %v251, %v250
  %v289 = vpack.c.b16 %v253, %v252
  %v290 = vpack.c.b16 %v255, %v254
  %v291 = vpack.c.b16 %v257, %v256
  %v292 = vpack.c.b16 %v259, %v258
  %v293 = vpack.c.b16 %v261, %v260
  %v294 = vpack.c.b16 %v263, %v262
  %v295 = vpack.c.b16 %v265, %v264
  %v296 = vpack.c.b16 %v267, %v266
  %v297 = vpack.c.b16 %v269, %v268
  %v298 = vpack.c.b16 %v271, %v270
  %v299 = vpack.c.b16 %v273, %v272
  %v300 = vpack.c.b16 %v275, %v274
  %v301 = vpack.c.b16 %v277, %v276
  %v302 = vpack.c.b16 %v279, %v278
  %v303 = vpack.c.b16 %v281, %v280
  %v304 = vpack.c.b16 %v283, %v282
  %v305 = vpack.c.b16 %v285, %v284
  %v306 = vpack.c.b16 %v287, %v286
  %vm326 = vcmask 392192
  %v328 = vsel %vm326, %v174, 0
  %v331 = vsel %vm326, %v177, 0
  %v334 = vsel %vm326, %v180, 0
  %v337 = vsel %vm326, %v183, 0
  %v340 = vsel %vm326, %v186, 0
  %v343 = vsel %vm326, %v189, 0
  %v346 = vsel %vm326, %v192, 0
  %v349 = vsel %vm326, %v195, 0
  %351 = vmatprep.subr.bf16.mxu0 0
  %352 = vmatpush1.bf16.msra.mxu0 %v295
  %353 = vmatprep.subr.bf16.mxu0 0
  %354 = vmatpush1.bf16.msra.mxu0 %v294
  %355 = vmatprep.subr.bf16.mxu0 0
  %356 = vmatpush1.bf16.msra.mxu0 %v293
  %357 = vmatprep.subr.bf16.mxu0 0
  %358 = vmatpush1.bf16.msra.mxu0 %v292
  %359 = vmatprep.subr.bf16.mxu0 0
  %360 = vmatpush1.bf16.msra.mxu0 %v291
  %361 = vmatprep.subr.bf16.mxu0 0
  %362 = vmatpush1.bf16.msra.mxu0 %v290
  %363 = vmatprep.subr.bf16.mxu0 0
  %364 = vmatpush1.bf16.msra.mxu0 %v289
  %365 = vmatprep.subr.bf16.mxu0 0
  %366 = vmatpush1.bf16.msra.mxu0 %v288
  %367 = vmatprep.subr.bf16.mxu0 0
  %368 = vmatpush2.bf16.msra.mxu0 %v303
  %369 = vmatprep.subr.bf16.mxu0 0
  %370 = vmatpush2.bf16.msra.mxu0 %v302
  %371 = vmatprep.subr.bf16.mxu0 0
  %372 = vmatpush2.bf16.msra.mxu0 %v301
  %373 = vmatprep.subr.bf16.mxu0 0
  %374 = vmatpush2.bf16.msra.mxu0 %v300
  %375 = vmatprep.subr.bf16.mxu0 0
  %376 = vmatpush2.bf16.msra.mxu0 %v299
  %377 = vmatprep.subr.bf16.mxu0 0
  %378 = vmatpush2.bf16.msra.mxu0 %v298
  %379 = vmatprep.subr.bf16.mxu0 0
  %380 = vmatpush2.bf16.msra.mxu0 %v297
  %381 = vmatprep.subr.bf16.mxu0 0
  %382 = vmatpush2.bf16.msra.mxu0 %v296
  %383 = vmatprep.mubr.bf16.mxu0 %v173
  %384 = vmatmul.mubr.bf16.gmra.mxu0 %v172
  %v385 = vpop.f32.mrf.mxu0
  %v386 = vadd.f32 %v90, %v385
  %v387 = vpop.f32.mrf.mxu0
  %v388 = vpop.f32.mrf.mxu0
  %v389 = vadd.f32 %v90, %v388
  %v390 = vpop.f32.mrf.mxu0
  %391 = vmatprep.mubr.bf16.mxu0 %v176
  %392 = vmatmul.mubr.bf16.gmra.mxu0 %v175
  %v393 = vpop.f32.mrf.mxu0
  %v394 = vadd.f32 %v90, %v393
  %v395 = vpop.f32.mrf.mxu0
  %v396 = vpop.f32.mrf.mxu0
  %v397 = vadd.f32 %v90, %v396
  %v398 = vpop.f32.mrf.mxu0
  %399 = vmatprep.mubr.bf16.mxu0 %v179
  %400 = vmatmul.mubr.bf16.gmra.mxu0 %v178
  %v401 = vpop.f32.mrf.mxu0
  %v402 = vadd.f32 %v90, %v401
  %v403 = vpop.f32.mrf.mxu0
  %v404 = vpop.f32.mrf.mxu0
  %v405 = vadd.f32 %v90, %v404
  %v406 = vpop.f32.mrf.mxu0
  %407 = vmatprep.mubr.bf16.mxu0 %v182
  %408 = vmatmul.mubr.bf16.gmra.mxu0 %v181
  %v409 = vpop.f32.mrf.mxu0
  %v410 = vadd.f32 %v90, %v409
  %v411 = vpop.f32.mrf.mxu0
  %v412 = vpop.f32.mrf.mxu0
  %v413 = vadd.f32 %v90, %v412
  %v414 = vpop.f32.mrf.mxu0
  %415 = vmatprep.mubr.bf16.mxu0 %v185
  %416 = vmatmul.mubr.bf16.gmra.mxu0 %v184
  %v417 = vpop.f32.mrf.mxu0
  %v418 = vadd.f32 %v90, %v417
  %v419 = vpop.f32.mrf.mxu0
  %v420 = vpop.f32.mrf.mxu0
  %v421 = vadd.f32 %v90, %v420
  %v422 = vpop.f32.mrf.mxu0
  %423 = vmatprep.mubr.bf16.mxu0 %v188
  %424 = vmatmul.mubr.bf16.gmra.mxu0 %v187
  %v425 = vpop.f32.mrf.mxu0
  %v426 = vadd.f32 %v90, %v425
  %v427 = vpop.f32.mrf.mxu0
  %v428 = vpop.f32.mrf.mxu0
  %v429 = vadd.f32 %v90, %v428
  %v430 = vpop.f32.mrf.mxu0
  %431 = vmatprep.mubr.bf16.mxu0 %v191
  %432 = vmatmul.mubr.bf16.gmra.mxu0 %v190
  %v433 = vpop.f32.mrf.mxu0
  %v434 = vadd.f32 %v90, %v433
  %v435 = vpop.f32.mrf.mxu0
  %v436 = vpop.f32.mrf.mxu0
  %v437 = vadd.f32 %v90, %v436
  %v438 = vpop.f32.mrf.mxu0
  %439 = vmatprep.mubr.bf16.mxu0 %v194
  %440 = vmatmul.mubr.bf16.gmra.mxu0 %v193
  %v441 = vpop.f32.mrf.mxu0
  %v442 = vadd.f32 %v90, %v441
  %v443 = vpop.f32.mrf.mxu0
  %v444 = vpop.f32.mrf.mxu0
  %v445 = vadd.f32 %v90, %v444
  %v446 = vpop.f32.mrf.mxu0
  %447 = vdwg.mxu0
  %448 = vmatprep.subr.bf16.mxu0 0
  %449 = vmatpush1.bf16.msra.mxu0 0
  %450 = vmatprep.subr.bf16.mxu0 0
  %451 = vmatpush1.bf16.msra.mxu0 0
  %452 = vmatprep.subr.bf16.mxu0 0
  %453 = vmatpush1.bf16.msra.mxu0 0
  %454 = vmatprep.subr.bf16.mxu0 0
  %455 = vmatpush1.bf16.msra.mxu0 0
  %456 = vmatprep.subr.bf16.mxu0 0
  %457 = vmatpush1.bf16.msra.mxu0 0
  %458 = vmatprep.subr.bf16.mxu0 0
  %459 = vmatpush1.bf16.msra.mxu0 %v306
  %460 = vmatprep.subr.bf16.mxu0 0
  %461 = vmatpush1.bf16.msra.mxu0 %v305
  %462 = vmatprep.subr.bf16.mxu0 0
  %463 = vmatpush1.bf16.msra.mxu0 %v304
  %464 = vmatprep.subr.bf16.mxu0 0
  %465 = vmatpush2.bf16.msra.mxu0 0
  %466 = vmatprep.subr.bf16.mxu0 0
  %467 = vmatpush2.bf16.msra.mxu0 0
  %468 = vmatprep.subr.bf16.mxu0 0
  %469 = vmatpush2.bf16.msra.mxu0 0
  %470 = vmatprep.subr.bf16.mxu0 0
  %471 = vmatpush2.bf16.msra.mxu0 0
  %472 = vmatprep.subr.bf16.mxu0 0
  %473 = vmatpush2.bf16.msra.mxu0 0
  %474 = vmatprep.subr.bf16.mxu0 0
  %475 = vmatpush2.bf16.msra.mxu0 0
  %476 = vmatprep.subr.bf16.mxu0 0
  %477 = vmatpush2.bf16.msra.mxu0 0
  %478 = vmatprep.subr.bf16.mxu0 0
  %479 = vmatpush2.bf16.msra.mxu0 0
  %480 = vmatprep.mubr.bf16.mxu0 0
  %481 = vmatmul.mubr.bf16.gmra.mxu0 %v328
  %v482 = vpop.f32.mrf.mxu0
  %v483 = vadd.f32 %v386, %v482
  %v484 = vpop.f32.mrf.mxu0
  %v485 = vpop.f32.mrf.mxu0
  %v486 = vadd.f32 %v389, %v485
  %v487 = vpop.f32.mrf.mxu0
  %488 = vmatprep.mubr.bf16.mxu0 0
  %489 = vmatmul.mubr.bf16.gmra.mxu0 %v331
  %v490 = vpop.f32.mrf.mxu0
  %v491 = vadd.f32 %v394, %v490
  %v492 = vpop.f32.mrf.mxu0
  %v493 = vpop.f32.mrf.mxu0
  %v494 = vadd.f32 %v397, %v493
  %v495 = vpop.f32.mrf.mxu0
  %496 = vmatprep.mubr.bf16.mxu0 0
  %497 = vmatmul.mubr.bf16.gmra.mxu0 %v334
  %v498 = vpop.f32.mrf.mxu0
  %v499 = vadd.f32 %v402, %v498
  %v500 = vpop.f32.mrf.mxu0
  %v501 = vpop.f32.mrf.mxu0
  %v502 = vadd.f32 %v405, %v501
  %v503 = vpop.f32.mrf.mxu0
  %504 = vmatprep.mubr.bf16.mxu0 0
  %505 = vmatmul.mubr.bf16.gmra.mxu0 %v337
  %v506 = vpop.f32.mrf.mxu0
  %v507 = vadd.f32 %v410, %v506
  %v508 = vpop.f32.mrf.mxu0
  %v509 = vpop.f32.mrf.mxu0
  %v510 = vadd.f32 %v413, %v509
  %v511 = vpop.f32.mrf.mxu0
  %512 = vmatprep.mubr.bf16.mxu0 0
  %513 = vmatmul.mubr.bf16.gmra.mxu0 %v340
  %v514 = vpop.f32.mrf.mxu0
  %v515 = vadd.f32 %v418, %v514
  %v516 = vpop.f32.mrf.mxu0
  %v517 = vpop.f32.mrf.mxu0
  %v518 = vadd.f32 %v421, %v517
  %v519 = vpop.f32.mrf.mxu0
  %520 = vmatprep.mubr.bf16.mxu0 0
  %521 = vmatmul.mubr.bf16.gmra.mxu0 %v343
  %v522 = vpop.f32.mrf.mxu0
  %v523 = vadd.f32 %v426, %v522
  %v524 = vpop.f32.mrf.mxu0
  %v525 = vpop.f32.mrf.mxu0
  %v526 = vadd.f32 %v429, %v525
  %v527 = vpop.f32.mrf.mxu0
  %528 = vmatprep.mubr.bf16.mxu0 0
  %529 = vmatmul.mubr.bf16.gmra.mxu0 %v346
  %v530 = vpop.f32.mrf.mxu0
  %v531 = vadd.f32 %v434, %v530
  %v532 = vpop.f32.mrf.mxu0
  %v533 = vpop.f32.mrf.mxu0
  %v534 = vadd.f32 %v437, %v533
  %v535 = vpop.f32.mrf.mxu0
  %536 = vmatprep.mubr.bf16.mxu0 0
  %537 = vmatmul.mubr.bf16.gmra.mxu0 %v349
  %v538 = vpop.f32.mrf.mxu0
  %v539 = vadd.f32 %v442, %v538
  %v540 = vpop.f32.mrf.mxu0
  %v541 = vpop.f32.mrf.mxu0
  %v542 = vadd.f32 %v445, %v541
  %v543 = vpop.f32.mrf.mxu0
  %544 = vdwg.mxu0
  %v545 = vmax.f32 %v483, 0.0
  %v546 = vmax.f32 %v486, 0.0
  %v547 = vmax.f32 %v491, 0.0
  %v548 = vmax.f32 %v494, 0.0
  %v549 = vmax.f32 %v499, 0.0
  %v550 = vmax.f32 %v502, 0.0
  %v551 = vmax.f32 %v507, 0.0
  %v552 = vmax.f32 %v510, 0.0
  %v553 = vmax.f32 %v515, 0.0
  %v554 = vmax.f32 %v518, 0.0
  %v555 = vmax.f32 %v523, 0.0
  %v556 = vmax.f32 %v526, 0.0
  %v557 = vmax.f32 %v531, 0.0
  %v558 = vmax.f32 %v534, 0.0
  %v559 = vmax.f32 %v539, 0.0
  %v560 = vmax.f32 %v542, 0.0
  %vm561 = vcmask 261120
  %562 = vst.msk [vmem:[%s3] sm:$0xff] %vm561, %v545
  %563 = vst.msk [vmem:[%s3 + $0x8] sm:$0xff] %vm561, %v546
  %564 = vst.msk [vmem:[%s3 + $0x10] sm:$0xff] %vm561, %v547
  %565 = vst.msk [vmem:[%s3 + $0x18] sm:$0xff] %vm561, %v548
  %566 = vst.msk [vmem:[%s3 + $0x20] sm:$0xff] %vm561, %v549
  %567 = vst.msk [vmem:[%s3 + $0x28] sm:$0xff] %vm561, %v550
  %568 = vst.msk [vmem:[%s3 + $0x30] sm:$0xff] %vm561, %v551
  %569 = vst.msk [vmem:[%s3 + $0x38] sm:$0xff] %vm561, %v552
  %570 = vst.msk [vmem:[%s3 + $0x40] sm:$0xff] %vm561, %v553
  %571 = vst.msk [vmem:[%s3 + $0x48] sm:$0xff] %vm561, %v554
  %572 = vst.msk [vmem:[%s3 + $0x50] sm:$0xff] %vm561, %v555
  %573 = vst.msk [vmem:[%s3 + $0x58] sm:$0xff] %vm561, %v556
  %574 = vst.msk [vmem:[%s3 + $0x60] sm:$0xff] %vm561, %v557
  %575 = vst.msk [vmem:[%s3 + $0x68] sm:$0xff] %vm561, %v558
  %576 = vst.msk [vmem:[%s3 + $0x70] sm:$0xff] %vm561, %v559
  %577 = vst.msk [vmem:[%s3 + $0x78] sm:$0xff] %vm561, %v560
  // Predicated region
  $region14: #{resnet14_forward.20} parent=0 // pred_check
    _
  $region15: #{resnet14_forward.20} parent=0 // pred_check_branch
    %579 = sbr.rel (0) target = $region17
  $region16: #{resnet14_forward.20} parent=0 // pred_region
    _
  $region17: #{resnet14_forward.20} parent=0 // pred_fallthru
    _
  // Predicated region
  $region18: #{resnet14_forward.20} parent=0 // pred_check
    _
  $region19: #{resnet14_forward.20} parent=0 // pred_check_branch
    %581 = sbr.rel (0) target = $region21
  $region20: #{resnet14_forward.20} parent=0 // pred_region
    _
  $region21: #{resnet14_forward.20} parent=0 // pred_fallthru
    _

// kernel: resnet14_forward.21
$region0: #{resnet14_forward.21}
  #allocation0 [shape = 'u32[]', space=smem, size = 0x4, offset = 0x4, fixed_abs, tag = 'smem constant byte address 0x4 - core index']
  #allocation1 [shape = 'u32[144,128]{1,0:T(1,128)}', space=vmem, size = 0x12000, scoped, tag = 'internal scratch']
  %s0 = inlined_call_operand.vmem [shape: bf16[128,288], index: 0, kind: input, shape index: {}]
  %s1 = inlined_call_operand.vmem [shape: bf16[288,32], index: 1, kind: input, shape index: {}]
  %s2 = inlined_call_operand.vmem [shape: f32[1,32], index: 2, kind: input, shape index: {}]
  %s3 = inlined_call_operand.vmem [shape: f32[128,32], index: 3, kind: output, shape index: {}]
  %s4 = sld [smem:[#allocation0]]
  $region22: #{resnet14_forward.21} parent=0
    _
  %s6 = ssub.s32 1, %s4
  %s7 = scalar_select 0, %s6, %s4
  // Predicated region
  $region2: #{resnet14_forward.21} parent=0 // pred_check
    _
  $region3: #{resnet14_forward.21} parent=0 // pred_check_branch
    %9 = sbr.rel (0) target = $region5
  $region4: #{resnet14_forward.21} parent=0 // pred_region
    _
  $region5: #{resnet14_forward.21} parent=0 // pred_fallthru
    _
  // Predicated region
  $region6: #{resnet14_forward.21} parent=0 // pred_check
    _
  $region7: #{resnet14_forward.21} parent=0 // pred_check_branch
    %11 = sbr.rel (0) target = $region9
  $region8: #{resnet14_forward.21} parent=0 // pred_region
    _
  $region9: #{resnet14_forward.21} parent=0 // pred_fallthru
    _
  // Predicated region
  $region10: #{resnet14_forward.21} parent=0 // pred_check
    _
  $region11: #{resnet14_forward.21} parent=0 // pred_check_branch
    %13 = sbr.rel (0) target = $region13
  $region12: #{resnet14_forward.21} parent=0 // pred_region
    _
  $region13: #{resnet14_forward.21} parent=0 // pred_fallthru
    _
  %v15 = vld [vmem:[%s0] sm:$0xff]
  %v16 = vld [vmem:[%s0 + $0x8] sm:$0xf]
  %v17 = vld [vmem:[%s0 + $0xc] sm:$0xff]
  %v18 = vld [vmem:[%s0 + $0x14] sm:$0xf]
  %v19 = vld [vmem:[%s0 + $0x18] sm:$0xff]
  %v20 = vld [vmem:[%s0 + $0x20] sm:$0xf]
  %v21 = vld [vmem:[%s0 + $0x24] sm:$0xff]
  %v22 = vld [vmem:[%s0 + $0x2c] sm:$0xf]
  %v23 = vld [vmem:[%s0 + $0x30] sm:$0xff]
  %v24 = vld [vmem:[%s0 + $0x38] sm:$0xf]
  %v25 = vld [vmem:[%s0 + $0x3c] sm:$0xff]
  %v26 = vld [vmem:[%s0 + $0x44] sm:$0xf]
  %v27 = vld [vmem:[%s0 + $0x48] sm:$0xff]
  %v28 = vld [vmem:[%s0 + $0x50] sm:$0xf]
  %v29 = vld [vmem:[%s0 + $0x54] sm:$0xff]
  %v30 = vld [vmem:[%s0 + $0x5c] sm:$0xf]
  %v31 = vld [vmem:[%s0 + $0x60] sm:$0xff]
  %v32 = vld [vmem:[%s0 + $0x68] sm:$0xf]
  %v33 = vld [vmem:[%s0 + $0x6c] sm:$0xff]
  %v34 = vld [vmem:[%s0 + $0x74] sm:$0xf]
  %v35 = vld [vmem:[%s0 + $0x78] sm:$0xff]
  %v36 = vld [vmem:[%s0 + $0x80] sm:$0xf]
  %v37 = vld [vmem:[%s0 + $0x84] sm:$0xff]
  %v38 = vld [vmem:[%s0 + $0x8c] sm:$0xf]
  %v39 = vld [vmem:[%s0 + $0x90] sm:$0xff]
  %v40 = vld [vmem:[%s0 + $0x98] sm:$0xf]
  %v41 = vld [vmem:[%s0 + $0x9c] sm:$0xff]
  %v42 = vld [vmem:[%s0 + $0xa4] sm:$0xf]
  %v43 = vld [vmem:[%s0 + $0xa8] sm:$0xff]
  %v44 = vld [vmem:[%s0 + $0xb0] sm:$0xf]
  %v45 = vld [vmem:[%s0 + $0xb4] sm:$0xff]
  %v46 = vld [vmem:[%s0 + $0xbc] sm:$0xf]
  %v47 = vld [vmem:[%s1] sm:$0xf]
  %v48 = vld [vmem:[%s1 + $0x4] sm:$0xf]
  %v49 = vld [vmem:[%s1 + $0x8] sm:$0xf]
  %v50 = vld [vmem:[%s1 + $0xc] sm:$0xf]
  %v51 = vld [vmem:[%s1 + $0x10] sm:$0xf]
  %v52 = vld [vmem:[%s1 + $0x14] sm:$0xf]
  %v53 = vld [vmem:[%s1 + $0x18] sm:$0xf]
  %v54 = vld [vmem:[%s1 + $0x1c] sm:$0xf]
  %v55 = vld [vmem:[%s1 + $0x20] sm:$0xf]
  %v56 = vld [vmem:[%s1 + $0x24] sm:$0xf]
  %v57 = vld [vmem:[%s1 + $0x28] sm:$0xf]
  %v58 = vld [vmem:[%s1 + $0x2c] sm:$0xf]
  %v59 = vld [vmem:[%s1 + $0x30] sm:$0xf]
  %v60 = vld [vmem:[%s1 + $0x34] sm:$0xf]
  %v61 = vld [vmem:[%s1 + $0x38] sm:$0xf]
  %v62 = vld [vmem:[%s1 + $0x3c] sm:$0xf]
  %v63 = vld [vmem:[%s1 + $0x40] sm:$0xf]
  %v64 = vld [vmem:[%s1 + $0x44] sm:$0xf]
  %v65 = vld [vmem:[%s1 + $0x48] sm:$0xf]
  %v66 = vld [vmem:[%s1 + $0x4c] sm:$0xf]
  %v67 = vld [vmem:[%s1 + $0x50] sm:$0xf]
  %v68 = vld [vmem:[%s1 + $0x54] sm:$0xf]
  %v69 = vld [vmem:[%s1 + $0x58] sm:$0xf]
  %v70 = vld [vmem:[%s1 + $0x5c] sm:$0xf]
  %v71 = vld [vmem:[%s1 + $0x60] sm:$0xf]
  %v72 = vld [vmem:[%s1 + $0x64] sm:$0xf]
  %v73 = vld [vmem:[%s1 + $0x68] sm:$0xf]
  %v74 = vld [vmem:[%s1 + $0x6c] sm:$0xf]
  %v75 = vld [vmem:[%s1 + $0x70] sm:$0xf]
  %v76 = vld [vmem:[%s1 + $0x74] sm:$0xf]
  %v77 = vld [vmem:[%s1 + $0x78] sm:$0xf]
  %v78 = vld [vmem:[%s1 + $0x7c] sm:$0xf]
  %v79 = vld [vmem:[%s1 + $0x80] sm:$0xf]
  %v80 = vld [vmem:[%s1 + $0x84] sm:$0xf]
  %v81 = vld [vmem:[%s1 + $0x88] sm:$0xf]
  %v82 = vld [vmem:[%s1 + $0x8c] sm:$0xf]
  %v83 = vld [vmem:[%s2] sm:$0x1]
  %v85 = vlaneseq
  %v86 = vshrl.u32 %v85, 7
  %v87 = vsub.s32 0, %v86
  %v88 = vrot.slane %v83, %v87
  %v122 = vunpack.c.l.b16 %v15
  %v123 = vunpack.c.h.b16 %v15
  %v124 = vunpack.c.l.b16 %v16
  %v125 = vunpack.c.l.b16 %v17
  %v126 = vunpack.c.h.b16 %v17
  %v127 = vunpack.c.l.b16 %v18
  %v128 = vunpack.c.l.b16 %v19
  %v129 = vunpack.c.h.b16 %v19
  %v130 = vunpack.c.l.b16 %v20
  %v131 = vunpack.c.l.b16 %v21
  %v132 = vunpack.c.h.b16 %v21
  %v133 = vunpack.c.l.b16 %v22
  %v134 = vunpack.c.l.b16 %v23
  %v135 = vunpack.c.h.b16 %v23
  %v136 = vunpack.c.l.b16 %v24
  %v137 = vunpack.c.l.b16 %v25
  %v138 = vunpack.c.h.b16 %v25
  %v139 = vunpack.c.l.b16 %v26
  %v140 = vunpack.c.l.b16 %v27
  %v141 = vunpack.c.h.b16 %v27
  %v142 = vunpack.c.l.b16 %v28
  %v143 = vunpack.c.l.b16 %v29
  %v144 = vunpack.c.h.b16 %v29
  %v145 = vunpack.c.l.b16 %v30
  %v146 = vunpack.c.l.b16 %v31
  %v147 = vunpack.c.h.b16 %v31
  %v148 = vunpack.c.l.b16 %v32
  %v149 = vunpack.c.l.b16 %v33
  %v150 = vunpack.c.h.b16 %v33
  %v151 = vunpack.c.l.b16 %v34
  %v152 = vunpack.c.l.b16 %v35
  %v153 = vunpack.c.h.b16 %v35
  %v154 = vunpack.c.l.b16 %v36
  %v155 = vunpack.c.l.b16 %v37
  %v156 = vunpack.c.h.b16 %v37
  %v157 = vunpack.c.l.b16 %v38
  %v158 = vunpack.c.l.b16 %v39
  %v159 = vunpack.c.h.b16 %v39
  %v160 = vunpack.c.l.b16 %v40
  %v161 = vunpack.c.l.b16 %v41
  %v162 = vunpack.c.h.b16 %v41
  %v163 = vunpack.c.l.b16 %v42
  %v164 = vunpack.c.l.b16 %v43
  %v165 = vunpack.c.h.b16 %v43
  %v166 = vunpack.c.l.b16 %v44
  %v167 = vunpack.c.l.b16 %v45
  %v168 = vunpack.c.h.b16 %v45
  %v169 = vunpack.c.l.b16 %v46
  %v170 = vpack.c.b16 %v125, %v122
  %v171 = vpack.c.b16 %v126, %v123
  %v172 = vpack.c.b16 %v127, %v124
  %v173 = vpack.c.b16 %v131, %v128
  %v174 = vpack.c.b16 %v132, %v129
  %v175 = vpack.c.b16 %v133, %v130
  %v176 = vpack.c.b16 %v137, %v134
  %v177 = vpack.c.b16 %v138, %v135
  %v178 = vpack.c.b16 %v139, %v136
  %v179 = vpack.c.b16 %v143, %v140
  %v180 = vpack.c.b16 %v144, %v141
  %v181 = vpack.c.b16 %v145, %v142
  %v182 = vpack.c.b16 %v149, %v146
  %v183 = vpack.c.b16 %v150, %v147
  %v184 = vpack.c.b16 %v151, %v148
  %v185 = vpack.c.b16 %v155, %v152
  %v186 = vpack.c.b16 %v156, %v153
  %v187 = vpack.c.b16 %v157, %v154
  %v188 = vpack.c.b16 %v161, %v158
  %v189 = vpack.c.b16 %v162, %v159
  %v190 = vpack.c.b16 %v163, %v160
  %v191 = vpack.c.b16 %v167, %v164
  %v192 = vpack.c.b16 %v168, %v165
  %v193 = vpack.c.b16 %v169, %v166
  %v246 = vunpack.c.l.b16 %v47
  %v247 = vunpack.c.l.b16 %v48
  %v248 = vunpack.c.l.b16 %v49
  %v249 = vunpack.c.l.b16 %v50
  %v250 = vunpack.c.l.b16 %v51
  %v251 = vunpack.c.l.b16 %v52
  %v252 = vunpack.c.l.b16 %v53
  %v253 = vunpack.c.l.b16 %v54
  %v254 = vunpack.c.l.b16 %v55
  %v255 = vunpack.c.l.b16 %v56
  %v256 = vunpack.c.l.b16 %v57
  %v257 = vunpack.c.l.b16 %v58
  %v258 = vunpack.c.l.b16 %v59
  %v259 = vunpack.c.l.b16 %v60
  %v260 = vunpack.c.l.b16 %v61
  %v261 = vunpack.c.l.b16 %v62
  %v262 = vunpack.c.l.b16 %v63
  %v263 = vunpack.c.l.b16 %v64
  %v264 = vunpack.c.l.b16 %v65
  %v265 = vunpack.c.l.b16 %v66
  %v266 = vunpack.c.l.b16 %v67
  %v267 = vunpack.c.l.b16 %v68
  %v268 = vunpack.c.l.b16 %v69
  %v269 = vunpack.c.l.b16 %v70
  %v270 = vunpack.c.l.b16 %v71
  %v271 = vunpack.c.l.b16 %v72
  %v272 = vunpack.c.l.b16 %v73
  %v273 = vunpack.c.l.b16 %v74
  %v274 = vunpack.c.l.b16 %v75
  %v275 = vunpack.c.l.b16 %v76
  %v276 = vunpack.c.l.b16 %v77
  %v277 = vunpack.c.l.b16 %v78
  %v278 = vunpack.c.l.b16 %v79
  %v279 = vunpack.c.l.b16 %v80
  %v280 = vunpack.c.l.b16 %v81
  %v281 = vunpack.c.l.b16 %v82
  %v282 = vpack.c.b16 %v247, %v246
  %v283 = vpack.c.b16 %v249, %v248
  %v284 = vpack.c.b16 %v251, %v250
  %v285 = vpack.c.b16 %v253, %v252
  %v286 = vpack.c.b16 %v255, %v254
  %v287 = vpack.c.b16 %v257, %v256
  %v288 = vpack.c.b16 %v259, %v258
  %v289 = vpack.c.b16 %v261, %v260
  %v290 = vpack.c.b16 %v263, %v262
  %v291 = vpack.c.b16 %v265, %v264
  %v292 = vpack.c.b16 %v267, %v266
  %v293 = vpack.c.b16 %v269, %v268
  %v294 = vpack.c.b16 %v271, %v270
  %v295 = vpack.c.b16 %v273, %v272
  %v296 = vpack.c.b16 %v275, %v274
  %v297 = vpack.c.b16 %v277, %v276
  %v298 = vpack.c.b16 %v279, %v278
  %v299 = vpack.c.b16 %v281, %v280
  %vm318 = vcmask 261120
  %v320 = vsel %vm318, %v172, 0
  %v323 = vsel %vm318, %v175, 0
  %v326 = vsel %vm318, %v178, 0
  %v329 = vsel %vm318, %v181, 0
  %v332 = vsel %vm318, %v184, 0
  %v335 = vsel %vm318, %v187, 0
  %v338 = vsel %vm318, %v190, 0
  %v341 = vsel %vm318, %v193, 0
  %343 = vmatprep.subr.bf16.mxu0 0
  %344 = vmatpush1.bf16.msra.mxu0 %v289
  %345 = vmatprep.subr.bf16.mxu0 0
  %346 = vmatpush1.bf16.msra.mxu0 %v288
  %347 = vmatprep.subr.bf16.mxu0 0
  %348 = vmatpush1.bf16.msra.mxu0 %v287
  %349 = vmatprep.subr.bf16.mxu0 0
  %350 = vmatpush1.bf16.msra.mxu0 %v286
  %351 = vmatprep.subr.bf16.mxu0 0
  %352 = vmatpush1.bf16.msra.mxu0 %v285
  %353 = vmatprep.subr.bf16.mxu0 0
  %354 = vmatpush1.bf16.msra.mxu0 %v284
  %355 = vmatprep.subr.bf16.mxu0 0
  %356 = vmatpush1.bf16.msra.mxu0 %v283
  %357 = vmatprep.subr.bf16.mxu0 0
  %358 = vmatpush1.bf16.msra.mxu0 %v282
  %359 = vmatprep.subr.bf16.mxu0 0
  %360 = vmatpush2.bf16.msra.mxu0 %v297
  %361 = vmatprep.subr.bf16.mxu0 0
  %362 = vmatpush2.bf16.msra.mxu0 %v296
  %363 = vmatprep.subr.bf16.mxu0 0
  %364 = vmatpush2.bf16.msra.mxu0 %v295
  %365 = vmatprep.subr.bf16.mxu0 0
  %366 = vmatpush2.bf16.msra.mxu0 %v294
  %367 = vmatprep.subr.bf16.mxu0 0
  %368 = vmatpush2.bf16.msra.mxu0 %v293
  %369 = vmatprep.subr.bf16.mxu0 0
  %370 = vmatpush2.bf16.msra.mxu0 %v292
  %371 = vmatprep.subr.bf16.mxu0 0
  %372 = vmatpush2.bf16.msra.mxu0 %v291
  %373 = vmatprep.subr.bf16.mxu0 0
  %374 = vmatpush2.bf16.msra.mxu0 %v290
  %375 = vmatprep.mubr.bf16.mxu0 %v171
  %376 = vmatmul.mubr.bf16.gmra.mxu0 %v170
  %v377 = vpop.f32.mrf.mxu0
  %v378 = vadd.f32 %v88, %v377
  %v379 = vpop.f32.mrf.mxu0
  %v380 = vpop.f32.mrf.mxu0
  %v381 = vadd.f32 %v88, %v380
  %v382 = vpop.f32.mrf.mxu0
  %383 = vmatprep.mubr.bf16.mxu0 %v174
  %384 = vmatmul.mubr.bf16.gmra.mxu0 %v173
  %v385 = vpop.f32.mrf.mxu0
  %v386 = vadd.f32 %v88, %v385
  %v387 = vpop.f32.mrf.mxu0
  %v388 = vpop.f32.mrf.mxu0
  %v389 = vadd.f32 %v88, %v388
  %v390 = vpop.f32.mrf.mxu0
  %391 = vmatprep.mubr.bf16.mxu0 %v177
  %392 = vmatmul.mubr.bf16.gmra.mxu0 %v176
  %v393 = vpop.f32.mrf.mxu0
  %v394 = vadd.f32 %v88, %v393
  %v395 = vpop.f32.mrf.mxu0
  %v396 = vpop.f32.mrf.mxu0
  %v397 = vadd.f32 %v88, %v396
  %v398 = vpop.f32.mrf.mxu0
  %399 = vmatprep.mubr.bf16.mxu0 %v180
  %400 = vmatmul.mubr.bf16.gmra.mxu0 %v179
  %v401 = vpop.f32.mrf.mxu0
  %v402 = vadd.f32 %v88, %v401
  %v403 = vpop.f32.mrf.mxu0
  %v404 = vpop.f32.mrf.mxu0
  %v405 = vadd.f32 %v88, %v404
  %v406 = vpop.f32.mrf.mxu0
  %407 = vmatprep.mubr.bf16.mxu0 %v183
  %408 = vmatmul.mubr.bf16.gmra.mxu0 %v182
  %v409 = vpop.f32.mrf.mxu0
  %v410 = vadd.f32 %v88, %v409
  %v411 = vpop.f32.mrf.mxu0
  %v412 = vpop.f32.mrf.mxu0
  %v413 = vadd.f32 %v88, %v412
  %v414 = vpop.f32.mrf.mxu0
  %415 = vmatprep.mubr.bf16.mxu0 %v186
  %416 = vmatmul.mubr.bf16.gmra.mxu0 %v185
  %v417 = vpop.f32.mrf.mxu0
  %v418 = vadd.f32 %v88, %v417
  %v419 = vpop.f32.mrf.mxu0
  %v420 = vpop.f32.mrf.mxu0
  %v421 = vadd.f32 %v88, %v420
  %v422 = vpop.f32.mrf.mxu0
  %423 = vmatprep.mubr.bf16.mxu0 %v189
  %424 = vmatmul.mubr.bf16.gmra.mxu0 %v188
  %v425 = vpop.f32.mrf.mxu0
  %v426 = vadd.f32 %v88, %v425
  %v427 = vpop.f32.mrf.mxu0
  %v428 = vpop.f32.mrf.mxu0
  %v429 = vadd.f32 %v88, %v428
  %v430 = vpop.f32.mrf.mxu0
  %431 = vmatprep.mubr.bf16.mxu0 %v192
  %432 = vmatmul.mubr.bf16.gmra.mxu0 %v191
  %v433 = vpop.f32.mrf.mxu0
  %v434 = vadd.f32 %v88, %v433
  %v435 = vpop.f32.mrf.mxu0
  %v436 = vpop.f32.mrf.mxu0
  %v437 = vadd.f32 %v88, %v436
  %v438 = vpop.f32.mrf.mxu0
  %439 = vdwg.mxu0
  %440 = vmatprep.subr.bf16.mxu0 0
  %441 = vmatpush1.bf16.msra.mxu0 0
  %442 = vmatprep.subr.bf16.mxu0 0
  %443 = vmatpush1.bf16.msra.mxu0 0
  %444 = vmatprep.subr.bf16.mxu0 0
  %445 = vmatpush1.bf16.msra.mxu0 0
  %446 = vmatprep.subr.bf16.mxu0 0
  %447 = vmatpush1.bf16.msra.mxu0 0
  %448 = vmatprep.subr.bf16.mxu0 0
  %449 = vmatpush1.bf16.msra.mxu0 0
  %450 = vmatprep.subr.bf16.mxu0 0
  %451 = vmatpush1.bf16.msra.mxu0 0
  %452 = vmatprep.subr.bf16.mxu0 0
  %453 = vmatpush1.bf16.msra.mxu0 %v299
  %454 = vmatprep.subr.bf16.mxu0 0
  %455 = vmatpush1.bf16.msra.mxu0 %v298
  %456 = vmatprep.subr.bf16.mxu0 0
  %457 = vmatpush2.bf16.msra.mxu0 0
  %458 = vmatprep.subr.bf16.mxu0 0
  %459 = vmatpush2.bf16.msra.mxu0 0
  %460 = vmatprep.subr.bf16.mxu0 0
  %461 = vmatpush2.bf16.msra.mxu0 0
  %462 = vmatprep.subr.bf16.mxu0 0
  %463 = vmatpush2.bf16.msra.mxu0 0
  %464 = vmatprep.subr.bf16.mxu0 0
  %465 = vmatpush2.bf16.msra.mxu0 0
  %466 = vmatprep.subr.bf16.mxu0 0
  %467 = vmatpush2.bf16.msra.mxu0 0
  %468 = vmatprep.subr.bf16.mxu0 0
  %469 = vmatpush2.bf16.msra.mxu0 0
  %470 = vmatprep.subr.bf16.mxu0 0
  %471 = vmatpush2.bf16.msra.mxu0 0
  %472 = vmatprep.mubr.bf16.mxu0 0
  %473 = vmatmul.mubr.bf16.gmra.mxu0 %v320
  %v474 = vpop.f32.mrf.mxu0
  %v475 = vadd.f32 %v378, %v474
  %v476 = vpop.f32.mrf.mxu0
  %v477 = vpop.f32.mrf.mxu0
  %v478 = vadd.f32 %v381, %v477
  %v479 = vpop.f32.mrf.mxu0
  %480 = vmatprep.mubr.bf16.mxu0 0
  %481 = vmatmul.mubr.bf16.gmra.mxu0 %v323
  %v482 = vpop.f32.mrf.mxu0
  %v483 = vadd.f32 %v386, %v482
  %v484 = vpop.f32.mrf.mxu0
  %v485 = vpop.f32.mrf.mxu0
  %v486 = vadd.f32 %v389, %v485
  %v487 = vpop.f32.mrf.mxu0
  %488 = vmatprep.mubr.bf16.mxu0 0
  %489 = vmatmul.mubr.bf16.gmra.mxu0 %v326
  %v490 = vpop.f32.mrf.mxu0
  %v491 = vadd.f32 %v394, %v490
  %v492 = vpop.f32.mrf.mxu0
  %v493 = vpop.f32.mrf.mxu0
  %v494 = vadd.f32 %v397, %v493
  %v495 = vpop.f32.mrf.mxu0
  %496 = vmatprep.mubr.bf16.mxu0 0
  %497 = vmatmul.mubr.bf16.gmra.mxu0 %v329
  %v498 = vpop.f32.mrf.mxu0
  %v499 = vadd.f32 %v402, %v498
  %v500 = vpop.f32.mrf.mxu0
  %v501 = vpop.f32.mrf.mxu0
  %v502 = vadd.f32 %v405, %v501
  %v503 = vpop.f32.mrf.mxu0
  %504 = vmatprep.mubr.bf16.mxu0 0
  %505 = vmatmul.mubr.bf16.gmra.mxu0 %v332
  %v506 = vpop.f32.mrf.mxu0
  %v507 = vadd.f32 %v410, %v506
  %v508 = vpop.f32.mrf.mxu0
  %v509 = vpop.f32.mrf.mxu0
  %v510 = vadd.f32 %v413, %v509
  %v511 = vpop.f32.mrf.mxu0
  %512 = vmatprep.mubr.bf16.mxu0 0
  %513 = vmatmul.mubr.bf16.gmra.mxu0 %v335
  %v514 = vpop.f32.mrf.mxu0
  %v515 = vadd.f32 %v418, %v514
  %v516 = vpop.f32.mrf.mxu0
  %v517 = vpop.f32.mrf.mxu0
  %v518 = vadd.f32 %v421, %v517
  %v519 = vpop.f32.mrf.mxu0
  %520 = vmatprep.mubr.bf16.mxu0 0
  %521 = vmatmul.mubr.bf16.gmra.mxu0 %v338
  %v522 = vpop.f32.mrf.mxu0
  %v523 = vadd.f32 %v426, %v522
  %v524 = vpop.f32.mrf.mxu0
  %v525 = vpop.f32.mrf.mxu0
  %v526 = vadd.f32 %v429, %v525
  %v527 = vpop.f32.mrf.mxu0
  %528 = vmatprep.mubr.bf16.mxu0 0
  %529 = vmatmul.mubr.bf16.gmra.mxu0 %v341
  %v530 = vpop.f32.mrf.mxu0
  %v531 = vadd.f32 %v434, %v530
  %v532 = vpop.f32.mrf.mxu0
  %v533 = vpop.f32.mrf.mxu0
  %v534 = vadd.f32 %v437, %v533
  %v535 = vpop.f32.mrf.mxu0
  %536 = vdwg.mxu0
  %v537 = vmax.f32 %v475, 0.0
  %v538 = vmax.f32 %v478, 0.0
  %v539 = vmax.f32 %v483, 0.0
  %v540 = vmax.f32 %v486, 0.0
  %v541 = vmax.f32 %v491, 0.0
  %v542 = vmax.f32 %v494, 0.0
  %v543 = vmax.f32 %v499, 0.0
  %v544 = vmax.f32 %v502, 0.0
  %v545 = vmax.f32 %v507, 0.0
  %v546 = vmax.f32 %v510, 0.0
  %v547 = vmax.f32 %v515, 0.0
  %v548 = vmax.f32 %v518, 0.0
  %v549 = vmax.f32 %v523, 0.0
  %v550 = vmax.f32 %v526, 0.0
  %v551 = vmax.f32 %v531, 0.0
  %v552 = vmax.f32 %v534, 0.0
  %553 = vst.msk [vmem:[%s3] sm:$0xff] %vm318, %v537
  %554 = vst.msk [vmem:[%s3 + $0x8] sm:$0xff] %vm318, %v538
  %555 = vst.msk [vmem:[%s3 + $0x10] sm:$0xff] %vm318, %v539
  %556 = vst.msk [vmem:[%s3 + $0x18] sm:$0xff] %vm318, %v540
  %557 = vst.msk [vmem:[%s3 + $0x20] sm:$0xff] %vm318, %v541
  %558 = vst.msk [vmem:[%s3 + $0x28] sm:$0xff] %vm318, %v542
  %559 = vst.msk [vmem:[%s3 + $0x30] sm:$0xff] %vm318, %v543
  %560 = vst.msk [vmem:[%s3 + $0x38] sm:$0xff] %vm318, %v544
  %561 = vst.msk [vmem:[%s3 + $0x40] sm:$0xff] %vm318, %v545
  %562 = vst.msk [vmem:[%s3 + $0x48] sm:$0xff] %vm318, %v546
  %563 = vst.msk [vmem:[%s3 + $0x50] sm:$0xff] %vm318, %v547
  %564 = vst.msk [vmem:[%s3 + $0x58] sm:$0xff] %vm318, %v548
  %565 = vst.msk [vmem:[%s3 + $0x60] sm:$0xff] %vm318, %v549
  %566 = vst.msk [vmem:[%s3 + $0x68] sm:$0xff] %vm318, %v550
  %567 = vst.msk [vmem:[%s3 + $0x70] sm:$0xff] %vm318, %v551
  %568 = vst.msk [vmem:[%s3 + $0x78] sm:$0xff] %vm318, %v552
  // Predicated region
  $region14: #{resnet14_forward.21} parent=0 // pred_check
    _
  $region15: #{resnet14_forward.21} parent=0 // pred_check_branch
    %570 = sbr.rel (0) target = $region17
  $region16: #{resnet14_forward.21} parent=0 // pred_region
    _
  $region17: #{resnet14_forward.21} parent=0 // pred_fallthru
    _
  // Predicated region
  $region18: #{resnet14_forward.21} parent=0 // pred_check
    _
  $region19: #{resnet14_forward.21} parent=0 // pred_check_branch
    %572 = sbr.rel (0) target = $region21
  $region20: #{resnet14_forward.21} parent=0 // pred_region
    _
  $region21: #{resnet14_forward.21} parent=0 // pred_fallthru
    _

// kernel: resnet14_forward.22
$region0: #{resnet14_forward.22}
  #allocation0 [shape = 'u32[]', space=smem, size = 0x4, offset = 0x4, fixed_abs, tag = 'smem constant byte address 0x4 - core index']
  #allocation1 [shape = 'u32[144,128]{1,0:T(1,128)}', space=vmem, size = 0x12000, scoped, tag = 'internal scratch']
  %s0 = inlined_call_operand.vmem [shape: bf16[128,320], index: 0, kind: input, shape index: {}]
  %s1 = inlined_call_operand.vmem [shape: bf16[320,32], index: 1, kind: input, shape index: {}]
  %s2 = inlined_call_operand.vmem [shape: f32[1,32], index: 2, kind: input, shape index: {}]
  %s3 = inlined_call_operand.vmem [shape: f32[128,32], index: 3, kind: output, shape index: {}]
  %s4 = sld [smem:[#allocation0]]
  $region22: #{resnet14_forward.22} parent=0
    _
  %s6 = ssub.s32 1, %s4
  %s7 = scalar_select 0, %s6, %s4
  // Predicated region
  $region2: #{resnet14_forward.22} parent=0 // pred_check
    _
  $region3: #{resnet14_forward.22} parent=0 // pred_check_branch
    %9 = sbr.rel (0) target = $region5
  $region4: #{resnet14_forward.22} parent=0 // pred_region
    _
  $region5: #{resnet14_forward.22} parent=0 // pred_fallthru
    _
  // Predicated region
  $region6: #{resnet14_forward.22} parent=0 // pred_check
    _
  $region7: #{resnet14_forward.22} parent=0 // pred_check_branch
    %11 = sbr.rel (0) target = $region9
  $region8: #{resnet14_forward.22} parent=0 // pred_region
    _
  $region9: #{resnet14_forward.22} parent=0 // pred_fallthru
    _
  // Predicated region
  $region10: #{resnet14_forward.22} parent=0 // pred_check
    _
  $region11: #{resnet14_forward.22} parent=0 // pred_check_branch
    %13 = sbr.rel (0) target = $region13
  $region12: #{resnet14_forward.22} parent=0 // pred_region
    _
  $region13: #{resnet14_forward.22} parent=0 // pred_fallthru
    _
  %v15 = vld [vmem:[%s0] sm:$0xff]
  %v16 = vld [vmem:[%s0 + $0x8] sm:$0xf]
  %v17 = vld [vmem:[%s0 + $0xc] sm:$0xff]
  %v18 = vld [vmem:[%s0 + $0x14] sm:$0xf]
  %v19 = vld [vmem:[%s0 + $0x18] sm:$0xff]
  %v20 = vld [vmem:[%s0 + $0x20] sm:$0xf]
  %v21 = vld [vmem:[%s0 + $0x24] sm:$0xff]
  %v22 = vld [vmem:[%s0 + $0x2c] sm:$0xf]
  %v23 = vld [vmem:[%s0 + $0x30] sm:$0xff]
  %v24 = vld [vmem:[%s0 + $0x38] sm:$0xf]
  %v25 = vld [vmem:[%s0 + $0x3c] sm:$0xff]
  %v26 = vld [vmem:[%s0 + $0x44] sm:$0xf]
  %v27 = vld [vmem:[%s0 + $0x48] sm:$0xff]
  %v28 = vld [vmem:[%s0 + $0x50] sm:$0xf]
  %v29 = vld [vmem:[%s0 + $0x54] sm:$0xff]
  %v30 = vld [vmem:[%s0 + $0x5c] sm:$0xf]
  %v31 = vld [vmem:[%s0 + $0x60] sm:$0xff]
  %v32 = vld [vmem:[%s0 + $0x68] sm:$0xf]
  %v33 = vld [vmem:[%s0 + $0x6c] sm:$0xff]
  %v34 = vld [vmem:[%s0 + $0x74] sm:$0xf]
  %v35 = vld [vmem:[%s0 + $0x78] sm:$0xff]
  %v36 = vld [vmem:[%s0 + $0x80] sm:$0xf]
  %v37 = vld [vmem:[%s0 + $0x84] sm:$0xff]
  %v38 = vld [vmem:[%s0 + $0x8c] sm:$0xf]
  %v39 = vld [vmem:[%s0 + $0x90] sm:$0xff]
  %v40 = vld [vmem:[%s0 + $0x98] sm:$0xf]
  %v41 = vld [vmem:[%s0 + $0x9c] sm:$0xff]
  %v42 = vld [vmem:[%s0 + $0xa4] sm:$0xf]
  %v43 = vld [vmem:[%s0 + $0xa8] sm:$0xff]
  %v44 = vld [vmem:[%s0 + $0xb0] sm:$0xf]
  %v45 = vld [vmem:[%s0 + $0xb4] sm:$0xff]
  %v46 = vld [vmem:[%s0 + $0xbc] sm:$0xf]
  %v47 = vld [vmem:[%s1] sm:$0xf]
  %v48 = vld [vmem:[%s1 + $0x4] sm:$0xf]
  %v49 = vld [vmem:[%s1 + $0x8] sm:$0xf]
  %v50 = vld [vmem:[%s1 + $0xc] sm:$0xf]
  %v51 = vld [vmem:[%s1 + $0x10] sm:$0xf]
  %v52 = vld [vmem:[%s1 + $0x14] sm:$0xf]
  %v53 = vld [vmem:[%s1 + $0x18] sm:$0xf]
  %v54 = vld [vmem:[%s1 + $0x1c] sm:$0xf]
  %v55 = vld [vmem:[%s1 + $0x20] sm:$0xf]
  %v56 = vld [vmem:[%s1 + $0x24] sm:$0xf]
  %v57 = vld [vmem:[%s1 + $0x28] sm:$0xf]
  %v58 = vld [vmem:[%s1 + $0x2c] sm:$0xf]
  %v59 = vld [vmem:[%s1 + $0x30] sm:$0xf]
  %v60 = vld [vmem:[%s1 + $0x34] sm:$0xf]
  %v61 = vld [vmem:[%s1 + $0x38] sm:$0xf]
  %v62 = vld [vmem:[%s1 + $0x3c] sm:$0xf]
  %v63 = vld [vmem:[%s1 + $0x40] sm:$0xf]
  %v64 = vld [vmem:[%s1 + $0x44] sm:$0xf]
  %v65 = vld [vmem:[%s1 + $0x48] sm:$0xf]
  %v66 = vld [vmem:[%s1 + $0x4c] sm:$0xf]
  %v67 = vld [vmem:[%s1 + $0x50] sm:$0xf]
  %v68 = vld [vmem:[%s1 + $0x54] sm:$0xf]
  %v69 = vld [vmem:[%s1 + $0x58] sm:$0xf]
  %v70 = vld [vmem:[%s1 + $0x5c] sm:$0xf]
  %v71 = vld [vmem:[%s1 + $0x60] sm:$0xf]
  %v72 = vld [vmem:[%s1 + $0x64] sm:$0xf]
  %v73 = vld [vmem:[%s1 + $0x68] sm:$0xf]
  %v74 = vld [vmem:[%s1 + $0x6c] sm:$0xf]
  %v75 = vld [vmem:[%s1 + $0x70] sm:$0xf]
  %v76 = vld [vmem:[%s1 + $0x74] sm:$0xf]
  %v77 = vld [vmem:[%s1 + $0x78] sm:$0xf]
  %v78 = vld [vmem:[%s1 + $0x7c] sm:$0xf]
  %v79 = vld [vmem:[%s1 + $0x80] sm:$0xf]
  %v80 = vld [vmem:[%s1 + $0x84] sm:$0xf]
  %v81 = vld [vmem:[%s1 + $0x88] sm:$0xf]
  %v82 = vld [vmem:[%s1 + $0x8c] sm:$0xf]
  %v83 = vld [vmem:[%s1 + $0x90] sm:$0xf]
  %v84 = vld [vmem:[%s1 + $0x94] sm:$0xf]
  %v85 = vld [vmem:[%s1 + $0x98] sm:$0xf]
  %v86 = vld [vmem:[%s1 + $0x9c] sm:$0xf]
  %v87 = vld [vmem:[%s2] sm:$0x1]
  %v89 = vlaneseq
  %v90 = vshrl.u32 %v89, 7
  %v91 = vsub.s32 0, %v90
  %v92 = vrot.slane %v87, %v91
  %v126 = vunpack.c.l.b16 %v15
  %v127 = vunpack.c.h.b16 %v15
  %v128 = vunpack.c.l.b16 %v16
  %v129 = vunpack.c.l.b16 %v17
  %v130 = vunpack.c.h.b16 %v17
  %v131 = vunpack.c.l.b16 %v18
  %v132 = vunpack.c.l.b16 %v19
  %v133 = vunpack.c.h.b16 %v19
  %v134 = vunpack.c.l.b16 %v20
  %v135 = vunpack.c.l.b16 %v21
  %v136 = vunpack.c.h.b16 %v21
  %v137 = vunpack.c.l.b16 %v22
  %v138 = vunpack.c.l.b16 %v23
  %v139 = vunpack.c.h.b16 %v23
  %v140 = vunpack.c.l.b16 %v24
  %v141 = vunpack.c.l.b16 %v25
  %v142 = vunpack.c.h.b16 %v25
  %v143 = vunpack.c.l.b16 %v26
  %v144 = vunpack.c.l.b16 %v27
  %v145 = vunpack.c.h.b16 %v27
  %v146 = vunpack.c.l.b16 %v28
  %v147 = vunpack.c.l.b16 %v29
  %v148 = vunpack.c.h.b16 %v29
  %v149 = vunpack.c.l.b16 %v30
  %v150 = vunpack.c.l.b16 %v31
  %v151 = vunpack.c.h.b16 %v31
  %v152 = vunpack.c.l.b16 %v32
  %v153 = vunpack.c.l.b16 %v33
  %v154 = vunpack.c.h.b16 %v33
  %v155 = vunpack.c.l.b16 %v34
  %v156 = vunpack.c.l.b16 %v35
  %v157 = vunpack.c.h.b16 %v35
  %v158 = vunpack.c.l.b16 %v36
  %v159 = vunpack.c.l.b16 %v37
  %v160 = vunpack.c.h.b16 %v37
  %v161 = vunpack.c.l.b16 %v38
  %v162 = vunpack.c.l.b16 %v39
  %v163 = vunpack.c.h.b16 %v39
  %v164 = vunpack.c.l.b16 %v40
  %v165 = vunpack.c.l.b16 %v41
  %v166 = vunpack.c.h.b16 %v41
  %v167 = vunpack.c.l.b16 %v42
  %v168 = vunpack.c.l.b16 %v43
  %v169 = vunpack.c.h.b16 %v43
  %v170 = vunpack.c.l.b16 %v44
  %v171 = vunpack.c.l.b16 %v45
  %v172 = vunpack.c.h.b16 %v45
  %v173 = vunpack.c.l.b16 %v46
  %v174 = vpack.c.b16 %v129, %v126
  %v175 = vpack.c.b16 %v130, %v127
  %v176 = vpack.c.b16 %v131, %v128
  %v177 = vpack.c.b16 %v135, %v132
  %v178 = vpack.c.b16 %v136, %v133
  %v179 = vpack.c.b16 %v137, %v134
  %v180 = vpack.c.b16 %v141, %v138
  %v181 = vpack.c.b16 %v142, %v139
  %v182 = vpack.c.b16 %v143, %v140
  %v183 = vpack.c.b16 %v147, %v144
  %v184 = vpack.c.b16 %v148, %v145
  %v185 = vpack.c.b16 %v149, %v146
  %v186 = vpack.c.b16 %v153, %v150
  %v187 = vpack.c.b16 %v154, %v151
  %v188 = vpack.c.b16 %v155, %v152
  %v189 = vpack.c.b16 %v159, %v156
  %v190 = vpack.c.b16 %v160, %v157
  %v191 = vpack.c.b16 %v161, %v158
  %v192 = vpack.c.b16 %v165, %v162
  %v193 = vpack.c.b16 %v166, %v163
  %v194 = vpack.c.b16 %v167, %v164
  %v195 = vpack.c.b16 %v171, %v168
  %v196 = vpack.c.b16 %v172, %v169
  %v197 = vpack.c.b16 %v173, %v170
  %v254 = vunpack.c.l.b16 %v47
  %v255 = vunpack.c.l.b16 %v48
  %v256 = vunpack.c.l.b16 %v49
  %v257 = vunpack.c.l.b16 %v50
  %v258 = vunpack.c.l.b16 %v51
  %v259 = vunpack.c.l.b16 %v52
  %v260 = vunpack.c.l.b16 %v53
  %v261 = vunpack.c.l.b16 %v54
  %v262 = vunpack.c.l.b16 %v55
  %v263 = vunpack.c.l.b16 %v56
  %v264 = vunpack.c.l.b16 %v57
  %v265 = vunpack.c.l.b16 %v58
  %v266 = vunpack.c.l.b16 %v59
  %v267 = vunpack.c.l.b16 %v60
  %v268 = vunpack.c.l.b16 %v61
  %v269 = vunpack.c.l.b16 %v62
  %v270 = vunpack.c.l.b16 %v63
  %v271 = vunpack.c.l.b16 %v64
  %v272 = vunpack.c.l.b16 %v65
  %v273 = vunpack.c.l.b16 %v66
  %v274 = vunpack.c.l.b16 %v67
  %v275 = vunpack.c.l.b16 %v68
  %v276 = vunpack.c.l.b16 %v69
  %v277 = vunpack.c.l.b16 %v70
  %v278 = vunpack.c.l.b16 %v71
  %v279 = vunpack.c.l.b16 %v72
  %v280 = vunpack.c.l.b16 %v73
  %v281 = vunpack.c.l.b16 %v74
  %v282 = vunpack.c.l.b16 %v75
  %v283 = vunpack.c.l.b16 %v76
  %v284 = vunpack.c.l.b16 %v77
  %v285 = vunpack.c.l.b16 %v78
  %v286 = vunpack.c.l.b16 %v79
  %v287 = vunpack.c.l.b16 %v80
  %v288 = vunpack.c.l.b16 %v81
  %v289 = vunpack.c.l.b16 %v82
  %v290 = vunpack.c.l.b16 %v83
  %v291 = vunpack.c.l.b16 %v84
  %v292 = vunpack.c.l.b16 %v85
  %v293 = vunpack.c.l.b16 %v86
  %v294 = vpack.c.b16 %v255, %v254
  %v295 = vpack.c.b16 %v257, %v256
  %v296 = vpack.c.b16 %v259, %v258
  %v297 = vpack.c.b16 %v261, %v260
  %v298 = vpack.c.b16 %v263, %v262
  %v299 = vpack.c.b16 %v265, %v264
  %v300 = vpack.c.b16 %v267, %v266
  %v301 = vpack.c.b16 %v269, %v268
  %v302 = vpack.c.b16 %v271, %v270
  %v303 = vpack.c.b16 %v273, %v272
  %v304 = vpack.c.b16 %v275, %v274
  %v305 = vpack.c.b16 %v277, %v276
  %v306 = vpack.c.b16 %v279, %v278
  %v307 = vpack.c.b16 %v281, %v280
  %v308 = vpack.c.b16 %v283, %v282
  %v309 = vpack.c.b16 %v285, %v284
  %v310 = vpack.c.b16 %v287, %v286
  %v311 = vpack.c.b16 %v289, %v288
  %v312 = vpack.c.b16 %v291, %v290
  %v313 = vpack.c.b16 %v293, %v292
  %vm334 = vcmask 523264
  %v336 = vsel %vm334, %v176, 0
  %v339 = vsel %vm334, %v179, 0
  %v342 = vsel %vm334, %v182, 0
  %v345 = vsel %vm334, %v185, 0
  %v348 = vsel %vm334, %v188, 0
  %v351 = vsel %vm334, %v191, 0
  %v354 = vsel %vm334, %v194, 0
  %v357 = vsel %vm334, %v197, 0
  %359 = vmatprep.subr.bf16.mxu0 0
  %360 = vmatpush1.bf16.msra.mxu0 %v301
  %361 = vmatprep.subr.bf16.mxu0 0
  %362 = vmatpush1.bf16.msra.mxu0 %v300
  %363 = vmatprep.subr.bf16.mxu0 0
  %364 = vmatpush1.bf16.msra.mxu0 %v299
  %365 = vmatprep.subr.bf16.mxu0 0
  %366 = vmatpush1.bf16.msra.mxu0 %v298
  %367 = vmatprep.subr.bf16.mxu0 0
  %368 = vmatpush1.bf16.msra.mxu0 %v297
  %369 = vmatprep.subr.bf16.mxu0 0
  %370 = vmatpush1.bf16.msra.mxu0 %v296
  %371 = vmatprep.subr.bf16.mxu0 0
  %372 = vmatpush1.bf16.msra.mxu0 %v295
  %373 = vmatprep.subr.bf16.mxu0 0
  %374 = vmatpush1.bf16.msra.mxu0 %v294
  %375 = vmatprep.subr.bf16.mxu0 0
  %376 = vmatpush2.bf16.msra.mxu0 %v309
  %377 = vmatprep.subr.bf16.mxu0 0
  %378 = vmatpush2.bf16.msra.mxu0 %v308
  %379 = vmatprep.subr.bf16.mxu0 0
  %380 = vmatpush2.bf16.msra.mxu0 %v307
  %381 = vmatprep.subr.bf16.mxu0 0
  %382 = vmatpush2.bf16.msra.mxu0 %v306
  %383 = vmatprep.subr.bf16.mxu0 0
  %384 = vmatpush2.bf16.msra.mxu0 %v305
  %385 = vmatprep.subr.bf16.mxu0 0
  %386 = vmatpush2.bf16.msra.mxu0 %v304
  %387 = vmatprep.subr.bf16.mxu0 0
  %388 = vmatpush2.bf16.msra.mxu0 %v303
  %389 = vmatprep.subr.bf16.mxu0 0
  %390 = vmatpush2.bf16.msra.mxu0 %v302
  %391 = vmatprep.mubr.bf16.mxu0 %v175
  %392 = vmatmul.mubr.bf16.gmra.mxu0 %v174
  %v393 = vpop.f32.mrf.mxu0
  %v394 = vadd.f32 %v92, %v393
  %v395 = vpop.f32.mrf.mxu0
  %v396 = vpop.f32.mrf.mxu0
  %v397 = vadd.f32 %v92, %v396
  %v398 = vpop.f32.mrf.mxu0
  %399 = vmatprep.mubr.bf16.mxu0 %v178
  %400 = vmatmul.mubr.bf16.gmra.mxu0 %v177
  %v401 = vpop.f32.mrf.mxu0
  %v402 = vadd.f32 %v92, %v401
  %v403 = vpop.f32.mrf.mxu0
  %v404 = vpop.f32.mrf.mxu0
  %v405 = vadd.f32 %v92, %v404
  %v406 = vpop.f32.mrf.mxu0
  %407 = vmatprep.mubr.bf16.mxu0 %v181
  %408 = vmatmul.mubr.bf16.gmra.mxu0 %v180
  %v409 = vpop.f32.mrf.mxu0
  %v410 = vadd.f32 %v92, %v409
  %v411 = vpop.f32.mrf.mxu0
  %v412 = vpop.f32.mrf.mxu0
  %v413 = vadd.f32 %v92, %v412
  %v414 = vpop.f32.mrf.mxu0
  %415 = vmatprep.mubr.bf16.mxu0 %v184
  %416 = vmatmul.mubr.bf16.gmra.mxu0 %v183
  %v417 = vpop.f32.mrf.mxu0
  %v418 = vadd.f32 %v92, %v417
  %v419 = vpop.f32.mrf.mxu0
  %v420 = vpop.f32.mrf.mxu0
  %v421 = vadd.f32 %v92, %v420
  %v422 = vpop.f32.mrf.mxu0
  %423 = vmatprep.mubr.bf16.mxu0 %v187
  %424 = vmatmul.mubr.bf16.gmra.mxu0 %v186
  %v425 = vpop.f32.mrf.mxu0
  %v426 = vadd.f32 %v92, %v425
  %v427 = vpop.f32.mrf.mxu0
  %v428 = vpop.f32.mrf.mxu0
  %v429 = vadd.f32 %v92, %v428
  %v430 = vpop.f32.mrf.mxu0
  %431 = vmatprep.mubr.bf16.mxu0 %v190
  %432 = vmatmul.mubr.bf16.gmra.mxu0 %v189
  %v433 = vpop.f32.mrf.mxu0
  %v434 = vadd.f32 %v92, %v433
  %v435 = vpop.f32.mrf.mxu0
  %v436 = vpop.f32.mrf.mxu0
  %v437 = vadd.f32 %v92, %v436
  %v438 = vpop.f32.mrf.mxu0
  %439 = vmatprep.mubr.bf16.mxu0 %v193
  %440 = vmatmul.mubr.bf16.gmra.mxu0 %v192
  %v441 = vpop.f32.mrf.mxu0
  %v442 = vadd.f32 %v92, %v441
  %v443 = vpop.f32.mrf.mxu0
  %v444 = vpop.f32.mrf.mxu0
  %v445 = vadd.f32 %v92, %v444
  %v446 = vpop.f32.mrf.mxu0
  %447 = vmatprep.mubr.bf16.mxu0 %v196
  %448 = vmatmul.mubr.bf16.gmra.mxu0 %v195
  %v449 = vpop.f32.mrf.mxu0
  %v450 = vadd.f32 %v92, %v449
  %v451 = vpop.f32.mrf.mxu0
  %v452 = vpop.f32.mrf.mxu0
  %v453 = vadd.f32 %v92, %v452
  %v454 = vpop.f32.mrf.mxu0
  %455 = vdwg.mxu0
  %456 = vmatprep.subr.bf16.mxu0 0
  %457 = vmatpush1.bf16.msra.mxu0 0
  %458 = vmatprep.subr.bf16.mxu0 0
  %459 = vmatpush1.bf16.msra.mxu0 0
  %460 = vmatprep.subr.bf16.mxu0 0
  %461 = vmatpush1.bf16.msra.mxu0 0
  %462 = vmatprep.subr.bf16.mxu0 0
  %463 = vmatpush1.bf16.msra.mxu0 0
  %464 = vmatprep.subr.bf16.mxu0 0
  %465 = vmatpush1.bf16.msra.mxu0 %v313
  %466 = vmatprep.subr.bf16.mxu0 0
  %467 = vmatpush1.bf16.msra.mxu0 %v312
  %468 = vmatprep.subr.bf16.mxu0 0
  %469 = vmatpush1.bf16.msra.mxu0 %v311
  %470 = vmatprep.subr.bf16.mxu0 0
  %471 = vmatpush1.bf16.msra.mxu0 %v310
  %472 = vmatprep.subr.bf16.mxu0 0
  %473 = vmatpush2.bf16.msra.mxu0 0
  %474 = vmatprep.subr.bf16.mxu0 0
  %475 = vmatpush2.bf16.msra.mxu0 0
  %476 = vmatprep.subr.bf16.mxu0 0
  %477 = vmatpush2.bf16.msra.mxu0 0
  %478 = vmatprep.subr.bf16.mxu0 0
  %479 = vmatpush2.bf16.msra.mxu0 0
  %480 = vmatprep.subr.bf16.mxu0 0
  %481 = vmatpush2.bf16.msra.mxu0 0
  %482 = vmatprep.subr.bf16.mxu0 0
  %483 = vmatpush2.bf16.msra.mxu0 0
  %484 = vmatprep.subr.bf16.mxu0 0
  %485 = vmatpush2.bf16.msra.mxu0 0
  %486 = vmatprep.subr.bf16.mxu0 0
  %487 = vmatpush2.bf16.msra.mxu0 0
  %488 = vmatprep.mubr.bf16.mxu0 0
  %489 = vmatmul.mubr.bf16.gmra.mxu0 %v336
  %v490 = vpop.f32.mrf.mxu0
  %v491 = vadd.f32 %v394, %v490
  %v492 = vpop.f32.mrf.mxu0
  %v493 = vpop.f32.mrf.mxu0
  %v494 = vadd.f32 %v397, %v493
  %v495 = vpop.f32.mrf.mxu0
  %496 = vmatprep.mubr.bf16.mxu0 0
  %497 = vmatmul.mubr.bf16.gmra.mxu0 %v339
  %v498 = vpop.f32.mrf.mxu0
  %v499 = vadd.f32 %v402, %v498
  %v500 = vpop.f32.mrf.mxu0
  %v501 = vpop.f32.mrf.mxu0
  %v502 = vadd.f32 %v405, %v501
  %v503 = vpop.f32.mrf.mxu0
  %504 = vmatprep.mubr.bf16.mxu0 0
  %505 = vmatmul.mubr.bf16.gmra.mxu0 %v342
  %v506 = vpop.f32.mrf.mxu0
  %v507 = vadd.f32 %v410, %v506
  %v508 = vpop.f32.mrf.mxu0
  %v509 = vpop.f32.mrf.mxu0
  %v510 = vadd.f32 %v413, %v509
  %v511 = vpop.f32.mrf.mxu0
  %512 = vmatprep.mubr.bf16.mxu0 0
  %513 = vmatmul.mubr.bf16.gmra.mxu0 %v345
  %v514 = vpop.f32.mrf.mxu0
  %v515 = vadd.f32 %v418, %v514
  %v516 = vpop.f32.mrf.mxu0
  %v517 = vpop.f32.mrf.mxu0
  %v518 = vadd.f32 %v421, %v517
  %v519 = vpop.f32.mrf.mxu0
  %520 = vmatprep.mubr.bf16.mxu0 0
  %521 = vmatmul.mubr.bf16.gmra.mxu0 %v348
  %v522 = vpop.f32.mrf.mxu0
  %v523 = vadd.f32 %v426, %v522
  %v524 = vpop.f32.mrf.mxu0
  %v525 = vpop.f32.mrf.mxu0
  %v526 = vadd.f32 %v429, %v525
  %v527 = vpop.f32.mrf.mxu0
  %528 = vmatprep.mubr.bf16.mxu0 0
  %529 = vmatmul.mubr.bf16.gmra.mxu0 %v351
  %v530 = vpop.f32.mrf.mxu0
  %v531 = vadd.f32 %v434, %v530
  %v532 = vpop.f32.mrf.mxu0
  %v533 = vpop.f32.mrf.mxu0
  %v534 = vadd.f32 %v437, %v533
  %v535 = vpop.f32.mrf.mxu0
  %536 = vmatprep.mubr.bf16.mxu0 0
  %537 = vmatmul.mubr.bf16.gmra.mxu0 %v354
  %v538 = vpop.f32.mrf.mxu0
  %v539 = vadd.f32 %v442, %v538
  %v540 = vpop.f32.mrf.mxu0
  %v541 = vpop.f32.mrf.mxu0
  %v542 = vadd.f32 %v445, %v541
  %v543 = vpop.f32.mrf.mxu0
  %544 = vmatprep.mubr.bf16.mxu0 0
  %545 = vmatmul.mubr.bf16.gmra.mxu0 %v357
  %v546 = vpop.f32.mrf.mxu0
  %v547 = vadd.f32 %v450, %v546
  %v548 = vpop.f32.mrf.mxu0
  %v549 = vpop.f32.mrf.mxu0
  %v550 = vadd.f32 %v453, %v549
  %v551 = vpop.f32.mrf.mxu0
  %552 = vdwg.mxu0
  %v553 = vmax.f32 %v491, 0.0
  %v554 = vmax.f32 %v494, 0.0
  %v555 = vmax.f32 %v499, 0.0
  %v556 = vmax.f32 %v502, 0.0
  %v557 = vmax.f32 %v507, 0.0
  %v558 = vmax.f32 %v510, 0.0
  %v559 = vmax.f32 %v515, 0.0
  %v560 = vmax.f32 %v518, 0.0
  %v561 = vmax.f32 %v523, 0.0
  %v562 = vmax.f32 %v526, 0.0
  %v563 = vmax.f32 %v531, 0.0
  %v564 = vmax.f32 %v534, 0.0
  %v565 = vmax.f32 %v539, 0.0
  %v566 = vmax.f32 %v542, 0.0
  %v567 = vmax.f32 %v547, 0.0
  %v568 = vmax.f32 %v550, 0.0
  %vm569 = vcmask 261120
  %570 = vst.msk [vmem:[%s3] sm:$0xff] %vm569, %v553
  %571 = vst.msk [vmem:[%s3 + $0x8] sm:$0xff] %vm569, %v554
  %572 = vst.msk [vmem:[%s3 + $0x10] sm:$0xff] %vm569, %v555
  %573 = vst.msk [vmem:[%s3 + $0x18] sm:$0xff] %vm569, %v556
  %574 = vst.msk [vmem:[%s3 + $0x20] sm:$0xff] %vm569, %v557
  %575 = vst.msk [vmem:[%s3 + $0x28] sm:$0xff] %vm569, %v558
  %576 = vst.msk [vmem:[%s3 + $0x30] sm:$0xff] %vm569, %v559
  %577 = vst.msk [vmem:[%s3 + $0x38] sm:$0xff] %vm569, %v560
  %578 = vst.msk [vmem:[%s3 + $0x40] sm:$0xff] %vm569, %v561
  %579 = vst.msk [vmem:[%s3 + $0x48] sm:$0xff] %vm569, %v562
  %580 = vst.msk [vmem:[%s3 + $0x50] sm:$0xff] %vm569, %v563
  %581 = vst.msk [vmem:[%s3 + $0x58] sm:$0xff] %vm569, %v564
  %582 = vst.msk [vmem:[%s3 + $0x60] sm:$0xff] %vm569, %v565
  %583 = vst.msk [vmem:[%s3 + $0x68] sm:$0xff] %vm569, %v566
  %584 = vst.msk [vmem:[%s3 + $0x70] sm:$0xff] %vm569, %v567
  %585 = vst.msk [vmem:[%s3 + $0x78] sm:$0xff] %vm569, %v568
  // Predicated region
  $region14: #{resnet14_forward.22} parent=0 // pred_check
    _
  $region15: #{resnet14_forward.22} parent=0 // pred_check_branch
    %587 = sbr.rel (0) target = $region17
  $region16: #{resnet14_forward.22} parent=0 // pred_region
    _
  $region17: #{resnet14_forward.22} parent=0 // pred_fallthru
    _
  // Predicated region
  $region18: #{resnet14_forward.22} parent=0 // pred_check
    _
  $region19: #{resnet14_forward.22} parent=0 // pred_check_branch
    %589 = sbr.rel (0) target = $region21
  $region20: #{resnet14_forward.22} parent=0 // pred_region
    _
  $region21: #{resnet14_forward.22} parent=0 // pred_fallthru
    _

// kernel: resnet14_forward.23
$region0: #{resnet14_forward.23}
  #allocation0 [shape = 'u32[]', space=smem, size = 0x4, offset = 0x4, fixed_abs, tag = 'smem constant byte address 0x4 - core index']
  #allocation1 [shape = 'u32[144,128]{1,0:T(1,128)}', space=vmem, size = 0x12000, scoped, tag = 'internal scratch']
  %s0 = inlined_call_operand.vmem [shape: bf16[32,288], index: 0, kind: input, shape index: {}]
  %s1 = inlined_call_operand.vmem [shape: bf16[288,64], index: 1, kind: input, shape index: {}]
  %s2 = inlined_call_operand.vmem [shape: f32[1,64], index: 2, kind: input, shape index: {}]
  %s3 = inlined_call_operand.vmem [shape: f32[32,64], index: 3, kind: output, shape index: {}]
  %s4 = sld [smem:[#allocation0]]
  $region22: #{resnet14_forward.23} parent=0
    _
  %s6 = ssub.s32 1, %s4
  %s7 = scalar_select 0, %s6, %s4
  // Predicated region
  $region2: #{resnet14_forward.23} parent=0 // pred_check
    _
  $region3: #{resnet14_forward.23} parent=0 // pred_check_branch
    %9 = sbr.rel (0) target = $region5
  $region4: #{resnet14_forward.23} parent=0 // pred_region
    _
  $region5: #{resnet14_forward.23} parent=0 // pred_fallthru
    _
  // Predicated region
  $region6: #{resnet14_forward.23} parent=0 // pred_check
    _
  $region7: #{resnet14_forward.23} parent=0 // pred_check_branch
    %11 = sbr.rel (0) target = $region9
  $region8: #{resnet14_forward.23} parent=0 // pred_region
    _
  $region9: #{resnet14_forward.23} parent=0 // pred_fallthru
    _
  // Predicated region
  $region10: #{resnet14_forward.23} parent=0 // pred_check
    _
  $region11: #{resnet14_forward.23} parent=0 // pred_check_branch
    %13 = sbr.rel (0) target = $region13
  $region12: #{resnet14_forward.23} parent=0 // pred_region
    _
  $region13: #{resnet14_forward.23} parent=0 // pred_fallthru
    _
  %v15 = vld [vmem:[%s0] sm:$0xff]
  %v16 = vld [vmem:[%s0 + $0x8] sm:$0xf]
  %v17 = vld [vmem:[%s0 + $0xc] sm:$0xff]
  %v18 = vld [vmem:[%s0 + $0x14] sm:$0xf]
  %v19 = vld [vmem:[%s0 + $0x18] sm:$0xff]
  %v20 = vld [vmem:[%s0 + $0x20] sm:$0xf]
  %v21 = vld [vmem:[%s0 + $0x24] sm:$0xff]
  %v22 = vld [vmem:[%s0 + $0x2c] sm:$0xf]
  %v23 = vld [vmem:[%s1] sm:$0xf]
  %v24 = vld [vmem:[%s1 + $0x4] sm:$0xf]
  %v25 = vld [vmem:[%s1 + $0x8] sm:$0xf]
  %v26 = vld [vmem:[%s1 + $0xc] sm:$0xf]
  %v27 = vld [vmem:[%s1 + $0x10] sm:$0xf]
  %v28 = vld [vmem:[%s1 + $0x14] sm:$0xf]
  %v29 = vld [vmem:[%s1 + $0x18] sm:$0xf]
  %v30 = vld [vmem:[%s1 + $0x1c] sm:$0xf]
  %v31 = vld [vmem:[%s1 + $0x20] sm:$0xf]
  %v32 = vld [vmem:[%s1 + $0x24] sm:$0xf]
  %v33 = vld [vmem:[%s1 + $0x28] sm:$0xf]
  %v34 = vld [vmem:[%s1 + $0x2c] sm:$0xf]
  %v35 = vld [vmem:[%s1 + $0x30] sm:$0xf]
  %v36 = vld [vmem:[%s1 + $0x34] sm:$0xf]
  %v37 = vld [vmem:[%s1 + $0x38] sm:$0xf]
  %v38 = vld [vmem:[%s1 + $0x3c] sm:$0xf]
  %v39 = vld [vmem:[%s1 + $0x40] sm:$0xf]
  %v40 = vld [vmem:[%s1 + $0x44] sm:$0xf]
  %v41 = vld [vmem:[%s1 + $0x48] sm:$0xf]
  %v42 = vld [vmem:[%s1 + $0x4c] sm:$0xf]
  %v43 = vld [vmem:[%s1 + $0x50] sm:$0xf]
  %v44 = vld [vmem:[%s1 + $0x54] sm:$0xf]
  %v45 = vld [vmem:[%s1 + $0x58] sm:$0xf]
  %v46 = vld [vmem:[%s1 + $0x5c] sm:$0xf]
  %v47 = vld [vmem:[%s1 + $0x60] sm:$0xf]
  %v48 = vld [vmem:[%s1 + $0x64] sm:$0xf]
  %v49 = vld [vmem:[%s1 + $0x68] sm:$0xf]
  %v50 = vld [vmem:[%s1 + $0x6c] sm:$0xf]
  %v51 = vld [vmem:[%s1 + $0x70] sm:$0xf]
  %v52 = vld [vmem:[%s1 + $0x74] sm:$0xf]
  %v53 = vld [vmem:[%s1 + $0x78] sm:$0xf]
  %v54 = vld [vmem:[%s1 + $0x7c] sm:$0xf]
  %v55 = vld [vmem:[%s1 + $0x80] sm:$0xf]
  %v56 = vld [vmem:[%s1 + $0x84] sm:$0xf]
  %v57 = vld [vmem:[%s1 + $0x88] sm:$0xf]
  %v58 = vld [vmem:[%s1 + $0x8c] sm:$0xf]
  %v59 = vld [vmem:[%s2] sm:$0x1]
  %v61 = vlaneseq
  %v62 = vshrl.u32 %v61, 7
  %v63 = vsub.s32 0, %v62
  %v64 = vrot.slane %v59, %v63
  %v74 = vunpack.c.l.b16 %v15
  %v75 = vunpack.c.h.b16 %v15
  %v76 = vunpack.c.l.b16 %v16
  %v77 = vunpack.c.l.b16 %v17
  %v78 = vunpack.c.h.b16 %v17
  %v79 = vunpack.c.l.b16 %v18
  %v80 = vunpack.c.l.b16 %v19
  %v81 = vunpack.c.h.b16 %v19
  %v82 = vunpack.c.l.b16 %v20
  %v83 = vunpack.c.l.b16 %v21
  %v84 = vunpack.c.h.b16 %v21
  %v85 = vunpack.c.l.b16 %v22
  %v86 = vpack.c.b16 %v77, %v74
  %v87 = vpack.c.b16 %v78, %v75
  %v88 = vpack.c.b16 %v79, %v76
  %v89 = vpack.c.b16 %v83, %v80
  %v90 = vpack.c.b16 %v84, %v81
  %v91 = vpack.c.b16 %v85, %v82
  %v132 = vunpack.c.l.b16 %v23
  %v133 = vunpack.c.l.b16 %v24
  %v134 = vunpack.c.l.b16 %v25
  %v135 = vunpack.c.l.b16 %v26
  %v136 = vunpack.c.l.b16 %v27
  %v137 = vunpack.c.l.b16 %v28
  %v138 = vunpack.c.l.b16 %v29
  %v139 = vunpack.c.l.b16 %v30
  %v140 = vunpack.c.l.b16 %v31
  %v141 = vunpack.c.l.b16 %v32
  %v142 = vunpack.c.l.b16 %v33
  %v143 = vunpack.c.l.b16 %v34
  %v144 = vunpack.c.l.b16 %v35
  %v145 = vunpack.c.l.b16 %v36
  %v146 = vunpack.c.l.b16 %v37
  %v147 = vunpack.c.l.b16 %v38
  %v148 = vunpack.c.l.b16 %v39
  %v149 = vunpack.c.l.b16 %v40
  %v150 = vunpack.c.l.b16 %v41
  %v151 = vunpack.c.l.b16 %v42
  %v152 = vunpack.c.l.b16 %v43
  %v153 = vunpack.c.l.b16 %v44
  %v154 = vunpack.c.l.b16 %v45
  %v155 = vunpack.c.l.b16 %v46
  %v156 = vunpack.c.l.b16 %v47
  %v157 = vunpack.c.l.b16 %v48
  %v158 = vunpack.c.l.b16 %v49
  %v159 = vunpack.c.l.b16 %v50
  %v160 = vunpack.c.l.b16 %v51
  %v161 = vunpack.c.l.b16 %v52
  %v162 = vunpack.c.l.b16 %v53
  %v163 = vunpack.c.l.b16 %v54
  %v164 = vunpack.c.l.b16 %v55
  %v165 = vunpack.c.l.b16 %v56
  %v166 = vunpack.c.l.b16 %v57
  %v167 = vunpack.c.l.b16 %v58
  %v168 = vpack.c.b16 %v133, %v132
  %v169 = vpack.c.b16 %v135, %v134
  %v170 = vpack.c.b16 %v137, %v136
  %v171 = vpack.c.b16 %v139, %v138
  %v172 = vpack.c.b16 %v141, %v140
  %v173 = vpack.c.b16 %v143, %v142
  %v174 = vpack.c.b16 %v145, %v144
  %v175 = vpack.c.b16 %v147, %v146
  %v176 = vpack.c.b16 %v149, %v148
  %v177 = vpack.c.b16 %v151, %v150
  %v178 = vpack.c.b16 %v153, %v152
  %v179 = vpack.c.b16 %v155, %v154
  %v180 = vpack.c.b16 %v157, %v156
  %v181 = vpack.c.b16 %v159, %v158
  %v182 = vpack.c.b16 %v161, %v160
  %v183 = vpack.c.b16 %v163, %v162
  %v184 = vpack.c.b16 %v165, %v164
  %v185 = vpack.c.b16 %v167, %v166
  %vm204 = vcmask 261120
  %v206 = vsel %vm204, %v88, 0
  %v209 = vsel %vm204, %v91, 0
  %211 = vmatprep.subr.bf16.mxu0 0
  %212 = vmatpush1.bf16.msra.mxu0 %v175
  %213 = vmatprep.subr.bf16.mxu0 0
  %214 = vmatpush1.bf16.msra.mxu0 %v174
  %215 = vmatprep.subr.bf16.mxu0 0
  %216 = vmatpush1.bf16.msra.mxu0 %v173
  %217 = vmatprep.subr.bf16.mxu0 0
  %218 = vmatpush1.bf16.msra.mxu0 %v172
  %219 = vmatprep.subr.bf16.mxu0 0
  %220 = vmatpush1.bf16.msra.mxu0 %v171
  %221 = vmatprep.subr.bf16.mxu0 0
  %222 = vmatpush1.bf16.msra.mxu0 %v170
  %223 = vmatprep.subr.bf16.mxu0 0
  %224 = vmatpush1.bf16.msra.mxu0 %v169
  %225 = vmatprep.subr.bf16.mxu0 0
  %226 = vmatpush1.bf16.msra.mxu0 %v168
  %227 = vmatprep.subr.bf16.mxu0 0
  %228 = vmatpush2.bf16.msra.mxu0 %v183
  %229 = vmatprep.subr.bf16.mxu0 0
  %230 = vmatpush2.bf16.msra.mxu0 %v182
  %231 = vmatprep.subr.bf16.mxu0 0
  %232 = vmatpush2.bf16.msra.mxu0 %v181
  %233 = vmatprep.subr.bf16.mxu0 0
  %234 = vmatpush2.bf16.msra.mxu0 %v180
  %235 = vmatprep.subr.bf16.mxu0 0
  %236 = vmatpush2.bf16.msra.mxu0 %v179
  %237 = vmatprep.subr.bf16.mxu0 0
  %238 = vmatpush2.bf16.msra.mxu0 %v178
  %239 = vmatprep.subr.bf16.mxu0 0
  %240 = vmatpush2.bf16.msra.mxu0 %v177
  %241 = vmatprep.subr.bf16.mxu0 0
  %242 = vmatpush2.bf16.msra.mxu0 %v176
  %243 = vmatprep.mubr.bf16.mxu0 %v87
  %244 = vmatmul.mubr.bf16.gmra.mxu0 %v86
  %v245 = vpop.f32.mrf.mxu0
  %v246 = vadd.f32 %v64, %v245
  %v247 = vpop.f32.mrf.mxu0
  %v248 = vpop.f32.mrf.mxu0
  %v249 = vadd.f32 %v64, %v248
  %v250 = vpop.f32.mrf.mxu0
  %251 = vmatprep.mubr.bf16.mxu0 %v90
  %252 = vmatmul.mubr.bf16.gmra.mxu0 %v89
  %v253 = vpop.f32.mrf.mxu0
  %v254 = vadd.f32 %v64, %v253
  %v255 = vpop.f32.mrf.mxu0
  %v256 = vpop.f32.mrf.mxu0
  %v257 = vadd.f32 %v64, %v256
  %v258 = vpop.f32.mrf.mxu0
  %259 = vdwg.mxu0
  %260 = vmatprep.subr.bf16.mxu0 0
  %261 = vmatpush1.bf16.msra.mxu0 0
  %262 = vmatprep.subr.bf16.mxu0 0
  %263 = vmatpush1.bf16.msra.mxu0 0
  %264 = vmatprep.subr.bf16.mxu0 0
  %265 = vmatpush1.bf16.msra.mxu0 0
  %266 = vmatprep.subr.bf16.mxu0 0
  %267 = vmatpush1.bf16.msra.mxu0 0
  %268 = vmatprep.subr.bf16.mxu0 0
  %269 = vmatpush1.bf16.msra.mxu0 0
  %270 = vmatprep.subr.bf16.mxu0 0
  %271 = vmatpush1.bf16.msra.mxu0 0
  %272 = vmatprep.subr.bf16.mxu0 0
  %273 = vmatpush1.bf16.msra.mxu0 %v185
  %274 = vmatprep.subr.bf16.mxu0 0
  %275 = vmatpush1.bf16.msra.mxu0 %v184
  %276 = vmatprep.subr.bf16.mxu0 0
  %277 = vmatpush2.bf16.msra.mxu0 0
  %278 = vmatprep.subr.bf16.mxu0 0
  %279 = vmatpush2.bf16.msra.mxu0 0
  %280 = vmatprep.subr.bf16.mxu0 0
  %281 = vmatpush2.bf16.msra.mxu0 0
  %282 = vmatprep.subr.bf16.mxu0 0
  %283 = vmatpush2.bf16.msra.mxu0 0
  %284 = vmatprep.subr.bf16.mxu0 0
  %285 = vmatpush2.bf16.msra.mxu0 0
  %286 = vmatprep.subr.bf16.mxu0 0
  %287 = vmatpush2.bf16.msra.mxu0 0
  %288 = vmatprep.subr.bf16.mxu0 0
  %289 = vmatpush2.bf16.msra.mxu0 0
  %290 = vmatprep.subr.bf16.mxu0 0
  %291 = vmatpush2.bf16.msra.mxu0 0
  %292 = vmatprep.mubr.bf16.mxu0 0
  %293 = vmatmul.mubr.bf16.gmra.mxu0 %v206
  %v294 = vpop.f32.mrf.mxu0
  %v295 = vadd.f32 %v246, %v294
  %v296 = vpop.f32.mrf.mxu0
  %v297 = vpop.f32.mrf.mxu0
  %v298 = vadd.f32 %v249, %v297
  %v299 = vpop.f32.mrf.mxu0
  %300 = vmatprep.mubr.bf16.mxu0 0
  %301 = vmatmul.mubr.bf16.gmra.mxu0 %v209
  %v302 = vpop.f32.mrf.mxu0
  %v303 = vadd.f32 %v254, %v302
  %v304 = vpop.f32.mrf.mxu0
  %v305 = vpop.f32.mrf.mxu0
  %v306 = vadd.f32 %v257, %v305
  %v307 = vpop.f32.mrf.mxu0
  %308 = vdwg.mxu0
  %v309 = vmax.f32 %v295, 0.0
  %v310 = vmax.f32 %v298, 0.0
  %v311 = vmax.f32 %v303, 0.0
  %v312 = vmax.f32 %v306, 0.0
  %vm313 = vcmask 523264
  %314 = vst.msk [vmem:[%s3] sm:$0xff] %vm313, %v309
  %315 = vst.msk [vmem:[%s3 + $0x8] sm:$0xff] %vm313, %v310
  %316 = vst.msk [vmem:[%s3 + $0x10] sm:$0xff] %vm313, %v311
  %317 = vst.msk [vmem:[%s3 + $0x18] sm:$0xff] %vm313, %v312
  // Predicated region
  $region14: #{resnet14_forward.23} parent=0 // pred_check
    _
  $region15: #{resnet14_forward.23} parent=0 // pred_check_branch
    %319 = sbr.rel (0) target = $region17
  $region16: #{resnet14_forward.23} parent=0 // pred_region
    _
  $region17: #{resnet14_forward.23} parent=0 // pred_fallthru
    _
  // Predicated region
  $region18: #{resnet14_forward.23} parent=0 // pred_check
    _
  $region19: #{resnet14_forward.23} parent=0 // pred_check_branch
    %321 = sbr.rel (0) target = $region21
  $region20: #{resnet14_forward.23} parent=0 // pred_region
    _
  $region21: #{resnet14_forward.23} parent=0 // pred_fallthru
    _

// kernel: resnet14_forward.24
$region0: #{resnet14_forward.24}
  #allocation0 [shape = 'u32[]', space=smem, size = 0x4, offset = 0x4, fixed_abs, tag = 'smem constant byte address 0x4 - core index']
  #allocation1 [shape = 'u32[144,128]{1,0:T(1,128)}', space=vmem, size = 0x12000, scoped, tag = 'internal scratch']
  %s0 = inlined_call_operand.vmem [shape: bf16[32,608], index: 0, kind: input, shape index: {}]
  %s1 = inlined_call_operand.vmem [shape: bf16[608,64], index: 1, kind: input, shape index: {}]
  %s2 = inlined_call_operand.vmem [shape: f32[1,64], index: 2, kind: input, shape index: {}]
  %s3 = inlined_call_operand.vmem [shape: f32[32,64], index: 3, kind: output, shape index: {}]
  %s4 = sld [smem:[#allocation0]]
  $region22: #{resnet14_forward.24} parent=0
    _
  %s6 = ssub.s32 1, %s4
  %s7 = scalar_select 0, %s6, %s4
  // Predicated region
  $region2: #{resnet14_forward.24} parent=0 // pred_check
    _
  $region3: #{resnet14_forward.24} parent=0 // pred_check_branch
    %9 = sbr.rel (0) target = $region5
  $region4: #{resnet14_forward.24} parent=0 // pred_region
    _
  $region5: #{resnet14_forward.24} parent=0 // pred_fallthru
    _
  // Predicated region
  $region6: #{resnet14_forward.24} parent=0 // pred_check
    _
  $region7: #{resnet14_forward.24} parent=0 // pred_check_branch
    %11 = sbr.rel (0) target = $region9
  $region8: #{resnet14_forward.24} parent=0 // pred_region
    _
  $region9: #{resnet14_forward.24} parent=0 // pred_fallthru
    _
  // Predicated region
  $region10: #{resnet14_forward.24} parent=0 // pred_check
    _
  $region11: #{resnet14_forward.24} parent=0 // pred_check_branch
    %13 = sbr.rel (0) target = $region13
  $region12: #{resnet14_forward.24} parent=0 // pred_region
    _
  $region13: #{resnet14_forward.24} parent=0 // pred_fallthru
    _
  %v15 = vld [vmem:[%s0] sm:$0xff]
  %v16 = vld [vmem:[%s0 + $0x8] sm:$0xff]
  %v17 = vld [vmem:[%s0 + $0x10] sm:$0xf]
  %v18 = vld [vmem:[%s0 + $0x14] sm:$0xff]
  %v19 = vld [vmem:[%s0 + $0x1c] sm:$0xff]
  %v20 = vld [vmem:[%s0 + $0x24] sm:$0xf]
  %v21 = vld [vmem:[%s0 + $0x28] sm:$0xff]
  %v22 = vld [vmem:[%s0 + $0x30] sm:$0xff]
  %v23 = vld [vmem:[%s0 + $0x38] sm:$0xf]
  %v24 = vld [vmem:[%s0 + $0x3c] sm:$0xff]
  %v25 = vld [vmem:[%s0 + $0x44] sm:$0xff]
  %v26 = vld [vmem:[%s0 + $0x4c] sm:$0xf]
  %v27 = vld [vmem:[%s1] sm:$0xf]
  %v28 = vld [vmem:[%s1 + $0x4] sm:$0xf]
  %v29 = vld [vmem:[%s1 + $0x8] sm:$0xf]
  %v30 = vld [vmem:[%s1 + $0xc] sm:$0xf]
  %v31 = vld [vmem:[%s1 + $0x10] sm:$0xf]
  %v32 = vld [vmem:[%s1 + $0x14] sm:$0xf]
  %v33 = vld [vmem:[%s1 + $0x18] sm:$0xf]
  %v34 = vld [vmem:[%s1 + $0x1c] sm:$0xf]
  %v35 = vld [vmem:[%s1 + $0x20] sm:$0xf]
  %v36 = vld [vmem:[%s1 + $0x24] sm:$0xf]
  %v37 = vld [vmem:[%s1 + $0x28] sm:$0xf]
  %v38 = vld [vmem:[%s1 + $0x2c] sm:$0xf]
  %v39 = vld [vmem:[%s1 + $0x30] sm:$0xf]
  %v40 = vld [vmem:[%s1 + $0x34] sm:$0xf]
  %v41 = vld [vmem:[%s1 + $0x38] sm:$0xf]
  %v42 = vld [vmem:[%s1 + $0x3c] sm:$0xf]
  %v43 = vld [vmem:[%s1 + $0x40] sm:$0xf]
  %v44 = vld [vmem:[%s1 + $0x44] sm:$0xf]
  %v45 = vld [vmem:[%s1 + $0x48] sm:$0xf]
  %v46 = vld [vmem:[%s1 + $0x4c] sm:$0xf]
  %v47 = vld [vmem:[%s1 + $0x50] sm:$0xf]
  %v48 = vld [vmem:[%s1 + $0x54] sm:$0xf]
  %v49 = vld [vmem:[%s1 + $0x58] sm:$0xf]
  %v50 = vld [vmem:[%s1 + $0x5c] sm:$0xf]
  %v51 = vld [vmem:[%s1 + $0x60] sm:$0xf]
  %v52 = vld [vmem:[%s1 + $0x64] sm:$0xf]
  %v53 = vld [vmem:[%s1 + $0x68] sm:$0xf]
  %v54 = vld [vmem:[%s1 + $0x6c] sm:$0xf]
  %v55 = vld [vmem:[%s1 + $0x70] sm:$0xf]
  %v56 = vld [vmem:[%s1 + $0x74] sm:$0xf]
  %v57 = vld [vmem:[%s1 + $0x78] sm:$0xf]
  %v58 = vld [vmem:[%s1 + $0x7c] sm:$0xf]
  %v59 = vld [vmem:[%s1 + $0x80] sm:$0xf]
  %v60 = vld [vmem:[%s1 + $0x84] sm:$0xf]
  %v61 = vld [vmem:[%s1 + $0x88] sm:$0xf]
  %v62 = vld [vmem:[%s1 + $0x8c] sm:$0xf]
  %v63 = vld [vmem:[%s1 + $0x90] sm:$0xf]
  %v64 = vld [vmem:[%s1 + $0x94] sm:$0xf]
  %v65 = vld [vmem:[%s1 + $0x98] sm:$0xf]
  %v66 = vld [vmem:[%s1 + $0x9c] sm:$0xf]
  %v67 = vld [vmem:[%s1 + $0xa0] sm:$0xf]
  %v68 = vld [vmem:[%s1 + $0xa4] sm:$0xf]
  %v69 = vld [vmem:[%s1 + $0xa8] sm:$0xf]
  %v70 = vld [vmem:[%s1 + $0xac] sm:$0xf]
  %v71 = vld [vmem:[%s1 + $0xb0] sm:$0xf]
  %v72 = vld [vmem:[%s1 + $0xb4] sm:$0xf]
  %v73 = vld [vmem:[%s1 + $0xb8] sm:$0xf]
  %v74 = vld [vmem:[%s1 + $0xbc] sm:$0xf]
  %v75 = vld [vmem:[%s1 + $0xc0] sm:$0xf]
  %v76 = vld [vmem:[%s1 + $0xc4] sm:$0xf]
  %v77 = vld [vmem:[%s1 + $0xc8] sm:$0xf]
  %v78 = vld [vmem:[%s1 + $0xcc] sm:$0xf]
  %v79 = vld [vmem:[%s1 + $0xd0] sm:$0xf]
  %v80 = vld [vmem:[%s1 + $0xd4] sm:$0xf]
  %v81 = vld [vmem:[%s1 + $0xd8] sm:$0xf]
  %v82 = vld [vmem:[%s1 + $0xdc] sm:$0xf]
  %v83 = vld [vmem:[%s1 + $0xe0] sm:$0xf]
  %v84 = vld [vmem:[%s1 + $0xe4] sm:$0xf]
  %v85 = vld [vmem:[%s1 + $0xe8] sm:$0xf]
  %v86 = vld [vmem:[%s1 + $0xec] sm:$0xf]
  %v87 = vld [vmem:[%s1 + $0xf0] sm:$0xf]
  %v88 = vld [vmem:[%s1 + $0xf4] sm:$0xf]
  %v89 = vld [vmem:[%s1 + $0xf8] sm:$0xf]
  %v90 = vld [vmem:[%s1 + $0xfc] sm:$0xf]
  %v91 = vld [vmem:[%s1 + $0x100] sm:$0xf]
  %v92 = vld [vmem:[%s1 + $0x104] sm:$0xf]
  %v93 = vld [vmem:[%s1 + $0x108] sm:$0xf]
  %v94 = vld [vmem:[%s1 + $0x10c] sm:$0xf]
  %v95 = vld [vmem:[%s1 + $0x110] sm:$0xf]
  %v96 = vld [vmem:[%s1 + $0x114] sm:$0xf]
  %v97 = vld [vmem:[%s1 + $0x118] sm:$0xf]
  %v98 = vld [vmem:[%s1 + $0x11c] sm:$0xf]
  %v99 = vld [vmem:[%s1 + $0x120] sm:$0xf]
  %v100 = vld [vmem:[%s1 + $0x124] sm:$0xf]
  %v101 = vld [vmem:[%s1 + $0x128] sm:$0xf]
  %v102 = vld [vmem:[%s1 + $0x12c] sm:$0xf]
  %v103 = vld [vmem:[%s2] sm:$0x1]
  %v105 = vlaneseq
  %v106 = vshrl.u32 %v105, 7
  %v107 = vsub.s32 0, %v106
  %v108 = vrot.slane %v103, %v107
  %v122 = vunpack.c.l.b16 %v15
  %v123 = vunpack.c.h.b16 %v15
  %v124 = vunpack.c.l.b16 %v16
  %v125 = vunpack.c.h.b16 %v16
  %v126 = vunpack.c.l.b16 %v17
  %v127 = vunpack.c.l.b16 %v18
  %v128 = vunpack.c.h.b16 %v18
  %v129 = vunpack.c.l.b16 %v19
  %v130 = vunpack.c.h.b16 %v19
  %v131 = vunpack.c.l.b16 %v20
  %v132 = vunpack.c.l.b16 %v21
  %v133 = vunpack.c.h.b16 %v21
  %v134 = vunpack.c.l.b16 %v22
  %v135 = vunpack.c.h.b16 %v22
  %v136 = vunpack.c.l.b16 %v23
  %v137 = vunpack.c.l.b16 %v24
  %v138 = vunpack.c.h.b16 %v24
  %v139 = vunpack.c.l.b16 %v25
  %v140 = vunpack.c.h.b16 %v25
  %v141 = vunpack.c.l.b16 %v26
  %v142 = vpack.c.b16 %v127, %v122
  %v143 = vpack.c.b16 %v128, %v123
  %v144 = vpack.c.b16 %v129, %v124
  %v145 = vpack.c.b16 %v130, %v125
  %v146 = vpack.c.b16 %v131, %v126
  %v147 = vpack.c.b16 %v137, %v132
  %v148 = vpack.c.b16 %v138, %v133
  %v149 = vpack.c.b16 %v139, %v134
  %v150 = vpack.c.b16 %v140, %v135
  %v151 = vpack.c.b16 %v141, %v136
  %v236 = vunpack.c.l.b16 %v27
  %v237 = vunpack.c.l.b16 %v28
  %v238 = vunpack.c.l.b16 %v29
  %v239 = vunpack.c.l.b16 %v30
  %v240 = vunpack.c.l.b16 %v31
  %v241 = vunpack.c.l.b16 %v32
  %v242 = vunpack.c.l.b16 %v33
  %v243 = vunpack.c.l.b16 %v34
  %v244 = vunpack.c.l.b16 %v35
  %v245 = vunpack.c.l.b16 %v36
  %v246 = vunpack.c.l.b16 %v37
  %v247 = vunpack.c.l.b16 %v38
  %v248 = vunpack.c.l.b16 %v39
  %v249 = vunpack.c.l.b16 %v40
  %v250 = vunpack.c.l.b16 %v41
  %v251 = vunpack.c.l.b16 %v42
  %v252 = vunpack.c.l.b16 %v43
  %v253 = vunpack.c.l.b16 %v44
  %v254 = vunpack.c.l.b16 %v45
  %v255 = vunpack.c.l.b16 %v46
  %v256 = vunpack.c.l.b16 %v47
  %v257 = vunpack.c.l.b16 %v48
  %v258 = vunpack.c.l.b16 %v49
  %v259 = vunpack.c.l.b16 %v50
  %v260 = vunpack.c.l.b16 %v51
  %v261 = vunpack.c.l.b16 %v52
  %v262 = vunpack.c.l.b16 %v53
  %v263 = vunpack.c.l.b16 %v54
  %v264 = vunpack.c.l.b16 %v55
  %v265 = vunpack.c.l.b16 %v56
  %v266 = vunpack.c.l.b16 %v57
  %v267 = vunpack.c.l.b16 %v58
  %v268 = vunpack.c.l.b16 %v59
  %v269 = vunpack.c.l.b16 %v60
  %v270 = vunpack.c.l.b16 %v61
  %v271 = vunpack.c.l.b16 %v62
  %v272 = vunpack.c.l.b16 %v63
  %v273 = vunpack.c.l.b16 %v64
  %v274 = vunpack.c.l.b16 %v65
  %v275 = vunpack.c.l.b16 %v66
  %v276 = vunpack.c.l.b16 %v67
  %v277 = vunpack.c.l.b16 %v68
  %v278 = vunpack.c.l.b16 %v69
  %v279 = vunpack.c.l.b16 %v70
  %v280 = vunpack.c.l.b16 %v71
  %v281 = vunpack.c.l.b16 %v72
  %v282 = vunpack.c.l.b16 %v73
  %v283 = vunpack.c.l.b16 %v74
  %v284 = vunpack.c.l.b16 %v75
  %v285 = vunpack.c.l.b16 %v76
  %v286 = vunpack.c.l.b16 %v77
  %v287 = vunpack.c.l.b16 %v78
  %v288 = vunpack.c.l.b16 %v79
  %v289 = vunpack.c.l.b16 %v80
  %v290 = vunpack.c.l.b16 %v81
  %v291 = vunpack.c.l.b16 %v82
  %v292 = vunpack.c.l.b16 %v83
  %v293 = vunpack.c.l.b16 %v84
  %v294 = vunpack.c.l.b16 %v85
  %v295 = vunpack.c.l.b16 %v86
  %v296 = vunpack.c.l.b16 %v87
  %v297 = vunpack.c.l.b16 %v88
  %v298 = vunpack.c.l.b16 %v89
  %v299 = vunpack.c.l.b16 %v90
  %v300 = vunpack.c.l.b16 %v91
  %v301 = vunpack.c.l.b16 %v92
  %v302 = vunpack.c.l.b16 %v93
  %v303 = vunpack.c.l.b16 %v94
  %v304 = vunpack.c.l.b16 %v95
  %v305 = vunpack.c.l.b16 %v96
  %v306 = vunpack.c.l.b16 %v97
  %v307 = vunpack.c.l.b16 %v98
  %v308 = vunpack.c.l.b16 %v99
  %v309 = vunpack.c.l.b16 %v100
  %v310 = vunpack.c.l.b16 %v101
  %v311 = vunpack.c.l.b16 %v102
  %v312 = vpack.c.b16 %v237, %v236
  %v313 = vpack.c.b16 %v239, %v238
  %v314 = vpack.c.b16 %v241, %v240
  %v315 = vpack.c.b16 %v243, %v242
  %v316 = vpack.c.b16 %v245, %v244
  %v317 = vpack.c.b16 %v247, %v246
  %v318 = vpack.c.b16 %v249, %v248
  %v319 = vpack.c.b16 %v251, %v250
  %v320 = vpack.c.b16 %v253, %v252
  %v321 = vpack.c.b16 %v255, %v254
  %v322 = vpack.c.b16 %v257, %v256
  %v323 = vpack.c.b16 %v259, %v258
  %v324 = vpack.c.b16 %v261, %v260
  %v325 = vpack.c.b16 %v263, %v262
  %v326 = vpack.c.b16 %v265, %v264
  %v327 = vpack.c.b16 %v267, %v266
  %v328 = vpack.c.b16 %v269, %v268
  %v329 = vpack.c.b16 %v271, %v270
  %v330 = vpack.c.b16 %v273, %v272
  %v331 = vpack.c.b16 %v275, %v274
  %v332 = vpack.c.b16 %v277, %v276
  %v333 = vpack.c.b16 %v279, %v278
  %v334 = vpack.c.b16 %v281, %v280
  %v335 = vpack.c.b16 %v283, %v282
  %v336 = vpack.c.b16 %v285, %v284
  %v337 = vpack.c.b16 %v287, %v286
  %v338 = vpack.c.b16 %v289, %v288
  %v339 = vpack.c.b16 %v291, %v290
  %v340 = vpack.c.b16 %v293, %v292
  %v341 = vpack.c.b16 %v295, %v294
  %v342 = vpack.c.b16 %v297, %v296
  %v343 = vpack.c.b16 %v299, %v298
  %v344 = vpack.c.b16 %v301, %v300
  %v345 = vpack.c.b16 %v303, %v302
  %v346 = vpack.c.b16 %v305, %v304
  %v347 = vpack.c.b16 %v307, %v306
  %v348 = vpack.c.b16 %v309, %v308
  %v349 = vpack.c.b16 %v311, %v310
  %vm388 = vcmask 785408
  %v390 = vsel %vm388, %v146, 0
  %v393 = vsel %vm388, %v151, 0
  %395 = vmatprep.subr.bf16.mxu0 0
  %396 = vmatpush1.bf16.msra.mxu0 %v319
  %397 = vmatprep.subr.bf16.mxu0 0
  %398 = vmatpush1.bf16.msra.mxu0 %v318
  %399 = vmatprep.subr.bf16.mxu0 0
  %400 = vmatpush1.bf16.msra.mxu0 %v317
  %401 = vmatprep.subr.bf16.mxu0 0
  %402 = vmatpush1.bf16.msra.mxu0 %v316
  %403 = vmatprep.subr.bf16.mxu0 0
  %404 = vmatpush1.bf16.msra.mxu0 %v315
  %405 = vmatprep.subr.bf16.mxu0 0
  %406 = vmatpush1.bf16.msra.mxu0 %v314
  %407 = vmatprep.subr.bf16.mxu0 0
  %408 = vmatpush1.bf16.msra.mxu0 %v313
  %409 = vmatprep.subr.bf16.mxu0 0
  %410 = vmatpush1.bf16.msra.mxu0 %v312
  %411 = vmatprep.subr.bf16.mxu0 0
  %412 = vmatpush2.bf16.msra.mxu0 %v327
  %413 = vmatprep.subr.bf16.mxu0 0
  %414 = vmatpush2.bf16.msra.mxu0 %v326
  %415 = vmatprep.subr.bf16.mxu0 0
  %416 = vmatpush2.bf16.msra.mxu0 %v325
  %417 = vmatprep.subr.bf16.mxu0 0
  %418 = vmatpush2.bf16.msra.mxu0 %v324
  %419 = vmatprep.subr.bf16.mxu0 0
  %420 = vmatpush2.bf16.msra.mxu0 %v323
  %421 = vmatprep.subr.bf16.mxu0 0
  %422 = vmatpush2.bf16.msra.mxu0 %v322
  %423 = vmatprep.subr.bf16.mxu0 0
  %424 = vmatpush2.bf16.msra.mxu0 %v321
  %425 = vmatprep.subr.bf16.mxu0 0
  %426 = vmatpush2.bf16.msra.mxu0 %v320
  %427 = vmatprep.mubr.bf16.mxu0 %v143
  %428 = vmatmul.mubr.bf16.gmra.mxu0 %v142
  %v429 = vpop.f32.mrf.mxu0
  %v430 = vadd.f32 %v108, %v429
  %v431 = vpop.f32.mrf.mxu0
  %v432 = vpop.f32.mrf.mxu0
  %v433 = vadd.f32 %v108, %v432
  %v434 = vpop.f32.mrf.mxu0
  %435 = vmatprep.mubr.bf16.mxu0 %v148
  %436 = vmatmul.mubr.bf16.gmra.mxu0 %v147
  %v437 = vpop.f32.mrf.mxu0
  %v438 = vadd.f32 %v108, %v437
  %v439 = vpop.f32.mrf.mxu0
  %v440 = vpop.f32.mrf.mxu0
  %v441 = vadd.f32 %v108, %v440
  %v442 = vpop.f32.mrf.mxu0
  %443 = vdwg.mxu0
  %444 = vmatprep.subr.bf16.mxu0 0
  %445 = vmatpush1.bf16.msra.mxu0 %v335
  %446 = vmatprep.subr.bf16.mxu0 0
  %447 = vmatpush1.bf16.msra.mxu0 %v334
  %448 = vmatprep.subr.bf16.mxu0 0
  %449 = vmatpush1.bf16.msra.mxu0 %v333
  %450 = vmatprep.subr.bf16.mxu0 0
  %451 = vmatpush1.bf16.msra.mxu0 %v332
  %452 = vmatprep.subr.bf16.mxu0 0
  %453 = vmatpush1.bf16.msra.mxu0 %v331
  %454 = vmatprep.subr.bf16.mxu0 0
  %455 = vmatpush1.bf16.msra.mxu0 %v330
  %456 = vmatprep.subr.bf16.mxu0 0
  %457 = vmatpush1.bf16.msra.mxu0 %v329
  %458 = vmatprep.subr.bf16.mxu0 0
  %459 = vmatpush1.bf16.msra.mxu0 %v328
  %460 = vmatprep.subr.bf16.mxu0 0
  %461 = vmatpush2.bf16.msra.mxu0 %v343
  %462 = vmatprep.subr.bf16.mxu0 0
  %463 = vmatpush2.bf16.msra.mxu0 %v342
  %464 = vmatprep.subr.bf16.mxu0 0
  %465 = vmatpush2.bf16.msra.mxu0 %v341
  %466 = vmatprep.subr.bf16.mxu0 0
  %467 = vmatpush2.bf16.msra.mxu0 %v340
  %468 = vmatprep.subr.bf16.mxu0 0
  %469 = vmatpush2.bf16.msra.mxu0 %v339
  %470 = vmatprep.subr.bf16.mxu0 0
  %471 = vmatpush2.bf16.msra.mxu0 %v338
  %472 = vmatprep.subr.bf16.mxu0 0
  %473 = vmatpush2.bf16.msra.mxu0 %v337
  %474 = vmatprep.subr.bf16.mxu0 0
  %475 = vmatpush2.bf16.msra.mxu0 %v336
  %476 = vmatprep.mubr.bf16.mxu0 %v145
  %477 = vmatmul.mubr.bf16.gmra.mxu0 %v144
  %v478 = vpop.f32.mrf.mxu0
  %v479 = vadd.f32 %v430, %v478
  %v480 = vpop.f32.mrf.mxu0
  %v481 = vpop.f32.mrf.mxu0
  %v482 = vadd.f32 %v433, %v481
  %v483 = vpop.f32.mrf.mxu0
  %484 = vmatprep.mubr.bf16.mxu0 %v150
  %485 = vmatmul.mubr.bf16.gmra.mxu0 %v149
  %v486 = vpop.f32.mrf.mxu0
  %v487 = vadd.f32 %v438, %v486
  %v488 = vpop.f32.mrf.mxu0
  %v489 = vpop.f32.mrf.mxu0
  %v490 = vadd.f32 %v441, %v489
  %v491 = vpop.f32.mrf.mxu0
  %492 = vdwg.mxu0
  %493 = vmatprep.subr.bf16.mxu0 0
  %494 = vmatpush1.bf16.msra.mxu0 0
  %495 = vmatprep.subr.bf16.mxu0 0
  %496 = vmatpush1.bf16.msra.mxu0 0
  %497 = vmatprep.subr.bf16.mxu0 0
  %498 = vmatpush1.bf16.msra.mxu0 %v349
  %499 = vmatprep.subr.bf16.mxu0 0
  %500 = vmatpush1.bf16.msra.mxu0 %v348
  %501 = vmatprep.subr.bf16.mxu0 0
  %502 = vmatpush1.bf16.msra.mxu0 %v347
  %503 = vmatprep.subr.bf16.mxu0 0
  %504 = vmatpush1.bf16.msra.mxu0 %v346
  %505 = vmatprep.subr.bf16.mxu0 0
  %506 = vmatpush1.bf16.msra.mxu0 %v345
  %507 = vmatprep.subr.bf16.mxu0 0
  %508 = vmatpush1.bf16.msra.mxu0 %v344
  %509 = vmatprep.subr.bf16.mxu0 0
  %510 = vmatpush2.bf16.msra.mxu0 0
  %511 = vmatprep.subr.bf16.mxu0 0
  %512 = vmatpush2.bf16.msra.mxu0 0
  %513 = vmatprep.subr.bf16.mxu0 0
  %514 = vmatpush2.bf16.msra.mxu0 0
  %515 = vmatprep.subr.bf16.mxu0 0
  %516 = vmatpush2.bf16.msra.mxu0 0
  %517 = vmatprep.subr.bf16.mxu0 0
  %518 = vmatpush2.bf16.msra.mxu0 0
  %519 = vmatprep.subr.bf16.mxu0 0
  %520 = vmatpush2.bf16.msra.mxu0 0
  %521 = vmatprep.subr.bf16.mxu0 0
  %522 = vmatpush2.bf16.msra.mxu0 0
  %523 = vmatprep.subr.bf16.mxu0 0
  %524 = vmatpush2.bf16.msra.mxu0 0
  %525 = vmatprep.mubr.bf16.mxu0 0
  %526 = vmatmul.mubr.bf16.gmra.mxu0 %v390
  %v527 = vpop.f32.mrf.mxu0
  %v528 = vadd.f32 %v479, %v527
  %v529 = vpop.f32.mrf.mxu0
  %v530 = vpop.f32.mrf.mxu0
  %v531 = vadd.f32 %v482, %v530
  %v532 = vpop.f32.mrf.mxu0
  %533 = vmatprep.mubr.bf16.mxu0 0
  %534 = vmatmul.mubr.bf16.gmra.mxu0 %v393
  %v535 = vpop.f32.mrf.mxu0
  %v536 = vadd.f32 %v487, %v535
  %v537 = vpop.f32.mrf.mxu0
  %v538 = vpop.f32.mrf.mxu0
  %v539 = vadd.f32 %v490, %v538
  %v540 = vpop.f32.mrf.mxu0
  %541 = vdwg.mxu0
  %v542 = vmax.f32 %v528, 0.0
  %v543 = vmax.f32 %v531, 0.0
  %v544 = vmax.f32 %v536, 0.0
  %v545 = vmax.f32 %v539, 0.0
  %vm546 = vcmask 523264
  %547 = vst.msk [vmem:[%s3] sm:$0xff] %vm546, %v542
  %548 = vst.msk [vmem:[%s3 + $0x8] sm:$0xff] %vm546, %v543
  %549 = vst.msk [vmem:[%s3 + $0x10] sm:$0xff] %vm546, %v544
  %550 = vst.msk [vmem:[%s3 + $0x18] sm:$0xff] %vm546, %v545
  // Predicated region
  $region14: #{resnet14_forward.24} parent=0 // pred_check
    _
  $region15: #{resnet14_forward.24} parent=0 // pred_check_branch
    %552 = sbr.rel (0) target = $region17
  $region16: #{resnet14_forward.24} parent=0 // pred_region
    _
  $region17: #{resnet14_forward.24} parent=0 // pred_fallthru
    _
  // Predicated region
  $region18: #{resnet14_forward.24} parent=0 // pred_check
    _
  $region19: #{resnet14_forward.24} parent=0 // pred_check_branch
    %554 = sbr.rel (0) target = $region21
  $region20: #{resnet14_forward.24} parent=0 // pred_region
    _
  $region21: #{resnet14_forward.24} parent=0 // pred_fallthru
    _

// kernel: resnet14_forward.25
$region0: #{resnet14_forward.25}
  #allocation0 [shape = 'u32[]', space=smem, size = 0x4, offset = 0x4, fixed_abs, tag = 'smem constant byte address 0x4 - core index']
  #allocation1 [shape = 'u32[144,128]{1,0:T(1,128)}', space=vmem, size = 0x12000, scoped, tag = 'internal scratch']
  %s0 = inlined_call_operand.vmem [shape: bf16[32,576], index: 0, kind: input, shape index: {}]
  %s1 = inlined_call_operand.vmem [shape: bf16[576,64], index: 1, kind: input, shape index: {}]
  %s2 = inlined_call_operand.vmem [shape: f32[1,64], index: 2, kind: input, shape index: {}]
  %s3 = inlined_call_operand.vmem [shape: f32[32,64], index: 3, kind: output, shape index: {}]
  %s4 = sld [smem:[#allocation0]]
  $region22: #{resnet14_forward.25} parent=0
    _
  %s6 = ssub.s32 1, %s4
  %s7 = scalar_select 0, %s6, %s4
  // Predicated region
  $region2: #{resnet14_forward.25} parent=0 // pred_check
    _
  $region3: #{resnet14_forward.25} parent=0 // pred_check_branch
    %9 = sbr.rel (0) target = $region5
  $region4: #{resnet14_forward.25} parent=0 // pred_region
    _
  $region5: #{resnet14_forward.25} parent=0 // pred_fallthru
    _
  // Predicated region
  $region6: #{resnet14_forward.25} parent=0 // pred_check
    _
  $region7: #{resnet14_forward.25} parent=0 // pred_check_branch
    %11 = sbr.rel (0) target = $region9
  $region8: #{resnet14_forward.25} parent=0 // pred_region
    _
  $region9: #{resnet14_forward.25} parent=0 // pred_fallthru
    _
  // Predicated region
  $region10: #{resnet14_forward.25} parent=0 // pred_check
    _
  $region11: #{resnet14_forward.25} parent=0 // pred_check_branch
    %13 = sbr.rel (0) target = $region13
  $region12: #{resnet14_forward.25} parent=0 // pred_region
    _
  $region13: #{resnet14_forward.25} parent=0 // pred_fallthru
    _
  %v15 = vld [vmem:[%s0] sm:$0xff]
  %v16 = vld [vmem:[%s0 + $0x8] sm:$0xff]
  %v17 = vld [vmem:[%s0 + $0x10] sm:$0xf]
  %v18 = vld [vmem:[%s0 + $0x14] sm:$0xff]
  %v19 = vld [vmem:[%s0 + $0x1c] sm:$0xff]
  %v20 = vld [vmem:[%s0 + $0x24] sm:$0xf]
  %v21 = vld [vmem:[%s0 + $0x28] sm:$0xff]
  %v22 = vld [vmem:[%s0 + $0x30] sm:$0xff]
  %v23 = vld [vmem:[%s0 + $0x38] sm:$0xf]
  %v24 = vld [vmem:[%s0 + $0x3c] sm:$0xff]
  %v25 = vld [vmem:[%s0 + $0x44] sm:$0xff]
  %v26 = vld [vmem:[%s0 + $0x4c] sm:$0xf]
  %v27 = vld [vmem:[%s1] sm:$0xf]
  %v28 = vld [vmem:[%s1 + $0x4] sm:$0xf]
  %v29 = vld [vmem:[%s1 + $0x8] sm:$0xf]
  %v30 = vld [vmem:[%s1 + $0xc] sm:$0xf]
  %v31 = vld [vmem:[%s1 + $0x10] sm:$0xf]
  %v32 = vld [vmem:[%s1 + $0x14] sm:$0xf]
  %v33 = vld [vmem:[%s1 + $0x18] sm:$0xf]
  %v34 = vld [vmem:[%s1 + $0x1c] sm:$0xf]
  %v35 = vld [vmem:[%s1 + $0x20] sm:$0xf]
  %v36 = vld [vmem:[%s1 + $0x24] sm:$0xf]
  %v37 = vld [vmem:[%s1 + $0x28] sm:$0xf]
  %v38 = vld [vmem:[%s1 + $0x2c] sm:$0xf]
  %v39 = vld [vmem:[%s1 + $0x30] sm:$0xf]
  %v40 = vld [vmem:[%s1 + $0x34] sm:$0xf]
  %v41 = vld [vmem:[%s1 + $0x38] sm:$0xf]
  %v42 = vld [vmem:[%s1 + $0x3c] sm:$0xf]
  %v43 = vld [vmem:[%s1 + $0x40] sm:$0xf]
  %v44 = vld [vmem:[%s1 + $0x44] sm:$0xf]
  %v45 = vld [vmem:[%s1 + $0x48] sm:$0xf]
  %v46 = vld [vmem:[%s1 + $0x4c] sm:$0xf]
  %v47 = vld [vmem:[%s1 + $0x50] sm:$0xf]
  %v48 = vld [vmem:[%s1 + $0x54] sm:$0xf]
  %v49 = vld [vmem:[%s1 + $0x58] sm:$0xf]
  %v50 = vld [vmem:[%s1 + $0x5c] sm:$0xf]
  %v51 = vld [vmem:[%s1 + $0x60] sm:$0xf]
  %v52 = vld [vmem:[%s1 + $0x64] sm:$0xf]
  %v53 = vld [vmem:[%s1 + $0x68] sm:$0xf]
  %v54 = vld [vmem:[%s1 + $0x6c] sm:$0xf]
  %v55 = vld [vmem:[%s1 + $0x70] sm:$0xf]
  %v56 = vld [vmem:[%s1 + $0x74] sm:$0xf]
  %v57 = vld [vmem:[%s1 + $0x78] sm:$0xf]
  %v58 = vld [vmem:[%s1 + $0x7c] sm:$0xf]
  %v59 = vld [vmem:[%s1 + $0x80] sm:$0xf]
  %v60 = vld [vmem:[%s1 + $0x84] sm:$0xf]
  %v61 = vld [vmem:[%s1 + $0x88] sm:$0xf]
  %v62 = vld [vmem:[%s1 + $0x8c] sm:$0xf]
  %v63 = vld [vmem:[%s1 + $0x90] sm:$0xf]
  %v64 = vld [vmem:[%s1 + $0x94] sm:$0xf]
  %v65 = vld [vmem:[%s1 + $0x98] sm:$0xf]
  %v66 = vld [vmem:[%s1 + $0x9c] sm:$0xf]
  %v67 = vld [vmem:[%s1 + $0xa0] sm:$0xf]
  %v68 = vld [vmem:[%s1 + $0xa4] sm:$0xf]
  %v69 = vld [vmem:[%s1 + $0xa8] sm:$0xf]
  %v70 = vld [vmem:[%s1 + $0xac] sm:$0xf]
  %v71 = vld [vmem:[%s1 + $0xb0] sm:$0xf]
  %v72 = vld [vmem:[%s1 + $0xb4] sm:$0xf]
  %v73 = vld [vmem:[%s1 + $0xb8] sm:$0xf]
  %v74 = vld [vmem:[%s1 + $0xbc] sm:$0xf]
  %v75 = vld [vmem:[%s1 + $0xc0] sm:$0xf]
  %v76 = vld [vmem:[%s1 + $0xc4] sm:$0xf]
  %v77 = vld [vmem:[%s1 + $0xc8] sm:$0xf]
  %v78 = vld [vmem:[%s1 + $0xcc] sm:$0xf]
  %v79 = vld [vmem:[%s1 + $0xd0] sm:$0xf]
  %v80 = vld [vmem:[%s1 + $0xd4] sm:$0xf]
  %v81 = vld [vmem:[%s1 + $0xd8] sm:$0xf]
  %v82 = vld [vmem:[%s1 + $0xdc] sm:$0xf]
  %v83 = vld [vmem:[%s1 + $0xe0] sm:$0xf]
  %v84 = vld [vmem:[%s1 + $0xe4] sm:$0xf]
  %v85 = vld [vmem:[%s1 + $0xe8] sm:$0xf]
  %v86 = vld [vmem:[%s1 + $0xec] sm:$0xf]
  %v87 = vld [vmem:[%s1 + $0xf0] sm:$0xf]
  %v88 = vld [vmem:[%s1 + $0xf4] sm:$0xf]
  %v89 = vld [vmem:[%s1 + $0xf8] sm:$0xf]
  %v90 = vld [vmem:[%s1 + $0xfc] sm:$0xf]
  %v91 = vld [vmem:[%s1 + $0x100] sm:$0xf]
  %v92 = vld [vmem:[%s1 + $0x104] sm:$0xf]
  %v93 = vld [vmem:[%s1 + $0x108] sm:$0xf]
  %v94 = vld [vmem:[%s1 + $0x10c] sm:$0xf]
  %v95 = vld [vmem:[%s1 + $0x110] sm:$0xf]
  %v96 = vld [vmem:[%s1 + $0x114] sm:$0xf]
  %v97 = vld [vmem:[%s1 + $0x118] sm:$0xf]
  %v98 = vld [vmem:[%s1 + $0x11c] sm:$0xf]
  %v99 = vld [vmem:[%s2] sm:$0x1]
  %v101 = vlaneseq
  %v102 = vshrl.u32 %v101, 7
  %v103 = vsub.s32 0, %v102
  %v104 = vrot.slane %v99, %v103
  %v118 = vunpack.c.l.b16 %v15
  %v119 = vunpack.c.h.b16 %v15
  %v120 = vunpack.c.l.b16 %v16
  %v121 = vunpack.c.h.b16 %v16
  %v122 = vunpack.c.l.b16 %v17
  %v123 = vunpack.c.l.b16 %v18
  %v124 = vunpack.c.h.b16 %v18
  %v125 = vunpack.c.l.b16 %v19
  %v126 = vunpack.c.h.b16 %v19
  %v127 = vunpack.c.l.b16 %v20
  %v128 = vunpack.c.l.b16 %v21
  %v129 = vunpack.c.h.b16 %v21
  %v130 = vunpack.c.l.b16 %v22
  %v131 = vunpack.c.h.b16 %v22
  %v132 = vunpack.c.l.b16 %v23
  %v133 = vunpack.c.l.b16 %v24
  %v134 = vunpack.c.h.b16 %v24
  %v135 = vunpack.c.l.b16 %v25
  %v136 = vunpack.c.h.b16 %v25
  %v137 = vunpack.c.l.b16 %v26
  %v138 = vpack.c.b16 %v123, %v118
  %v139 = vpack.c.b16 %v124, %v119
  %v140 = vpack.c.b16 %v125, %v120
  %v141 = vpack.c.b16 %v126, %v121
  %v142 = vpack.c.b16 %v127, %v122
  %v143 = vpack.c.b16 %v133, %v128
  %v144 = vpack.c.b16 %v134, %v129
  %v145 = vpack.c.b16 %v135, %v130
  %v146 = vpack.c.b16 %v136, %v131
  %v147 = vpack.c.b16 %v137, %v132
  %v228 = vunpack.c.l.b16 %v27
  %v229 = vunpack.c.l.b16 %v28
  %v230 = vunpack.c.l.b16 %v29
  %v231 = vunpack.c.l.b16 %v30
  %v232 = vunpack.c.l.b16 %v31
  %v233 = vunpack.c.l.b16 %v32
  %v234 = vunpack.c.l.b16 %v33
  %v235 = vunpack.c.l.b16 %v34
  %v236 = vunpack.c.l.b16 %v35
  %v237 = vunpack.c.l.b16 %v36
  %v238 = vunpack.c.l.b16 %v37
  %v239 = vunpack.c.l.b16 %v38
  %v240 = vunpack.c.l.b16 %v39
  %v241 = vunpack.c.l.b16 %v40
  %v242 = vunpack.c.l.b16 %v41
  %v243 = vunpack.c.l.b16 %v42
  %v244 = vunpack.c.l.b16 %v43
  %v245 = vunpack.c.l.b16 %v44
  %v246 = vunpack.c.l.b16 %v45
  %v247 = vunpack.c.l.b16 %v46
  %v248 = vunpack.c.l.b16 %v47
  %v249 = vunpack.c.l.b16 %v48
  %v250 = vunpack.c.l.b16 %v49
  %v251 = vunpack.c.l.b16 %v50
  %v252 = vunpack.c.l.b16 %v51
  %v253 = vunpack.c.l.b16 %v52
  %v254 = vunpack.c.l.b16 %v53
  %v255 = vunpack.c.l.b16 %v54
  %v256 = vunpack.c.l.b16 %v55
  %v257 = vunpack.c.l.b16 %v56
  %v258 = vunpack.c.l.b16 %v57
  %v259 = vunpack.c.l.b16 %v58
  %v260 = vunpack.c.l.b16 %v59
  %v261 = vunpack.c.l.b16 %v60
  %v262 = vunpack.c.l.b16 %v61
  %v263 = vunpack.c.l.b16 %v62
  %v264 = vunpack.c.l.b16 %v63
  %v265 = vunpack.c.l.b16 %v64
  %v266 = vunpack.c.l.b16 %v65
  %v267 = vunpack.c.l.b16 %v66
  %v268 = vunpack.c.l.b16 %v67
  %v269 = vunpack.c.l.b16 %v68
  %v270 = vunpack.c.l.b16 %v69
  %v271 = vunpack.c.l.b16 %v70
  %v272 = vunpack.c.l.b16 %v71
  %v273 = vunpack.c.l.b16 %v72
  %v274 = vunpack.c.l.b16 %v73
  %v275 = vunpack.c.l.b16 %v74
  %v276 = vunpack.c.l.b16 %v75
  %v277 = vunpack.c.l.b16 %v76
  %v278 = vunpack.c.l.b16 %v77
  %v279 = vunpack.c.l.b16 %v78
  %v280 = vunpack.c.l.b16 %v79
  %v281 = vunpack.c.l.b16 %v80
  %v282 = vunpack.c.l.b16 %v81
  %v283 = vunpack.c.l.b16 %v82
  %v284 = vunpack.c.l.b16 %v83
  %v285 = vunpack.c.l.b16 %v84
  %v286 = vunpack.c.l.b16 %v85
  %v287 = vunpack.c.l.b16 %v86
  %v288 = vunpack.c.l.b16 %v87
  %v289 = vunpack.c.l.b16 %v88
  %v290 = vunpack.c.l.b16 %v89
  %v291 = vunpack.c.l.b16 %v90
  %v292 = vunpack.c.l.b16 %v91
  %v293 = vunpack.c.l.b16 %v92
  %v294 = vunpack.c.l.b16 %v93
  %v295 = vunpack.c.l.b16 %v94
  %v296 = vunpack.c.l.b16 %v95
  %v297 = vunpack.c.l.b16 %v96
  %v298 = vunpack.c.l.b16 %v97
  %v299 = vunpack.c.l.b16 %v98
  %v300 = vpack.c.b16 %v229, %v228
  %v301 = vpack.c.b16 %v231, %v230
  %v302 = vpack.c.b16 %v233, %v232
  %v303 = vpack.c.b16 %v235, %v234
  %v304 = vpack.c.b16 %v237, %v236
  %v305 = vpack.c.b16 %v239, %v238
  %v306 = vpack.c.b16 %v241, %v240
  %v307 = vpack.c.b16 %v243, %v242
  %v308 = vpack.c.b16 %v245, %v244
  %v309 = vpack.c.b16 %v247, %v246
  %v310 = vpack.c.b16 %v249, %v248
  %v311 = vpack.c.b16 %v251, %v250
  %v312 = vpack.c.b16 %v253, %v252
  %v313 = vpack.c.b16 %v255, %v254
  %v314 = vpack.c.b16 %v257, %v256
  %v315 = vpack.c.b16 %v259, %v258
  %v316 = vpack.c.b16 %v261, %v260
  %v317 = vpack.c.b16 %v263, %v262
  %v318 = vpack.c.b16 %v265, %v264
  %v319 = vpack.c.b16 %v267, %v266
  %v320 = vpack.c.b16 %v269, %v268
  %v321 = vpack.c.b16 %v271, %v270
  %v322 = vpack.c.b16 %v273, %v272
  %v323 = vpack.c.b16 %v275, %v274
  %v324 = vpack.c.b16 %v277, %v276
  %v325 = vpack.c.b16 %v279, %v278
  %v326 = vpack.c.b16 %v281, %v280
  %v327 = vpack.c.b16 %v283, %v282
  %v328 = vpack.c.b16 %v285, %v284
  %v329 = vpack.c.b16 %v287, %v286
  %v330 = vpack.c.b16 %v289, %v288
  %v331 = vpack.c.b16 %v291, %v290
  %v332 = vpack.c.b16 %v293, %v292
  %v333 = vpack.c.b16 %v295, %v294
  %v334 = vpack.c.b16 %v297, %v296
  %v335 = vpack.c.b16 %v299, %v298
  %vm372 = vcmask 523264
  %v374 = vsel %vm372, %v142, 0
  %v377 = vsel %vm372, %v147, 0
  %379 = vmatprep.subr.bf16.mxu0 0
  %380 = vmatpush1.bf16.msra.mxu0 %v307
  %381 = vmatprep.subr.bf16.mxu0 0
  %382 = vmatpush1.bf16.msra.mxu0 %v306
  %383 = vmatprep.subr.bf16.mxu0 0
  %384 = vmatpush1.bf16.msra.mxu0 %v305
  %385 = vmatprep.subr.bf16.mxu0 0
  %386 = vmatpush1.bf16.msra.mxu0 %v304
  %387 = vmatprep.subr.bf16.mxu0 0
  %388 = vmatpush1.bf16.msra.mxu0 %v303
  %389 = vmatprep.subr.bf16.mxu0 0
  %390 = vmatpush1.bf16.msra.mxu0 %v302
  %391 = vmatprep.subr.bf16.mxu0 0
  %392 = vmatpush1.bf16.msra.mxu0 %v301
  %393 = vmatprep.subr.bf16.mxu0 0
  %394 = vmatpush1.bf16.msra.mxu0 %v300
  %395 = vmatprep.subr.bf16.mxu0 0
  %396 = vmatpush2.bf16.msra.mxu0 %v315
  %397 = vmatprep.subr.bf16.mxu0 0
  %398 = vmatpush2.bf16.msra.mxu0 %v314
  %399 = vmatprep.subr.bf16.mxu0 0
  %400 = vmatpush2.bf16.msra.mxu0 %v313
  %401 = vmatprep.subr.bf16.mxu0 0
  %402 = vmatpush2.bf16.msra.mxu0 %v312
  %403 = vmatprep.subr.bf16.mxu0 0
  %404 = vmatpush2.bf16.msra.mxu0 %v311
  %405 = vmatprep.subr.bf16.mxu0 0
  %406 = vmatpush2.bf16.msra.mxu0 %v310
  %407 = vmatprep.subr.bf16.mxu0 0
  %408 = vmatpush2.bf16.msra.mxu0 %v309
  %409 = vmatprep.subr.bf16.mxu0 0
  %410 = vmatpush2.bf16.msra.mxu0 %v308
  %411 = vmatprep.mubr.bf16.mxu0 %v139
  %412 = vmatmul.mubr.bf16.gmra.mxu0 %v138
  %v413 = vpop.f32.mrf.mxu0
  %v414 = vadd.f32 %v104, %v413
  %v415 = vpop.f32.mrf.mxu0
  %v416 = vpop.f32.mrf.mxu0
  %v417 = vadd.f32 %v104, %v416
  %v418 = vpop.f32.mrf.mxu0
  %419 = vmatprep.mubr.bf16.mxu0 %v144
  %420 = vmatmul.mubr.bf16.gmra.mxu0 %v143
  %v421 = vpop.f32.mrf.mxu0
  %v422 = vadd.f32 %v104, %v421
  %v423 = vpop.f32.mrf.mxu0
  %v424 = vpop.f32.mrf.mxu0
  %v425 = vadd.f32 %v104, %v424
  %v426 = vpop.f32.mrf.mxu0
  %427 = vdwg.mxu0
  %428 = vmatprep.subr.bf16.mxu0 0
  %429 = vmatpush1.bf16.msra.mxu0 %v323
  %430 = vmatprep.subr.bf16.mxu0 0
  %431 = vmatpush1.bf16.msra.mxu0 %v322
  %432 = vmatprep.subr.bf16.mxu0 0
  %433 = vmatpush1.bf16.msra.mxu0 %v321
  %434 = vmatprep.subr.bf16.mxu0 0
  %435 = vmatpush1.bf16.msra.mxu0 %v320
  %436 = vmatprep.subr.bf16.mxu0 0
  %437 = vmatpush1.bf16.msra.mxu0 %v319
  %438 = vmatprep.subr.bf16.mxu0 0
  %439 = vmatpush1.bf16.msra.mxu0 %v318
  %440 = vmatprep.subr.bf16.mxu0 0
  %441 = vmatpush1.bf16.msra.mxu0 %v317
  %442 = vmatprep.subr.bf16.mxu0 0
  %443 = vmatpush1.bf16.msra.mxu0 %v316
  %444 = vmatprep.subr.bf16.mxu0 0
  %445 = vmatpush2.bf16.msra.mxu0 %v331
  %446 = vmatprep.subr.bf16.mxu0 0
  %447 = vmatpush2.bf16.msra.mxu0 %v330
  %448 = vmatprep.subr.bf16.mxu0 0
  %449 = vmatpush2.bf16.msra.mxu0 %v329
  %450 = vmatprep.subr.bf16.mxu0 0
  %451 = vmatpush2.bf16.msra.mxu0 %v328
  %452 = vmatprep.subr.bf16.mxu0 0
  %453 = vmatpush2.bf16.msra.mxu0 %v327
  %454 = vmatprep.subr.bf16.mxu0 0
  %455 = vmatpush2.bf16.msra.mxu0 %v326
  %456 = vmatprep.subr.bf16.mxu0 0
  %457 = vmatpush2.bf16.msra.mxu0 %v325
  %458 = vmatprep.subr.bf16.mxu0 0
  %459 = vmatpush2.bf16.msra.mxu0 %v324
  %460 = vmatprep.mubr.bf16.mxu0 %v141
  %461 = vmatmul.mubr.bf16.gmra.mxu0 %v140
  %v462 = vpop.f32.mrf.mxu0
  %v463 = vadd.f32 %v414, %v462
  %v464 = vpop.f32.mrf.mxu0
  %v465 = vpop.f32.mrf.mxu0
  %v466 = vadd.f32 %v417, %v465
  %v467 = vpop.f32.mrf.mxu0
  %468 = vmatprep.mubr.bf16.mxu0 %v146
  %469 = vmatmul.mubr.bf16.gmra.mxu0 %v145
  %v470 = vpop.f32.mrf.mxu0
  %v471 = vadd.f32 %v422, %v470
  %v472 = vpop.f32.mrf.mxu0
  %v473 = vpop.f32.mrf.mxu0
  %v474 = vadd.f32 %v425, %v473
  %v475 = vpop.f32.mrf.mxu0
  %476 = vdwg.mxu0
  %477 = vmatprep.subr.bf16.mxu0 0
  %478 = vmatpush1.bf16.msra.mxu0 0
  %479 = vmatprep.subr.bf16.mxu0 0
  %480 = vmatpush1.bf16.msra.mxu0 0
  %481 = vmatprep.subr.bf16.mxu0 0
  %482 = vmatpush1.bf16.msra.mxu0 0
  %483 = vmatprep.subr.bf16.mxu0 0
  %484 = vmatpush1.bf16.msra.mxu0 0
  %485 = vmatprep.subr.bf16.mxu0 0
  %486 = vmatpush1.bf16.msra.mxu0 %v335
  %487 = vmatprep.subr.bf16.mxu0 0
  %488 = vmatpush1.bf16.msra.mxu0 %v334
  %489 = vmatprep.subr.bf16.mxu0 0
  %490 = vmatpush1.bf16.msra.mxu0 %v333
  %491 = vmatprep.subr.bf16.mxu0 0
  %492 = vmatpush1.bf16.msra.mxu0 %v332
  %493 = vmatprep.subr.bf16.mxu0 0
  %494 = vmatpush2.bf16.msra.mxu0 0
  %495 = vmatprep.subr.bf16.mxu0 0
  %496 = vmatpush2.bf16.msra.mxu0 0
  %497 = vmatprep.subr.bf16.mxu0 0
  %498 = vmatpush2.bf16.msra.mxu0 0
  %499 = vmatprep.subr.bf16.mxu0 0
  %500 = vmatpush2.bf16.msra.mxu0 0
  %501 = vmatprep.subr.bf16.mxu0 0
  %502 = vmatpush2.bf16.msra.mxu0 0
  %503 = vmatprep.subr.bf16.mxu0 0
  %504 = vmatpush2.bf16.msra.mxu0 0
  %505 = vmatprep.subr.bf16.mxu0 0
  %506 = vmatpush2.bf16.msra.mxu0 0
  %507 = vmatprep.subr.bf16.mxu0 0
  %508 = vmatpush2.bf16.msra.mxu0 0
  %509 = vmatprep.mubr.bf16.mxu0 0
  %510 = vmatmul.mubr.bf16.gmra.mxu0 %v374
  %v511 = vpop.f32.mrf.mxu0
  %v512 = vadd.f32 %v463, %v511
  %v513 = vpop.f32.mrf.mxu0
  %v514 = vpop.f32.mrf.mxu0
  %v515 = vadd.f32 %v466, %v514
  %v516 = vpop.f32.mrf.mxu0
  %517 = vmatprep.mubr.bf16.mxu0 0
  %518 = vmatmul.mubr.bf16.gmra.mxu0 %v377
  %v519 = vpop.f32.mrf.mxu0
  %v520 = vadd.f32 %v471, %v519
  %v521 = vpop.f32.mrf.mxu0
  %v522 = vpop.f32.mrf.mxu0
  %v523 = vadd.f32 %v474, %v522
  %v524 = vpop.f32.mrf.mxu0
  %525 = vdwg.mxu0
  %v526 = vmax.f32 %v512, 0.0
  %v527 = vmax.f32 %v515, 0.0
  %v528 = vmax.f32 %v520, 0.0
  %v529 = vmax.f32 %v523, 0.0
  %530 = vst.msk [vmem:[%s3] sm:$0xff] %vm372, %v526
  %531 = vst.msk [vmem:[%s3 + $0x8] sm:$0xff] %vm372, %v527
  %532 = vst.msk [vmem:[%s3 + $0x10] sm:$0xff] %vm372, %v528
  %533 = vst.msk [vmem:[%s3 + $0x18] sm:$0xff] %vm372, %v529
  // Predicated region
  $region14: #{resnet14_forward.25} parent=0 // pred_check
    _
  $region15: #{resnet14_forward.25} parent=0 // pred_check_branch
    %535 = sbr.rel (0) target = $region17
  $region16: #{resnet14_forward.25} parent=0 // pred_region
    _
  $region17: #{resnet14_forward.25} parent=0 // pred_fallthru
    _
  // Predicated region
  $region18: #{resnet14_forward.25} parent=0 // pred_check
    _
  $region19: #{resnet14_forward.25} parent=0 // pred_check_branch
    %537 = sbr.rel (0) target = $region21
  $region20: #{resnet14_forward.25} parent=0 // pred_region
    _
  $region21: #{resnet14_forward.25} parent=0 // pred_fallthru
    _

// kernel: resnet14_forward.27
$region0: #{resnet14_forward.27}
  #allocation0 [shape = 'u32[]', space=smem, size = 0x4, offset = 0x4, fixed_abs, tag = 'smem constant byte address 0x4 - core index']
  #allocation1 [shape = 'u32[144,128]{1,0:T(1,128)}', space=vmem, size = 0x12000, scoped, tag = 'internal scratch']
  %s0 = inlined_call_operand.vmem [shape: f32[32,64], index: 0, kind: input, shape index: {}]
  %s1 = inlined_call_operand.vmem [shape: f32[2,32], index: 1, kind: input, shape index: {}]
  %s2 = inlined_call_operand.vmem [shape: f32[64,10], index: 2, kind: input, shape index: {}]
  %s3 = inlined_call_operand.vmem [shape: f32[1,10], index: 3, kind: input, shape index: {}]
  %s4 = inlined_call_operand.hbm [shape: f32[2,10], index: 4, kind: output, shape index: {}]
  %s5 = sld [smem:[#allocation0]]
  $region26: #{resnet14_forward.27} parent=0
    _
  %s7 = ssub.s32 1, %s5
  %s8 = scalar_select 0, %s7, %s5
  $region1: #{resnet14_forward.27} parent=0
    #allocation2 [shape = 'u8[1024]{0}', space=vmem, size = 0x400, scoped, tag = 'output window, operand 0, single buffered']
    #allocation3 [shape = 's32[1]{0}', space=sflag, size = 0x4, scoped, tag = 'scoped memory for resnet14_forward.27']
    %9 = vsyncpa [#allocation3], 0
    // Predicated region
    $region2: #{resnet14_forward.27} parent=1 // pred_check
      _
    $region3: #{resnet14_forward.27} parent=1 // pred_check_branch
      %11 = sbr.rel (0) target = $region5
    $region4: #{resnet14_forward.27} parent=1 // pred_region
      _
    $region5: #{resnet14_forward.27} parent=1 // pred_fallthru
      _
    // Predicated region
    $region6: #{resnet14_forward.27} parent=1 // pred_check
      _
    $region7: #{resnet14_forward.27} parent=1 // pred_check_branch
      %13 = sbr.rel (0) target = $region9
    $region8: #{resnet14_forward.27} parent=1 // pred_region
      _
    $region9: #{resnet14_forward.27} parent=1 // pred_fallthru
      _
    // Predicated region
    $region10: #{resnet14_forward.27} parent=1 // pred_check
      _
    $region11: #{resnet14_forward.27} parent=1 // pred_check_branch
      %15 = sbr.rel (0) target = $region13
    $region12: #{resnet14_forward.27} parent=1 // pred_region
      _
    $region13: #{resnet14_forward.27} parent=1 // pred_fallthru
      _
    // Predicated region
    $region14: #{resnet14_forward.27} parent=1 // pred_check
      _
    $region15: #{resnet14_forward.27} parent=1 // pred_check_branch
      %17 = sbr.rel (0) target = $region17
    $region16: #{resnet14_forward.27} parent=1 // pred_region
      _
    $region17: #{resnet14_forward.27} parent=1 // pred_fallthru
      _
    %v18 = vld [vmem:[%s1] sm:$0x3]
    %v19 = vld [vmem:[%s0] sm:$0xff]
    %v20 = vld [vmem:[%s0 + $0x8] sm:$0xff]
    %v21 = vld [vmem:[%s0 + $0x10] sm:$0xff]
    %v22 = vld [vmem:[%s0 + $0x18] sm:$0xff]
    %vm23 = vcmask 261120
    %v25 = vsel %vm23, %v18, 0
    %27 = vmatprep.subr.mxu0 0.0
    %28 = vmatpush1.msra.mxu0 0.0
    %29 = vmatprep.subr.mxu0 0.0
    %30 = vmatpush1.msra.mxu0 0.0
    %31 = vmatprep.subr.mxu0 0.0
    %32 = vmatpush1.msra.mxu0 0.0
    %33 = vmatprep.subr.mxu0 0.0
    %34 = vmatpush1.msra.mxu0 0.0
    %35 = vmatprep.subr.mxu0 0.0
    %36 = vmatpush1.msra.mxu0 0.0
    %37 = vmatprep.subr.mxu0 0.0
    %38 = vmatpush1.msra.mxu0 0.0
    %39 = vmatprep.subr.mxu0 0.0
    %40 = vmatpush1.msra.mxu0 0.0
    %41 = vmatprep.subr.mxu0 0.0
    %42 = vmatpush1.msra.mxu0 0.0
    %43 = vmatprep.subr.mxu0 0.0
    %44 = vmatpush1.msra.mxu0 0.0
    %45 = vmatprep.subr.mxu0 0.0
    %46 = vmatpush1.msra.mxu0 0.0
    %47 = vmatprep.subr.mxu0 0.0
    %48 = vmatpush1.msra.mxu0 0.0
    %49 = vmatprep.subr.mxu0 0.0
    %50 = vmatpush1.msra.mxu0 0.0
    %51 = vmatprep.subr.mxu0 0.0
    %52 = vmatpush1.msra.mxu0 %v22
    %53 = vmatprep.subr.mxu0 0.0
    %54 = vmatpush1.msra.mxu0 %v21
    %55 = vmatprep.subr.mxu0 0.0
    %56 = vmatpush1.msra.mxu0 %v20
    %57 = vmatprep.subr.mxu0 0.0
    %58 = vmatpush1.msra.mxu0 %v19
    %59 = vmatprep.subr.mxu0 0.0
    %60 = vmatpush2.msra.mxu0 0.0
    %61 = vmatprep.subr.mxu0 0.0
    %62 = vmatpush2.msra.mxu0 0.0
    %63 = vmatprep.subr.mxu0 0.0
    %64 = vmatpush2.msra.mxu0 0.0
    %65 = vmatprep.subr.mxu0 0.0
    %66 = vmatpush2.msra.mxu0 0.0
    %67 = vmatprep.subr.mxu0 0.0
    %68 = vmatpush2.msra.mxu0 0.0
    %69 = vmatprep.subr.mxu0 0.0
    %70 = vmatpush2.msra.mxu0 0.0
    %71 = vmatprep.subr.mxu0 0.0
    %72 = vmatpush2.msra.mxu0 0.0
    %73 = vmatprep.subr.mxu0 0.0
    %74 = vmatpush2.msra.mxu0 0.0
    %75 = vmatprep.subr.mxu0 0.0
    %76 = vmatpush2.msra.mxu0 0.0
    %77 = vmatprep.subr.mxu0 0.0
    %78 = vmatpush2.msra.mxu0 0.0
    %79 = vmatprep.subr.mxu0 0.0
    %80 = vmatpush2.msra.mxu0 0.0
    %81 = vmatprep.subr.mxu0 0.0
    %82 = vmatpush2.msra.mxu0 0.0
    %83 = vmatprep.subr.mxu0 0.0
    %84 = vmatpush2.msra.mxu0 0.0
    %85 = vmatprep.subr.mxu0 0.0
    %86 = vmatpush2.msra.mxu0 0.0
    %87 = vmatprep.subr.mxu0 0.0
    %88 = vmatpush2.msra.mxu0 0.0
    %89 = vmatprep.subr.mxu0 0.0
    %90 = vmatpush2.msra.mxu0 0.0
    %91 = vmatprep.mubr.f32.mxu0 0.0
    %92 = vmatmul.mubr.f32.gmra.mxu0 %v25
    %v93 = vpop.f32.mrf.mxu0
    %v94 = vadd.f32 0.0, %v93
    %v95 = vpop.f32.mrf.mxu0
    %96 = vdwg.mxu0
    %v97 = vld [vmem:[%s2] sm:$0xff]
    %v98 = vld [vmem:[%s2 + $0x8] sm:$0xff]
    %v99 = vld [vmem:[%s2 + $0x10] sm:$0xff]
    %v100 = vld [vmem:[%s2 + $0x18] sm:$0xff]
    %v101 = vld [vmem:[%s2 + $0x20] sm:$0xff]
    %v102 = vld [vmem:[%s2 + $0x28] sm:$0xff]
    %v103 = vld [vmem:[%s2 + $0x30] sm:$0xff]
    %v104 = vld [vmem:[%s2 + $0x38] sm:$0xff]
    %v105 = vld [vmem:[%s3] sm:$0x1]
    %v107 = vlaneseq
    %v108 = vshrl.u32 %v107, 7
    %v109 = vsub.s32 0, %v108
    %v110 = vrot.slane %v105, %v109
    %vm112 = vcmask 523264
    %v114 = vsel %vm112, %v94, 0
    %116 = vmatprep.subr.mxu0 0.0
    %117 = vmatpush1.msra.mxu0 0.0
    %118 = vmatprep.subr.mxu0 0.0
    %119 = vmatpush1.msra.mxu0 0.0
    %120 = vmatprep.subr.mxu0 0.0
    %121 = vmatpush1.msra.mxu0 0.0
    %122 = vmatprep.subr.mxu0 0.0
    %123 = vmatpush1.msra.mxu0 0.0
    %124 = vmatprep.subr.mxu0 0.0
    %125 = vmatpush1.msra.mxu0 0.0
    %126 = vmatprep.subr.mxu0 0.0
    %127 = vmatpush1.msra.mxu0 0.0
    %128 = vmatprep.subr.mxu0 0.0
    %129 = vmatpush1.msra.mxu0 0.0
    %130 = vmatprep.subr.mxu0 0.0
    %131 = vmatpush1.msra.mxu0 0.0
    %132 = vmatprep.subr.mxu0 0.0
    %133 = vmatpush1.msra.mxu0 %v104
    %134 = vmatprep.subr.mxu0 0.0
    %135 = vmatpush1.msra.mxu0 %v103
    %136 = vmatprep.subr.mxu0 0.0
    %137 = vmatpush1.msra.mxu0 %v102
    %138 = vmatprep.subr.mxu0 0.0
    %139 = vmatpush1.msra.mxu0 %v101
    %140 = vmatprep.subr.mxu0 0.0
    %141 = vmatpush1.msra.mxu0 %v100
    %142 = vmatprep.subr.mxu0 0.0
    %143 = vmatpush1.msra.mxu0 %v99
    %144 = vmatprep.subr.mxu0 0.0
    %145 = vmatpush1.msra.mxu0 %v98
    %146 = vmatprep.subr.mxu0 0.0
    %147 = vmatpush1.msra.mxu0 %v97
    %148 = vmatprep.subr.mxu0 0.0
    %149 = vmatpush2.msra.mxu0 0.0
    %150 = vmatprep.subr.mxu0 0.0
    %151 = vmatpush2.msra.mxu0 0.0
    %152 = vmatprep.subr.mxu0 0.0
    %153 = vmatpush2.msra.mxu0 0.0
    %154 = vmatprep.subr.mxu0 0.0
    %155 = vmatpush2.msra.mxu0 0.0
    %156 = vmatprep.subr.mxu0 0.0
    %157 = vmatpush2.msra.mxu0 0.0
    %158 = vmatprep.subr.mxu0 0.0
    %159 = vmatpush2.msra.mxu0 0.0
    %160 = vmatprep.subr.mxu0 0.0
    %161 = vmatpush2.msra.mxu0 0.0
    %162 = vmatprep.subr.mxu0 0.0
    %163 = vmatpush2.msra.mxu0 0.0
    %164 = vmatprep.subr.mxu0 0.0
    %165 = vmatpush2.msra.mxu0 0.0
    %166 = vmatprep.subr.mxu0 0.0
    %167 = vmatpush2.msra.mxu0 0.0
    %168 = vmatprep.subr.mxu0 0.0
    %169 = vmatpush2.msra.mxu0 0.0
    %170 = vmatprep.subr.mxu0 0.0
    %171 = vmatpush2.msra.mxu0 0.0
    %172 = vmatprep.subr.mxu0 0.0
    %173 = vmatpush2.msra.mxu0 0.0
    %174 = vmatprep.subr.mxu0 0.0
    %175 = vmatpush2.msra.mxu0 0.0
    %176 = vmatprep.subr.mxu0 0.0
    %177 = vmatpush2.msra.mxu0 0.0
    %178 = vmatprep.subr.mxu0 0.0
    %179 = vmatpush2.msra.mxu0 0.0
    %180 = vmatprep.mubr.f32.mxu0 0.0
    %181 = vmatmul.mubr.f32.gmra.mxu0 %v114
    %v182 = vpop.f32.mrf.mxu0
    %v183 = vadd.f32 %v110, %v182
    %v184 = vpop.f32.mrf.mxu0
    %185 = vdwg.mxu0
    %vm186 = vcmask 74752
    %187 = vst.msk [vmem:[#allocation2] sm:$0x3] %vm186, %v183
    // Predicated region
    $region18: #{resnet14_forward.27} parent=1 // pred_check
      _
    $region19: #{resnet14_forward.27} parent=1 // pred_check_branch
      %189 = sbr.rel (0) target = $region21
    $region20: #{resnet14_forward.27} parent=1 // pred_region
      %s191 = ssub.s32 32, 32
      %192 = vsyncadd [#allocation3], %s191
      %s194 = sshll.u32 [#allocation2], 4
      %s195 = int_to_ptr.vmem [resolvable:$true] %s194
      %197 = dma.vmem_to_hbm [thread:$0]  %s195, 32, %s4, [#allocation3]
    $region21: #{resnet14_forward.27} parent=1 // pred_fallthru
      _
    // Predicated region
    $region22: #{resnet14_forward.27} parent=1 // pred_check
      _
    $region23: #{resnet14_forward.27} parent=1 // pred_check_branch
      %199 = sbr.rel (0) target = $region25
    $region24: #{resnet14_forward.27} parent=1 // pred_region
      %200 = dma.done [#allocation3], 32
    $region25: #{resnet14_forward.27} parent=1 // pred_fallthru
      _
    %201 = vsyncpa [#allocation3], 1

// kernel: resnet14_forward.26
$region0: #{resnet14_forward.26}
  #allocation0 [shape = 'u32[]', space=smem, size = 0x4, offset = 0x4, fixed_abs, tag = 'smem constant byte address 0x4 - core index']
  #allocation1 [shape = 'u32[144,128]{1,0:T(1,128)}', space=vmem, size = 0x12000, scoped, tag = 'internal scratch']
  %s0 = inlined_call_operand.vmem [shape: bf16[32,640], index: 0, kind: input, shape index: {}]
  %s1 = inlined_call_operand.vmem [shape: bf16[640,64], index: 1, kind: input, shape index: {}]
  %s2 = inlined_call_operand.vmem [shape: f32[1,64], index: 2, kind: input, shape index: {}]
  %s3 = inlined_call_operand.vmem [shape: f32[32,64], index: 3, kind: output, shape index: {}]
  %s4 = sld [smem:[#allocation0]]
  $region22: #{resnet14_forward.26} parent=0
    _
  %s6 = ssub.s32 1, %s4
  %s7 = scalar_select 0, %s6, %s4
  // Predicated region
  $region2: #{resnet14_forward.26} parent=0 // pred_check
    _
  $region3: #{resnet14_forward.26} parent=0 // pred_check_branch
    %9 = sbr.rel (0) target = $region5
  $region4: #{resnet14_forward.26} parent=0 // pred_region
    _
  $region5: #{resnet14_forward.26} parent=0 // pred_fallthru
    _
  // Predicated region
  $region6: #{resnet14_forward.26} parent=0 // pred_check
    _
  $region7: #{resnet14_forward.26} parent=0 // pred_check_branch
    %11 = sbr.rel (0) target = $region9
  $region8: #{resnet14_forward.26} parent=0 // pred_region
    _
  $region9: #{resnet14_forward.26} parent=0 // pred_fallthru
    _
  // Predicated region
  $region10: #{resnet14_forward.26} parent=0 // pred_check
    _
  $region11: #{resnet14_forward.26} parent=0 // pred_check_branch
    %13 = sbr.rel (0) target = $region13
  $region12: #{resnet14_forward.26} parent=0 // pred_region
    _
  $region13: #{resnet14_forward.26} parent=0 // pred_fallthru
    _
  %v15 = vld [vmem:[%s0] sm:$0xff]
  %v16 = vld [vmem:[%s0 + $0x8] sm:$0xff]
  %v17 = vld [vmem:[%s0 + $0x10] sm:$0xf]
  %v18 = vld [vmem:[%s0 + $0x14] sm:$0xff]
  %v19 = vld [vmem:[%s0 + $0x1c] sm:$0xff]
  %v20 = vld [vmem:[%s0 + $0x24] sm:$0xf]
  %v21 = vld [vmem:[%s0 + $0x28] sm:$0xff]
  %v22 = vld [vmem:[%s0 + $0x30] sm:$0xff]
  %v23 = vld [vmem:[%s0 + $0x38] sm:$0xf]
  %v24 = vld [vmem:[%s0 + $0x3c] sm:$0xff]
  %v25 = vld [vmem:[%s0 + $0x44] sm:$0xff]
  %v26 = vld [vmem:[%s0 + $0x4c] sm:$0xf]
  %v27 = vld [vmem:[%s1] sm:$0xf]
  %v28 = vld [vmem:[%s1 + $0x4] sm:$0xf]
  %v29 = vld [vmem:[%s1 + $0x8] sm:$0xf]
  %v30 = vld [vmem:[%s1 + $0xc] sm:$0xf]
  %v31 = vld [vmem:[%s1 + $0x10] sm:$0xf]
  %v32 = vld [vmem:[%s1 + $0x14] sm:$0xf]
  %v33 = vld [vmem:[%s1 + $0x18] sm:$0xf]
  %v34 = vld [vmem:[%s1 + $0x1c] sm:$0xf]
  %v35 = vld [vmem:[%s1 + $0x20] sm:$0xf]
  %v36 = vld [vmem:[%s1 + $0x24] sm:$0xf]
  %v37 = vld [vmem:[%s1 + $0x28] sm:$0xf]
  %v38 = vld [vmem:[%s1 + $0x2c] sm:$0xf]
  %v39 = vld [vmem:[%s1 + $0x30] sm:$0xf]
  %v40 = vld [vmem:[%s1 + $0x34] sm:$0xf]
  %v41 = vld [vmem:[%s1 + $0x38] sm:$0xf]
  %v42 = vld [vmem:[%s1 + $0x3c] sm:$0xf]
  %v43 = vld [vmem:[%s1 + $0x40] sm:$0xf]
  %v44 = vld [vmem:[%s1 + $0x44] sm:$0xf]
  %v45 = vld [vmem:[%s1 + $0x48] sm:$0xf]
  %v46 = vld [vmem:[%s1 + $0x4c] sm:$0xf]
  %v47 = vld [vmem:[%s1 + $0x50] sm:$0xf]
  %v48 = vld [vmem:[%s1 + $0x54] sm:$0xf]
  %v49 = vld [vmem:[%s1 + $0x58] sm:$0xf]
  %v50 = vld [vmem:[%s1 + $0x5c] sm:$0xf]
  %v51 = vld [vmem:[%s1 + $0x60] sm:$0xf]
  %v52 = vld [vmem:[%s1 + $0x64] sm:$0xf]
  %v53 = vld [vmem:[%s1 + $0x68] sm:$0xf]
  %v54 = vld [vmem:[%s1 + $0x6c] sm:$0xf]
  %v55 = vld [vmem:[%s1 + $0x70] sm:$0xf]
  %v56 = vld [vmem:[%s1 + $0x74] sm:$0xf]
  %v57 = vld [vmem:[%s1 + $0x78] sm:$0xf]
  %v58 = vld [vmem:[%s1 + $0x7c] sm:$0xf]
  %v59 = vld [vmem:[%s1 + $0x80] sm:$0xf]
  %v60 = vld [vmem:[%s1 + $0x84] sm:$0xf]
  %v61 = vld [vmem:[%s1 + $0x88] sm:$0xf]
  %v62 = vld [vmem:[%s1 + $0x8c] sm:$0xf]
  %v63 = vld [vmem:[%s1 + $0x90] sm:$0xf]
  %v64 = vld [vmem:[%s1 + $0x94] sm:$0xf]
  %v65 = vld [vmem:[%s1 + $0x98] sm:$0xf]
  %v66 = vld [vmem:[%s1 + $0x9c] sm:$0xf]
  %v67 = vld [vmem:[%s1 + $0xa0] sm:$0xf]
  %v68 = vld [vmem:[%s1 + $0xa4] sm:$0xf]
  %v69 = vld [vmem:[%s1 + $0xa8] sm:$0xf]
  %v70 = vld [vmem:[%s1 + $0xac] sm:$0xf]
  %v71 = vld [vmem:[%s1 + $0xb0] sm:$0xf]
  %v72 = vld [vmem:[%s1 + $0xb4] sm:$0xf]
  %v73 = vld [vmem:[%s1 + $0xb8] sm:$0xf]
  %v74 = vld [vmem:[%s1 + $0xbc] sm:$0xf]
  %v75 = vld [vmem:[%s1 + $0xc0] sm:$0xf]
  %v76 = vld [vmem:[%s1 + $0xc4] sm:$0xf]
  %v77 = vld [vmem:[%s1 + $0xc8] sm:$0xf]
  %v78 = vld [vmem:[%s1 + $0xcc] sm:$0xf]
  %v79 = vld [vmem:[%s1 + $0xd0] sm:$0xf]
  %v80 = vld [vmem:[%s1 + $0xd4] sm:$0xf]
  %v81 = vld [vmem:[%s1 + $0xd8] sm:$0xf]
  %v82 = vld [vmem:[%s1 + $0xdc] sm:$0xf]
  %v83 = vld [vmem:[%s1 + $0xe0] sm:$0xf]
  %v84 = vld [vmem:[%s1 + $0xe4] sm:$0xf]
  %v85 = vld [vmem:[%s1 + $0xe8] sm:$0xf]
  %v86 = vld [vmem:[%s1 + $0xec] sm:$0xf]
  %v87 = vld [vmem:[%s1 + $0xf0] sm:$0xf]
  %v88 = vld [vmem:[%s1 + $0xf4] sm:$0xf]
  %v89 = vld [vmem:[%s1 + $0xf8] sm:$0xf]
  %v90 = vld [vmem:[%s1 + $0xfc] sm:$0xf]
  %v91 = vld [vmem:[%s1 + $0x100] sm:$0xf]
  %v92 = vld [vmem:[%s1 + $0x104] sm:$0xf]
  %v93 = vld [vmem:[%s1 + $0x108] sm:$0xf]
  %v94 = vld [vmem:[%s1 + $0x10c] sm:$0xf]
  %v95 = vld [vmem:[%s1 + $0x110] sm:$0xf]
  %v96 = vld [vmem:[%s1 + $0x114] sm:$0xf]
  %v97 = vld [vmem:[%s1 + $0x118] sm:$0xf]
  %v98 = vld [vmem:[%s1 + $0x11c] sm:$0xf]
  %v99 = vld [vmem:[%s1 + $0x120] sm:$0xf]
  %v100 = vld [vmem:[%s1 + $0x124] sm:$0xf]
  %v101 = vld [vmem:[%s1 + $0x128] sm:$0xf]
  %v102 = vld [vmem:[%s1 + $0x12c] sm:$0xf]
  %v103 = vld [vmem:[%s1 + $0x130] sm:$0xf]
  %v104 = vld [vmem:[%s1 + $0x134] sm:$0xf]
  %v105 = vld [vmem:[%s1 + $0x138] sm:$0xf]
  %v106 = vld [vmem:[%s1 + $0x13c] sm:$0xf]
  %v107 = vld [vmem:[%s2] sm:$0x1]
  %v109 = vlaneseq
  %v110 = vshrl.u32 %v109, 7
  %v111 = vsub.s32 0, %v110
  %v112 = vrot.slane %v107, %v111
  %v126 = vunpack.c.l.b16 %v15
  %v127 = vunpack.c.h.b16 %v15
  %v128 = vunpack.c.l.b16 %v16
  %v129 = vunpack.c.h.b16 %v16
  %v130 = vunpack.c.l.b16 %v17
  %v131 = vunpack.c.l.b16 %v18
  %v132 = vunpack.c.h.b16 %v18
  %v133 = vunpack.c.l.b16 %v19
  %v134 = vunpack.c.h.b16 %v19
  %v135 = vunpack.c.l.b16 %v20
  %v136 = vunpack.c.l.b16 %v21
  %v137 = vunpack.c.h.b16 %v21
  %v138 = vunpack.c.l.b16 %v22
  %v139 = vunpack.c.h.b16 %v22
  %v140 = vunpack.c.l.b16 %v23
  %v141 = vunpack.c.l.b16 %v24
  %v142 = vunpack.c.h.b16 %v24
  %v143 = vunpack.c.l.b16 %v25
  %v144 = vunpack.c.h.b16 %v25
  %v145 = vunpack.c.l.b16 %v26
  %v146 = vpack.c.b16 %v131, %v126
  %v147 = vpack.c.b16 %v132, %v127
  %v148 = vpack.c.b16 %v133, %v128
  %v149 = vpack.c.b16 %v134, %v129
  %v150 = vpack.c.b16 %v135, %v130
  %v151 = vpack.c.b16 %v141, %v136
  %v152 = vpack.c.b16 %v142, %v137
  %v153 = vpack.c.b16 %v143, %v138
  %v154 = vpack.c.b16 %v144, %v139
  %v155 = vpack.c.b16 %v145, %v140
  %v246 = vunpack.c.l.b16 %v27
  %v247 = vunpack.c.l.b16 %v28
  %v248 = vunpack.c.l.b16 %v29
  %v249 = vunpack.c.l.b16 %v30
  %v250 = vunpack.c.l.b16 %v31
  %v251 = vunpack.c.l.b16 %v32
  %v252 = vunpack.c.l.b16 %v33
  %v253 = vunpack.c.l.b16 %v34
  %v254 = vunpack.c.l.b16 %v35
  %v255 = vunpack.c.l.b16 %v36
  %v256 = vunpack.c.l.b16 %v37
  %v257 = vunpack.c.l.b16 %v38
  %v258 = vunpack.c.l.b16 %v39
  %v259 = vunpack.c.l.b16 %v40
  %v260 = vunpack.c.l.b16 %v41
  %v261 = vunpack.c.l.b16 %v42
  %v262 = vunpack.c.l.b16 %v43
  %v263 = vunpack.c.l.b16 %v44
  %v264 = vunpack.c.l.b16 %v45
  %v265 = vunpack.c.l.b16 %v46
  %v266 = vunpack.c.l.b16 %v47
  %v267 = vunpack.c.l.b16 %v48
  %v268 = vunpack.c.l.b16 %v49
  %v269 = vunpack.c.l.b16 %v50
  %v270 = vunpack.c.l.b16 %v51
  %v271 = vunpack.c.l.b16 %v52
  %v272 = vunpack.c.l.b16 %v53
  %v273 = vunpack.c.l.b16 %v54
  %v274 = vunpack.c.l.b16 %v55
  %v275 = vunpack.c.l.b16 %v56
  %v276 = vunpack.c.l.b16 %v57
  %v277 = vunpack.c.l.b16 %v58
  %v278 = vunpack.c.l.b16 %v59
  %v279 = vunpack.c.l.b16 %v60
  %v280 = vunpack.c.l.b16 %v61
  %v281 = vunpack.c.l.b16 %v62
  %v282 = vunpack.c.l.b16 %v63
  %v283 = vunpack.c.l.b16 %v64
  %v284 = vunpack.c.l.b16 %v65
  %v285 = vunpack.c.l.b16 %v66
  %v286 = vunpack.c.l.b16 %v67
  %v287 = vunpack.c.l.b16 %v68
  %v288 = vunpack.c.l.b16 %v69
  %v289 = vunpack.c.l.b16 %v70
  %v290 = vunpack.c.l.b16 %v71
  %v291 = vunpack.c.l.b16 %v72
  %v292 = vunpack.c.l.b16 %v73
  %v293 = vunpack.c.l.b16 %v74
  %v294 = vunpack.c.l.b16 %v75
  %v295 = vunpack.c.l.b16 %v76
  %v296 = vunpack.c.l.b16 %v77
  %v297 = vunpack.c.l.b16 %v78
  %v298 = vunpack.c.l.b16 %v79
  %v299 = vunpack.c.l.b16 %v80
  %v300 = vunpack.c.l.b16 %v81
  %v301 = vunpack.c.l.b16 %v82
  %v302 = vunpack.c.l.b16 %v83
  %v303 = vunpack.c.l.b16 %v84
  %v304 = vunpack.c.l.b16 %v85
  %v305 = vunpack.c.l.b16 %v86
  %v306 = vunpack.c.l.b16 %v87
  %v307 = vunpack.c.l.b16 %v88
  %v308 = vunpack.c.l.b16 %v89
  %v309 = vunpack.c.l.b16 %v90
  %v310 = vunpack.c.l.b16 %v91
  %v311 = vunpack.c.l.b16 %v92
  %v312 = vunpack.c.l.b16 %v93
  %v313 = vunpack.c.l.b16 %v94
  %v314 = vunpack.c.l.b16 %v95
  %v315 = vunpack.c.l.b16 %v96
  %v316 = vunpack.c.l.b16 %v97
  %v317 = vunpack.c.l.b16 %v98
  %v318 = vunpack.c.l.b16 %v99
  %v319 = vunpack.c.l.b16 %v100
  %v320 = vunpack.c.l.b16 %v101
  %v321 = vunpack.c.l.b16 %v102
  %v322 = vunpack.c.l.b16 %v103
  %v323 = vunpack.c.l.b16 %v104
  %v324 = vunpack.c.l.b16 %v105
  %v325 = vunpack.c.l.b16 %v106
  %v326 = vpack.c.b16 %v247, %v246
  %v327 = vpack.c.b16 %v249, %v248
  %v328 = vpack.c.b16 %v251, %v250
  %v329 = vpack.c.b16 %v253, %v252
  %v330 = vpack.c.b16 %v255, %v254
  %v331 = vpack.c.b16 %v257, %v256
  %v332 = vpack.c.b16 %v259, %v258
  %v333 = vpack.c.b16 %v261, %v260
  %v334 = vpack.c.b16 %v263, %v262
  %v335 = vpack.c.b16 %v265, %v264
  %v336 = vpack.c.b16 %v267, %v266
  %v337 = vpack.c.b16 %v269, %v268
  %v338 = vpack.c.b16 %v271, %v270
  %v339 = vpack.c.b16 %v273, %v272
  %v340 = vpack.c.b16 %v275, %v274
  %v341 = vpack.c.b16 %v277, %v276
  %v342 = vpack.c.b16 %v279, %v278
  %v343 = vpack.c.b16 %v281, %v280
  %v344 = vpack.c.b16 %v283, %v282
  %v345 = vpack.c.b16 %v285, %v284
  %v346 = vpack.c.b16 %v287, %v286
  %v347 = vpack.c.b16 %v289, %v288
  %v348 = vpack.c.b16 %v291, %v290
  %v349 = vpack.c.b16 %v293, %v292
  %v350 = vpack.c.b16 %v295, %v294
  %v351 = vpack.c.b16 %v297, %v296
  %v352 = vpack.c.b16 %v299, %v298
  %v353 = vpack.c.b16 %v301, %v300
  %v354 = vpack.c.b16 %v303, %v302
  %v355 = vpack.c.b16 %v305, %v304
  %v356 = vpack.c.b16 %v307, %v306
  %v357 = vpack.c.b16 %v309, %v308
  %v358 = vpack.c.b16 %v311, %v310
  %v359 = vpack.c.b16 %v313, %v312
  %v360 = vpack.c.b16 %v315, %v314
  %v361 = vpack.c.b16 %v317, %v316
  %v362 = vpack.c.b16 %v319, %v318
  %v363 = vpack.c.b16 %v321, %v320
  %v364 = vpack.c.b16 %v323, %v322
  %v365 = vpack.c.b16 %v325, %v324
  %406 = vmatprep.subr.bf16.mxu0 0
  %407 = vmatpush1.bf16.msra.mxu0 %v333
  %408 = vmatprep.subr.bf16.mxu0 0
  %409 = vmatpush1.bf16.msra.mxu0 %v332
  %410 = vmatprep.subr.bf16.mxu0 0
  %411 = vmatpush1.bf16.msra.mxu0 %v331
  %412 = vmatprep.subr.bf16.mxu0 0
  %413 = vmatpush1.bf16.msra.mxu0 %v330
  %414 = vmatprep.subr.bf16.mxu0 0
  %415 = vmatpush1.bf16.msra.mxu0 %v329
  %416 = vmatprep.subr.bf16.mxu0 0
  %417 = vmatpush1.bf16.msra.mxu0 %v328
  %418 = vmatprep.subr.bf16.mxu0 0
  %419 = vmatpush1.bf16.msra.mxu0 %v327
  %420 = vmatprep.subr.bf16.mxu0 0
  %421 = vmatpush1.bf16.msra.mxu0 %v326
  %422 = vmatprep.subr.bf16.mxu0 0
  %423 = vmatpush2.bf16.msra.mxu0 %v341
  %424 = vmatprep.subr.bf16.mxu0 0
  %425 = vmatpush2.bf16.msra.mxu0 %v340
  %426 = vmatprep.subr.bf16.mxu0 0
  %427 = vmatpush2.bf16.msra.mxu0 %v339
  %428 = vmatprep.subr.bf16.mxu0 0
  %429 = vmatpush2.bf16.msra.mxu0 %v338
  %430 = vmatprep.subr.bf16.mxu0 0
  %431 = vmatpush2.bf16.msra.mxu0 %v337
  %432 = vmatprep.subr.bf16.mxu0 0
  %433 = vmatpush2.bf16.msra.mxu0 %v336
  %434 = vmatprep.subr.bf16.mxu0 0
  %435 = vmatpush2.bf16.msra.mxu0 %v335
  %436 = vmatprep.subr.bf16.mxu0 0
  %437 = vmatpush2.bf16.msra.mxu0 %v334
  %438 = vmatprep.mubr.bf16.mxu0 %v147
  %439 = vmatmul.mubr.bf16.gmra.mxu0 %v146
  %v440 = vpop.f32.mrf.mxu0
  %v441 = vadd.f32 %v112, %v440
  %v442 = vpop.f32.mrf.mxu0
  %v443 = vpop.f32.mrf.mxu0
  %v444 = vadd.f32 %v112, %v443
  %v445 = vpop.f32.mrf.mxu0
  %446 = vmatprep.mubr.bf16.mxu0 %v152
  %447 = vmatmul.mubr.bf16.gmra.mxu0 %v151
  %v448 = vpop.f32.mrf.mxu0
  %v449 = vadd.f32 %v112, %v448
  %v450 = vpop.f32.mrf.mxu0
  %v451 = vpop.f32.mrf.mxu0
  %v452 = vadd.f32 %v112, %v451
  %v453 = vpop.f32.mrf.mxu0
  %454 = vdwg.mxu0
  %455 = vmatprep.subr.bf16.mxu0 0
  %456 = vmatpush1.bf16.msra.mxu0 %v349
  %457 = vmatprep.subr.bf16.mxu0 0
  %458 = vmatpush1.bf16.msra.mxu0 %v348
  %459 = vmatprep.subr.bf16.mxu0 0
  %460 = vmatpush1.bf16.msra.mxu0 %v347
  %461 = vmatprep.subr.bf16.mxu0 0
  %462 = vmatpush1.bf16.msra.mxu0 %v346
  %463 = vmatprep.subr.bf16.mxu0 0
  %464 = vmatpush1.bf16.msra.mxu0 %v345
  %465 = vmatprep.subr.bf16.mxu0 0
  %466 = vmatpush1.bf16.msra.mxu0 %v344
  %467 = vmatprep.subr.bf16.mxu0 0
  %468 = vmatpush1.bf16.msra.mxu0 %v343
  %469 = vmatprep.subr.bf16.mxu0 0
  %470 = vmatpush1.bf16.msra.mxu0 %v342
  %471 = vmatprep.subr.bf16.mxu0 0
  %472 = vmatpush2.bf16.msra.mxu0 %v357
  %473 = vmatprep.subr.bf16.mxu0 0
  %474 = vmatpush2.bf16.msra.mxu0 %v356
  %475 = vmatprep.subr.bf16.mxu0 0
  %476 = vmatpush2.bf16.msra.mxu0 %v355
  %477 = vmatprep.subr.bf16.mxu0 0
  %478 = vmatpush2.bf16.msra.mxu0 %v354
  %479 = vmatprep.subr.bf16.mxu0 0
  %480 = vmatpush2.bf16.msra.mxu0 %v353
  %481 = vmatprep.subr.bf16.mxu0 0
  %482 = vmatpush2.bf16.msra.mxu0 %v352
  %483 = vmatprep.subr.bf16.mxu0 0
  %484 = vmatpush2.bf16.msra.mxu0 %v351
  %485 = vmatprep.subr.bf16.mxu0 0
  %486 = vmatpush2.bf16.msra.mxu0 %v350
  %487 = vmatprep.mubr.bf16.mxu0 %v149
  %488 = vmatmul.mubr.bf16.gmra.mxu0 %v148
  %v489 = vpop.f32.mrf.mxu0
  %v490 = vadd.f32 %v441, %v489
  %v491 = vpop.f32.mrf.mxu0
  %v492 = vpop.f32.mrf.mxu0
  %v493 = vadd.f32 %v444, %v492
  %v494 = vpop.f32.mrf.mxu0
  %495 = vmatprep.mubr.bf16.mxu0 %v154
  %496 = vmatmul.mubr.bf16.gmra.mxu0 %v153
  %v497 = vpop.f32.mrf.mxu0
  %v498 = vadd.f32 %v449, %v497
  %v499 = vpop.f32.mrf.mxu0
  %v500 = vpop.f32.mrf.mxu0
  %v501 = vadd.f32 %v452, %v500
  %v502 = vpop.f32.mrf.mxu0
  %503 = vdwg.mxu0
  %504 = vmatprep.subr.bf16.mxu0 0
  %505 = vmatpush1.bf16.msra.mxu0 %v365
  %506 = vmatprep.subr.bf16.mxu0 0
  %507 = vmatpush1.bf16.msra.mxu0 %v364
  %508 = vmatprep.subr.bf16.mxu0 0
  %509 = vmatpush1.bf16.msra.mxu0 %v363
  %510 = vmatprep.subr.bf16.mxu0 0
  %511 = vmatpush1.bf16.msra.mxu0 %v362
  %512 = vmatprep.subr.bf16.mxu0 0
  %513 = vmatpush1.bf16.msra.mxu0 %v361
  %514 = vmatprep.subr.bf16.mxu0 0
  %515 = vmatpush1.bf16.msra.mxu0 %v360
  %516 = vmatprep.subr.bf16.mxu0 0
  %517 = vmatpush1.bf16.msra.mxu0 %v359
  %518 = vmatprep.subr.bf16.mxu0 0
  %519 = vmatpush1.bf16.msra.mxu0 %v358
  %520 = vmatprep.subr.bf16.mxu0 0
  %521 = vmatpush2.bf16.msra.mxu0 0
  %522 = vmatprep.subr.bf16.mxu0 0
  %523 = vmatpush2.bf16.msra.mxu0 0
  %524 = vmatprep.subr.bf16.mxu0 0
  %525 = vmatpush2.bf16.msra.mxu0 0
  %526 = vmatprep.subr.bf16.mxu0 0
  %527 = vmatpush2.bf16.msra.mxu0 0
  %528 = vmatprep.subr.bf16.mxu0 0
  %529 = vmatpush2.bf16.msra.mxu0 0
  %530 = vmatprep.subr.bf16.mxu0 0
  %531 = vmatpush2.bf16.msra.mxu0 0
  %532 = vmatprep.subr.bf16.mxu0 0
  %533 = vmatpush2.bf16.msra.mxu0 0
  %534 = vmatprep.subr.bf16.mxu0 0
  %535 = vmatpush2.bf16.msra.mxu0 0
  %536 = vmatprep.mubr.bf16.mxu0 0
  %537 = vmatmul.mubr.bf16.gmra.mxu0 %v150
  %v538 = vpop.f32.mrf.mxu0
  %v539 = vadd.f32 %v490, %v538
  %v540 = vpop.f32.mrf.mxu0
  %v541 = vpop.f32.mrf.mxu0
  %v542 = vadd.f32 %v493, %v541
  %v543 = vpop.f32.mrf.mxu0
  %544 = vmatprep.mubr.bf16.mxu0 0
  %545 = vmatmul.mubr.bf16.gmra.mxu0 %v155
  %v546 = vpop.f32.mrf.mxu0
  %v547 = vadd.f32 %v498, %v546
  %v548 = vpop.f32.mrf.mxu0
  %v549 = vpop.f32.mrf.mxu0
  %v550 = vadd.f32 %v501, %v549
  %v551 = vpop.f32.mrf.mxu0
  %552 = vdwg.mxu0
  %v553 = vmax.f32 %v539, 0.0
  %v554 = vmax.f32 %v542, 0.0
  %v555 = vmax.f32 %v547, 0.0
  %v556 = vmax.f32 %v550, 0.0
  %vm557 = vcmask 523264
  %558 = vst.msk [vmem:[%s3] sm:$0xff] %vm557, %v553
  %559 = vst.msk [vmem:[%s3 + $0x8] sm:$0xff] %vm557, %v554
  %560 = vst.msk [vmem:[%s3 + $0x10] sm:$0xff] %vm557, %v555
  %561 = vst.msk [vmem:[%s3 + $0x18] sm:$0xff] %vm557, %v556
  // Predicated region
  $region14: #{resnet14_forward.26} parent=0 // pred_check
    _
  $region15: #{resnet14_forward.26} parent=0 // pred_check_branch
    %563 = sbr.rel (0) target = $region17
  $region16: #{resnet14_forward.26} parent=0 // pred_region
    _
  $region17: #{resnet14_forward.26} parent=0 // pred_fallthru
    _
  // Predicated region
  $region18: #{resnet14_forward.26} parent=0 // pred_check
    _
  $region19: #{resnet14_forward.26} parent=0 // pred_check_branch
    %565 = sbr.rel (0) target = $region21
  $region20: #{resnet14_forward.26} parent=0 // pred_region
    _
  $region21: #{resnet14_forward.26} parent=0 // pred_fallthru
    _

</llo_original>
